<compile_context>
chip_gen: v6e
topology: v6e:2x2x1
jax: 0.10.0
libtpu: 0.0.40
codegen_flags: <defaults>
</compile_context>

<pallas_src>
import numpy as np
import jax
import jax.numpy as jnp
from jax.experimental import pallas as pl
from jax.experimental.pallas import tpu as pltpu

VMEM = pl.BlockSpec(memory_space=pltpu.MemorySpace.VMEM)
POOL_PHASES = ((0, 0), (0, 1), (1, 0), (1, 1))


def _phase_max(h, c):
    """Max over 4 pool-phase heads: (R, 4*c) -> (R, c)."""
    return jnp.maximum(jnp.maximum(h[:, 0:c], h[:, c:2 * c]),
                       jnp.maximum(h[:, 2 * c:3 * c], h[:, 3 * c:4 * c]))


# ---------------------------------------------------------------------------
# Kernel 1: full conv encoder (all four conv_blocks) for one batch tile.
# Activation layout inside the kernel: (H, W, nb, C)  -> batch=sublane, C=lane.
# ---------------------------------------------------------------------------
def _encoder_kernel(p_ref, w1_ref, s1_ref, b1_ref,
                    w2_ref, s2_ref, b2_ref,
                    w3_ref, s3_ref, b3_ref,
                    w4_ref, s4_ref, b4_ref, o_ref):
    nb = p_ref.shape[1]

    # ---- block 1: folded conv(1->64) + BN + ReLU + maxpool over 4x4 patches ----
    p2 = p_ref[...].reshape(64 * nb, 16)                       # rows = (y, x, n)
    h1 = jnp.dot(p2, w1_ref[...], preferred_element_type=jnp.float32)
    h1 = jnp.maximum(h1 * s1_ref[...] + b1_ref[...], 0.0)
    a1 = _phase_max(h1, 64).reshape(8, 8, nb, 64)              # pooled 8x8x64, f32

    # ---- block 2: 3x3 conv(64->64) as 9 shifted matmuls + BN + ReLU + pool ----
    zx = jnp.zeros((8, 1, nb, 64), jnp.float32)
    zy = jnp.zeros((1, 10, nb, 64), jnp.float32)
    a1p = jnp.concatenate([zy, jnp.concatenate([zx, a1, zx], axis=1), zy], axis=0)
    w2 = w2_ref[...]                                           # (9, 64, 64) bf16
    acc = jnp.zeros((64 * nb, 64), jnp.float32)
    for dy in range(3):
        for dx in range(3):
            tap = a1p[dy:dy + 8, dx:dx + 8].reshape(64 * nb, 64)
            acc = acc + jnp.dot(tap.astype(jnp.bfloat16), w2[dy * 3 + dx],
                                preferred_element_type=jnp.float32)
    y2 = jnp.maximum(acc * s2_ref[...] + b2_ref[...], 0.0).reshape(8, 8, nb, 64)
    y2 = y2.reshape(4, 2, 8, nb, 64)
    y2 = jnp.maximum(y2[:, 0], y2[:, 1])                       # pool along H
    y2 = y2.reshape(4, 4, 2, nb, 64)
    a2 = jnp.maximum(y2[:, :, 0], y2[:, :, 1])                 # pool along W: (4,4,nb,64)
    a2 = a2.reshape(16, nb, 64)

    # ---- block 3: folded conv+BN+ReLU+pool over the 4x4x64 map ----
    w3 = w3_ref[...]                                           # (16, 64, 1024) bf16
    h3 = jnp.zeros((nb, 1024), jnp.float32)
    for s in range(16):
        h3 = h3 + jnp.dot(a2[s].astype(jnp.bfloat16), w3[s],
                          preferred_element_type=jnp.float32)
    h3 = jnp.maximum(h3 * s3_ref[...] + b3_ref[...], 0.0)
    a3 = _phase_max(h3, 256)                                   # (nb, 256)

    # ---- block 4: folded conv+BN+ReLU+pool over the 2x2x64 map -> embedding ----
    h4 = jnp.dot(a3.astype(jnp.bfloat16), w4_ref[...],
                 preferred_element_type=jnp.float32)
    h4 = jnp.maximum(h4 * s4_ref[...] + b4_ref[...], 0.0)
    o_ref[...] = _phase_max(h4, 64)                            # (nb, 64)


def encoder(patches, params, nb):
    npad = patches.shape[1]
    return pl.pallas_call(
        _encoder_kernel,
        out_shape=jax.ShapeDtypeStruct((npad, 64), jnp.float32),
        grid=(npad // nb,),
        in_specs=[
            pl.BlockSpec((64, nb, 16), lambda i: (0, i, 0)),
            pl.BlockSpec((16, 256), lambda i: (0, 0)),
            pl.BlockSpec((1, 256), lambda i: (0, 0)),
            pl.BlockSpec((1, 256), lambda i: (0, 0)),
            pl.BlockSpec((9, 64, 64), lambda i: (0, 0, 0)),
            pl.BlockSpec((1, 64), lambda i: (0, 0)),
            pl.BlockSpec((1, 64), lambda i: (0, 0)),
            pl.BlockSpec((16, 64, 1024), lambda i: (0, 0, 0)),
            pl.BlockSpec((1, 1024), lambda i: (0, 0)),
            pl.BlockSpec((1, 1024), lambda i: (0, 0)),
            pl.BlockSpec((256, 256), lambda i: (0, 0)),
            pl.BlockSpec((1, 256), lambda i: (0, 0)),
            pl.BlockSpec((1, 256), lambda i: (0, 0)),
        ],
        out_specs=pl.BlockSpec((nb, 64), lambda i: (i, 0)),
        compiler_params=pltpu.CompilerParams(
            dimension_semantics=("parallel",),
            vmem_limit_bytes=32 * 1024 * 1024),
    )(patches,
      params['l1_w'], params['l1_s'], params['l1_b'],
      params['l2_w'], params['l2_s'], params['l2_b'],
      params['l3_w'], params['l3_s'], params['l3_b'],
      params['l4_w'], params['l4_s'], params['l4_b'])


# ---------------------------------------------------------------------------
# Kernel 2: fused VAE head (fc1+relu, fused fc21|fc22, reparameterize,
# fc3+relu, fc4+sigmoid).  mu|logvar packed into one lane-dense 128-wide out.
# ---------------------------------------------------------------------------
def _head_kernel(e_ref, w1_ref, b1_ref, w2_ref, b2_ref, w3_ref, b3_ref,
                 w4_ref, b4_ref, eps_ref, ml_ref, rec_ref):
    e = e_ref[...]
    h1 = jnp.maximum(
        jnp.dot(e, w1_ref[...], preferred_element_type=jnp.float32) + b1_ref[...], 0.0)
    ml = jnp.dot(h1, w2_ref[...], preferred_element_type=jnp.float32) + b2_ref[...]
    mu = ml[:, 0:64]
    logvar = ml[:, 64:128]
    z = eps_ref[...] * jnp.exp(0.5 * logvar) + mu
    h3 = jnp.maximum(
        jnp.dot(z, w3_ref[...], preferred_element_type=jnp.float32) + b3_ref[...], 0.0)
    logits = jnp.dot(h3, w4_ref[...], preferred_element_type=jnp.float32) + b4_ref[...]
    ml_ref[...] = ml
    rec_ref[...] = pl.reciprocal(1.0 + jnp.exp(-logits), approx=True)   # sigmoid


def vae_head(emb, w1, b1, w2, b2, w3, b3, w4, b4, eps):
    bsz = emb.shape[0]
    return pl.pallas_call(
        _head_kernel,
        out_shape=(jax.ShapeDtypeStruct((bsz, 128), jnp.float32),
                   jax.ShapeDtypeStruct((bsz, 64), jnp.float32)),
        in_specs=[VMEM] * 10,
        out_specs=(VMEM, VMEM),
    )(emb, w1, b1, w2, b2, w3, b3, w4, b4, eps)


# ---------------------------------------------------------------------------
# Parameter init + folding (deterministic synthetic weights; BN in eval mode,
# conv bias and running stats folded into per-channel scale/bias).
# ---------------------------------------------------------------------------
def init_params(key):
    keys = jax.random.split(key, 16)
    bn_eps = 1e-5

    def bn_fold(conv_bias):
        gamma = np.ones((64,), np.float32); beta = np.zeros((64,), np.float32)
        mean = np.zeros((64,), np.float32); var = np.ones((64,), np.float32)
        scale = gamma / np.sqrt(var + bn_eps)
        return scale, beta + scale * (conv_bias - mean)

    conv_w, conv_b, cin = [], [], 1
    for i in range(4):
        conv_w.append(np.asarray(jax.random.normal(keys[i], (3, 3, cin, 64))) * 0.1)
        conv_b.append(np.asarray(jax.random.normal(keys[4 + i], (64,))) * 0.05)
        cin = 64
    bns = [bn_fold(conv_b[i]) for i in range(4)]

    # Block 1: fold 3x3 conv (Cin=1) into 4 pool-phase heads over 4x4 patches.
    w1f = np.zeros((16, 256), np.float32)
    for p_i, (py, px) in enumerate(POOL_PHASES):
        for dy in range(3):
            for dx in range(3):
                w1f[(py + dy) * 4 + (px + dx), p_i * 64:(p_i + 1) * 64] = conv_w[0][dy, dx, 0, :]
    s1f, b1f = np.tile(bns[0][0], 4)[None, :], np.tile(bns[0][1], 4)[None, :]

    # Block 2: per-tap (9, 64, 64) weights.
    w2t = conv_w[1].reshape(9, 64, 64)
    s2f, b2f = bns[1][0][None, :], bns[1][1][None, :]

    # Block 3: per-input-position (16, 64, 1024) weights with 4 pool-phase heads.
    w3t = np.zeros((16, 64, 1024), np.float32)
    for p_i, (py, px) in enumerate(POOL_PHASES):
        for yo in range(2):
            for xo in range(2):
                yc, xc = 2 * yo + py, 2 * xo + px
                c0 = p_i * 256 + (yo * 2 + xo) * 64
                for dy in range(3):
                    for dx in range(3):
                        yi, xi = yc + dy - 1, xc + dx - 1
                        if 0 <= yi < 4 and 0 <= xi < 4:
                            w3t[yi * 4 + xi, :, c0:c0 + 64] = conv_w[2][dy, dx]
    s3f, b3f = np.tile(bns[2][0], 16)[None, :], np.tile(bns[2][1], 16)[None, :]

    # Block 4: fold conv over the 2x2x64 map into (256, 4*64) with 4 phase heads.
    w4f = np.zeros((256, 256), np.float32)
    for p_i, (py, px) in enumerate(POOL_PHASES):
        for dy in range(3):
            for dx in range(3):
                yi, xi = py + dy - 1, px + dx - 1
                if 0 <= yi < 2 and 0 <= xi < 2:
                    r0 = (yi * 2 + xi) * 64
                    w4f[r0:r0 + 64, p_i * 64:(p_i + 1) * 64] = conv_w[3][dy, dx]
    s4f, b4f = np.tile(bns[3][0], 4)[None, :], np.tile(bns[3][1], 4)[None, :]

    def linear(k, din, dout):
        kw, kb = jax.random.split(k)
        return (np.asarray(jax.random.normal(kw, (din, dout))) * 0.05,
                np.asarray(jax.random.normal(kb, (1, dout))) * 0.05)

    hw1, hb1 = linear(keys[8], 64, 256)
    hw21, hb21 = linear(keys[9], 256, 64)
    hw22, hb22 = linear(keys[10], 256, 64)
    hw3, hb3 = linear(keys[11], 64, 256)
    hw4, hb4 = linear(keys[12], 256, 64)
    hw2 = np.concatenate([hw21, hw22], axis=1)   # fused fc21|fc22
    hb2 = np.concatenate([hb21, hb22], axis=1)

    j = jnp.asarray
    return dict(
        l1_w=j(w1f), l1_s=j(s1f), l1_b=j(b1f),
        l2_w=j(w2t, dtype=jnp.bfloat16), l2_s=j(s2f), l2_b=j(b2f),
        l3_w=j(w3t, dtype=jnp.bfloat16), l3_s=j(s3f), l3_b=j(b3f),
        l4_w=j(w4f, dtype=jnp.bfloat16), l4_s=j(s4f), l4_b=j(b4f),
        h_w1=j(hw1), h_b1=j(hb1), h_w2=j(hw2), h_b2=j(hb2),
        h_w3=j(hw3), h_b3=j(hb3), h_w4=j(hw4), h_b4=j(hb4),
    )


# ---------------------------------------------------------------------------
# Forward:  forward((x_, label)) -> (emb_x, recon, mu, logvar)
# ---------------------------------------------------------------------------
def _build_patches(x_nchw, npad):
    """Stride-2 4x4 patches around every pooled output position of block 1.
    Returns (64, npad, 16): dims = (spatial y*8+x, image, patch element)."""
    n = x_nchw.shape[0]
    x2 = x_nchw[:, 0, :, :].astype(jnp.float32)
    xp = jnp.pad(x2, ((0, 0), (1, 1), (1, 1)))
    cols = [xp[:, a:a + 16:2, b:b + 16:2] for a in range(4) for b in range(4)]
    p = jnp.stack(cols, axis=-1).reshape(n, 64, 16)
    p = jnp.transpose(p, (1, 0, 2))
    if npad != n:
        p = jnp.pad(p, ((0, 0), (0, npad - n), (0, 0)))
    return p


def vae_forward(params, x_nchw, label, eps):
    n = x_nchw.shape[0]
    nb = min(32, 8 * ((n + 7) // 8))
    npad = ((n + nb - 1) // nb) * nb

    patches = _build_patches(x_nchw, npad)
    emb = encoder(patches, params, nb)[:n]

    # episode-averaging branch from encode() (support batches of 300/100)
    if label == 'support' and n in (300, 100):
        emb = emb.reshape(5, n // 5, 64).mean(axis=0)

    b = emb.shape[0]
    ml, recon = vae_head(emb, params['h_w1'], params['h_b1'], params['h_w2'],
                         params['h_b2'], params['h_w3'], params['h_b3'],
                         params['h_w4'], params['h_b4'], eps[:b])
    mu, logvar = ml[:, 0:64], ml[:, 64:128]
    return emb, recon, mu, logvar


if __name__ == "__main__":
    key = jax.random.PRNGKey(0)
    kp, kx, keps = jax.random.split(key, 3)
    params = init_params(kp)

    # Omniglot-like demo input: batch=2, 1 channel, 16x16 spatial
    # (16 -> 8 -> 4 -> 2 -> 1 after the four conv_block maxpools; fc1 sees 64).
    x = jax.random.normal(kx, (2, 1, 16, 16), jnp.float32)
    label = 'support'
    eps = jax.random.normal(keps, (2, 64), jnp.float32)   # reparameterize noise

    emb_x, recon, mu, logvar = vae_forward(params, x, label, eps)
    jax.block_until_ready((emb_x, recon, mu, logvar))

    assert emb_x.shape == (2, 64)
    assert recon.shape == (2, 64)
    assert mu.shape == (2, 64)
    assert logvar.shape == (2, 64)
    print("KERNEL_OK")
</pallas_src>

<mosaic_0001>
module attributes {stable_mosaic.version = 11 : i64} {
  func.func @_encoder_kernel(%arg0: i32, %arg1: memref<64x8x16xf32, #tpu.memory_space<vmem>>, %arg2: memref<16x256xf32, #tpu.memory_space<vmem>>, %arg3: memref<1x256xf32, #tpu.memory_space<vmem>>, %arg4: memref<1x256xf32, #tpu.memory_space<vmem>>, %arg5: memref<9x64x64xbf16, #tpu.memory_space<vmem>>, %arg6: memref<1x64xf32, #tpu.memory_space<vmem>>, %arg7: memref<1x64xf32, #tpu.memory_space<vmem>>, %arg8: memref<16x64x1024xbf16, #tpu.memory_space<vmem>>, %arg9: memref<1x1024xf32, #tpu.memory_space<vmem>>, %arg10: memref<1x1024xf32, #tpu.memory_space<vmem>>, %arg11: memref<256x256xbf16, #tpu.memory_space<vmem>>, %arg12: memref<1x256xf32, #tpu.memory_space<vmem>>, %arg13: memref<1x256xf32, #tpu.memory_space<vmem>>, %arg14: memref<8x64xf32, #tpu.memory_space<vmem>>) attributes {dimension_semantics = [#tpu.dimension_semantics<parallel>], iteration_bounds = array<i64: 1>, scalar_prefetch = 0 : i64, scratch_operands = 0 : i64, tpu.core_type = #tpu.core_type<tc>, window_params = [{transform_indices = @transform_0, window_bounds = array<i64: 64, 8, 16>}, {pipeline_mode = #tpu.pipeline_mode<synchronous>, transform_indices = @transform_1, window_bounds = array<i64: 16, 256>}, {pipeline_mode = #tpu.pipeline_mode<synchronous>, transform_indices = @transform_2, window_bounds = array<i64: 1, 256>}, {pipeline_mode = #tpu.pipeline_mode<synchronous>, transform_indices = @transform_3, window_bounds = array<i64: 1, 256>}, {pipeline_mode = #tpu.pipeline_mode<synchronous>, transform_indices = @transform_4, window_bounds = array<i64: 9, 64, 64>}, {pipeline_mode = #tpu.pipeline_mode<synchronous>, transform_indices = @transform_5, window_bounds = array<i64: 1, 64>}, {pipeline_mode = #tpu.pipeline_mode<synchronous>, transform_indices = @transform_6, window_bounds = array<i64: 1, 64>}, {pipeline_mode = #tpu.pipeline_mode<synchronous>, transform_indices = @transform_7, window_bounds = array<i64: 16, 64, 1024>}, {pipeline_mode = #tpu.pipeline_mode<synchronous>, transform_indices = @transform_8, window_bounds = array<i64: 1, 1024>}, {pipeline_mode = #tpu.pipeline_mode<synchronous>, transform_indices = @transform_9, window_bounds = array<i64: 1, 1024>}, {pipeline_mode = #tpu.pipeline_mode<synchronous>, transform_indices = @transform_10, window_bounds = array<i64: 256, 256>}, {pipeline_mode = #tpu.pipeline_mode<synchronous>, transform_indices = @transform_11, window_bounds = array<i64: 1, 256>}, {pipeline_mode = #tpu.pipeline_mode<synchronous>, transform_indices = @transform_12, window_bounds = array<i64: 1, 256>}, {transform_indices = @transform_13, window_bounds = array<i64: 8, 64>}]} {
    %c0 = arith.constant 0 : index
    %c0_0 = arith.constant 0 : index
    %c0_1 = arith.constant 0 : index
    %0 = vector.load %arg1[%c0, %c0_0, %c0_1] : memref<64x8x16xf32, #tpu.memory_space<vmem>>, vector<64x8x16xf32>
    %1 = vector.shape_cast %0 : vector<64x8x16xf32> to vector<512x16xf32>
    %c0_2 = arith.constant 0 : index
    %c0_3 = arith.constant 0 : index
    %2 = vector.load %arg2[%c0_2, %c0_3] : memref<16x256xf32, #tpu.memory_space<vmem>>, vector<16x256xf32>
    %cst = arith.constant dense<0.000000e+00> : vector<512x256xf32>
    %3 = tpu.matmul %1, %2, %cst {dimension_numbers = #tpu.dot_dimension_numbers<[1], [0], [0], [1], [0, 0, 1, 1], [], []>} : vector<512x16xf32>, vector<16x256xf32>, vector<512x256xf32> -> vector<512x256xf32>
    %c0_4 = arith.constant 0 : index
    %c0_5 = arith.constant 0 : index
    %4 = vector.load %arg3[%c0_4, %c0_5] : memref<1x256xf32, #tpu.memory_space<vmem>>, vector<1x256xf32>
    %5 = vector.broadcast %4 : vector<1x256xf32> to vector<512x256xf32>
    %6 = arith.mulf %3, %5 : vector<512x256xf32>
    %c0_6 = arith.constant 0 : index
    %c0_7 = arith.constant 0 : index
    %7 = vector.load %arg4[%c0_6, %c0_7] : memref<1x256xf32, #tpu.memory_space<vmem>>, vector<1x256xf32>
    %8 = vector.broadcast %7 : vector<1x256xf32> to vector<512x256xf32>
    %9 = arith.addf %6, %8 : vector<512x256xf32>
    %cst_8 = arith.constant 0.000000e+00 : f32
    %10 = vector.broadcast %cst_8 : f32 to vector<512x256xf32>
    %11 = arith.maximumf %9, %10 : vector<512x256xf32>
    %12 = vector.extract_strided_slice %11 {offsets = [0, 0], sizes = [512, 64], strides = [1, 1]} : vector<512x256xf32> to vector<512x64xf32>
    %13 = vector.extract_strided_slice %11 {offsets = [0, 64], sizes = [512, 64], strides = [1, 1]} : vector<512x256xf32> to vector<512x64xf32>
    %14 = arith.maximumf %12, %13 : vector<512x64xf32>
    %15 = vector.extract_strided_slice %11 {offsets = [0, 128], sizes = [512, 64], strides = [1, 1]} : vector<512x256xf32> to vector<512x64xf32>
    %16 = vector.extract_strided_slice %11 {offsets = [0, 192], sizes = [512, 64], strides = [1, 1]} : vector<512x256xf32> to vector<512x64xf32>
    %17 = arith.maximumf %15, %16 : vector<512x64xf32>
    %18 = arith.maximumf %14, %17 : vector<512x64xf32>
    %19 = vector.shape_cast %18 : vector<512x64xf32> to vector<8x8x8x64xf32>
    %cst_9 = arith.constant 0.000000e+00 : f32
    %20 = vector.broadcast %cst_9 : f32 to vector<8x1x8x64xf32>
    %cst_10 = arith.constant 0.000000e+00 : f32
    %21 = vector.broadcast %cst_10 : f32 to vector<1x10x8x64xf32>
    %22 = tpu.concatenate %20, %19, %20 in 1 : vector<8x1x8x64xf32>, vector<8x8x8x64xf32>, vector<8x1x8x64xf32> -> vector<8x10x8x64xf32>
    %23 = tpu.concatenate %21, %22, %21 in 0 : vector<1x10x8x64xf32>, vector<8x10x8x64xf32>, vector<1x10x8x64xf32> -> vector<10x10x8x64xf32>
    %c0_11 = arith.constant 0 : index
    %c0_12 = arith.constant 0 : index
    %c0_13 = arith.constant 0 : index
    %24 = vector.load %arg5[%c0_11, %c0_12, %c0_13] : memref<9x64x64xbf16, #tpu.memory_space<vmem>>, vector<9x64x64xbf16>
    %cst_14 = arith.constant 0.000000e+00 : f32
    %25 = vector.broadcast %cst_14 : f32 to vector<512x64xf32>
    %26 = vector.extract_strided_slice %23 {offsets = [0, 0, 0, 0], sizes = [8, 8, 8, 64], strides = [1, 1, 1, 1]} : vector<10x10x8x64xf32> to vector<8x8x8x64xf32>
    %27 = vector.shape_cast %26 : vector<8x8x8x64xf32> to vector<512x64xf32>
    %28 = arith.truncf %27 : vector<512x64xf32> to vector<512x64xbf16>
    %29 = vector.extract_strided_slice %24 {offsets = [0, 0, 0], sizes = [1, 64, 64], strides = [1, 1, 1]} : vector<9x64x64xbf16> to vector<1x64x64xbf16>
    %30 = vector.shape_cast %29 : vector<1x64x64xbf16> to vector<64x64xbf16>
    %cst_15 = arith.constant dense<0.000000e+00> : vector<512x64xf32>
    %31 = tpu.matmul %28, %30, %cst_15 {dimension_numbers = #tpu.dot_dimension_numbers<[1], [0], [0], [1], [0, 0, 1, 1], [], []>} : vector<512x64xbf16>, vector<64x64xbf16>, vector<512x64xf32> -> vector<512x64xf32>
    %32 = arith.addf %25, %31 : vector<512x64xf32>
    %33 = vector.extract_strided_slice %23 {offsets = [0, 1, 0, 0], sizes = [8, 8, 8, 64], strides = [1, 1, 1, 1]} : vector<10x10x8x64xf32> to vector<8x8x8x64xf32>
    %34 = vector.shape_cast %33 : vector<8x8x8x64xf32> to vector<512x64xf32>
    %35 = arith.truncf %34 : vector<512x64xf32> to vector<512x64xbf16>
    %36 = vector.extract_strided_slice %24 {offsets = [1, 0, 0], sizes = [1, 64, 64], strides = [1, 1, 1]} : vector<9x64x64xbf16> to vector<1x64x64xbf16>
    %37 = vector.shape_cast %36 : vector<1x64x64xbf16> to vector<64x64xbf16>
    %cst_16 = arith.constant dense<0.000000e+00> : vector<512x64xf32>
    %38 = tpu.matmul %35, %37, %cst_16 {dimension_numbers = #tpu.dot_dimension_numbers<[1], [0], [0], [1], [0, 0, 1, 1], [], []>} : vector<512x64xbf16>, vector<64x64xbf16>, vector<512x64xf32> -> vector<512x64xf32>
    %39 = arith.addf %32, %38 : vector<512x64xf32>
    %40 = vector.extract_strided_slice %23 {offsets = [0, 2, 0, 0], sizes = [8, 8, 8, 64], strides = [1, 1, 1, 1]} : vector<10x10x8x64xf32> to vector<8x8x8x64xf32>
    %41 = vector.shape_cast %40 : vector<8x8x8x64xf32> to vector<512x64xf32>
    %42 = arith.truncf %41 : vector<512x64xf32> to vector<512x64xbf16>
    %43 = vector.extract_strided_slice %24 {offsets = [2, 0, 0], sizes = [1, 64, 64], strides = [1, 1, 1]} : vector<9x64x64xbf16> to vector<1x64x64xbf16>
    %44 = vector.shape_cast %43 : vector<1x64x64xbf16> to vector<64x64xbf16>
    %cst_17 = arith.constant dense<0.000000e+00> : vector<512x64xf32>
    %45 = tpu.matmul %42, %44, %cst_17 {dimension_numbers = #tpu.dot_dimension_numbers<[1], [0], [0], [1], [0, 0, 1, 1], [], []>} : vector<512x64xbf16>, vector<64x64xbf16>, vector<512x64xf32> -> vector<512x64xf32>
    %46 = arith.addf %39, %45 : vector<512x64xf32>
    %47 = vector.extract_strided_slice %23 {offsets = [1, 0, 0, 0], sizes = [8, 8, 8, 64], strides = [1, 1, 1, 1]} : vector<10x10x8x64xf32> to vector<8x8x8x64xf32>
    %48 = vector.shape_cast %47 : vector<8x8x8x64xf32> to vector<512x64xf32>
    %49 = arith.truncf %48 : vector<512x64xf32> to vector<512x64xbf16>
    %50 = vector.extract_strided_slice %24 {offsets = [3, 0, 0], sizes = [1, 64, 64], strides = [1, 1, 1]} : vector<9x64x64xbf16> to vector<1x64x64xbf16>
    %51 = vector.shape_cast %50 : vector<1x64x64xbf16> to vector<64x64xbf16>
    %cst_18 = arith.constant dense<0.000000e+00> : vector<512x64xf32>
    %52 = tpu.matmul %49, %51, %cst_18 {dimension_numbers = #tpu.dot_dimension_numbers<[1], [0], [0], [1], [0, 0, 1, 1], [], []>} : vector<512x64xbf16>, vector<64x64xbf16>, vector<512x64xf32> -> vector<512x64xf32>
    %53 = arith.addf %46, %52 : vector<512x64xf32>
    %54 = vector.extract_strided_slice %23 {offsets = [1, 1, 0, 0], sizes = [8, 8, 8, 64], strides = [1, 1, 1, 1]} : vector<10x10x8x64xf32> to vector<8x8x8x64xf32>
    %55 = vector.shape_cast %54 : vector<8x8x8x64xf32> to vector<512x64xf32>
    %56 = arith.truncf %55 : vector<512x64xf32> to vector<512x64xbf16>
    %57 = vector.extract_strided_slice %24 {offsets = [4, 0, 0], sizes = [1, 64, 64], strides = [1, 1, 1]} : vector<9x64x64xbf16> to vector<1x64x64xbf16>
    %58 = vector.shape_cast %57 : vector<1x64x64xbf16> to vector<64x64xbf16>
    %cst_19 = arith.constant dense<0.000000e+00> : vector<512x64xf32>
    %59 = tpu.matmul %56, %58, %cst_19 {dimension_numbers = #tpu.dot_dimension_numbers<[1], [0], [0], [1], [0, 0, 1, 1], [], []>} : vector<512x64xbf16>, vector<64x64xbf16>, vector<512x64xf32> -> vector<512x64xf32>
    %60 = arith.addf %53, %59 : vector<512x64xf32>
    %61 = vector.extract_strided_slice %23 {offsets = [1, 2, 0, 0], sizes = [8, 8, 8, 64], strides = [1, 1, 1, 1]} : vector<10x10x8x64xf32> to vector<8x8x8x64xf32>
    %62 = vector.shape_cast %61 : vector<8x8x8x64xf32> to vector<512x64xf32>
    %63 = arith.truncf %62 : vector<512x64xf32> to vector<512x64xbf16>
    %64 = vector.extract_strided_slice %24 {offsets = [5, 0, 0], sizes = [1, 64, 64], strides = [1, 1, 1]} : vector<9x64x64xbf16> to vector<1x64x64xbf16>
    %65 = vector.shape_cast %64 : vector<1x64x64xbf16> to vector<64x64xbf16>
    %cst_20 = arith.constant dense<0.000000e+00> : vector<512x64xf32>
    %66 = tpu.matmul %63, %65, %cst_20 {dimension_numbers = #tpu.dot_dimension_numbers<[1], [0], [0], [1], [0, 0, 1, 1], [], []>} : vector<512x64xbf16>, vector<64x64xbf16>, vector<512x64xf32> -> vector<512x64xf32>
    %67 = arith.addf %60, %66 : vector<512x64xf32>
    %68 = vector.extract_strided_slice %23 {offsets = [2, 0, 0, 0], sizes = [8, 8, 8, 64], strides = [1, 1, 1, 1]} : vector<10x10x8x64xf32> to vector<8x8x8x64xf32>
    %69 = vector.shape_cast %68 : vector<8x8x8x64xf32> to vector<512x64xf32>
    %70 = arith.truncf %69 : vector<512x64xf32> to vector<512x64xbf16>
    %71 = vector.extract_strided_slice %24 {offsets = [6, 0, 0], sizes = [1, 64, 64], strides = [1, 1, 1]} : vector<9x64x64xbf16> to vector<1x64x64xbf16>
    %72 = vector.shape_cast %71 : vector<1x64x64xbf16> to vector<64x64xbf16>
    %cst_21 = arith.constant dense<0.000000e+00> : vector<512x64xf32>
    %73 = tpu.matmul %70, %72, %cst_21 {dimension_numbers = #tpu.dot_dimension_numbers<[1], [0], [0], [1], [0, 0, 1, 1], [], []>} : vector<512x64xbf16>, vector<64x64xbf16>, vector<512x64xf32> -> vector<512x64xf32>
    %74 = arith.addf %67, %73 : vector<512x64xf32>
    %75 = vector.extract_strided_slice %23 {offsets = [2, 1, 0, 0], sizes = [8, 8, 8, 64], strides = [1, 1, 1, 1]} : vector<10x10x8x64xf32> to vector<8x8x8x64xf32>
    %76 = vector.shape_cast %75 : vector<8x8x8x64xf32> to vector<512x64xf32>
    %77 = arith.truncf %76 : vector<512x64xf32> to vector<512x64xbf16>
    %78 = vector.extract_strided_slice %24 {offsets = [7, 0, 0], sizes = [1, 64, 64], strides = [1, 1, 1]} : vector<9x64x64xbf16> to vector<1x64x64xbf16>
    %79 = vector.shape_cast %78 : vector<1x64x64xbf16> to vector<64x64xbf16>
    %cst_22 = arith.constant dense<0.000000e+00> : vector<512x64xf32>
    %80 = tpu.matmul %77, %79, %cst_22 {dimension_numbers = #tpu.dot_dimension_numbers<[1], [0], [0], [1], [0, 0, 1, 1], [], []>} : vector<512x64xbf16>, vector<64x64xbf16>, vector<512x64xf32> -> vector<512x64xf32>
    %81 = arith.addf %74, %80 : vector<512x64xf32>
    %82 = vector.extract_strided_slice %23 {offsets = [2, 2, 0, 0], sizes = [8, 8, 8, 64], strides = [1, 1, 1, 1]} : vector<10x10x8x64xf32> to vector<8x8x8x64xf32>
    %83 = vector.shape_cast %82 : vector<8x8x8x64xf32> to vector<512x64xf32>
    %84 = arith.truncf %83 : vector<512x64xf32> to vector<512x64xbf16>
    %85 = vector.extract_strided_slice %24 {offsets = [8, 0, 0], sizes = [1, 64, 64], strides = [1, 1, 1]} : vector<9x64x64xbf16> to vector<1x64x64xbf16>
    %86 = vector.shape_cast %85 : vector<1x64x64xbf16> to vector<64x64xbf16>
    %cst_23 = arith.constant dense<0.000000e+00> : vector<512x64xf32>
    %87 = tpu.matmul %84, %86, %cst_23 {dimension_numbers = #tpu.dot_dimension_numbers<[1], [0], [0], [1], [0, 0, 1, 1], [], []>} : vector<512x64xbf16>, vector<64x64xbf16>, vector<512x64xf32> -> vector<512x64xf32>
    %88 = arith.addf %81, %87 : vector<512x64xf32>
    %c0_24 = arith.constant 0 : index
    %c0_25 = arith.constant 0 : index
    %89 = vector.load %arg6[%c0_24, %c0_25] : memref<1x64xf32, #tpu.memory_space<vmem>>, vector<1x64xf32>
    %90 = vector.broadcast %89 : vector<1x64xf32> to vector<512x64xf32>
    %91 = arith.mulf %88, %90 : vector<512x64xf32>
    %c0_26 = arith.constant 0 : index
    %c0_27 = arith.constant 0 : index
    %92 = vector.load %arg7[%c0_26, %c0_27] : memref<1x64xf32, #tpu.memory_space<vmem>>, vector<1x64xf32>
    %93 = vector.broadcast %92 : vector<1x64xf32> to vector<512x64xf32>
    %94 = arith.addf %91, %93 : vector<512x64xf32>
    %cst_28 = arith.constant 0.000000e+00 : f32
    %95 = vector.broadcast %cst_28 : f32 to vector<512x64xf32>
    %96 = arith.maximumf %94, %95 : vector<512x64xf32>
    %97 = vector.shape_cast %96 : vector<512x64xf32> to vector<8x8x8x64xf32>
    %98 = vector.shape_cast %97 : vector<8x8x8x64xf32> to vector<4x2x8x8x64xf32>
    %99 = vector.extract_strided_slice %98 {offsets = [0, 0, 0, 0, 0], sizes = [4, 1, 8, 8, 64], strides = [1, 1, 1, 1, 1]} : vector<4x2x8x8x64xf32> to vector<4x1x8x8x64xf32>
    %100 = vector.shape_cast %99 : vector<4x1x8x8x64xf32> to vector<4x8x8x64xf32>
    %101 = vector.extract_strided_slice %98 {offsets = [0, 1, 0, 0, 0], sizes = [4, 1, 8, 8, 64], strides = [1, 1, 1, 1, 1]} : vector<4x2x8x8x64xf32> to vector<4x1x8x8x64xf32>
    %102 = vector.shape_cast %101 : vector<4x1x8x8x64xf32> to vector<4x8x8x64xf32>
    %103 = arith.maximumf %100, %102 : vector<4x8x8x64xf32>
    %104 = vector.shape_cast %103 : vector<4x8x8x64xf32> to vector<4x4x2x8x64xf32>
    %105 = vector.extract_strided_slice %104 {offsets = [0, 0, 0, 0, 0], sizes = [4, 4, 1, 8, 64], strides = [1, 1, 1, 1, 1]} : vector<4x4x2x8x64xf32> to vector<4x4x1x8x64xf32>
    %106 = vector.shape_cast %105 : vector<4x4x1x8x64xf32> to vector<4x4x8x64xf32>
    %107 = vector.extract_strided_slice %104 {offsets = [0, 0, 1, 0, 0], sizes = [4, 4, 1, 8, 64], strides = [1, 1, 1, 1, 1]} : vector<4x4x2x8x64xf32> to vector<4x4x1x8x64xf32>
    %108 = vector.shape_cast %107 : vector<4x4x1x8x64xf32> to vector<4x4x8x64xf32>
    %109 = arith.maximumf %106, %108 : vector<4x4x8x64xf32>
    %110 = vector.shape_cast %109 : vector<4x4x8x64xf32> to vector<16x8x64xf32>
    %c0_29 = arith.constant 0 : index
    %c0_30 = arith.constant 0 : index
    %c0_31 = arith.constant 0 : index
    %111 = vector.load %arg8[%c0_29, %c0_30, %c0_31] : memref<16x64x1024xbf16, #tpu.memory_space<vmem>>, vector<16x64x1024xbf16>
    %cst_32 = arith.constant 0.000000e+00 : f32
    %112 = vector.broadcast %cst_32 : f32 to vector<8x1024xf32>
    %113 = vector.extract_strided_slice %110 {offsets = [0, 0, 0], sizes = [1, 8, 64], strides = [1, 1, 1]} : vector<16x8x64xf32> to vector<1x8x64xf32>
    %114 = vector.shape_cast %113 : vector<1x8x64xf32> to vector<8x64xf32>
    %115 = arith.truncf %114 : vector<8x64xf32> to vector<8x64xbf16>
    %116 = vector.extract_strided_slice %111 {offsets = [0, 0, 0], sizes = [1, 64, 1024], strides = [1, 1, 1]} : vector<16x64x1024xbf16> to vector<1x64x1024xbf16>
    %117 = vector.shape_cast %116 : vector<1x64x1024xbf16> to vector<64x1024xbf16>
    %cst_33 = arith.constant dense<0.000000e+00> : vector<8x1024xf32>
    %118 = tpu.matmul %115, %117, %cst_33 {dimension_numbers = #tpu.dot_dimension_numbers<[1], [0], [0], [1], [0, 0, 1, 1], [], []>} : vector<8x64xbf16>, vector<64x1024xbf16>, vector<8x1024xf32> -> vector<8x1024xf32>
    %119 = arith.addf %112, %118 : vector<8x1024xf32>
    %120 = vector.extract_strided_slice %110 {offsets = [1, 0, 0], sizes = [1, 8, 64], strides = [1, 1, 1]} : vector<16x8x64xf32> to vector<1x8x64xf32>
    %121 = vector.shape_cast %120 : vector<1x8x64xf32> to vector<8x64xf32>
    %122 = arith.truncf %121 : vector<8x64xf32> to vector<8x64xbf16>
    %123 = vector.extract_strided_slice %111 {offsets = [1, 0, 0], sizes = [1, 64, 1024], strides = [1, 1, 1]} : vector<16x64x1024xbf16> to vector<1x64x1024xbf16>
    %124 = vector.shape_cast %123 : vector<1x64x1024xbf16> to vector<64x1024xbf16>
    %cst_34 = arith.constant dense<0.000000e+00> : vector<8x1024xf32>
    %125 = tpu.matmul %122, %124, %cst_34 {dimension_numbers = #tpu.dot_dimension_numbers<[1], [0], [0], [1], [0, 0, 1, 1], [], []>} : vector<8x64xbf16>, vector<64x1024xbf16>, vector<8x1024xf32> -> vector<8x1024xf32>
    %126 = arith.addf %119, %125 : vector<8x1024xf32>
    %127 = vector.extract_strided_slice %110 {offsets = [2, 0, 0], sizes = [1, 8, 64], strides = [1, 1, 1]} : vector<16x8x64xf32> to vector<1x8x64xf32>
    %128 = vector.shape_cast %127 : vector<1x8x64xf32> to vector<8x64xf32>
    %129 = arith.truncf %128 : vector<8x64xf32> to vector<8x64xbf16>
    %130 = vector.extract_strided_slice %111 {offsets = [2, 0, 0], sizes = [1, 64, 1024], strides = [1, 1, 1]} : vector<16x64x1024xbf16> to vector<1x64x1024xbf16>
    %131 = vector.shape_cast %130 : vector<1x64x1024xbf16> to vector<64x1024xbf16>
    %cst_35 = arith.constant dense<0.000000e+00> : vector<8x1024xf32>
    %132 = tpu.matmul %129, %131, %cst_35 {dimension_numbers = #tpu.dot_dimension_numbers<[1], [0], [0], [1], [0, 0, 1, 1], [], []>} : vector<8x64xbf16>, vector<64x1024xbf16>, vector<8x1024xf32> -> vector<8x1024xf32>
    %133 = arith.addf %126, %132 : vector<8x1024xf32>
    %134 = vector.extract_strided_slice %110 {offsets = [3, 0, 0], sizes = [1, 8, 64], strides = [1, 1, 1]} : vector<16x8x64xf32> to vector<1x8x64xf32>
    %135 = vector.shape_cast %134 : vector<1x8x64xf32> to vector<8x64xf32>
    %136 = arith.truncf %135 : vector<8x64xf32> to vector<8x64xbf16>
    %137 = vector.extract_strided_slice %111 {offsets = [3, 0, 0], sizes = [1, 64, 1024], strides = [1, 1, 1]} : vector<16x64x1024xbf16> to vector<1x64x1024xbf16>
    %138 = vector.shape_cast %137 : vector<1x64x1024xbf16> to vector<64x1024xbf16>
    %cst_36 = arith.constant dense<0.000000e+00> : vector<8x1024xf32>
    %139 = tpu.matmul %136, %138, %cst_36 {dimension_numbers = #tpu.dot_dimension_numbers<[1], [0], [0], [1], [0, 0, 1, 1], [], []>} : vector<8x64xbf16>, vector<64x1024xbf16>, vector<8x1024xf32> -> vector<8x1024xf32>
    %140 = arith.addf %133, %139 : vector<8x1024xf32>
    %141 = vector.extract_strided_slice %110 {offsets = [4, 0, 0], sizes = [1, 8, 64], strides = [1, 1, 1]} : vector<16x8x64xf32> to vector<1x8x64xf32>
    %142 = vector.shape_cast %141 : vector<1x8x64xf32> to vector<8x64xf32>
    %143 = arith.truncf %142 : vector<8x64xf32> to vector<8x64xbf16>
    %144 = vector.extract_strided_slice %111 {offsets = [4, 0, 0], sizes = [1, 64, 1024], strides = [1, 1, 1]} : vector<16x64x1024xbf16> to vector<1x64x1024xbf16>
    %145 = vector.shape_cast %144 : vector<1x64x1024xbf16> to vector<64x1024xbf16>
    %cst_37 = arith.constant dense<0.000000e+00> : vector<8x1024xf32>
    %146 = tpu.matmul %143, %145, %cst_37 {dimension_numbers = #tpu.dot_dimension_numbers<[1], [0], [0], [1], [0, 0, 1, 1], [], []>} : vector<8x64xbf16>, vector<64x1024xbf16>, vector<8x1024xf32> -> vector<8x1024xf32>
    %147 = arith.addf %140, %146 : vector<8x1024xf32>
    %148 = vector.extract_strided_slice %110 {offsets = [5, 0, 0], sizes = [1, 8, 64], strides = [1, 1, 1]} : vector<16x8x64xf32> to vector<1x8x64xf32>
    %149 = vector.shape_cast %148 : vector<1x8x64xf32> to vector<8x64xf32>
    %150 = arith.truncf %149 : vector<8x64xf32> to vector<8x64xbf16>
    %151 = vector.extract_strided_slice %111 {offsets = [5, 0, 0], sizes = [1, 64, 1024], strides = [1, 1, 1]} : vector<16x64x1024xbf16> to vector<1x64x1024xbf16>
    %152 = vector.shape_cast %151 : vector<1x64x1024xbf16> to vector<64x1024xbf16>
    %cst_38 = arith.constant dense<0.000000e+00> : vector<8x1024xf32>
    %153 = tpu.matmul %150, %152, %cst_38 {dimension_numbers = #tpu.dot_dimension_numbers<[1], [0], [0], [1], [0, 0, 1, 1], [], []>} : vector<8x64xbf16>, vector<64x1024xbf16>, vector<8x1024xf32> -> vector<8x1024xf32>
    %154 = arith.addf %147, %153 : vector<8x1024xf32>
    %155 = vector.extract_strided_slice %110 {offsets = [6, 0, 0], sizes = [1, 8, 64], strides = [1, 1, 1]} : vector<16x8x64xf32> to vector<1x8x64xf32>
    %156 = vector.shape_cast %155 : vector<1x8x64xf32> to vector<8x64xf32>
    %157 = arith.truncf %156 : vector<8x64xf32> to vector<8x64xbf16>
    %158 = vector.extract_strided_slice %111 {offsets = [6, 0, 0], sizes = [1, 64, 1024], strides = [1, 1, 1]} : vector<16x64x1024xbf16> to vector<1x64x1024xbf16>
    %159 = vector.shape_cast %158 : vector<1x64x1024xbf16> to vector<64x1024xbf16>
    %cst_39 = arith.constant dense<0.000000e+00> : vector<8x1024xf32>
    %160 = tpu.matmul %157, %159, %cst_39 {dimension_numbers = #tpu.dot_dimension_numbers<[1], [0], [0], [1], [0, 0, 1, 1], [], []>} : vector<8x64xbf16>, vector<64x1024xbf16>, vector<8x1024xf32> -> vector<8x1024xf32>
    %161 = arith.addf %154, %160 : vector<8x1024xf32>
    %162 = vector.extract_strided_slice %110 {offsets = [7, 0, 0], sizes = [1, 8, 64], strides = [1, 1, 1]} : vector<16x8x64xf32> to vector<1x8x64xf32>
    %163 = vector.shape_cast %162 : vector<1x8x64xf32> to vector<8x64xf32>
    %164 = arith.truncf %163 : vector<8x64xf32> to vector<8x64xbf16>
    %165 = vector.extract_strided_slice %111 {offsets = [7, 0, 0], sizes = [1, 64, 1024], strides = [1, 1, 1]} : vector<16x64x1024xbf16> to vector<1x64x1024xbf16>
    %166 = vector.shape_cast %165 : vector<1x64x1024xbf16> to vector<64x1024xbf16>
    %cst_40 = arith.constant dense<0.000000e+00> : vector<8x1024xf32>
    %167 = tpu.matmul %164, %166, %cst_40 {dimension_numbers = #tpu.dot_dimension_numbers<[1], [0], [0], [1], [0, 0, 1, 1], [], []>} : vector<8x64xbf16>, vector<64x1024xbf16>, vector<8x1024xf32> -> vector<8x1024xf32>
    %168 = arith.addf %161, %167 : vector<8x1024xf32>
    %169 = vector.extract_strided_slice %110 {offsets = [8, 0, 0], sizes = [1, 8, 64], strides = [1, 1, 1]} : vector<16x8x64xf32> to vector<1x8x64xf32>
    %170 = vector.shape_cast %169 : vector<1x8x64xf32> to vector<8x64xf32>
    %171 = arith.truncf %170 : vector<8x64xf32> to vector<8x64xbf16>
    %172 = vector.extract_strided_slice %111 {offsets = [8, 0, 0], sizes = [1, 64, 1024], strides = [1, 1, 1]} : vector<16x64x1024xbf16> to vector<1x64x1024xbf16>
    %173 = vector.shape_cast %172 : vector<1x64x1024xbf16> to vector<64x1024xbf16>
    %cst_41 = arith.constant dense<0.000000e+00> : vector<8x1024xf32>
    %174 = tpu.matmul %171, %173, %cst_41 {dimension_numbers = #tpu.dot_dimension_numbers<[1], [0], [0], [1], [0, 0, 1, 1], [], []>} : vector<8x64xbf16>, vector<64x1024xbf16>, vector<8x1024xf32> -> vector<8x1024xf32>
    %175 = arith.addf %168, %174 : vector<8x1024xf32>
    %176 = vector.extract_strided_slice %110 {offsets = [9, 0, 0], sizes = [1, 8, 64], strides = [1, 1, 1]} : vector<16x8x64xf32> to vector<1x8x64xf32>
    %177 = vector.shape_cast %176 : vector<1x8x64xf32> to vector<8x64xf32>
    %178 = arith.truncf %177 : vector<8x64xf32> to vector<8x64xbf16>
    %179 = vector.extract_strided_slice %111 {offsets = [9, 0, 0], sizes = [1, 64, 1024], strides = [1, 1, 1]} : vector<16x64x1024xbf16> to vector<1x64x1024xbf16>
    %180 = vector.shape_cast %179 : vector<1x64x1024xbf16> to vector<64x1024xbf16>
    %cst_42 = arith.constant dense<0.000000e+00> : vector<8x1024xf32>
    %181 = tpu.matmul %178, %180, %cst_42 {dimension_numbers = #tpu.dot_dimension_numbers<[1], [0], [0], [1], [0, 0, 1, 1], [], []>} : vector<8x64xbf16>, vector<64x1024xbf16>, vector<8x1024xf32> -> vector<8x1024xf32>
    %182 = arith.addf %175, %181 : vector<8x1024xf32>
    %183 = vector.extract_strided_slice %110 {offsets = [10, 0, 0], sizes = [1, 8, 64], strides = [1, 1, 1]} : vector<16x8x64xf32> to vector<1x8x64xf32>
    %184 = vector.shape_cast %183 : vector<1x8x64xf32> to vector<8x64xf32>
    %185 = arith.truncf %184 : vector<8x64xf32> to vector<8x64xbf16>
    %186 = vector.extract_strided_slice %111 {offsets = [10, 0, 0], sizes = [1, 64, 1024], strides = [1, 1, 1]} : vector<16x64x1024xbf16> to vector<1x64x1024xbf16>
    %187 = vector.shape_cast %186 : vector<1x64x1024xbf16> to vector<64x1024xbf16>
    %cst_43 = arith.constant dense<0.000000e+00> : vector<8x1024xf32>
    %188 = tpu.matmul %185, %187, %cst_43 {dimension_numbers = #tpu.dot_dimension_numbers<[1], [0], [0], [1], [0, 0, 1, 1], [], []>} : vector<8x64xbf16>, vector<64x1024xbf16>, vector<8x1024xf32> -> vector<8x1024xf32>
    %189 = arith.addf %182, %188 : vector<8x1024xf32>
    %190 = vector.extract_strided_slice %110 {offsets = [11, 0, 0], sizes = [1, 8, 64], strides = [1, 1, 1]} : vector<16x8x64xf32> to vector<1x8x64xf32>
    %191 = vector.shape_cast %190 : vector<1x8x64xf32> to vector<8x64xf32>
    %192 = arith.truncf %191 : vector<8x64xf32> to vector<8x64xbf16>
    %193 = vector.extract_strided_slice %111 {offsets = [11, 0, 0], sizes = [1, 64, 1024], strides = [1, 1, 1]} : vector<16x64x1024xbf16> to vector<1x64x1024xbf16>
    %194 = vector.shape_cast %193 : vector<1x64x1024xbf16> to vector<64x1024xbf16>
    %cst_44 = arith.constant dense<0.000000e+00> : vector<8x1024xf32>
    %195 = tpu.matmul %192, %194, %cst_44 {dimension_numbers = #tpu.dot_dimension_numbers<[1], [0], [0], [1], [0, 0, 1, 1], [], []>} : vector<8x64xbf16>, vector<64x1024xbf16>, vector<8x1024xf32> -> vector<8x1024xf32>
    %196 = arith.addf %189, %195 : vector<8x1024xf32>
    %197 = vector.extract_strided_slice %110 {offsets = [12, 0, 0], sizes = [1, 8, 64], strides = [1, 1, 1]} : vector<16x8x64xf32> to vector<1x8x64xf32>
    %198 = vector.shape_cast %197 : vector<1x8x64xf32> to vector<8x64xf32>
    %199 = arith.truncf %198 : vector<8x64xf32> to vector<8x64xbf16>
    %200 = vector.extract_strided_slice %111 {offsets = [12, 0, 0], sizes = [1, 64, 1024], strides = [1, 1, 1]} : vector<16x64x1024xbf16> to vector<1x64x1024xbf16>
    %201 = vector.shape_cast %200 : vector<1x64x1024xbf16> to vector<64x1024xbf16>
    %cst_45 = arith.constant dense<0.000000e+00> : vector<8x1024xf32>
    %202 = tpu.matmul %199, %201, %cst_45 {dimension_numbers = #tpu.dot_dimension_numbers<[1], [0], [0], [1], [0, 0, 1, 1], [], []>} : vector<8x64xbf16>, vector<64x1024xbf16>, vector<8x1024xf32> -> vector<8x1024xf32>
    %203 = arith.addf %196, %202 : vector<8x1024xf32>
    %204 = vector.extract_strided_slice %110 {offsets = [13, 0, 0], sizes = [1, 8, 64], strides = [1, 1, 1]} : vector<16x8x64xf32> to vector<1x8x64xf32>
    %205 = vector.shape_cast %204 : vector<1x8x64xf32> to vector<8x64xf32>
    %206 = arith.truncf %205 : vector<8x64xf32> to vector<8x64xbf16>
    %207 = vector.extract_strided_slice %111 {offsets = [13, 0, 0], sizes = [1, 64, 1024], strides = [1, 1, 1]} : vector<16x64x1024xbf16> to vector<1x64x1024xbf16>
    %208 = vector.shape_cast %207 : vector<1x64x1024xbf16> to vector<64x1024xbf16>
    %cst_46 = arith.constant dense<0.000000e+00> : vector<8x1024xf32>
    %209 = tpu.matmul %206, %208, %cst_46 {dimension_numbers = #tpu.dot_dimension_numbers<[1], [0], [0], [1], [0, 0, 1, 1], [], []>} : vector<8x64xbf16>, vector<64x1024xbf16>, vector<8x1024xf32> -> vector<8x1024xf32>
    %210 = arith.addf %203, %209 : vector<8x1024xf32>
    %211 = vector.extract_strided_slice %110 {offsets = [14, 0, 0], sizes = [1, 8, 64], strides = [1, 1, 1]} : vector<16x8x64xf32> to vector<1x8x64xf32>
    %212 = vector.shape_cast %211 : vector<1x8x64xf32> to vector<8x64xf32>
    %213 = arith.truncf %212 : vector<8x64xf32> to vector<8x64xbf16>
    %214 = vector.extract_strided_slice %111 {offsets = [14, 0, 0], sizes = [1, 64, 1024], strides = [1, 1, 1]} : vector<16x64x1024xbf16> to vector<1x64x1024xbf16>
    %215 = vector.shape_cast %214 : vector<1x64x1024xbf16> to vector<64x1024xbf16>
    %cst_47 = arith.constant dense<0.000000e+00> : vector<8x1024xf32>
    %216 = tpu.matmul %213, %215, %cst_47 {dimension_numbers = #tpu.dot_dimension_numbers<[1], [0], [0], [1], [0, 0, 1, 1], [], []>} : vector<8x64xbf16>, vector<64x1024xbf16>, vector<8x1024xf32> -> vector<8x1024xf32>
    %217 = arith.addf %210, %216 : vector<8x1024xf32>
    %218 = vector.extract_strided_slice %110 {offsets = [15, 0, 0], sizes = [1, 8, 64], strides = [1, 1, 1]} : vector<16x8x64xf32> to vector<1x8x64xf32>
    %219 = vector.shape_cast %218 : vector<1x8x64xf32> to vector<8x64xf32>
    %220 = arith.truncf %219 : vector<8x64xf32> to vector<8x64xbf16>
    %221 = vector.extract_strided_slice %111 {offsets = [15, 0, 0], sizes = [1, 64, 1024], strides = [1, 1, 1]} : vector<16x64x1024xbf16> to vector<1x64x1024xbf16>
    %222 = vector.shape_cast %221 : vector<1x64x1024xbf16> to vector<64x1024xbf16>
    %cst_48 = arith.constant dense<0.000000e+00> : vector<8x1024xf32>
    %223 = tpu.matmul %220, %222, %cst_48 {dimension_numbers = #tpu.dot_dimension_numbers<[1], [0], [0], [1], [0, 0, 1, 1], [], []>} : vector<8x64xbf16>, vector<64x1024xbf16>, vector<8x1024xf32> -> vector<8x1024xf32>
    %224 = arith.addf %217, %223 : vector<8x1024xf32>
    %c0_49 = arith.constant 0 : index
    %c0_50 = arith.constant 0 : index
    %225 = vector.load %arg9[%c0_49, %c0_50] : memref<1x1024xf32, #tpu.memory_space<vmem>>, vector<1x1024xf32>
    %226 = vector.broadcast %225 : vector<1x1024xf32> to vector<8x1024xf32>
    %227 = arith.mulf %224, %226 : vector<8x1024xf32>
    %c0_51 = arith.constant 0 : index
    %c0_52 = arith.constant 0 : index
    %228 = vector.load %arg10[%c0_51, %c0_52] : memref<1x1024xf32, #tpu.memory_space<vmem>>, vector<1x1024xf32>
    %229 = vector.broadcast %228 : vector<1x1024xf32> to vector<8x1024xf32>
    %230 = arith.addf %227, %229 : vector<8x1024xf32>
    %cst_53 = arith.constant 0.000000e+00 : f32
    %231 = vector.broadcast %cst_53 : f32 to vector<8x1024xf32>
    %232 = arith.maximumf %230, %231 : vector<8x1024xf32>
    %233 = vector.extract_strided_slice %232 {offsets = [0, 0], sizes = [8, 256], strides = [1, 1]} : vector<8x1024xf32> to vector<8x256xf32>
    %234 = vector.extract_strided_slice %232 {offsets = [0, 256], sizes = [8, 256], strides = [1, 1]} : vector<8x1024xf32> to vector<8x256xf32>
    %235 = arith.maximumf %233, %234 : vector<8x256xf32>
    %236 = vector.extract_strided_slice %232 {offsets = [0, 512], sizes = [8, 256], strides = [1, 1]} : vector<8x1024xf32> to vector<8x256xf32>
    %237 = vector.extract_strided_slice %232 {offsets = [0, 768], sizes = [8, 256], strides = [1, 1]} : vector<8x1024xf32> to vector<8x256xf32>
    %238 = arith.maximumf %236, %237 : vector<8x256xf32>
    %239 = arith.maximumf %235, %238 : vector<8x256xf32>
    %240 = arith.truncf %239 : vector<8x256xf32> to vector<8x256xbf16>
    %c0_54 = arith.constant 0 : index
    %c0_55 = arith.constant 0 : index
    %241 = vector.load %arg11[%c0_54, %c0_55] : memref<256x256xbf16, #tpu.memory_space<vmem>>, vector<256x256xbf16>
    %cst_56 = arith.constant dense<0.000000e+00> : vector<8x256xf32>
    %242 = tpu.matmul %240, %241, %cst_56 {dimension_numbers = #tpu.dot_dimension_numbers<[1], [0], [0], [1], [0, 0, 1, 1], [], []>} : vector<8x256xbf16>, vector<256x256xbf16>, vector<8x256xf32> -> vector<8x256xf32>
    %c0_57 = arith.constant 0 : index
    %c0_58 = arith.constant 0 : index
    %243 = vector.load %arg12[%c0_57, %c0_58] : memref<1x256xf32, #tpu.memory_space<vmem>>, vector<1x256xf32>
    %244 = vector.broadcast %243 : vector<1x256xf32> to vector<8x256xf32>
    %245 = arith.mulf %242, %244 : vector<8x256xf32>
    %c0_59 = arith.constant 0 : index
    %c0_60 = arith.constant 0 : index
    %246 = vector.load %arg13[%c0_59, %c0_60] : memref<1x256xf32, #tpu.memory_space<vmem>>, vector<1x256xf32>
    %247 = vector.broadcast %246 : vector<1x256xf32> to vector<8x256xf32>
    %248 = arith.addf %245, %247 : vector<8x256xf32>
    %cst_61 = arith.constant 0.000000e+00 : f32
    %249 = vector.broadcast %cst_61 : f32 to vector<8x256xf32>
    %250 = arith.maximumf %248, %249 : vector<8x256xf32>
    %251 = vector.extract_strided_slice %250 {offsets = [0, 0], sizes = [8, 64], strides = [1, 1]} : vector<8x256xf32> to vector<8x64xf32>
    %252 = vector.extract_strided_slice %250 {offsets = [0, 64], sizes = [8, 64], strides = [1, 1]} : vector<8x256xf32> to vector<8x64xf32>
    %253 = arith.maximumf %251, %252 : vector<8x64xf32>
    %254 = vector.extract_strided_slice %250 {offsets = [0, 128], sizes = [8, 64], strides = [1, 1]} : vector<8x256xf32> to vector<8x64xf32>
    %255 = vector.extract_strided_slice %250 {offsets = [0, 192], sizes = [8, 64], strides = [1, 1]} : vector<8x256xf32> to vector<8x64xf32>
    %256 = arith.maximumf %254, %255 : vector<8x64xf32>
    %257 = arith.maximumf %253, %256 : vector<8x64xf32>
    %c0_62 = arith.constant 0 : index
    %c0_63 = arith.constant 0 : index
    %258 = vector.load %arg14[%c0_62, %c0_63] : memref<8x64xf32, #tpu.memory_space<vmem>>, vector<8x64xf32>
    tpu.vector_store %arg14[%c0_62, %c0_63], %257 {strides = array<i32>} : memref<8x64xf32, #tpu.memory_space<vmem>>, vector<8x64xf32>,
    return
  }
  func.func @transform_0(%arg0: i32) -> (i32, i32, i32) {
    %c0_i32 = arith.constant 0 : i32
    %c0_i32_0 = arith.constant 0 : i32
    %c0_i32_1 = arith.constant 0 : i32
    return %c0_i32, %arg0, %c0_i32_0 : i32, i32, i32
  }
  func.func @transform_1(%arg0: i32) -> (i32, i32) {
    %c0_i32 = arith.constant 0 : i32
    %c0_i32_0 = arith.constant 0 : i32
    %c0_i32_1 = arith.constant 0 : i32
    return %c0_i32, %c0_i32_0 : i32, i32
  }
  func.func @transform_2(%arg0: i32) -> (i32, i32) {
    %c0_i32 = arith.constant 0 : i32
    %c0_i32_0 = arith.constant 0 : i32
    %c0_i32_1 = arith.constant 0 : i32
    return %c0_i32, %c0_i32_0 : i32, i32
  }
  func.func @transform_3(%arg0: i32) -> (i32, i32) {
    %c0_i32 = arith.constant 0 : i32
    %c0_i32_0 = arith.constant 0 : i32
    %c0_i32_1 = arith.constant 0 : i32
    return %c0_i32, %c0_i32_0 : i32, i32
  }
  func.func @transform_4(%arg0: i32) -> (i32, i32, i32) {
    %c0_i32 = arith.constant 0 : i32
    %c0_i32_0 = arith.constant 0 : i32
    %c0_i32_1 = arith.constant 0 : i32
    %c0_i32_2 = arith.constant 0 : i32
    return %c0_i32, %c0_i32_0, %c0_i32_1 : i32, i32, i32
  }
  func.func @transform_5(%arg0: i32) -> (i32, i32) {
    %c0_i32 = arith.constant 0 : i32
    %c0_i32_0 = arith.constant 0 : i32
    %c0_i32_1 = arith.constant 0 : i32
    return %c0_i32, %c0_i32_0 : i32, i32
  }
  func.func @transform_6(%arg0: i32) -> (i32, i32) {
    %c0_i32 = arith.constant 0 : i32
    %c0_i32_0 = arith.constant 0 : i32
    %c0_i32_1 = arith.constant 0 : i32
    return %c0_i32, %c0_i32_0 : i32, i32
  }
  func.func @transform_7(%arg0: i32) -> (i32, i32, i32) {
    %c0_i32 = arith.constant 0 : i32
    %c0_i32_0 = arith.constant 0 : i32
    %c0_i32_1 = arith.constant 0 : i32
    %c0_i32_2 = arith.constant 0 : i32
    return %c0_i32, %c0_i32_0, %c0_i32_1 : i32, i32, i32
  }
  func.func @transform_8(%arg0: i32) -> (i32, i32) {
    %c0_i32 = arith.constant 0 : i32
    %c0_i32_0 = arith.constant 0 : i32
    %c0_i32_1 = arith.constant 0 : i32
    return %c0_i32, %c0_i32_0 : i32, i32
  }
  func.func @transform_9(%arg0: i32) -> (i32, i32) {
    %c0_i32 = arith.constant 0 : i32
    %c0_i32_0 = arith.constant 0 : i32
    %c0_i32_1 = arith.constant 0 : i32
    return %c0_i32, %c0_i32_0 : i32, i32
  }
  func.func @transform_10(%arg0: i32) -> (i32, i32) {
    %c0_i32 = arith.constant 0 : i32
    %c0_i32_0 = arith.constant 0 : i32
    %c0_i32_1 = arith.constant 0 : i32
    return %c0_i32, %c0_i32_0 : i32, i32
  }
  func.func @transform_11(%arg0: i32) -> (i32, i32) {
    %c0_i32 = arith.constant 0 : i32
    %c0_i32_0 = arith.constant 0 : i32
    %c0_i32_1 = arith.constant 0 : i32
    return %c0_i32, %c0_i32_0 : i32, i32
  }
  func.func @transform_12(%arg0: i32) -> (i32, i32) {
    %c0_i32 = arith.constant 0 : i32
    %c0_i32_0 = arith.constant 0 : i32
    %c0_i32_1 = arith.constant 0 : i32
    return %c0_i32, %c0_i32_0 : i32, i32
  }
  func.func @transform_13(%arg0: i32) -> (i32, i32) {
    %c0_i32 = arith.constant 0 : i32
    %c0_i32_0 = arith.constant 0 : i32
    return %arg0, %c0_i32 : i32, i32
  }
}

</mosaic_0001>

<llo_original>
// kernel: tpu_custom_call.1
$region0: #{tpu_custom_call.1}
  #allocation0 [shape = 'u32[]', space=smem, size = 0x4, offset = 0x4, fixed_abs, tag = 'smem constant byte address 0x4 - core index']
  #allocation1 [shape = 'u32[144,128]{1,0:T(1,128)}', space=vmem, size = 0x12000, scoped, tag = 'internal scratch']
  %s0 = inlined_call_operand.vmem [shape: f32[64,8,16], index: 0, kind: input, shape index: {}]
  %s1 = inlined_call_operand.hbm [shape: f32[16,256], index: 1, kind: input, shape index: {}]
  %s2 = inlined_call_operand.hbm [shape: f32[1,256], index: 2, kind: input, shape index: {}]
  %s3 = inlined_call_operand.hbm [shape: f32[1,256], index: 3, kind: input, shape index: {}]
  %s4 = inlined_call_operand.hbm [shape: bf16[9,64,64], index: 4, kind: input, shape index: {}]
  %s5 = inlined_call_operand.hbm [shape: f32[1,64], index: 5, kind: input, shape index: {}]
  %s6 = inlined_call_operand.hbm [shape: f32[1,64], index: 6, kind: input, shape index: {}]
  %s7 = inlined_call_operand.hbm [shape: bf16[16,64,1024], index: 7, kind: input, shape index: {}]
  %s8 = inlined_call_operand.hbm [shape: f32[1,1024], index: 8, kind: input, shape index: {}]
  %s9 = inlined_call_operand.hbm [shape: f32[1,1024], index: 9, kind: input, shape index: {}]
  %s10 = inlined_call_operand.hbm [shape: bf16[256,256], index: 10, kind: input, shape index: {}]
  %s11 = inlined_call_operand.hbm [shape: f32[1,256], index: 11, kind: input, shape index: {}]
  %s12 = inlined_call_operand.hbm [shape: f32[1,256], index: 12, kind: input, shape index: {}]
  %s13 = inlined_call_operand.hbm [shape: f32[8,64], index: 13, kind: output, shape index: {}]
  %s14 = sld [smem:[#allocation0]]
  $region110: #{tpu_custom_call.1} parent=0
    _
  %s16 = ssub.s32 1, %s14
  %s17 = scalar_select 0, %s16, %s14
  $region1: #{tpu_custom_call.1} parent=0
    #allocation2 [shape = 'u8[16384]{0}', space=vmem, size = 0x4000, scoped, tag = 'input window, operand 1, single buffered']
    #allocation3 [shape = 's32[1]{0}', space=sflag, size = 0x4, scoped, tag = 'scoped memory for tpu_custom_call.1']
    #allocation4 [shape = 's32[1]{0}', space=sflag, size = 0x4, scoped, tag = 'scoped memory for tpu_custom_call.1']
    #allocation5 [shape = 'u8[1024]{0}', space=vmem, size = 0x400, scoped, tag = 'input window, operand 2, single buffered']
    #allocation6 [shape = 's32[1]{0}', space=sflag, size = 0x4, scoped, tag = 'scoped memory for tpu_custom_call.1']
    #allocation7 [shape = 'u8[1024]{0}', space=vmem, size = 0x400, scoped, tag = 'input window, operand 3, single buffered']
    #allocation8 [shape = 'u8[147456]{0}', space=vmem, size = 0x24000, scoped, tag = 'input window, operand 4, single buffered']
    #allocation9 [shape = 's32[1]{0}', space=sflag, size = 0x4, scoped, tag = 'scoped memory for tpu_custom_call.1']
    #allocation10 [shape = 'u8[512]{0}', space=vmem, size = 0x400, scoped, tag = 'input window, operand 5, single buffered']
    #allocation11 [shape = 'u8[512]{0}', space=vmem, size = 0x400, scoped, tag = 'input window, operand 6, single buffered']
    #allocation12 [shape = 's32[1]{0}', space=sflag, size = 0x4, scoped, tag = 'scoped memory for tpu_custom_call.1']
    #allocation13 [shape = 'u8[2097152]{0}', space=vmem, size = 0x200000, scoped, tag = 'input window, operand 7, single buffered']
    #allocation14 [shape = 'u8[4096]{0}', space=vmem, size = 0x1000, scoped, tag = 'input window, operand 8, single buffered']
    #allocation15 [shape = 's32[1]{0}', space=sflag, size = 0x4, scoped, tag = 'scoped memory for tpu_custom_call.1']
    #allocation16 [shape = 'u8[4096]{0}', space=vmem, size = 0x1000, scoped, tag = 'input window, operand 9, single buffered']
    #allocation17 [shape = 'u8[131072]{0}', space=vmem, size = 0x20000, scoped, tag = 'input window, operand 10, single buffered']
    #allocation18 [shape = 's32[1]{0}', space=sflag, size = 0x4, scoped, tag = 'scoped memory for tpu_custom_call.1']
    #allocation19 [shape = 'u8[1024]{0}', space=vmem, size = 0x400, scoped, tag = 'input window, operand 11, single buffered']
    #allocation20 [shape = 'u8[1024]{0}', space=vmem, size = 0x400, scoped, tag = 'input window, operand 12, single buffered']
    #allocation21 [shape = 's32[1]{0}', space=sflag, size = 0x4, scoped, tag = 'scoped memory for tpu_custom_call.1']
    #allocation22 [shape = 'u8[4096]{0}', space=vmem, size = 0x1000, scoped, tag = 'output window, operand 0, single buffered']
    %18 = vsyncpa [#allocation3], 0
    %19 = vsyncpa [#allocation6], 0
    %20 = vsyncpa [#allocation9], 0
    %21 = vsyncpa [#allocation12], 0
    %22 = vsyncpa [#allocation15], 0
    %23 = vsyncpa [#allocation18], 0
    %24 = vsyncpa [#allocation21], 0
    %25 = vsyncpa [#allocation4], 0
    // Predicated region
    $region2: #{tpu_custom_call.1} parent=1 // pred_check
      _
    $region3: #{tpu_custom_call.1} parent=1 // pred_check_branch
      %27 = sbr.rel (0) target = $region5
    $region4: #{tpu_custom_call.1} parent=1 // pred_region
      _
    $region5: #{tpu_custom_call.1} parent=1 // pred_fallthru
      _
    // Predicated region
    $region6: #{tpu_custom_call.1} parent=1 // pred_check
      _
    $region7: #{tpu_custom_call.1} parent=1 // pred_check_branch
      %29 = sbr.rel (0) target = $region9
    $region8: #{tpu_custom_call.1} parent=1 // pred_region
      %s31 = ssub.s32 512, 512
      %32 = vsyncadd [#allocation3], %s31
      %s33 = sshll.u32 [#allocation2], 4
      %s34 = int_to_ptr.vmem [resolvable:$true] %s33
      %39 = dma.hbm_to_vmem [thread:$0]  %s1, 512, %s34, [#allocation3], 256, 256, 16
    $region9: #{tpu_custom_call.1} parent=1 // pred_fallthru
      _
    // Predicated region
    $region10: #{tpu_custom_call.1} parent=1 // pred_check
      _
    $region11: #{tpu_custom_call.1} parent=1 // pred_check_branch
      %41 = sbr.rel (0) target = $region13
    $region12: #{tpu_custom_call.1} parent=1 // pred_region
      %s43 = ssub.s32 32, 32
      %44 = vsyncadd [#allocation6], %s43
      %s46 = sshll.u32 [#allocation5], 4
      %s47 = int_to_ptr.vmem [resolvable:$true] %s46
      %49 = dma.hbm_to_vmem [thread:$0]  %s2, 32, %s47, [#allocation6]
    $region13: #{tpu_custom_call.1} parent=1 // pred_fallthru
      _
    // Predicated region
    $region14: #{tpu_custom_call.1} parent=1 // pred_check
      _
    $region15: #{tpu_custom_call.1} parent=1 // pred_check_branch
      %51 = sbr.rel (0) target = $region17
    $region16: #{tpu_custom_call.1} parent=1 // pred_region
      %s53 = ssub.s32 32, 32
      %54 = vsyncadd [#allocation6], %s53
      %s56 = sshll.u32 [#allocation7], 4
      %s57 = int_to_ptr.vmem [resolvable:$true] %s56
      %59 = dma.hbm_to_vmem [thread:$0]  %s3, 32, %s57, [#allocation6]
    $region17: #{tpu_custom_call.1} parent=1 // pred_fallthru
      _
    // Predicated region
    $region18: #{tpu_custom_call.1} parent=1 // pred_check
      _
    $region19: #{tpu_custom_call.1} parent=1 // pred_check_branch
      %61 = sbr.rel (0) target = $region21
    $region20: #{tpu_custom_call.1} parent=1 // pred_region
      %s63 = ssub.s32 4608, 4608
      %64 = vsyncadd [#allocation9], %s63
      %s65 = sshll.u32 [#allocation8], 4
      %s66 = int_to_ptr.vmem [resolvable:$true] %s65
      %71 = dma.hbm_to_vmem [thread:$0]  %s4, 4608, %s66, [#allocation9], 64, 64, 4
    $region21: #{tpu_custom_call.1} parent=1 // pred_fallthru
      _
    // Predicated region
    $region22: #{tpu_custom_call.1} parent=1 // pred_check
      _
    $region23: #{tpu_custom_call.1} parent=1 // pred_check_branch
      %73 = sbr.rel (0) target = $region25
    $region24: #{tpu_custom_call.1} parent=1 // pred_region
      %s75 = ssub.s32 16, 16
      %76 = vsyncadd [#allocation9], %s75
      %s78 = sshll.u32 [#allocation10], 4
      %s79 = int_to_ptr.vmem [resolvable:$true] %s78
      %81 = dma.hbm_to_vmem [thread:$0]  %s5, 16, %s79, [#allocation9]
    $region25: #{tpu_custom_call.1} parent=1 // pred_fallthru
      _
    // Predicated region
    $region26: #{tpu_custom_call.1} parent=1 // pred_check
      _
    $region27: #{tpu_custom_call.1} parent=1 // pred_check_branch
      %83 = sbr.rel (0) target = $region29
    $region28: #{tpu_custom_call.1} parent=1 // pred_region
      %s85 = ssub.s32 16, 16
      %86 = vsyncadd [#allocation12], %s85
      %s88 = sshll.u32 [#allocation11], 4
      %s89 = int_to_ptr.vmem [resolvable:$true] %s88
      %91 = dma.hbm_to_vmem [thread:$0]  %s6, 16, %s89, [#allocation12]
    $region29: #{tpu_custom_call.1} parent=1 // pred_fallthru
      _
    // Predicated region
    $region30: #{tpu_custom_call.1} parent=1 // pred_check
      _
    $region31: #{tpu_custom_call.1} parent=1 // pred_check_branch
      %93 = sbr.rel (0) target = $region33
    $region32: #{tpu_custom_call.1} parent=1 // pred_region
      %s95 = ssub.s32 65536, 65536
      %96 = vsyncadd [#allocation12], %s95
      %s97 = sshll.u32 [#allocation13], 4
      %s98 = int_to_ptr.vmem [resolvable:$true] %s97
      %103 = dma.hbm_to_vmem [thread:$0]  %s7, 65536, %s98, [#allocation12], 512, 512, 32
    $region33: #{tpu_custom_call.1} parent=1 // pred_fallthru
      _
    // Predicated region
    $region34: #{tpu_custom_call.1} parent=1 // pred_check
      _
    $region35: #{tpu_custom_call.1} parent=1 // pred_check_branch
      %105 = sbr.rel (0) target = $region37
    $region36: #{tpu_custom_call.1} parent=1 // pred_region
      %s107 = ssub.s32 128, 128
      %108 = vsyncadd [#allocation15], %s107
      %s110 = sshll.u32 [#allocation14], 4
      %s111 = int_to_ptr.vmem [resolvable:$true] %s110
      %113 = dma.hbm_to_vmem [thread:$0]  %s8, 128, %s111, [#allocation15]
    $region37: #{tpu_custom_call.1} parent=1 // pred_fallthru
      _
    // Predicated region
    $region38: #{tpu_custom_call.1} parent=1 // pred_check
      _
    $region39: #{tpu_custom_call.1} parent=1 // pred_check_branch
      %115 = sbr.rel (0) target = $region41
    $region40: #{tpu_custom_call.1} parent=1 // pred_region
      %s117 = ssub.s32 128, 128
      %118 = vsyncadd [#allocation15], %s117
      %s120 = sshll.u32 [#allocation16], 4
      %s121 = int_to_ptr.vmem [resolvable:$true] %s120
      %123 = dma.hbm_to_vmem [thread:$0]  %s9, 128, %s121, [#allocation15]
    $region41: #{tpu_custom_call.1} parent=1 // pred_fallthru
      _
    // Predicated region
    $region42: #{tpu_custom_call.1} parent=1 // pred_check
      _
    $region43: #{tpu_custom_call.1} parent=1 // pred_check_branch
      %125 = sbr.rel (0) target = $region45
    $region44: #{tpu_custom_call.1} parent=1 // pred_region
      %s127 = ssub.s32 4096, 4096
      %128 = vsyncadd [#allocation18], %s127
      %s129 = sshll.u32 [#allocation17], 4
      %s130 = int_to_ptr.vmem [resolvable:$true] %s129
      %135 = dma.hbm_to_vmem [thread:$0]  %s10, 4096, %s130, [#allocation18], 128, 128, 8
    $region45: #{tpu_custom_call.1} parent=1 // pred_fallthru
      _
    // Predicated region
    $region46: #{tpu_custom_call.1} parent=1 // pred_check
      _
    $region47: #{tpu_custom_call.1} parent=1 // pred_check_branch
      %137 = sbr.rel (0) target = $region49
    $region48: #{tpu_custom_call.1} parent=1 // pred_region
      %s139 = ssub.s32 32, 32
      %140 = vsyncadd [#allocation18], %s139
      %s142 = sshll.u32 [#allocation19], 4
      %s143 = int_to_ptr.vmem [resolvable:$true] %s142
      %145 = dma.hbm_to_vmem [thread:$0]  %s11, 32, %s143, [#allocation18]
    $region49: #{tpu_custom_call.1} parent=1 // pred_fallthru
      _
    // Predicated region
    $region50: #{tpu_custom_call.1} parent=1 // pred_check
      _
    $region51: #{tpu_custom_call.1} parent=1 // pred_check_branch
      %147 = sbr.rel (0) target = $region53
    $region52: #{tpu_custom_call.1} parent=1 // pred_region
      %s149 = ssub.s32 32, 32
      %150 = vsyncadd [#allocation21], %s149
      %s152 = sshll.u32 [#allocation20], 4
      %s153 = int_to_ptr.vmem [resolvable:$true] %s152
      %155 = dma.hbm_to_vmem [thread:$0]  %s12, 32, %s153, [#allocation21]
    $region53: #{tpu_custom_call.1} parent=1 // pred_fallthru
      _
    // Predicated region
    $region54: #{tpu_custom_call.1} parent=1 // pred_check
      _
    $region55: #{tpu_custom_call.1} parent=1 // pred_check_branch
      %157 = sbr.rel (0) target = $region57
    $region56: #{tpu_custom_call.1} parent=1 // pred_region
      %158 = dma.done [#allocation3], 512
    $region57: #{tpu_custom_call.1} parent=1 // pred_fallthru
      _
    // Predicated region
    $region58: #{tpu_custom_call.1} parent=1 // pred_check
      _
    $region59: #{tpu_custom_call.1} parent=1 // pred_check_branch
      %160 = sbr.rel (0) target = $region61
    $region60: #{tpu_custom_call.1} parent=1 // pred_region
      %161 = dma.done [#allocation6], 32
    $region61: #{tpu_custom_call.1} parent=1 // pred_fallthru
      _
    // Predicated region
    $region62: #{tpu_custom_call.1} parent=1 // pred_check
      _
    $region63: #{tpu_custom_call.1} parent=1 // pred_check_branch
      %163 = sbr.rel (0) target = $region65
    $region64: #{tpu_custom_call.1} parent=1 // pred_region
      %164 = dma.done [#allocation6], 32
    $region65: #{tpu_custom_call.1} parent=1 // pred_fallthru
      _
    // Predicated region
    $region66: #{tpu_custom_call.1} parent=1 // pred_check
      _
    $region67: #{tpu_custom_call.1} parent=1 // pred_check_branch
      %166 = sbr.rel (0) target = $region69
    $region68: #{tpu_custom_call.1} parent=1 // pred_region
      %167 = dma.done [#allocation9], 4608
    $region69: #{tpu_custom_call.1} parent=1 // pred_fallthru
      _
    // Predicated region
    $region70: #{tpu_custom_call.1} parent=1 // pred_check
      _
    $region71: #{tpu_custom_call.1} parent=1 // pred_check_branch
      %169 = sbr.rel (0) target = $region73
    $region72: #{tpu_custom_call.1} parent=1 // pred_region
      %170 = dma.done [#allocation9], 16
    $region73: #{tpu_custom_call.1} parent=1 // pred_fallthru
      _
    // Predicated region
    $region74: #{tpu_custom_call.1} parent=1 // pred_check
      _
    $region75: #{tpu_custom_call.1} parent=1 // pred_check_branch
      %172 = sbr.rel (0) target = $region77
    $region76: #{tpu_custom_call.1} parent=1 // pred_region
      %173 = dma.done [#allocation12], 16
    $region77: #{tpu_custom_call.1} parent=1 // pred_fallthru
      _
    // Predicated region
    $region78: #{tpu_custom_call.1} parent=1 // pred_check
      _
    $region79: #{tpu_custom_call.1} parent=1 // pred_check_branch
      %175 = sbr.rel (0) target = $region81
    $region80: #{tpu_custom_call.1} parent=1 // pred_region
      %176 = dma.done [#allocation12], 65536
    $region81: #{tpu_custom_call.1} parent=1 // pred_fallthru
      _
    // Predicated region
    $region82: #{tpu_custom_call.1} parent=1 // pred_check
      _
    $region83: #{tpu_custom_call.1} parent=1 // pred_check_branch
      %178 = sbr.rel (0) target = $region85
    $region84: #{tpu_custom_call.1} parent=1 // pred_region
      %179 = dma.done [#allocation15], 128
    $region85: #{tpu_custom_call.1} parent=1 // pred_fallthru
      _
    // Predicated region
    $region86: #{tpu_custom_call.1} parent=1 // pred_check
      _
    $region87: #{tpu_custom_call.1} parent=1 // pred_check_branch
      %181 = sbr.rel (0) target = $region89
    $region88: #{tpu_custom_call.1} parent=1 // pred_region
      %182 = dma.done [#allocation15], 128
    $region89: #{tpu_custom_call.1} parent=1 // pred_fallthru
      _
    // Predicated region
    $region90: #{tpu_custom_call.1} parent=1 // pred_check
      _
    $region91: #{tpu_custom_call.1} parent=1 // pred_check_branch
      %184 = sbr.rel (0) target = $region93
    $region92: #{tpu_custom_call.1} parent=1 // pred_region
      %185 = dma.done [#allocation18], 4096
    $region93: #{tpu_custom_call.1} parent=1 // pred_fallthru
      _
    // Predicated region
    $region94: #{tpu_custom_call.1} parent=1 // pred_check
      _
    $region95: #{tpu_custom_call.1} parent=1 // pred_check_branch
      %187 = sbr.rel (0) target = $region97
    $region96: #{tpu_custom_call.1} parent=1 // pred_region
      %188 = dma.done [#allocation18], 32
    $region97: #{tpu_custom_call.1} parent=1 // pred_fallthru
      _
    // Predicated region
    $region98: #{tpu_custom_call.1} parent=1 // pred_check
      _
    $region99: #{tpu_custom_call.1} parent=1 // pred_check_branch
      %190 = sbr.rel (0) target = $region101
    $region100: #{tpu_custom_call.1} parent=1 // pred_region
      %191 = dma.done [#allocation21], 32
    $region101: #{tpu_custom_call.1} parent=1 // pred_fallthru
      _
    %v193 = vld [vmem:[%s0] sm:$0xff]
    %v194 = vld [vmem:[%s0 + $0x8] sm:$0xff]
    %v195 = vld [vmem:[%s0 + $0x10] sm:$0xff]
    %v196 = vld [vmem:[%s0 + $0x18] sm:$0xff]
    %v197 = vld [vmem:[%s0 + $0x20] sm:$0xff]
    %v198 = vld [vmem:[%s0 + $0x28] sm:$0xff]
    %v199 = vld [vmem:[%s0 + $0x30] sm:$0xff]
    %v200 = vld [vmem:[%s0 + $0x38] sm:$0xff]
    %v201 = vld [vmem:[%s0 + $0x40] sm:$0xff]
    %v202 = vld [vmem:[%s0 + $0x48] sm:$0xff]
    %v203 = vld [vmem:[%s0 + $0x50] sm:$0xff]
    %v204 = vld [vmem:[%s0 + $0x58] sm:$0xff]
    %v205 = vld [vmem:[%s0 + $0x60] sm:$0xff]
    %v206 = vld [vmem:[%s0 + $0x68] sm:$0xff]
    %v207 = vld [vmem:[%s0 + $0x70] sm:$0xff]
    %v208 = vld [vmem:[%s0 + $0x78] sm:$0xff]
    %v209 = vld [vmem:[%s0 + $0x80] sm:$0xff]
    %v210 = vld [vmem:[%s0 + $0x88] sm:$0xff]
    %v211 = vld [vmem:[%s0 + $0x90] sm:$0xff]
    %v212 = vld [vmem:[%s0 + $0x98] sm:$0xff]
    %v213 = vld [vmem:[%s0 + $0xa0] sm:$0xff]
    %v214 = vld [vmem:[%s0 + $0xa8] sm:$0xff]
    %v215 = vld [vmem:[%s0 + $0xb0] sm:$0xff]
    %v216 = vld [vmem:[%s0 + $0xb8] sm:$0xff]
    %v217 = vld [vmem:[%s0 + $0xc0] sm:$0xff]
    %v218 = vld [vmem:[%s0 + $0xc8] sm:$0xff]
    %v219 = vld [vmem:[%s0 + $0xd0] sm:$0xff]
    %v220 = vld [vmem:[%s0 + $0xd8] sm:$0xff]
    %v221 = vld [vmem:[%s0 + $0xe0] sm:$0xff]
    %v222 = vld [vmem:[%s0 + $0xe8] sm:$0xff]
    %v223 = vld [vmem:[%s0 + $0xf0] sm:$0xff]
    %v224 = vld [vmem:[%s0 + $0xf8] sm:$0xff]
    %v225 = vld [vmem:[%s0 + $0x100] sm:$0xff]
    %v226 = vld [vmem:[%s0 + $0x108] sm:$0xff]
    %v227 = vld [vmem:[%s0 + $0x110] sm:$0xff]
    %v228 = vld [vmem:[%s0 + $0x118] sm:$0xff]
    %v229 = vld [vmem:[%s0 + $0x120] sm:$0xff]
    %v230 = vld [vmem:[%s0 + $0x128] sm:$0xff]
    %v231 = vld [vmem:[%s0 + $0x130] sm:$0xff]
    %v232 = vld [vmem:[%s0 + $0x138] sm:$0xff]
    %v233 = vld [vmem:[%s0 + $0x140] sm:$0xff]
    %v234 = vld [vmem:[%s0 + $0x148] sm:$0xff]
    %v235 = vld [vmem:[%s0 + $0x150] sm:$0xff]
    %v236 = vld [vmem:[%s0 + $0x158] sm:$0xff]
    %v237 = vld [vmem:[%s0 + $0x160] sm:$0xff]
    %v238 = vld [vmem:[%s0 + $0x168] sm:$0xff]
    %v239 = vld [vmem:[%s0 + $0x170] sm:$0xff]
    %v240 = vld [vmem:[%s0 + $0x178] sm:$0xff]
    %v241 = vld [vmem:[%s0 + $0x180] sm:$0xff]
    %v242 = vld [vmem:[%s0 + $0x188] sm:$0xff]
    %v243 = vld [vmem:[%s0 + $0x190] sm:$0xff]
    %v244 = vld [vmem:[%s0 + $0x198] sm:$0xff]
    %v245 = vld [vmem:[%s0 + $0x1a0] sm:$0xff]
    %v246 = vld [vmem:[%s0 + $0x1a8] sm:$0xff]
    %v247 = vld [vmem:[%s0 + $0x1b0] sm:$0xff]
    %v248 = vld [vmem:[%s0 + $0x1b8] sm:$0xff]
    %v249 = vld [vmem:[%s0 + $0x1c0] sm:$0xff]
    %v250 = vld [vmem:[%s0 + $0x1c8] sm:$0xff]
    %v251 = vld [vmem:[%s0 + $0x1d0] sm:$0xff]
    %v252 = vld [vmem:[%s0 + $0x1d8] sm:$0xff]
    %v253 = vld [vmem:[%s0 + $0x1e0] sm:$0xff]
    %v254 = vld [vmem:[%s0 + $0x1e8] sm:$0xff]
    %v255 = vld [vmem:[%s0 + $0x1f0] sm:$0xff]
    %v256 = vld [vmem:[%s0 + $0x1f8] sm:$0xff]
    %v257 = vld [vmem:[#allocation2] sm:$0xff]
    %v258 = vld [vmem:[#allocation2 + $0x8] sm:$0xff]
    %v259 = vld [vmem:[#allocation2 + $0x10] sm:$0xff]
    %v260 = vld [vmem:[#allocation2 + $0x18] sm:$0xff]
    %vm261 = vcmask 130048
    %v263 = vsel %vm261, %v193, 0
    %v266 = vsel %vm261, %v194, 0
    %v269 = vsel %vm261, %v195, 0
    %v272 = vsel %vm261, %v196, 0
    %v275 = vsel %vm261, %v197, 0
    %v278 = vsel %vm261, %v198, 0
    %v281 = vsel %vm261, %v199, 0
    %v284 = vsel %vm261, %v200, 0
    %v287 = vsel %vm261, %v201, 0
    %v290 = vsel %vm261, %v202, 0
    %v293 = vsel %vm261, %v203, 0
    %v296 = vsel %vm261, %v204, 0
    %v299 = vsel %vm261, %v205, 0
    %v302 = vsel %vm261, %v206, 0
    %v305 = vsel %vm261, %v207, 0
    %v308 = vsel %vm261, %v208, 0
    %v311 = vsel %vm261, %v209, 0
    %v314 = vsel %vm261, %v210, 0
    %v317 = vsel %vm261, %v211, 0
    %v320 = vsel %vm261, %v212, 0
    %v323 = vsel %vm261, %v213, 0
    %v326 = vsel %vm261, %v214, 0
    %v329 = vsel %vm261, %v215, 0
    %v332 = vsel %vm261, %v216, 0
    %v335 = vsel %vm261, %v217, 0
    %v338 = vsel %vm261, %v218, 0
    %v341 = vsel %vm261, %v219, 0
    %v344 = vsel %vm261, %v220, 0
    %v347 = vsel %vm261, %v221, 0
    %v350 = vsel %vm261, %v222, 0
    %v353 = vsel %vm261, %v223, 0
    %v356 = vsel %vm261, %v224, 0
    %v359 = vsel %vm261, %v225, 0
    %v362 = vsel %vm261, %v226, 0
    %v365 = vsel %vm261, %v227, 0
    %v368 = vsel %vm261, %v228, 0
    %v371 = vsel %vm261, %v229, 0
    %v374 = vsel %vm261, %v230, 0
    %v377 = vsel %vm261, %v231, 0
    %v380 = vsel %vm261, %v232, 0
    %v383 = vsel %vm261, %v233, 0
    %v386 = vsel %vm261, %v234, 0
    %v389 = vsel %vm261, %v235, 0
    %v392 = vsel %vm261, %v236, 0
    %v395 = vsel %vm261, %v237, 0
    %v398 = vsel %vm261, %v238, 0
    %v401 = vsel %vm261, %v239, 0
    %v404 = vsel %vm261, %v240, 0
    %v407 = vsel %vm261, %v241, 0
    %v410 = vsel %vm261, %v242, 0
    %v413 = vsel %vm261, %v243, 0
    %v416 = vsel %vm261, %v244, 0
    %v419 = vsel %vm261, %v245, 0
    %v422 = vsel %vm261, %v246, 0
    %v425 = vsel %vm261, %v247, 0
    %v428 = vsel %vm261, %v248, 0
    %v431 = vsel %vm261, %v249, 0
    %v434 = vsel %vm261, %v250, 0
    %v437 = vsel %vm261, %v251, 0
    %v440 = vsel %vm261, %v252, 0
    %v443 = vsel %vm261, %v253, 0
    %v446 = vsel %vm261, %v254, 0
    %v449 = vsel %vm261, %v255, 0
    %v452 = vsel %vm261, %v256, 0
    %454 = vmatprep.subr.mxu0 0.0
    %455 = vmatpush1.msra.mxu0 0.0
    %456 = vmatprep.subr.mxu0 0.0
    %457 = vmatpush1.msra.mxu0 0.0
    %458 = vmatprep.subr.mxu0 0.0
    %459 = vmatpush1.msra.mxu0 0.0
    %460 = vmatprep.subr.mxu0 0.0
    %461 = vmatpush1.msra.mxu0 0.0
    %462 = vmatprep.subr.mxu0 0.0
    %463 = vmatpush1.msra.mxu0 0.0
    %464 = vmatprep.subr.mxu0 0.0
    %465 = vmatpush1.msra.mxu0 0.0
    %466 = vmatprep.subr.mxu0 0.0
    %467 = vmatpush1.msra.mxu0 0.0
    %468 = vmatprep.subr.mxu0 0.0
    %469 = vmatpush1.msra.mxu0 0.0
    %470 = vmatprep.subr.mxu0 0.0
    %471 = vmatpush1.msra.mxu0 0.0
    %472 = vmatprep.subr.mxu0 0.0
    %473 = vmatpush1.msra.mxu0 0.0
    %474 = vmatprep.subr.mxu0 0.0
    %475 = vmatpush1.msra.mxu0 0.0
    %476 = vmatprep.subr.mxu0 0.0
    %477 = vmatpush1.msra.mxu0 0.0
    %478 = vmatprep.subr.mxu0 0.0
    %479 = vmatpush1.msra.mxu0 0.0
    %480 = vmatprep.subr.mxu0 0.0
    %481 = vmatpush1.msra.mxu0 0.0
    %482 = vmatprep.subr.mxu0 %v260
    %483 = vmatpush1.msra.mxu0 %v259
    %484 = vmatprep.subr.mxu0 %v258
    %485 = vmatpush1.msra.mxu0 %v257
    %486 = vmatprep.subr.mxu0 0.0
    %487 = vmatpush2.msra.mxu0 0.0
    %488 = vmatprep.subr.mxu0 0.0
    %489 = vmatpush2.msra.mxu0 0.0
    %490 = vmatprep.subr.mxu0 0.0
    %491 = vmatpush2.msra.mxu0 0.0
    %492 = vmatprep.subr.mxu0 0.0
    %493 = vmatpush2.msra.mxu0 0.0
    %494 = vmatprep.subr.mxu0 0.0
    %495 = vmatpush2.msra.mxu0 0.0
    %496 = vmatprep.subr.mxu0 0.0
    %497 = vmatpush2.msra.mxu0 0.0
    %498 = vmatprep.subr.mxu0 0.0
    %499 = vmatpush2.msra.mxu0 0.0
    %500 = vmatprep.subr.mxu0 0.0
    %501 = vmatpush2.msra.mxu0 0.0
    %502 = vmatprep.subr.mxu0 0.0
    %503 = vmatpush2.msra.mxu0 0.0
    %504 = vmatprep.subr.mxu0 0.0
    %505 = vmatpush2.msra.mxu0 0.0
    %506 = vmatprep.subr.mxu0 0.0
    %507 = vmatpush2.msra.mxu0 0.0
    %508 = vmatprep.subr.mxu0 0.0
    %509 = vmatpush2.msra.mxu0 0.0
    %510 = vmatprep.subr.mxu0 0.0
    %511 = vmatpush2.msra.mxu0 0.0
    %512 = vmatprep.subr.mxu0 0.0
    %513 = vmatpush2.msra.mxu0 0.0
    %514 = vmatprep.subr.mxu0 0.0
    %515 = vmatpush2.msra.mxu0 0.0
    %516 = vmatprep.subr.mxu0 0.0
    %517 = vmatpush2.msra.mxu0 0.0
    %518 = vmatprep.mubr.f32.mxu0 0.0
    %519 = vmatmul.mubr.f32.gmra.mxu0 %v263
    %v520 = vpop.f32.mrf.mxu0
    %v521 = vadd.f32 0.0, %v520
    %v522 = vpop.f32.mrf.mxu0
    %v523 = vadd.f32 0.0, %v522
    %524 = vmatprep.mubr.f32.mxu0 0.0
    %525 = vmatmul.mubr.f32.gmra.mxu0 %v266
    %v526 = vpop.f32.mrf.mxu0
    %v527 = vadd.f32 0.0, %v526
    %v528 = vpop.f32.mrf.mxu0
    %v529 = vadd.f32 0.0, %v528
    %530 = vmatprep.mubr.f32.mxu0 0.0
    %531 = vmatmul.mubr.f32.gmra.mxu0 %v269
    %v532 = vpop.f32.mrf.mxu0
    %v533 = vadd.f32 0.0, %v532
    %v534 = vpop.f32.mrf.mxu0
    %v535 = vadd.f32 0.0, %v534
    %536 = vmatprep.mubr.f32.mxu0 0.0
    %537 = vmatmul.mubr.f32.gmra.mxu0 %v272
    %v538 = vpop.f32.mrf.mxu0
    %v539 = vadd.f32 0.0, %v538
    %v540 = vpop.f32.mrf.mxu0
    %v541 = vadd.f32 0.0, %v540
    %542 = vmatprep.mubr.f32.mxu0 0.0
    %543 = vmatmul.mubr.f32.gmra.mxu0 %v275
    %v544 = vpop.f32.mrf.mxu0
    %v545 = vadd.f32 0.0, %v544
    %v546 = vpop.f32.mrf.mxu0
    %v547 = vadd.f32 0.0, %v546
    %548 = vmatprep.mubr.f32.mxu0 0.0
    %549 = vmatmul.mubr.f32.gmra.mxu0 %v278
    %v550 = vpop.f32.mrf.mxu0
    %v551 = vadd.f32 0.0, %v550
    %v552 = vpop.f32.mrf.mxu0
    %v553 = vadd.f32 0.0, %v552
    %554 = vmatprep.mubr.f32.mxu0 0.0
    %555 = vmatmul.mubr.f32.gmra.mxu0 %v281
    %v556 = vpop.f32.mrf.mxu0
    %v557 = vadd.f32 0.0, %v556
    %v558 = vpop.f32.mrf.mxu0
    %v559 = vadd.f32 0.0, %v558
    %560 = vmatprep.mubr.f32.mxu0 0.0
    %561 = vmatmul.mubr.f32.gmra.mxu0 %v284
    %v562 = vpop.f32.mrf.mxu0
    %v563 = vadd.f32 0.0, %v562
    %v564 = vpop.f32.mrf.mxu0
    %v565 = vadd.f32 0.0, %v564
    %566 = vmatprep.mubr.f32.mxu0 0.0
    %567 = vmatmul.mubr.f32.gmra.mxu0 %v287
    %v568 = vpop.f32.mrf.mxu0
    %v569 = vadd.f32 0.0, %v568
    %v570 = vpop.f32.mrf.mxu0
    %v571 = vadd.f32 0.0, %v570
    %572 = vmatprep.mubr.f32.mxu0 0.0
    %573 = vmatmul.mubr.f32.gmra.mxu0 %v290
    %v574 = vpop.f32.mrf.mxu0
    %v575 = vadd.f32 0.0, %v574
    %v576 = vpop.f32.mrf.mxu0
    %v577 = vadd.f32 0.0, %v576
    %578 = vmatprep.mubr.f32.mxu0 0.0
    %579 = vmatmul.mubr.f32.gmra.mxu0 %v293
    %v580 = vpop.f32.mrf.mxu0
    %v581 = vadd.f32 0.0, %v580
    %v582 = vpop.f32.mrf.mxu0
    %v583 = vadd.f32 0.0, %v582
    %584 = vmatprep.mubr.f32.mxu0 0.0
    %585 = vmatmul.mubr.f32.gmra.mxu0 %v296
    %v586 = vpop.f32.mrf.mxu0
    %v587 = vadd.f32 0.0, %v586
    %v588 = vpop.f32.mrf.mxu0
    %v589 = vadd.f32 0.0, %v588
    %590 = vmatprep.mubr.f32.mxu0 0.0
    %591 = vmatmul.mubr.f32.gmra.mxu0 %v299
    %v592 = vpop.f32.mrf.mxu0
    %v593 = vadd.f32 0.0, %v592
    %v594 = vpop.f32.mrf.mxu0
    %v595 = vadd.f32 0.0, %v594
    %596 = vmatprep.mubr.f32.mxu0 0.0
    %597 = vmatmul.mubr.f32.gmra.mxu0 %v302
    %v598 = vpop.f32.mrf.mxu0
    %v599 = vadd.f32 0.0, %v598
    %v600 = vpop.f32.mrf.mxu0
    %v601 = vadd.f32 0.0, %v600
    %602 = vmatprep.mubr.f32.mxu0 0.0
    %603 = vmatmul.mubr.f32.gmra.mxu0 %v305
    %v604 = vpop.f32.mrf.mxu0
    %v605 = vadd.f32 0.0, %v604
    %v606 = vpop.f32.mrf.mxu0
    %v607 = vadd.f32 0.0, %v606
    %608 = vmatprep.mubr.f32.mxu0 0.0
    %609 = vmatmul.mubr.f32.gmra.mxu0 %v308
    %v610 = vpop.f32.mrf.mxu0
    %v611 = vadd.f32 0.0, %v610
    %v612 = vpop.f32.mrf.mxu0
    %v613 = vadd.f32 0.0, %v612
    %614 = vmatprep.mubr.f32.mxu0 0.0
    %615 = vmatmul.mubr.f32.gmra.mxu0 %v311
    %v616 = vpop.f32.mrf.mxu0
    %v617 = vadd.f32 0.0, %v616
    %v618 = vpop.f32.mrf.mxu0
    %v619 = vadd.f32 0.0, %v618
    %620 = vmatprep.mubr.f32.mxu0 0.0
    %621 = vmatmul.mubr.f32.gmra.mxu0 %v314
    %v622 = vpop.f32.mrf.mxu0
    %v623 = vadd.f32 0.0, %v622
    %v624 = vpop.f32.mrf.mxu0
    %v625 = vadd.f32 0.0, %v624
    %626 = vmatprep.mubr.f32.mxu0 0.0
    %627 = vmatmul.mubr.f32.gmra.mxu0 %v317
    %v628 = vpop.f32.mrf.mxu0
    %v629 = vadd.f32 0.0, %v628
    %v630 = vpop.f32.mrf.mxu0
    %v631 = vadd.f32 0.0, %v630
    %632 = vmatprep.mubr.f32.mxu0 0.0
    %633 = vmatmul.mubr.f32.gmra.mxu0 %v320
    %v634 = vpop.f32.mrf.mxu0
    %v635 = vadd.f32 0.0, %v634
    %v636 = vpop.f32.mrf.mxu0
    %v637 = vadd.f32 0.0, %v636
    %638 = vmatprep.mubr.f32.mxu0 0.0
    %639 = vmatmul.mubr.f32.gmra.mxu0 %v323
    %v640 = vpop.f32.mrf.mxu0
    %v641 = vadd.f32 0.0, %v640
    %v642 = vpop.f32.mrf.mxu0
    %v643 = vadd.f32 0.0, %v642
    %644 = vmatprep.mubr.f32.mxu0 0.0
    %645 = vmatmul.mubr.f32.gmra.mxu0 %v326
    %v646 = vpop.f32.mrf.mxu0
    %v647 = vadd.f32 0.0, %v646
    %v648 = vpop.f32.mrf.mxu0
    %v649 = vadd.f32 0.0, %v648
    %650 = vmatprep.mubr.f32.mxu0 0.0
    %651 = vmatmul.mubr.f32.gmra.mxu0 %v329
    %v652 = vpop.f32.mrf.mxu0
    %v653 = vadd.f32 0.0, %v652
    %v654 = vpop.f32.mrf.mxu0
    %v655 = vadd.f32 0.0, %v654
    %656 = vmatprep.mubr.f32.mxu0 0.0
    %657 = vmatmul.mubr.f32.gmra.mxu0 %v332
    %v658 = vpop.f32.mrf.mxu0
    %v659 = vadd.f32 0.0, %v658
    %v660 = vpop.f32.mrf.mxu0
    %v661 = vadd.f32 0.0, %v660
    %662 = vmatprep.mubr.f32.mxu0 0.0
    %663 = vmatmul.mubr.f32.gmra.mxu0 %v335
    %v664 = vpop.f32.mrf.mxu0
    %v665 = vadd.f32 0.0, %v664
    %v666 = vpop.f32.mrf.mxu0
    %v667 = vadd.f32 0.0, %v666
    %668 = vmatprep.mubr.f32.mxu0 0.0
    %669 = vmatmul.mubr.f32.gmra.mxu0 %v338
    %v670 = vpop.f32.mrf.mxu0
    %v671 = vadd.f32 0.0, %v670
    %v672 = vpop.f32.mrf.mxu0
    %v673 = vadd.f32 0.0, %v672
    %674 = vmatprep.mubr.f32.mxu0 0.0
    %675 = vmatmul.mubr.f32.gmra.mxu0 %v341
    %v676 = vpop.f32.mrf.mxu0
    %v677 = vadd.f32 0.0, %v676
    %v678 = vpop.f32.mrf.mxu0
    %v679 = vadd.f32 0.0, %v678
    %680 = vmatprep.mubr.f32.mxu0 0.0
    %681 = vmatmul.mubr.f32.gmra.mxu0 %v344
    %v682 = vpop.f32.mrf.mxu0
    %v683 = vadd.f32 0.0, %v682
    %v684 = vpop.f32.mrf.mxu0
    %v685 = vadd.f32 0.0, %v684
    %686 = vmatprep.mubr.f32.mxu0 0.0
    %687 = vmatmul.mubr.f32.gmra.mxu0 %v347
    %v688 = vpop.f32.mrf.mxu0
    %v689 = vadd.f32 0.0, %v688
    %v690 = vpop.f32.mrf.mxu0
    %v691 = vadd.f32 0.0, %v690
    %692 = vmatprep.mubr.f32.mxu0 0.0
    %693 = vmatmul.mubr.f32.gmra.mxu0 %v350
    %v694 = vpop.f32.mrf.mxu0
    %v695 = vadd.f32 0.0, %v694
    %v696 = vpop.f32.mrf.mxu0
    %v697 = vadd.f32 0.0, %v696
    %698 = vmatprep.mubr.f32.mxu0 0.0
    %699 = vmatmul.mubr.f32.gmra.mxu0 %v353
    %v700 = vpop.f32.mrf.mxu0
    %v701 = vadd.f32 0.0, %v700
    %v702 = vpop.f32.mrf.mxu0
    %v703 = vadd.f32 0.0, %v702
    %704 = vmatprep.mubr.f32.mxu0 0.0
    %705 = vmatmul.mubr.f32.gmra.mxu0 %v356
    %v706 = vpop.f32.mrf.mxu0
    %v707 = vadd.f32 0.0, %v706
    %v708 = vpop.f32.mrf.mxu0
    %v709 = vadd.f32 0.0, %v708
    %710 = vmatprep.mubr.f32.mxu0 0.0
    %711 = vmatmul.mubr.f32.gmra.mxu0 %v359
    %v712 = vpop.f32.mrf.mxu0
    %v713 = vadd.f32 0.0, %v712
    %v714 = vpop.f32.mrf.mxu0
    %v715 = vadd.f32 0.0, %v714
    %716 = vmatprep.mubr.f32.mxu0 0.0
    %717 = vmatmul.mubr.f32.gmra.mxu0 %v362
    %v718 = vpop.f32.mrf.mxu0
    %v719 = vadd.f32 0.0, %v718
    %v720 = vpop.f32.mrf.mxu0
    %v721 = vadd.f32 0.0, %v720
    %722 = vmatprep.mubr.f32.mxu0 0.0
    %723 = vmatmul.mubr.f32.gmra.mxu0 %v365
    %v724 = vpop.f32.mrf.mxu0
    %v725 = vadd.f32 0.0, %v724
    %v726 = vpop.f32.mrf.mxu0
    %v727 = vadd.f32 0.0, %v726
    %728 = vmatprep.mubr.f32.mxu0 0.0
    %729 = vmatmul.mubr.f32.gmra.mxu0 %v368
    %v730 = vpop.f32.mrf.mxu0
    %v731 = vadd.f32 0.0, %v730
    %v732 = vpop.f32.mrf.mxu0
    %v733 = vadd.f32 0.0, %v732
    %734 = vmatprep.mubr.f32.mxu0 0.0
    %735 = vmatmul.mubr.f32.gmra.mxu0 %v371
    %v736 = vpop.f32.mrf.mxu0
    %v737 = vadd.f32 0.0, %v736
    %v738 = vpop.f32.mrf.mxu0
    %v739 = vadd.f32 0.0, %v738
    %740 = vmatprep.mubr.f32.mxu0 0.0
    %741 = vmatmul.mubr.f32.gmra.mxu0 %v374
    %v742 = vpop.f32.mrf.mxu0
    %v743 = vadd.f32 0.0, %v742
    %v744 = vpop.f32.mrf.mxu0
    %v745 = vadd.f32 0.0, %v744
    %746 = vmatprep.mubr.f32.mxu0 0.0
    %747 = vmatmul.mubr.f32.gmra.mxu0 %v377
    %v748 = vpop.f32.mrf.mxu0
    %v749 = vadd.f32 0.0, %v748
    %v750 = vpop.f32.mrf.mxu0
    %v751 = vadd.f32 0.0, %v750
    %752 = vmatprep.mubr.f32.mxu0 0.0
    %753 = vmatmul.mubr.f32.gmra.mxu0 %v380
    %v754 = vpop.f32.mrf.mxu0
    %v755 = vadd.f32 0.0, %v754
    %v756 = vpop.f32.mrf.mxu0
    %v757 = vadd.f32 0.0, %v756
    %758 = vmatprep.mubr.f32.mxu0 0.0
    %759 = vmatmul.mubr.f32.gmra.mxu0 %v383
    %v760 = vpop.f32.mrf.mxu0
    %v761 = vadd.f32 0.0, %v760
    %v762 = vpop.f32.mrf.mxu0
    %v763 = vadd.f32 0.0, %v762
    %764 = vmatprep.mubr.f32.mxu0 0.0
    %765 = vmatmul.mubr.f32.gmra.mxu0 %v386
    %v766 = vpop.f32.mrf.mxu0
    %v767 = vadd.f32 0.0, %v766
    %v768 = vpop.f32.mrf.mxu0
    %v769 = vadd.f32 0.0, %v768
    %770 = vmatprep.mubr.f32.mxu0 0.0
    %771 = vmatmul.mubr.f32.gmra.mxu0 %v389
    %v772 = vpop.f32.mrf.mxu0
    %v773 = vadd.f32 0.0, %v772
    %v774 = vpop.f32.mrf.mxu0
    %v775 = vadd.f32 0.0, %v774
    %776 = vmatprep.mubr.f32.mxu0 0.0
    %777 = vmatmul.mubr.f32.gmra.mxu0 %v392
    %v778 = vpop.f32.mrf.mxu0
    %v779 = vadd.f32 0.0, %v778
    %v780 = vpop.f32.mrf.mxu0
    %v781 = vadd.f32 0.0, %v780
    %782 = vmatprep.mubr.f32.mxu0 0.0
    %783 = vmatmul.mubr.f32.gmra.mxu0 %v395
    %v784 = vpop.f32.mrf.mxu0
    %v785 = vadd.f32 0.0, %v784
    %v786 = vpop.f32.mrf.mxu0
    %v787 = vadd.f32 0.0, %v786
    %788 = vmatprep.mubr.f32.mxu0 0.0
    %789 = vmatmul.mubr.f32.gmra.mxu0 %v398
    %v790 = vpop.f32.mrf.mxu0
    %v791 = vadd.f32 0.0, %v790
    %v792 = vpop.f32.mrf.mxu0
    %v793 = vadd.f32 0.0, %v792
    %794 = vmatprep.mubr.f32.mxu0 0.0
    %795 = vmatmul.mubr.f32.gmra.mxu0 %v401
    %v796 = vpop.f32.mrf.mxu0
    %v797 = vadd.f32 0.0, %v796
    %v798 = vpop.f32.mrf.mxu0
    %v799 = vadd.f32 0.0, %v798
    %800 = vmatprep.mubr.f32.mxu0 0.0
    %801 = vmatmul.mubr.f32.gmra.mxu0 %v404
    %v802 = vpop.f32.mrf.mxu0
    %v803 = vadd.f32 0.0, %v802
    %v804 = vpop.f32.mrf.mxu0
    %v805 = vadd.f32 0.0, %v804
    %806 = vmatprep.mubr.f32.mxu0 0.0
    %807 = vmatmul.mubr.f32.gmra.mxu0 %v407
    %v808 = vpop.f32.mrf.mxu0
    %v809 = vadd.f32 0.0, %v808
    %v810 = vpop.f32.mrf.mxu0
    %v811 = vadd.f32 0.0, %v810
    %812 = vmatprep.mubr.f32.mxu0 0.0
    %813 = vmatmul.mubr.f32.gmra.mxu0 %v410
    %v814 = vpop.f32.mrf.mxu0
    %v815 = vadd.f32 0.0, %v814
    %v816 = vpop.f32.mrf.mxu0
    %v817 = vadd.f32 0.0, %v816
    %818 = vmatprep.mubr.f32.mxu0 0.0
    %819 = vmatmul.mubr.f32.gmra.mxu0 %v413
    %v820 = vpop.f32.mrf.mxu0
    %v821 = vadd.f32 0.0, %v820
    %v822 = vpop.f32.mrf.mxu0
    %v823 = vadd.f32 0.0, %v822
    %824 = vmatprep.mubr.f32.mxu0 0.0
    %825 = vmatmul.mubr.f32.gmra.mxu0 %v416
    %v826 = vpop.f32.mrf.mxu0
    %v827 = vadd.f32 0.0, %v826
    %v828 = vpop.f32.mrf.mxu0
    %v829 = vadd.f32 0.0, %v828
    %830 = vmatprep.mubr.f32.mxu0 0.0
    %831 = vmatmul.mubr.f32.gmra.mxu0 %v419
    %v832 = vpop.f32.mrf.mxu0
    %v833 = vadd.f32 0.0, %v832
    %v834 = vpop.f32.mrf.mxu0
    %v835 = vadd.f32 0.0, %v834
    %836 = vmatprep.mubr.f32.mxu0 0.0
    %837 = vmatmul.mubr.f32.gmra.mxu0 %v422
    %v838 = vpop.f32.mrf.mxu0
    %v839 = vadd.f32 0.0, %v838
    %v840 = vpop.f32.mrf.mxu0
    %v841 = vadd.f32 0.0, %v840
    %842 = vmatprep.mubr.f32.mxu0 0.0
    %843 = vmatmul.mubr.f32.gmra.mxu0 %v425
    %v844 = vpop.f32.mrf.mxu0
    %v845 = vadd.f32 0.0, %v844
    %v846 = vpop.f32.mrf.mxu0
    %v847 = vadd.f32 0.0, %v846
    %848 = vmatprep.mubr.f32.mxu0 0.0
    %849 = vmatmul.mubr.f32.gmra.mxu0 %v428
    %v850 = vpop.f32.mrf.mxu0
    %v851 = vadd.f32 0.0, %v850
    %v852 = vpop.f32.mrf.mxu0
    %v853 = vadd.f32 0.0, %v852
    %854 = vmatprep.mubr.f32.mxu0 0.0
    %855 = vmatmul.mubr.f32.gmra.mxu0 %v431
    %v856 = vpop.f32.mrf.mxu0
    %v857 = vadd.f32 0.0, %v856
    %v858 = vpop.f32.mrf.mxu0
    %v859 = vadd.f32 0.0, %v858
    %860 = vmatprep.mubr.f32.mxu0 0.0
    %861 = vmatmul.mubr.f32.gmra.mxu0 %v434
    %v862 = vpop.f32.mrf.mxu0
    %v863 = vadd.f32 0.0, %v862
    %v864 = vpop.f32.mrf.mxu0
    %v865 = vadd.f32 0.0, %v864
    %866 = vmatprep.mubr.f32.mxu0 0.0
    %867 = vmatmul.mubr.f32.gmra.mxu0 %v437
    %v868 = vpop.f32.mrf.mxu0
    %v869 = vadd.f32 0.0, %v868
    %v870 = vpop.f32.mrf.mxu0
    %v871 = vadd.f32 0.0, %v870
    %872 = vmatprep.mubr.f32.mxu0 0.0
    %873 = vmatmul.mubr.f32.gmra.mxu0 %v440
    %v874 = vpop.f32.mrf.mxu0
    %v875 = vadd.f32 0.0, %v874
    %v876 = vpop.f32.mrf.mxu0
    %v877 = vadd.f32 0.0, %v876
    %878 = vmatprep.mubr.f32.mxu0 0.0
    %879 = vmatmul.mubr.f32.gmra.mxu0 %v443
    %v880 = vpop.f32.mrf.mxu0
    %v881 = vadd.f32 0.0, %v880
    %v882 = vpop.f32.mrf.mxu0
    %v883 = vadd.f32 0.0, %v882
    %884 = vmatprep.mubr.f32.mxu0 0.0
    %885 = vmatmul.mubr.f32.gmra.mxu0 %v446
    %v886 = vpop.f32.mrf.mxu0
    %v887 = vadd.f32 0.0, %v886
    %v888 = vpop.f32.mrf.mxu0
    %v889 = vadd.f32 0.0, %v888
    %890 = vmatprep.mubr.f32.mxu0 0.0
    %891 = vmatmul.mubr.f32.gmra.mxu0 %v449
    %v892 = vpop.f32.mrf.mxu0
    %v893 = vadd.f32 0.0, %v892
    %v894 = vpop.f32.mrf.mxu0
    %v895 = vadd.f32 0.0, %v894
    %896 = vmatprep.mubr.f32.mxu0 0.0
    %897 = vmatmul.mubr.f32.gmra.mxu0 %v452
    %v898 = vpop.f32.mrf.mxu0
    %v899 = vadd.f32 0.0, %v898
    %v900 = vpop.f32.mrf.mxu0
    %v901 = vadd.f32 0.0, %v900
    %902 = vdwg.mxu0
    %v903 = vld [vmem:[#allocation5] sm:$0x3]
    %v905 = vlaneseq
    %v906 = vshrl.u32 %v905, 7
    %v907 = vsub.s32 0, %v906
    %v908 = vrot.slane %v903, %v907
    %v909 = vlaneseq
    %v910 = vshrl.u32 %v909, 7
    %v911 = vsub.s32 1, %v910
    %v912 = vrot.slane %v903, %v911
    %v915 = vmul.f32 %v521, %v908
    %v916 = vmul.f32 %v523, %v912
    %v917 = vmul.f32 %v527, %v908
    %v918 = vmul.f32 %v529, %v912
    %v919 = vmul.f32 %v533, %v908
    %v920 = vmul.f32 %v535, %v912
    %v921 = vmul.f32 %v539, %v908
    %v922 = vmul.f32 %v541, %v912
    %v923 = vmul.f32 %v545, %v908
    %v924 = vmul.f32 %v547, %v912
    %v925 = vmul.f32 %v551, %v908
    %v926 = vmul.f32 %v553, %v912
    %v927 = vmul.f32 %v557, %v908
    %v928 = vmul.f32 %v559, %v912
    %v929 = vmul.f32 %v563, %v908
    %v930 = vmul.f32 %v565, %v912
    %v931 = vmul.f32 %v569, %v908
    %v932 = vmul.f32 %v571, %v912
    %v933 = vmul.f32 %v575, %v908
    %v934 = vmul.f32 %v577, %v912
    %v935 = vmul.f32 %v581, %v908
    %v936 = vmul.f32 %v583, %v912
    %v937 = vmul.f32 %v587, %v908
    %v938 = vmul.f32 %v589, %v912
    %v939 = vmul.f32 %v593, %v908
    %v940 = vmul.f32 %v595, %v912
    %v941 = vmul.f32 %v599, %v908
    %v942 = vmul.f32 %v601, %v912
    %v943 = vmul.f32 %v605, %v908
    %v944 = vmul.f32 %v607, %v912
    %v945 = vmul.f32 %v611, %v908
    %v946 = vmul.f32 %v613, %v912
    %v947 = vmul.f32 %v617, %v908
    %v948 = vmul.f32 %v619, %v912
    %v949 = vmul.f32 %v623, %v908
    %v950 = vmul.f32 %v625, %v912
    %v951 = vmul.f32 %v629, %v908
    %v952 = vmul.f32 %v631, %v912
    %v953 = vmul.f32 %v635, %v908
    %v954 = vmul.f32 %v637, %v912
    %v955 = vmul.f32 %v641, %v908
    %v956 = vmul.f32 %v643, %v912
    %v957 = vmul.f32 %v647, %v908
    %v958 = vmul.f32 %v649, %v912
    %v959 = vmul.f32 %v653, %v908
    %v960 = vmul.f32 %v655, %v912
    %v961 = vmul.f32 %v659, %v908
    %v962 = vmul.f32 %v661, %v912
    %v963 = vmul.f32 %v665, %v908
    %v964 = vmul.f32 %v667, %v912
    %v965 = vmul.f32 %v671, %v908
    %v966 = vmul.f32 %v673, %v912
    %v967 = vmul.f32 %v677, %v908
    %v968 = vmul.f32 %v679, %v912
    %v969 = vmul.f32 %v683, %v908
    %v970 = vmul.f32 %v685, %v912
    %v971 = vmul.f32 %v689, %v908
    %v972 = vmul.f32 %v691, %v912
    %v973 = vmul.f32 %v695, %v908
    %v974 = vmul.f32 %v697, %v912
    %v975 = vmul.f32 %v701, %v908
    %v976 = vmul.f32 %v703, %v912
    %v977 = vmul.f32 %v707, %v908
    %v978 = vmul.f32 %v709, %v912
    %v979 = vmul.f32 %v713, %v908
    %v980 = vmul.f32 %v715, %v912
    %v981 = vmul.f32 %v719, %v908
    %v982 = vmul.f32 %v721, %v912
    %v983 = vmul.f32 %v725, %v908
    %v984 = vmul.f32 %v727, %v912
    %v985 = vmul.f32 %v731, %v908
    %v986 = vmul.f32 %v733, %v912
    %v987 = vmul.f32 %v737, %v908
    %v988 = vmul.f32 %v739, %v912
    %v989 = vmul.f32 %v743, %v908
    %v990 = vmul.f32 %v745, %v912
    %v991 = vmul.f32 %v749, %v908
    %v992 = vmul.f32 %v751, %v912
    %v993 = vmul.f32 %v755, %v908
    %v994 = vmul.f32 %v757, %v912
    %v995 = vmul.f32 %v761, %v908
    %v996 = vmul.f32 %v763, %v912
    %v997 = vmul.f32 %v767, %v908
    %v998 = vmul.f32 %v769, %v912
    %v999 = vmul.f32 %v773, %v908
    %v1000 = vmul.f32 %v775, %v912
    %v1001 = vmul.f32 %v779, %v908
    %v1002 = vmul.f32 %v781, %v912
    %v1003 = vmul.f32 %v785, %v908
    %v1004 = vmul.f32 %v787, %v912
    %v1005 = vmul.f32 %v791, %v908
    %v1006 = vmul.f32 %v793, %v912
    %v1007 = vmul.f32 %v797, %v908
    %v1008 = vmul.f32 %v799, %v912
    %v1009 = vmul.f32 %v803, %v908
    %v1010 = vmul.f32 %v805, %v912
    %v1011 = vmul.f32 %v809, %v908
    %v1012 = vmul.f32 %v811, %v912
    %v1013 = vmul.f32 %v815, %v908
    %v1014 = vmul.f32 %v817, %v912
    %v1015 = vmul.f32 %v821, %v908
    %v1016 = vmul.f32 %v823, %v912
    %v1017 = vmul.f32 %v827, %v908
    %v1018 = vmul.f32 %v829, %v912
    %v1019 = vmul.f32 %v833, %v908
    %v1020 = vmul.f32 %v835, %v912
    %v1021 = vmul.f32 %v839, %v908
    %v1022 = vmul.f32 %v841, %v912
    %v1023 = vmul.f32 %v845, %v908
    %v1024 = vmul.f32 %v847, %v912
    %v1025 = vmul.f32 %v851, %v908
    %v1026 = vmul.f32 %v853, %v912
    %v1027 = vmul.f32 %v857, %v908
    %v1028 = vmul.f32 %v859, %v912
    %v1029 = vmul.f32 %v863, %v908
    %v1030 = vmul.f32 %v865, %v912
    %v1031 = vmul.f32 %v869, %v908
    %v1032 = vmul.f32 %v871, %v912
    %v1033 = vmul.f32 %v875, %v908
    %v1034 = vmul.f32 %v877, %v912
    %v1035 = vmul.f32 %v881, %v908
    %v1036 = vmul.f32 %v883, %v912
    %v1037 = vmul.f32 %v887, %v908
    %v1038 = vmul.f32 %v889, %v912
    %v1039 = vmul.f32 %v893, %v908
    %v1040 = vmul.f32 %v895, %v912
    %v1041 = vmul.f32 %v899, %v908
    %v1042 = vmul.f32 %v901, %v912
    %v1043 = vld [vmem:[#allocation7] sm:$0x3]
    %v1045 = vlaneseq
    %v1046 = vshrl.u32 %v1045, 7
    %v1047 = vsub.s32 0, %v1046
    %v1048 = vrot.slane %v1043, %v1047
    %v1049 = vlaneseq
    %v1050 = vshrl.u32 %v1049, 7
    %v1051 = vsub.s32 1, %v1050
    %v1052 = vrot.slane %v1043, %v1051
    %v1055 = vadd.f32 %v915, %v1048
    %v1056 = vadd.f32 %v916, %v1052
    %v1057 = vadd.f32 %v917, %v1048
    %v1058 = vadd.f32 %v918, %v1052
    %v1059 = vadd.f32 %v919, %v1048
    %v1060 = vadd.f32 %v920, %v1052
    %v1061 = vadd.f32 %v921, %v1048
    %v1062 = vadd.f32 %v922, %v1052
    %v1063 = vadd.f32 %v923, %v1048
    %v1064 = vadd.f32 %v924, %v1052
    %v1065 = vadd.f32 %v925, %v1048
    %v1066 = vadd.f32 %v926, %v1052
    %v1067 = vadd.f32 %v927, %v1048
    %v1068 = vadd.f32 %v928, %v1052
    %v1069 = vadd.f32 %v929, %v1048
    %v1070 = vadd.f32 %v930, %v1052
    %v1071 = vadd.f32 %v931, %v1048
    %v1072 = vadd.f32 %v932, %v1052
    %v1073 = vadd.f32 %v933, %v1048
    %v1074 = vadd.f32 %v934, %v1052
    %v1075 = vadd.f32 %v935, %v1048
    %v1076 = vadd.f32 %v936, %v1052
    %v1077 = vadd.f32 %v937, %v1048
    %v1078 = vadd.f32 %v938, %v1052
    %v1079 = vadd.f32 %v939, %v1048
    %v1080 = vadd.f32 %v940, %v1052
    %v1081 = vadd.f32 %v941, %v1048
    %v1082 = vadd.f32 %v942, %v1052
    %v1083 = vadd.f32 %v943, %v1048
    %v1084 = vadd.f32 %v944, %v1052
    %v1085 = vadd.f32 %v945, %v1048
    %v1086 = vadd.f32 %v946, %v1052
    %v1087 = vadd.f32 %v947, %v1048
    %v1088 = vadd.f32 %v948, %v1052
    %v1089 = vadd.f32 %v949, %v1048
    %v1090 = vadd.f32 %v950, %v1052
    %v1091 = vadd.f32 %v951, %v1048
    %v1092 = vadd.f32 %v952, %v1052
    %v1093 = vadd.f32 %v953, %v1048
    %v1094 = vadd.f32 %v954, %v1052
    %v1095 = vadd.f32 %v955, %v1048
    %v1096 = vadd.f32 %v956, %v1052
    %v1097 = vadd.f32 %v957, %v1048
    %v1098 = vadd.f32 %v958, %v1052
    %v1099 = vadd.f32 %v959, %v1048
    %v1100 = vadd.f32 %v960, %v1052
    %v1101 = vadd.f32 %v961, %v1048
    %v1102 = vadd.f32 %v962, %v1052
    %v1103 = vadd.f32 %v963, %v1048
    %v1104 = vadd.f32 %v964, %v1052
    %v1105 = vadd.f32 %v965, %v1048
    %v1106 = vadd.f32 %v966, %v1052
    %v1107 = vadd.f32 %v967, %v1048
    %v1108 = vadd.f32 %v968, %v1052
    %v1109 = vadd.f32 %v969, %v1048
    %v1110 = vadd.f32 %v970, %v1052
    %v1111 = vadd.f32 %v971, %v1048
    %v1112 = vadd.f32 %v972, %v1052
    %v1113 = vadd.f32 %v973, %v1048
    %v1114 = vadd.f32 %v974, %v1052
    %v1115 = vadd.f32 %v975, %v1048
    %v1116 = vadd.f32 %v976, %v1052
    %v1117 = vadd.f32 %v977, %v1048
    %v1118 = vadd.f32 %v978, %v1052
    %v1119 = vadd.f32 %v979, %v1048
    %v1120 = vadd.f32 %v980, %v1052
    %v1121 = vadd.f32 %v981, %v1048
    %v1122 = vadd.f32 %v982, %v1052
    %v1123 = vadd.f32 %v983, %v1048
    %v1124 = vadd.f32 %v984, %v1052
    %v1125 = vadd.f32 %v985, %v1048
    %v1126 = vadd.f32 %v986, %v1052
    %v1127 = vadd.f32 %v987, %v1048
    %v1128 = vadd.f32 %v988, %v1052
    %v1129 = vadd.f32 %v989, %v1048
    %v1130 = vadd.f32 %v990, %v1052
    %v1131 = vadd.f32 %v991, %v1048
    %v1132 = vadd.f32 %v992, %v1052
    %v1133 = vadd.f32 %v993, %v1048
    %v1134 = vadd.f32 %v994, %v1052
    %v1135 = vadd.f32 %v995, %v1048
    %v1136 = vadd.f32 %v996, %v1052
    %v1137 = vadd.f32 %v997, %v1048
    %v1138 = vadd.f32 %v998, %v1052
    %v1139 = vadd.f32 %v999, %v1048
    %v1140 = vadd.f32 %v1000, %v1052
    %v1141 = vadd.f32 %v1001, %v1048
    %v1142 = vadd.f32 %v1002, %v1052
    %v1143 = vadd.f32 %v1003, %v1048
    %v1144 = vadd.f32 %v1004, %v1052
    %v1145 = vadd.f32 %v1005, %v1048
    %v1146 = vadd.f32 %v1006, %v1052
    %v1147 = vadd.f32 %v1007, %v1048
    %v1148 = vadd.f32 %v1008, %v1052
    %v1149 = vadd.f32 %v1009, %v1048
    %v1150 = vadd.f32 %v1010, %v1052
    %v1151 = vadd.f32 %v1011, %v1048
    %v1152 = vadd.f32 %v1012, %v1052
    %v1153 = vadd.f32 %v1013, %v1048
    %v1154 = vadd.f32 %v1014, %v1052
    %v1155 = vadd.f32 %v1015, %v1048
    %v1156 = vadd.f32 %v1016, %v1052
    %v1157 = vadd.f32 %v1017, %v1048
    %v1158 = vadd.f32 %v1018, %v1052
    %v1159 = vadd.f32 %v1019, %v1048
    %v1160 = vadd.f32 %v1020, %v1052
    %v1161 = vadd.f32 %v1021, %v1048
    %v1162 = vadd.f32 %v1022, %v1052
    %v1163 = vadd.f32 %v1023, %v1048
    %v1164 = vadd.f32 %v1024, %v1052
    %v1165 = vadd.f32 %v1025, %v1048
    %v1166 = vadd.f32 %v1026, %v1052
    %v1167 = vadd.f32 %v1027, %v1048
    %v1168 = vadd.f32 %v1028, %v1052
    %v1169 = vadd.f32 %v1029, %v1048
    %v1170 = vadd.f32 %v1030, %v1052
    %v1171 = vadd.f32 %v1031, %v1048
    %v1172 = vadd.f32 %v1032, %v1052
    %v1173 = vadd.f32 %v1033, %v1048
    %v1174 = vadd.f32 %v1034, %v1052
    %v1175 = vadd.f32 %v1035, %v1048
    %v1176 = vadd.f32 %v1036, %v1052
    %v1177 = vadd.f32 %v1037, %v1048
    %v1178 = vadd.f32 %v1038, %v1052
    %v1179 = vadd.f32 %v1039, %v1048
    %v1180 = vadd.f32 %v1040, %v1052
    %v1181 = vadd.f32 %v1041, %v1048
    %v1182 = vadd.f32 %v1042, %v1052
    %v1183 = vmax.f32 %v1055, 0.0
    %v1184 = vmax.f32 %v1056, 0.0
    %v1185 = vmax.f32 %v1057, 0.0
    %v1186 = vmax.f32 %v1058, 0.0
    %v1187 = vmax.f32 %v1059, 0.0
    %v1188 = vmax.f32 %v1060, 0.0
    %v1189 = vmax.f32 %v1061, 0.0
    %v1190 = vmax.f32 %v1062, 0.0
    %v1191 = vmax.f32 %v1063, 0.0
    %v1192 = vmax.f32 %v1064, 0.0
    %v1193 = vmax.f32 %v1065, 0.0
    %v1194 = vmax.f32 %v1066, 0.0
    %v1195 = vmax.f32 %v1067, 0.0
    %v1196 = vmax.f32 %v1068, 0.0
    %v1197 = vmax.f32 %v1069, 0.0
    %v1198 = vmax.f32 %v1070, 0.0
    %v1199 = vmax.f32 %v1071, 0.0
    %v1200 = vmax.f32 %v1072, 0.0
    %v1201 = vmax.f32 %v1073, 0.0
    %v1202 = vmax.f32 %v1074, 0.0
    %v1203 = vmax.f32 %v1075, 0.0
    %v1204 = vmax.f32 %v1076, 0.0
    %v1205 = vmax.f32 %v1077, 0.0
    %v1206 = vmax.f32 %v1078, 0.0
    %v1207 = vmax.f32 %v1079, 0.0
    %v1208 = vmax.f32 %v1080, 0.0
    %v1209 = vmax.f32 %v1081, 0.0
    %v1210 = vmax.f32 %v1082, 0.0
    %v1211 = vmax.f32 %v1083, 0.0
    %v1212 = vmax.f32 %v1084, 0.0
    %v1213 = vmax.f32 %v1085, 0.0
    %v1214 = vmax.f32 %v1086, 0.0
    %v1215 = vmax.f32 %v1087, 0.0
    %v1216 = vmax.f32 %v1088, 0.0
    %v1217 = vmax.f32 %v1089, 0.0
    %v1218 = vmax.f32 %v1090, 0.0
    %v1219 = vmax.f32 %v1091, 0.0
    %v1220 = vmax.f32 %v1092, 0.0
    %v1221 = vmax.f32 %v1093, 0.0
    %v1222 = vmax.f32 %v1094, 0.0
    %v1223 = vmax.f32 %v1095, 0.0
    %v1224 = vmax.f32 %v1096, 0.0
    %v1225 = vmax.f32 %v1097, 0.0
    %v1226 = vmax.f32 %v1098, 0.0
    %v1227 = vmax.f32 %v1099, 0.0
    %v1228 = vmax.f32 %v1100, 0.0
    %v1229 = vmax.f32 %v1101, 0.0
    %v1230 = vmax.f32 %v1102, 0.0
    %v1231 = vmax.f32 %v1103, 0.0
    %v1232 = vmax.f32 %v1104, 0.0
    %v1233 = vmax.f32 %v1105, 0.0
    %v1234 = vmax.f32 %v1106, 0.0
    %v1235 = vmax.f32 %v1107, 0.0
    %v1236 = vmax.f32 %v1108, 0.0
    %v1237 = vmax.f32 %v1109, 0.0
    %v1238 = vmax.f32 %v1110, 0.0
    %v1239 = vmax.f32 %v1111, 0.0
    %v1240 = vmax.f32 %v1112, 0.0
    %v1241 = vmax.f32 %v1113, 0.0
    %v1242 = vmax.f32 %v1114, 0.0
    %v1243 = vmax.f32 %v1115, 0.0
    %v1244 = vmax.f32 %v1116, 0.0
    %v1245 = vmax.f32 %v1117, 0.0
    %v1246 = vmax.f32 %v1118, 0.0
    %v1247 = vmax.f32 %v1119, 0.0
    %v1248 = vmax.f32 %v1120, 0.0
    %v1249 = vmax.f32 %v1121, 0.0
    %v1250 = vmax.f32 %v1122, 0.0
    %v1251 = vmax.f32 %v1123, 0.0
    %v1252 = vmax.f32 %v1124, 0.0
    %v1253 = vmax.f32 %v1125, 0.0
    %v1254 = vmax.f32 %v1126, 0.0
    %v1255 = vmax.f32 %v1127, 0.0
    %v1256 = vmax.f32 %v1128, 0.0
    %v1257 = vmax.f32 %v1129, 0.0
    %v1258 = vmax.f32 %v1130, 0.0
    %v1259 = vmax.f32 %v1131, 0.0
    %v1260 = vmax.f32 %v1132, 0.0
    %v1261 = vmax.f32 %v1133, 0.0
    %v1262 = vmax.f32 %v1134, 0.0
    %v1263 = vmax.f32 %v1135, 0.0
    %v1264 = vmax.f32 %v1136, 0.0
    %v1265 = vmax.f32 %v1137, 0.0
    %v1266 = vmax.f32 %v1138, 0.0
    %v1267 = vmax.f32 %v1139, 0.0
    %v1268 = vmax.f32 %v1140, 0.0
    %v1269 = vmax.f32 %v1141, 0.0
    %v1270 = vmax.f32 %v1142, 0.0
    %v1271 = vmax.f32 %v1143, 0.0
    %v1272 = vmax.f32 %v1144, 0.0
    %v1273 = vmax.f32 %v1145, 0.0
    %v1274 = vmax.f32 %v1146, 0.0
    %v1275 = vmax.f32 %v1147, 0.0
    %v1276 = vmax.f32 %v1148, 0.0
    %v1277 = vmax.f32 %v1149, 0.0
    %v1278 = vmax.f32 %v1150, 0.0
    %v1279 = vmax.f32 %v1151, 0.0
    %v1280 = vmax.f32 %v1152, 0.0
    %v1281 = vmax.f32 %v1153, 0.0
    %v1282 = vmax.f32 %v1154, 0.0
    %v1283 = vmax.f32 %v1155, 0.0
    %v1284 = vmax.f32 %v1156, 0.0
    %v1285 = vmax.f32 %v1157, 0.0
    %v1286 = vmax.f32 %v1158, 0.0
    %v1287 = vmax.f32 %v1159, 0.0
    %v1288 = vmax.f32 %v1160, 0.0
    %v1289 = vmax.f32 %v1161, 0.0
    %v1290 = vmax.f32 %v1162, 0.0
    %v1291 = vmax.f32 %v1163, 0.0
    %v1292 = vmax.f32 %v1164, 0.0
    %v1293 = vmax.f32 %v1165, 0.0
    %v1294 = vmax.f32 %v1166, 0.0
    %v1295 = vmax.f32 %v1167, 0.0
    %v1296 = vmax.f32 %v1168, 0.0
    %v1297 = vmax.f32 %v1169, 0.0
    %v1298 = vmax.f32 %v1170, 0.0
    %v1299 = vmax.f32 %v1171, 0.0
    %v1300 = vmax.f32 %v1172, 0.0
    %v1301 = vmax.f32 %v1173, 0.0
    %v1302 = vmax.f32 %v1174, 0.0
    %v1303 = vmax.f32 %v1175, 0.0
    %v1304 = vmax.f32 %v1176, 0.0
    %v1305 = vmax.f32 %v1177, 0.0
    %v1306 = vmax.f32 %v1178, 0.0
    %v1307 = vmax.f32 %v1179, 0.0
    %v1308 = vmax.f32 %v1180, 0.0
    %v1309 = vmax.f32 %v1181, 0.0
    %v1310 = vmax.f32 %v1182, 0.0
    %1375 = vrot.lane.b32.xlu0 %v1183, 64
    %v1376 = vpop.permute.xlu0 %1375
    %1377 = vrot.lane.b32.xlu0 %v1185, 64
    %v1378 = vpop.permute.xlu0 %1377
    %1379 = vrot.lane.b32.xlu0 %v1187, 64
    %v1380 = vpop.permute.xlu0 %1379
    %1381 = vrot.lane.b32.xlu0 %v1189, 64
    %v1382 = vpop.permute.xlu0 %1381
    %1383 = vrot.lane.b32.xlu0 %v1191, 64
    %v1384 = vpop.permute.xlu0 %1383
    %1385 = vrot.lane.b32.xlu0 %v1193, 64
    %v1386 = vpop.permute.xlu0 %1385
    %1387 = vrot.lane.b32.xlu0 %v1195, 64
    %v1388 = vpop.permute.xlu0 %1387
    %1389 = vrot.lane.b32.xlu0 %v1197, 64
    %v1390 = vpop.permute.xlu0 %1389
    %1391 = vrot.lane.b32.xlu0 %v1199, 64
    %v1392 = vpop.permute.xlu0 %1391
    %1393 = vrot.lane.b32.xlu0 %v1201, 64
    %v1394 = vpop.permute.xlu0 %1393
    %1395 = vrot.lane.b32.xlu0 %v1203, 64
    %v1396 = vpop.permute.xlu0 %1395
    %1397 = vrot.lane.b32.xlu0 %v1205, 64
    %v1398 = vpop.permute.xlu0 %1397
    %1399 = vrot.lane.b32.xlu0 %v1207, 64
    %v1400 = vpop.permute.xlu0 %1399
    %1401 = vrot.lane.b32.xlu0 %v1209, 64
    %v1402 = vpop.permute.xlu0 %1401
    %1403 = vrot.lane.b32.xlu0 %v1211, 64
    %v1404 = vpop.permute.xlu0 %1403
    %1405 = vrot.lane.b32.xlu0 %v1213, 64
    %v1406 = vpop.permute.xlu0 %1405
    %1407 = vrot.lane.b32.xlu0 %v1215, 64
    %v1408 = vpop.permute.xlu0 %1407
    %1409 = vrot.lane.b32.xlu0 %v1217, 64
    %v1410 = vpop.permute.xlu0 %1409
    %1411 = vrot.lane.b32.xlu0 %v1219, 64
    %v1412 = vpop.permute.xlu0 %1411
    %1413 = vrot.lane.b32.xlu0 %v1221, 64
    %v1414 = vpop.permute.xlu0 %1413
    %1415 = vrot.lane.b32.xlu0 %v1223, 64
    %v1416 = vpop.permute.xlu0 %1415
    %1417 = vrot.lane.b32.xlu0 %v1225, 64
    %v1418 = vpop.permute.xlu0 %1417
    %1419 = vrot.lane.b32.xlu0 %v1227, 64
    %v1420 = vpop.permute.xlu0 %1419
    %1421 = vrot.lane.b32.xlu0 %v1229, 64
    %v1422 = vpop.permute.xlu0 %1421
    %1423 = vrot.lane.b32.xlu0 %v1231, 64
    %v1424 = vpop.permute.xlu0 %1423
    %1425 = vrot.lane.b32.xlu0 %v1233, 64
    %v1426 = vpop.permute.xlu0 %1425
    %1427 = vrot.lane.b32.xlu0 %v1235, 64
    %v1428 = vpop.permute.xlu0 %1427
    %1429 = vrot.lane.b32.xlu0 %v1237, 64
    %v1430 = vpop.permute.xlu0 %1429
    %1431 = vrot.lane.b32.xlu0 %v1239, 64
    %v1432 = vpop.permute.xlu0 %1431
    %1433 = vrot.lane.b32.xlu0 %v1241, 64
    %v1434 = vpop.permute.xlu0 %1433
    %1435 = vrot.lane.b32.xlu0 %v1243, 64
    %v1436 = vpop.permute.xlu0 %1435
    %1437 = vrot.lane.b32.xlu0 %v1245, 64
    %v1438 = vpop.permute.xlu0 %1437
    %1439 = vrot.lane.b32.xlu0 %v1247, 64
    %v1440 = vpop.permute.xlu0 %1439
    %1441 = vrot.lane.b32.xlu0 %v1249, 64
    %v1442 = vpop.permute.xlu0 %1441
    %1443 = vrot.lane.b32.xlu0 %v1251, 64
    %v1444 = vpop.permute.xlu0 %1443
    %1445 = vrot.lane.b32.xlu0 %v1253, 64
    %v1446 = vpop.permute.xlu0 %1445
    %1447 = vrot.lane.b32.xlu0 %v1255, 64
    %v1448 = vpop.permute.xlu0 %1447
    %1449 = vrot.lane.b32.xlu0 %v1257, 64
    %v1450 = vpop.permute.xlu0 %1449
    %1451 = vrot.lane.b32.xlu0 %v1259, 64
    %v1452 = vpop.permute.xlu0 %1451
    %1453 = vrot.lane.b32.xlu0 %v1261, 64
    %v1454 = vpop.permute.xlu0 %1453
    %1455 = vrot.lane.b32.xlu0 %v1263, 64
    %v1456 = vpop.permute.xlu0 %1455
    %1457 = vrot.lane.b32.xlu0 %v1265, 64
    %v1458 = vpop.permute.xlu0 %1457
    %1459 = vrot.lane.b32.xlu0 %v1267, 64
    %v1460 = vpop.permute.xlu0 %1459
    %1461 = vrot.lane.b32.xlu0 %v1269, 64
    %v1462 = vpop.permute.xlu0 %1461
    %1463 = vrot.lane.b32.xlu0 %v1271, 64
    %v1464 = vpop.permute.xlu0 %1463
    %1465 = vrot.lane.b32.xlu0 %v1273, 64
    %v1466 = vpop.permute.xlu0 %1465
    %1467 = vrot.lane.b32.xlu0 %v1275, 64
    %v1468 = vpop.permute.xlu0 %1467
    %1469 = vrot.lane.b32.xlu0 %v1277, 64
    %v1470 = vpop.permute.xlu0 %1469
    %1471 = vrot.lane.b32.xlu0 %v1279, 64
    %v1472 = vpop.permute.xlu0 %1471
    %1473 = vrot.lane.b32.xlu0 %v1281, 64
    %v1474 = vpop.permute.xlu0 %1473
    %1475 = vrot.lane.b32.xlu0 %v1283, 64
    %v1476 = vpop.permute.xlu0 %1475
    %1477 = vrot.lane.b32.xlu0 %v1285, 64
    %v1478 = vpop.permute.xlu0 %1477
    %1479 = vrot.lane.b32.xlu0 %v1287, 64
    %v1480 = vpop.permute.xlu0 %1479
    %1481 = vrot.lane.b32.xlu0 %v1289, 64
    %v1482 = vpop.permute.xlu0 %1481
    %1483 = vrot.lane.b32.xlu0 %v1291, 64
    %v1484 = vpop.permute.xlu0 %1483
    %1485 = vrot.lane.b32.xlu0 %v1293, 64
    %v1486 = vpop.permute.xlu0 %1485
    %1487 = vrot.lane.b32.xlu0 %v1295, 64
    %v1488 = vpop.permute.xlu0 %1487
    %1489 = vrot.lane.b32.xlu0 %v1297, 64
    %v1490 = vpop.permute.xlu0 %1489
    %1491 = vrot.lane.b32.xlu0 %v1299, 64
    %v1492 = vpop.permute.xlu0 %1491
    %1493 = vrot.lane.b32.xlu0 %v1301, 64
    %v1494 = vpop.permute.xlu0 %1493
    %1495 = vrot.lane.b32.xlu0 %v1303, 64
    %v1496 = vpop.permute.xlu0 %1495
    %1497 = vrot.lane.b32.xlu0 %v1305, 64
    %v1498 = vpop.permute.xlu0 %1497
    %1499 = vrot.lane.b32.xlu0 %v1307, 64
    %v1500 = vpop.permute.xlu0 %1499
    %1501 = vrot.lane.b32.xlu0 %v1309, 64
    %v1502 = vpop.permute.xlu0 %1501
    %v1567 = vmax.f32 %v1183, %v1376
    %v1568 = vmax.f32 %v1185, %v1378
    %v1569 = vmax.f32 %v1187, %v1380
    %v1570 = vmax.f32 %v1189, %v1382
    %v1571 = vmax.f32 %v1191, %v1384
    %v1572 = vmax.f32 %v1193, %v1386
    %v1573 = vmax.f32 %v1195, %v1388
    %v1574 = vmax.f32 %v1197, %v1390
    %v1575 = vmax.f32 %v1199, %v1392
    %v1576 = vmax.f32 %v1201, %v1394
    %v1577 = vmax.f32 %v1203, %v1396
    %v1578 = vmax.f32 %v1205, %v1398
    %v1579 = vmax.f32 %v1207, %v1400
    %v1580 = vmax.f32 %v1209, %v1402
    %v1581 = vmax.f32 %v1211, %v1404
    %v1582 = vmax.f32 %v1213, %v1406
    %v1583 = vmax.f32 %v1215, %v1408
    %v1584 = vmax.f32 %v1217, %v1410
    %v1585 = vmax.f32 %v1219, %v1412
    %v1586 = vmax.f32 %v1221, %v1414
    %v1587 = vmax.f32 %v1223, %v1416
    %v1588 = vmax.f32 %v1225, %v1418
    %v1589 = vmax.f32 %v1227, %v1420
    %v1590 = vmax.f32 %v1229, %v1422
    %v1591 = vmax.f32 %v1231, %v1424
    %v1592 = vmax.f32 %v1233, %v1426
    %v1593 = vmax.f32 %v1235, %v1428
    %v1594 = vmax.f32 %v1237, %v1430
    %v1595 = vmax.f32 %v1239, %v1432
    %v1596 = vmax.f32 %v1241, %v1434
    %v1597 = vmax.f32 %v1243, %v1436
    %v1598 = vmax.f32 %v1245, %v1438
    %v1599 = vmax.f32 %v1247, %v1440
    %v1600 = vmax.f32 %v1249, %v1442
    %v1601 = vmax.f32 %v1251, %v1444
    %v1602 = vmax.f32 %v1253, %v1446
    %v1603 = vmax.f32 %v1255, %v1448
    %v1604 = vmax.f32 %v1257, %v1450
    %v1605 = vmax.f32 %v1259, %v1452
    %v1606 = vmax.f32 %v1261, %v1454
    %v1607 = vmax.f32 %v1263, %v1456
    %v1608 = vmax.f32 %v1265, %v1458
    %v1609 = vmax.f32 %v1267, %v1460
    %v1610 = vmax.f32 %v1269, %v1462
    %v1611 = vmax.f32 %v1271, %v1464
    %v1612 = vmax.f32 %v1273, %v1466
    %v1613 = vmax.f32 %v1275, %v1468
    %v1614 = vmax.f32 %v1277, %v1470
    %v1615 = vmax.f32 %v1279, %v1472
    %v1616 = vmax.f32 %v1281, %v1474
    %v1617 = vmax.f32 %v1283, %v1476
    %v1618 = vmax.f32 %v1285, %v1478
    %v1619 = vmax.f32 %v1287, %v1480
    %v1620 = vmax.f32 %v1289, %v1482
    %v1621 = vmax.f32 %v1291, %v1484
    %v1622 = vmax.f32 %v1293, %v1486
    %v1623 = vmax.f32 %v1295, %v1488
    %v1624 = vmax.f32 %v1297, %v1490
    %v1625 = vmax.f32 %v1299, %v1492
    %v1626 = vmax.f32 %v1301, %v1494
    %v1627 = vmax.f32 %v1303, %v1496
    %v1628 = vmax.f32 %v1305, %v1498
    %v1629 = vmax.f32 %v1307, %v1500
    %v1630 = vmax.f32 %v1309, %v1502
    %1695 = vrot.lane.b32.xlu0 %v1184, 64
    %v1696 = vpop.permute.xlu0 %1695
    %1697 = vrot.lane.b32.xlu0 %v1186, 64
    %v1698 = vpop.permute.xlu0 %1697
    %1699 = vrot.lane.b32.xlu0 %v1188, 64
    %v1700 = vpop.permute.xlu0 %1699
    %1701 = vrot.lane.b32.xlu0 %v1190, 64
    %v1702 = vpop.permute.xlu0 %1701
    %1703 = vrot.lane.b32.xlu0 %v1192, 64
    %v1704 = vpop.permute.xlu0 %1703
    %1705 = vrot.lane.b32.xlu0 %v1194, 64
    %v1706 = vpop.permute.xlu0 %1705
    %1707 = vrot.lane.b32.xlu0 %v1196, 64
    %v1708 = vpop.permute.xlu0 %1707
    %1709 = vrot.lane.b32.xlu0 %v1198, 64
    %v1710 = vpop.permute.xlu0 %1709
    %1711 = vrot.lane.b32.xlu0 %v1200, 64
    %v1712 = vpop.permute.xlu0 %1711
    %1713 = vrot.lane.b32.xlu0 %v1202, 64
    %v1714 = vpop.permute.xlu0 %1713
    %1715 = vrot.lane.b32.xlu0 %v1204, 64
    %v1716 = vpop.permute.xlu0 %1715
    %1717 = vrot.lane.b32.xlu0 %v1206, 64
    %v1718 = vpop.permute.xlu0 %1717
    %1719 = vrot.lane.b32.xlu0 %v1208, 64
    %v1720 = vpop.permute.xlu0 %1719
    %1721 = vrot.lane.b32.xlu0 %v1210, 64
    %v1722 = vpop.permute.xlu0 %1721
    %1723 = vrot.lane.b32.xlu0 %v1212, 64
    %v1724 = vpop.permute.xlu0 %1723
    %1725 = vrot.lane.b32.xlu0 %v1214, 64
    %v1726 = vpop.permute.xlu0 %1725
    %1727 = vrot.lane.b32.xlu0 %v1216, 64
    %v1728 = vpop.permute.xlu0 %1727
    %1729 = vrot.lane.b32.xlu0 %v1218, 64
    %v1730 = vpop.permute.xlu0 %1729
    %1731 = vrot.lane.b32.xlu0 %v1220, 64
    %v1732 = vpop.permute.xlu0 %1731
    %1733 = vrot.lane.b32.xlu0 %v1222, 64
    %v1734 = vpop.permute.xlu0 %1733
    %1735 = vrot.lane.b32.xlu0 %v1224, 64
    %v1736 = vpop.permute.xlu0 %1735
    %1737 = vrot.lane.b32.xlu0 %v1226, 64
    %v1738 = vpop.permute.xlu0 %1737
    %1739 = vrot.lane.b32.xlu0 %v1228, 64
    %v1740 = vpop.permute.xlu0 %1739
    %1741 = vrot.lane.b32.xlu0 %v1230, 64
    %v1742 = vpop.permute.xlu0 %1741
    %1743 = vrot.lane.b32.xlu0 %v1232, 64
    %v1744 = vpop.permute.xlu0 %1743
    %1745 = vrot.lane.b32.xlu0 %v1234, 64
    %v1746 = vpop.permute.xlu0 %1745
    %1747 = vrot.lane.b32.xlu0 %v1236, 64
    %v1748 = vpop.permute.xlu0 %1747
    %1749 = vrot.lane.b32.xlu0 %v1238, 64
    %v1750 = vpop.permute.xlu0 %1749
    %1751 = vrot.lane.b32.xlu0 %v1240, 64
    %v1752 = vpop.permute.xlu0 %1751
    %1753 = vrot.lane.b32.xlu0 %v1242, 64
    %v1754 = vpop.permute.xlu0 %1753
    %1755 = vrot.lane.b32.xlu0 %v1244, 64
    %v1756 = vpop.permute.xlu0 %1755
    %1757 = vrot.lane.b32.xlu0 %v1246, 64
    %v1758 = vpop.permute.xlu0 %1757
    %1759 = vrot.lane.b32.xlu0 %v1248, 64
    %v1760 = vpop.permute.xlu0 %1759
    %1761 = vrot.lane.b32.xlu0 %v1250, 64
    %v1762 = vpop.permute.xlu0 %1761
    %1763 = vrot.lane.b32.xlu0 %v1252, 64
    %v1764 = vpop.permute.xlu0 %1763
    %1765 = vrot.lane.b32.xlu0 %v1254, 64
    %v1766 = vpop.permute.xlu0 %1765
    %1767 = vrot.lane.b32.xlu0 %v1256, 64
    %v1768 = vpop.permute.xlu0 %1767
    %1769 = vrot.lane.b32.xlu0 %v1258, 64
    %v1770 = vpop.permute.xlu0 %1769
    %1771 = vrot.lane.b32.xlu0 %v1260, 64
    %v1772 = vpop.permute.xlu0 %1771
    %1773 = vrot.lane.b32.xlu0 %v1262, 64
    %v1774 = vpop.permute.xlu0 %1773
    %1775 = vrot.lane.b32.xlu0 %v1264, 64
    %v1776 = vpop.permute.xlu0 %1775
    %1777 = vrot.lane.b32.xlu0 %v1266, 64
    %v1778 = vpop.permute.xlu0 %1777
    %1779 = vrot.lane.b32.xlu0 %v1268, 64
    %v1780 = vpop.permute.xlu0 %1779
    %1781 = vrot.lane.b32.xlu0 %v1270, 64
    %v1782 = vpop.permute.xlu0 %1781
    %1783 = vrot.lane.b32.xlu0 %v1272, 64
    %v1784 = vpop.permute.xlu0 %1783
    %1785 = vrot.lane.b32.xlu0 %v1274, 64
    %v1786 = vpop.permute.xlu0 %1785
    %1787 = vrot.lane.b32.xlu0 %v1276, 64
    %v1788 = vpop.permute.xlu0 %1787
    %1789 = vrot.lane.b32.xlu0 %v1278, 64
    %v1790 = vpop.permute.xlu0 %1789
    %1791 = vrot.lane.b32.xlu0 %v1280, 64
    %v1792 = vpop.permute.xlu0 %1791
    %1793 = vrot.lane.b32.xlu0 %v1282, 64
    %v1794 = vpop.permute.xlu0 %1793
    %1795 = vrot.lane.b32.xlu0 %v1284, 64
    %v1796 = vpop.permute.xlu0 %1795
    %1797 = vrot.lane.b32.xlu0 %v1286, 64
    %v1798 = vpop.permute.xlu0 %1797
    %1799 = vrot.lane.b32.xlu0 %v1288, 64
    %v1800 = vpop.permute.xlu0 %1799
    %1801 = vrot.lane.b32.xlu0 %v1290, 64
    %v1802 = vpop.permute.xlu0 %1801
    %1803 = vrot.lane.b32.xlu0 %v1292, 64
    %v1804 = vpop.permute.xlu0 %1803
    %1805 = vrot.lane.b32.xlu0 %v1294, 64
    %v1806 = vpop.permute.xlu0 %1805
    %1807 = vrot.lane.b32.xlu0 %v1296, 64
    %v1808 = vpop.permute.xlu0 %1807
    %1809 = vrot.lane.b32.xlu0 %v1298, 64
    %v1810 = vpop.permute.xlu0 %1809
    %1811 = vrot.lane.b32.xlu0 %v1300, 64
    %v1812 = vpop.permute.xlu0 %1811
    %1813 = vrot.lane.b32.xlu0 %v1302, 64
    %v1814 = vpop.permute.xlu0 %1813
    %1815 = vrot.lane.b32.xlu0 %v1304, 64
    %v1816 = vpop.permute.xlu0 %1815
    %1817 = vrot.lane.b32.xlu0 %v1306, 64
    %v1818 = vpop.permute.xlu0 %1817
    %1819 = vrot.lane.b32.xlu0 %v1308, 64
    %v1820 = vpop.permute.xlu0 %1819
    %1821 = vrot.lane.b32.xlu0 %v1310, 64
    %v1822 = vpop.permute.xlu0 %1821
    %v1887 = vmax.f32 %v1184, %v1696
    %v1888 = vmax.f32 %v1186, %v1698
    %v1889 = vmax.f32 %v1188, %v1700
    %v1890 = vmax.f32 %v1190, %v1702
    %v1891 = vmax.f32 %v1192, %v1704
    %v1892 = vmax.f32 %v1194, %v1706
    %v1893 = vmax.f32 %v1196, %v1708
    %v1894 = vmax.f32 %v1198, %v1710
    %v1895 = vmax.f32 %v1200, %v1712
    %v1896 = vmax.f32 %v1202, %v1714
    %v1897 = vmax.f32 %v1204, %v1716
    %v1898 = vmax.f32 %v1206, %v1718
    %v1899 = vmax.f32 %v1208, %v1720
    %v1900 = vmax.f32 %v1210, %v1722
    %v1901 = vmax.f32 %v1212, %v1724
    %v1902 = vmax.f32 %v1214, %v1726
    %v1903 = vmax.f32 %v1216, %v1728
    %v1904 = vmax.f32 %v1218, %v1730
    %v1905 = vmax.f32 %v1220, %v1732
    %v1906 = vmax.f32 %v1222, %v1734
    %v1907 = vmax.f32 %v1224, %v1736
    %v1908 = vmax.f32 %v1226, %v1738
    %v1909 = vmax.f32 %v1228, %v1740
    %v1910 = vmax.f32 %v1230, %v1742
    %v1911 = vmax.f32 %v1232, %v1744
    %v1912 = vmax.f32 %v1234, %v1746
    %v1913 = vmax.f32 %v1236, %v1748
    %v1914 = vmax.f32 %v1238, %v1750
    %v1915 = vmax.f32 %v1240, %v1752
    %v1916 = vmax.f32 %v1242, %v1754
    %v1917 = vmax.f32 %v1244, %v1756
    %v1918 = vmax.f32 %v1246, %v1758
    %v1919 = vmax.f32 %v1248, %v1760
    %v1920 = vmax.f32 %v1250, %v1762
    %v1921 = vmax.f32 %v1252, %v1764
    %v1922 = vmax.f32 %v1254, %v1766
    %v1923 = vmax.f32 %v1256, %v1768
    %v1924 = vmax.f32 %v1258, %v1770
    %v1925 = vmax.f32 %v1260, %v1772
    %v1926 = vmax.f32 %v1262, %v1774
    %v1927 = vmax.f32 %v1264, %v1776
    %v1928 = vmax.f32 %v1266, %v1778
    %v1929 = vmax.f32 %v1268, %v1780
    %v1930 = vmax.f32 %v1270, %v1782
    %v1931 = vmax.f32 %v1272, %v1784
    %v1932 = vmax.f32 %v1274, %v1786
    %v1933 = vmax.f32 %v1276, %v1788
    %v1934 = vmax.f32 %v1278, %v1790
    %v1935 = vmax.f32 %v1280, %v1792
    %v1936 = vmax.f32 %v1282, %v1794
    %v1937 = vmax.f32 %v1284, %v1796
    %v1938 = vmax.f32 %v1286, %v1798
    %v1939 = vmax.f32 %v1288, %v1800
    %v1940 = vmax.f32 %v1290, %v1802
    %v1941 = vmax.f32 %v1292, %v1804
    %v1942 = vmax.f32 %v1294, %v1806
    %v1943 = vmax.f32 %v1296, %v1808
    %v1944 = vmax.f32 %v1298, %v1810
    %v1945 = vmax.f32 %v1300, %v1812
    %v1946 = vmax.f32 %v1302, %v1814
    %v1947 = vmax.f32 %v1304, %v1816
    %v1948 = vmax.f32 %v1306, %v1818
    %v1949 = vmax.f32 %v1308, %v1820
    %v1950 = vmax.f32 %v1310, %v1822
    %v1951 = vmax.f32 %v1567, %v1887
    %v1952 = vmax.f32 %v1568, %v1888
    %v1953 = vmax.f32 %v1569, %v1889
    %v1954 = vmax.f32 %v1570, %v1890
    %v1955 = vmax.f32 %v1571, %v1891
    %v1956 = vmax.f32 %v1572, %v1892
    %v1957 = vmax.f32 %v1573, %v1893
    %v1958 = vmax.f32 %v1574, %v1894
    %v1959 = vmax.f32 %v1575, %v1895
    %v1960 = vmax.f32 %v1576, %v1896
    %v1961 = vmax.f32 %v1577, %v1897
    %v1962 = vmax.f32 %v1578, %v1898
    %v1963 = vmax.f32 %v1579, %v1899
    %v1964 = vmax.f32 %v1580, %v1900
    %v1965 = vmax.f32 %v1581, %v1901
    %v1966 = vmax.f32 %v1582, %v1902
    %v1967 = vmax.f32 %v1583, %v1903
    %v1968 = vmax.f32 %v1584, %v1904
    %v1969 = vmax.f32 %v1585, %v1905
    %v1970 = vmax.f32 %v1586, %v1906
    %v1971 = vmax.f32 %v1587, %v1907
    %v1972 = vmax.f32 %v1588, %v1908
    %v1973 = vmax.f32 %v1589, %v1909
    %v1974 = vmax.f32 %v1590, %v1910
    %v1975 = vmax.f32 %v1591, %v1911
    %v1976 = vmax.f32 %v1592, %v1912
    %v1977 = vmax.f32 %v1593, %v1913
    %v1978 = vmax.f32 %v1594, %v1914
    %v1979 = vmax.f32 %v1595, %v1915
    %v1980 = vmax.f32 %v1596, %v1916
    %v1981 = vmax.f32 %v1597, %v1917
    %v1982 = vmax.f32 %v1598, %v1918
    %v1983 = vmax.f32 %v1599, %v1919
    %v1984 = vmax.f32 %v1600, %v1920
    %v1985 = vmax.f32 %v1601, %v1921
    %v1986 = vmax.f32 %v1602, %v1922
    %v1987 = vmax.f32 %v1603, %v1923
    %v1988 = vmax.f32 %v1604, %v1924
    %v1989 = vmax.f32 %v1605, %v1925
    %v1990 = vmax.f32 %v1606, %v1926
    %v1991 = vmax.f32 %v1607, %v1927
    %v1992 = vmax.f32 %v1608, %v1928
    %v1993 = vmax.f32 %v1609, %v1929
    %v1994 = vmax.f32 %v1610, %v1930
    %v1995 = vmax.f32 %v1611, %v1931
    %v1996 = vmax.f32 %v1612, %v1932
    %v1997 = vmax.f32 %v1613, %v1933
    %v1998 = vmax.f32 %v1614, %v1934
    %v1999 = vmax.f32 %v1615, %v1935
    %v2000 = vmax.f32 %v1616, %v1936
    %v2001 = vmax.f32 %v1617, %v1937
    %v2002 = vmax.f32 %v1618, %v1938
    %v2003 = vmax.f32 %v1619, %v1939
    %v2004 = vmax.f32 %v1620, %v1940
    %v2005 = vmax.f32 %v1621, %v1941
    %v2006 = vmax.f32 %v1622, %v1942
    %v2007 = vmax.f32 %v1623, %v1943
    %v2008 = vmax.f32 %v1624, %v1944
    %v2009 = vmax.f32 %v1625, %v1945
    %v2010 = vmax.f32 %v1626, %v1946
    %v2011 = vmax.f32 %v1627, %v1947
    %v2012 = vmax.f32 %v1628, %v1948
    %v2013 = vmax.f32 %v1629, %v1949
    %v2014 = vmax.f32 %v1630, %v1950
    %v2015 = vld [vmem:[#allocation8] sm:$0xf]
    %v2016 = vld [vmem:[#allocation8 + $0x4] sm:$0xf]
    %v2017 = vld [vmem:[#allocation8 + $0x8] sm:$0xf]
    %v2018 = vld [vmem:[#allocation8 + $0xc] sm:$0xf]
    %v2019 = vld [vmem:[#allocation8 + $0x10] sm:$0xf]
    %v2020 = vld [vmem:[#allocation8 + $0x14] sm:$0xf]
    %v2021 = vld [vmem:[#allocation8 + $0x18] sm:$0xf]
    %v2022 = vld [vmem:[#allocation8 + $0x1c] sm:$0xf]
    %v2023 = vld [vmem:[#allocation8 + $0x20] sm:$0xf]
    %v2024 = vld [vmem:[#allocation8 + $0x24] sm:$0xf]
    %v2025 = vld [vmem:[#allocation8 + $0x28] sm:$0xf]
    %v2026 = vld [vmem:[#allocation8 + $0x2c] sm:$0xf]
    %v2027 = vld [vmem:[#allocation8 + $0x30] sm:$0xf]
    %v2028 = vld [vmem:[#allocation8 + $0x34] sm:$0xf]
    %v2029 = vld [vmem:[#allocation8 + $0x38] sm:$0xf]
    %v2030 = vld [vmem:[#allocation8 + $0x3c] sm:$0xf]
    %v2031 = vld [vmem:[#allocation8 + $0x40] sm:$0xf]
    %v2032 = vld [vmem:[#allocation8 + $0x44] sm:$0xf]
    %v2033 = vld [vmem:[#allocation8 + $0x48] sm:$0xf]
    %v2034 = vld [vmem:[#allocation8 + $0x4c] sm:$0xf]
    %v2035 = vld [vmem:[#allocation8 + $0x50] sm:$0xf]
    %v2036 = vld [vmem:[#allocation8 + $0x54] sm:$0xf]
    %v2037 = vld [vmem:[#allocation8 + $0x58] sm:$0xf]
    %v2038 = vld [vmem:[#allocation8 + $0x5c] sm:$0xf]
    %v2039 = vld [vmem:[#allocation8 + $0x60] sm:$0xf]
    %v2040 = vld [vmem:[#allocation8 + $0x64] sm:$0xf]
    %v2041 = vld [vmem:[#allocation8 + $0x68] sm:$0xf]
    %v2042 = vld [vmem:[#allocation8 + $0x6c] sm:$0xf]
    %v2043 = vld [vmem:[#allocation8 + $0x70] sm:$0xf]
    %v2044 = vld [vmem:[#allocation8 + $0x74] sm:$0xf]
    %v2045 = vld [vmem:[#allocation8 + $0x78] sm:$0xf]
    %v2046 = vld [vmem:[#allocation8 + $0x7c] sm:$0xf]
    %v2047 = vld [vmem:[#allocation8 + $0x80] sm:$0xf]
    %v2048 = vld [vmem:[#allocation8 + $0x84] sm:$0xf]
    %v2049 = vld [vmem:[#allocation8 + $0x88] sm:$0xf]
    %v2050 = vld [vmem:[#allocation8 + $0x8c] sm:$0xf]
    %v2051 = vld [vmem:[#allocation8 + $0x90] sm:$0xf]
    %v2052 = vld [vmem:[#allocation8 + $0x94] sm:$0xf]
    %v2053 = vld [vmem:[#allocation8 + $0x98] sm:$0xf]
    %v2054 = vld [vmem:[#allocation8 + $0x9c] sm:$0xf]
    %v2055 = vld [vmem:[#allocation8 + $0xa0] sm:$0xf]
    %v2056 = vld [vmem:[#allocation8 + $0xa4] sm:$0xf]
    %v2057 = vld [vmem:[#allocation8 + $0xa8] sm:$0xf]
    %v2058 = vld [vmem:[#allocation8 + $0xac] sm:$0xf]
    %v2059 = vld [vmem:[#allocation8 + $0xb0] sm:$0xf]
    %v2060 = vld [vmem:[#allocation8 + $0xb4] sm:$0xf]
    %v2061 = vld [vmem:[#allocation8 + $0xb8] sm:$0xf]
    %v2062 = vld [vmem:[#allocation8 + $0xbc] sm:$0xf]
    %v2063 = vld [vmem:[#allocation8 + $0xc0] sm:$0xf]
    %v2064 = vld [vmem:[#allocation8 + $0xc4] sm:$0xf]
    %v2065 = vld [vmem:[#allocation8 + $0xc8] sm:$0xf]
    %v2066 = vld [vmem:[#allocation8 + $0xcc] sm:$0xf]
    %v2067 = vld [vmem:[#allocation8 + $0xd0] sm:$0xf]
    %v2068 = vld [vmem:[#allocation8 + $0xd4] sm:$0xf]
    %v2069 = vld [vmem:[#allocation8 + $0xd8] sm:$0xf]
    %v2070 = vld [vmem:[#allocation8 + $0xdc] sm:$0xf]
    %v2071 = vld [vmem:[#allocation8 + $0xe0] sm:$0xf]
    %v2072 = vld [vmem:[#allocation8 + $0xe4] sm:$0xf]
    %v2073 = vld [vmem:[#allocation8 + $0xe8] sm:$0xf]
    %v2074 = vld [vmem:[#allocation8 + $0xec] sm:$0xf]
    %v2075 = vld [vmem:[#allocation8 + $0xf0] sm:$0xf]
    %v2076 = vld [vmem:[#allocation8 + $0xf4] sm:$0xf]
    %v2077 = vld [vmem:[#allocation8 + $0xf8] sm:$0xf]
    %v2078 = vld [vmem:[#allocation8 + $0xfc] sm:$0xf]
    %v2079 = vld [vmem:[#allocation8 + $0x100] sm:$0xf]
    %v2080 = vld [vmem:[#allocation8 + $0x104] sm:$0xf]
    %v2081 = vld [vmem:[#allocation8 + $0x108] sm:$0xf]
    %v2082 = vld [vmem:[#allocation8 + $0x10c] sm:$0xf]
    %v2083 = vld [vmem:[#allocation8 + $0x110] sm:$0xf]
    %v2084 = vld [vmem:[#allocation8 + $0x114] sm:$0xf]
    %v2085 = vld [vmem:[#allocation8 + $0x118] sm:$0xf]
    %v2086 = vld [vmem:[#allocation8 + $0x11c] sm:$0xf]
    %v2087 = vpack.c.bf16 0.0, 0.0
    %v2088 = vpack.c.bf16 %v1951, 0.0
    %v2089 = vpack.c.bf16 %v1953, %v1952
    %v2090 = vpack.c.bf16 %v1955, %v1954
    %v2091 = vpack.c.bf16 %v1957, %v1956
    %v2092 = vpack.c.bf16 %v1959, 0.0
    %v2093 = vpack.c.bf16 %v1961, %v1960
    %v2094 = vpack.c.bf16 %v1963, %v1962
    %v2095 = vpack.c.bf16 %v1965, %v1964
    %v2096 = vpack.c.bf16 %v1967, 0.0
    %v2097 = vpack.c.bf16 %v1969, %v1968
    %v2098 = vpack.c.bf16 %v1971, %v1970
    %v2099 = vpack.c.bf16 %v1973, %v1972
    %v2100 = vpack.c.bf16 %v1975, 0.0
    %v2101 = vpack.c.bf16 %v1977, %v1976
    %v2102 = vpack.c.bf16 %v1979, %v1978
    %v2103 = vpack.c.bf16 %v1981, %v1980
    %v2104 = vpack.c.bf16 %v1983, 0.0
    %v2105 = vpack.c.bf16 %v1985, %v1984
    %v2106 = vpack.c.bf16 %v1987, %v1986
    %v2107 = vpack.c.bf16 %v1989, %v1988
    %v2108 = vpack.c.bf16 %v1991, 0.0
    %v2109 = vpack.c.bf16 %v1993, %v1992
    %v2110 = vpack.c.bf16 %v1995, %v1994
    %v2111 = vpack.c.bf16 %v1997, %v1996
    %v2112 = vpack.c.bf16 %v1999, 0.0
    %v2113 = vpack.c.bf16 %v2001, %v2000
    %v2114 = vpack.c.bf16 %v2003, %v2002
    %v2115 = vpack.c.bf16 %v2005, %v2004
    %v2116 = vpack.c.bf16 %v1952, %v1951
    %v2117 = vpack.c.bf16 %v1954, %v1953
    %v2118 = vpack.c.bf16 %v1956, %v1955
    %v2119 = vpack.c.bf16 %v1958, %v1957
    %v2120 = vpack.c.bf16 %v1960, %v1959
    %v2121 = vpack.c.bf16 %v1962, %v1961
    %v2122 = vpack.c.bf16 %v1964, %v1963
    %v2123 = vpack.c.bf16 %v1966, %v1965
    %v2124 = vpack.c.bf16 %v1968, %v1967
    %v2125 = vpack.c.bf16 %v1970, %v1969
    %v2126 = vpack.c.bf16 %v1972, %v1971
    %v2127 = vpack.c.bf16 %v1974, %v1973
    %v2128 = vpack.c.bf16 %v1976, %v1975
    %v2129 = vpack.c.bf16 %v1978, %v1977
    %v2130 = vpack.c.bf16 %v1980, %v1979
    %v2131 = vpack.c.bf16 %v1982, %v1981
    %v2132 = vpack.c.bf16 %v1984, %v1983
    %v2133 = vpack.c.bf16 %v1986, %v1985
    %v2134 = vpack.c.bf16 %v1988, %v1987
    %v2135 = vpack.c.bf16 %v1990, %v1989
    %v2136 = vpack.c.bf16 %v1992, %v1991
    %v2137 = vpack.c.bf16 %v1994, %v1993
    %v2138 = vpack.c.bf16 %v1996, %v1995
    %v2139 = vpack.c.bf16 %v1998, %v1997
    %v2140 = vpack.c.bf16 %v2000, %v1999
    %v2141 = vpack.c.bf16 %v2002, %v2001
    %v2142 = vpack.c.bf16 %v2004, %v2003
    %v2143 = vpack.c.bf16 %v2006, %v2005
    %v2152 = vunpack.c.l.b16 %v2023
    %v2153 = vunpack.c.l.b16 %v2024
    %v2154 = vunpack.c.l.b16 %v2025
    %v2155 = vunpack.c.l.b16 %v2026
    %v2156 = vunpack.c.l.b16 %v2027
    %v2157 = vunpack.c.l.b16 %v2028
    %v2158 = vunpack.c.l.b16 %v2029
    %v2159 = vunpack.c.l.b16 %v2030
    %v2160 = vpack.c.b16 %v2153, %v2152
    %v2161 = vpack.c.b16 %v2155, %v2154
    %v2162 = vpack.c.b16 %v2157, %v2156
    %v2163 = vpack.c.b16 %v2159, %v2158
    %vm2168 = vcmask 523264
    %v2170 = vsel %vm2168, %v2087, 0
    %v2173 = vsel %vm2168, %v2116, 0
    %v2176 = vsel %vm2168, %v2117, 0
    %v2179 = vsel %vm2168, %v2118, 0
    %v2182 = vsel %vm2168, %v2119, 0
    %v2185 = vsel %vm2168, %v2120, 0
    %v2188 = vsel %vm2168, %v2121, 0
    %v2191 = vsel %vm2168, %v2122, 0
    %v2194 = vsel %vm2168, %v2123, 0
    %v2197 = vsel %vm2168, %v2124, 0
    %v2200 = vsel %vm2168, %v2125, 0
    %v2203 = vsel %vm2168, %v2126, 0
    %v2206 = vsel %vm2168, %v2127, 0
    %v2209 = vsel %vm2168, %v2128, 0
    %v2212 = vsel %vm2168, %v2129, 0
    %v2215 = vsel %vm2168, %v2130, 0
    %v2218 = vsel %vm2168, %v2131, 0
    %v2221 = vsel %vm2168, %v2132, 0
    %v2224 = vsel %vm2168, %v2133, 0
    %v2227 = vsel %vm2168, %v2134, 0
    %v2230 = vsel %vm2168, %v2135, 0
    %v2233 = vsel %vm2168, %v2136, 0
    %v2236 = vsel %vm2168, %v2137, 0
    %v2239 = vsel %vm2168, %v2138, 0
    %v2242 = vsel %vm2168, %v2139, 0
    %v2245 = vsel %vm2168, %v2140, 0
    %v2248 = vsel %vm2168, %v2141, 0
    %v2251 = vsel %vm2168, %v2142, 0
    %v2254 = vsel %vm2168, %v2143, 0
    %2256 = vmatprep.subr.bf16.mxu0 0
    %2257 = vmatpush1.bf16.msra.mxu0 0
    %2258 = vmatprep.subr.bf16.mxu0 0
    %2259 = vmatpush1.bf16.msra.mxu0 0
    %2260 = vmatprep.subr.bf16.mxu0 0
    %2261 = vmatpush1.bf16.msra.mxu0 0
    %2262 = vmatprep.subr.bf16.mxu0 0
    %2263 = vmatpush1.bf16.msra.mxu0 0
    %2264 = vmatprep.subr.bf16.mxu0 0
    %2265 = vmatpush1.bf16.msra.mxu0 %v2163
    %2266 = vmatprep.subr.bf16.mxu0 0
    %2267 = vmatpush1.bf16.msra.mxu0 %v2162
    %2268 = vmatprep.subr.bf16.mxu0 0
    %2269 = vmatpush1.bf16.msra.mxu0 %v2161
    %2270 = vmatprep.subr.bf16.mxu0 0
    %2271 = vmatpush1.bf16.msra.mxu0 %v2160
    %2272 = vmatprep.subr.bf16.mxu0 0
    %2273 = vmatpush2.bf16.msra.mxu0 0
    %2274 = vmatprep.subr.bf16.mxu0 0
    %2275 = vmatpush2.bf16.msra.mxu0 0
    %2276 = vmatprep.subr.bf16.mxu0 0
    %2277 = vmatpush2.bf16.msra.mxu0 0
    %2278 = vmatprep.subr.bf16.mxu0 0
    %2279 = vmatpush2.bf16.msra.mxu0 0
    %2280 = vmatprep.subr.bf16.mxu0 0
    %2281 = vmatpush2.bf16.msra.mxu0 0
    %2282 = vmatprep.subr.bf16.mxu0 0
    %2283 = vmatpush2.bf16.msra.mxu0 0
    %2284 = vmatprep.subr.bf16.mxu0 0
    %2285 = vmatpush2.bf16.msra.mxu0 0
    %2286 = vmatprep.subr.bf16.mxu0 0
    %2287 = vmatpush2.bf16.msra.mxu0 0
    %2288 = vmatprep.mubr.bf16.mxu0 0
    %2289 = vmatmul.mubr.bf16.gmra.mxu0 %v2170
    %v2290 = vpop.f32.mrf.mxu0
    %v2291 = vadd.f32 0.0, %v2290
    %v2292 = vpop.f32.mrf.mxu0
    %v2293 = vpop.f32.mrf.mxu0
    %v2294 = vadd.f32 0.0, %v2293
    %v2295 = vpop.f32.mrf.mxu0
    %2296 = vmatprep.mubr.bf16.mxu0 0
    %2297 = vmatmul.mubr.bf16.gmra.mxu0 %v2170
    %v2298 = vpop.f32.mrf.mxu0
    %v2299 = vadd.f32 0.0, %v2298
    %v2300 = vpop.f32.mrf.mxu0
    %v2301 = vpop.f32.mrf.mxu0
    %v2302 = vadd.f32 0.0, %v2301
    %v2303 = vpop.f32.mrf.mxu0
    %2304 = vmatprep.mubr.bf16.mxu0 0
    %2305 = vmatmul.mubr.bf16.gmra.mxu0 %v2170
    %v2306 = vpop.f32.mrf.mxu0
    %v2307 = vadd.f32 0.0, %v2306
    %v2308 = vpop.f32.mrf.mxu0
    %v2309 = vpop.f32.mrf.mxu0
    %v2310 = vadd.f32 0.0, %v2309
    %v2311 = vpop.f32.mrf.mxu0
    %2312 = vmatprep.mubr.bf16.mxu0 0
    %2313 = vmatmul.mubr.bf16.gmra.mxu0 %v2170
    %v2314 = vpop.f32.mrf.mxu0
    %v2315 = vadd.f32 0.0, %v2314
    %v2316 = vpop.f32.mrf.mxu0
    %v2317 = vpop.f32.mrf.mxu0
    %v2318 = vadd.f32 0.0, %v2317
    %v2319 = vpop.f32.mrf.mxu0
    %2320 = vmatprep.mubr.bf16.mxu0 0
    %2321 = vmatmul.mubr.bf16.gmra.mxu0 %v2173
    %v2322 = vpop.f32.mrf.mxu0
    %v2323 = vadd.f32 0.0, %v2322
    %v2324 = vpop.f32.mrf.mxu0
    %v2325 = vpop.f32.mrf.mxu0
    %v2326 = vadd.f32 0.0, %v2325
    %v2327 = vpop.f32.mrf.mxu0
    %2328 = vmatprep.mubr.bf16.mxu0 0
    %2329 = vmatmul.mubr.bf16.gmra.mxu0 %v2176
    %v2330 = vpop.f32.mrf.mxu0
    %v2331 = vadd.f32 0.0, %v2330
    %v2332 = vpop.f32.mrf.mxu0
    %v2333 = vpop.f32.mrf.mxu0
    %v2334 = vadd.f32 0.0, %v2333
    %v2335 = vpop.f32.mrf.mxu0
    %2336 = vmatprep.mubr.bf16.mxu0 0
    %2337 = vmatmul.mubr.bf16.gmra.mxu0 %v2179
    %v2338 = vpop.f32.mrf.mxu0
    %v2339 = vadd.f32 0.0, %v2338
    %v2340 = vpop.f32.mrf.mxu0
    %v2341 = vpop.f32.mrf.mxu0
    %v2342 = vadd.f32 0.0, %v2341
    %v2343 = vpop.f32.mrf.mxu0
    %2344 = vmatprep.mubr.bf16.mxu0 0
    %2345 = vmatmul.mubr.bf16.gmra.mxu0 %v2182
    %v2346 = vpop.f32.mrf.mxu0
    %v2347 = vadd.f32 0.0, %v2346
    %v2348 = vpop.f32.mrf.mxu0
    %v2349 = vpop.f32.mrf.mxu0
    %v2350 = vadd.f32 0.0, %v2349
    %v2351 = vpop.f32.mrf.mxu0
    %2352 = vmatprep.mubr.bf16.mxu0 0
    %2353 = vmatmul.mubr.bf16.gmra.mxu0 %v2185
    %v2354 = vpop.f32.mrf.mxu0
    %v2355 = vadd.f32 0.0, %v2354
    %v2356 = vpop.f32.mrf.mxu0
    %v2357 = vpop.f32.mrf.mxu0
    %v2358 = vadd.f32 0.0, %v2357
    %v2359 = vpop.f32.mrf.mxu0
    %2360 = vmatprep.mubr.bf16.mxu0 0
    %2361 = vmatmul.mubr.bf16.gmra.mxu0 %v2188
    %v2362 = vpop.f32.mrf.mxu0
    %v2363 = vadd.f32 0.0, %v2362
    %v2364 = vpop.f32.mrf.mxu0
    %v2365 = vpop.f32.mrf.mxu0
    %v2366 = vadd.f32 0.0, %v2365
    %v2367 = vpop.f32.mrf.mxu0
    %2368 = vmatprep.mubr.bf16.mxu0 0
    %2369 = vmatmul.mubr.bf16.gmra.mxu0 %v2191
    %v2370 = vpop.f32.mrf.mxu0
    %v2371 = vadd.f32 0.0, %v2370
    %v2372 = vpop.f32.mrf.mxu0
    %v2373 = vpop.f32.mrf.mxu0
    %v2374 = vadd.f32 0.0, %v2373
    %v2375 = vpop.f32.mrf.mxu0
    %2376 = vmatprep.mubr.bf16.mxu0 0
    %2377 = vmatmul.mubr.bf16.gmra.mxu0 %v2194
    %v2378 = vpop.f32.mrf.mxu0
    %v2379 = vadd.f32 0.0, %v2378
    %v2380 = vpop.f32.mrf.mxu0
    %v2381 = vpop.f32.mrf.mxu0
    %v2382 = vadd.f32 0.0, %v2381
    %v2383 = vpop.f32.mrf.mxu0
    %2384 = vmatprep.mubr.bf16.mxu0 0
    %2385 = vmatmul.mubr.bf16.gmra.mxu0 %v2197
    %v2386 = vpop.f32.mrf.mxu0
    %v2387 = vadd.f32 0.0, %v2386
    %v2388 = vpop.f32.mrf.mxu0
    %v2389 = vpop.f32.mrf.mxu0
    %v2390 = vadd.f32 0.0, %v2389
    %v2391 = vpop.f32.mrf.mxu0
    %2392 = vmatprep.mubr.bf16.mxu0 0
    %2393 = vmatmul.mubr.bf16.gmra.mxu0 %v2200
    %v2394 = vpop.f32.mrf.mxu0
    %v2395 = vadd.f32 0.0, %v2394
    %v2396 = vpop.f32.mrf.mxu0
    %v2397 = vpop.f32.mrf.mxu0
    %v2398 = vadd.f32 0.0, %v2397
    %v2399 = vpop.f32.mrf.mxu0
    %2400 = vmatprep.mubr.bf16.mxu0 0
    %2401 = vmatmul.mubr.bf16.gmra.mxu0 %v2203
    %v2402 = vpop.f32.mrf.mxu0
    %v2403 = vadd.f32 0.0, %v2402
    %v2404 = vpop.f32.mrf.mxu0
    %v2405 = vpop.f32.mrf.mxu0
    %v2406 = vadd.f32 0.0, %v2405
    %v2407 = vpop.f32.mrf.mxu0
    %2408 = vmatprep.mubr.bf16.mxu0 0
    %2409 = vmatmul.mubr.bf16.gmra.mxu0 %v2206
    %v2410 = vpop.f32.mrf.mxu0
    %v2411 = vadd.f32 0.0, %v2410
    %v2412 = vpop.f32.mrf.mxu0
    %v2413 = vpop.f32.mrf.mxu0
    %v2414 = vadd.f32 0.0, %v2413
    %v2415 = vpop.f32.mrf.mxu0
    %2416 = vmatprep.mubr.bf16.mxu0 0
    %2417 = vmatmul.mubr.bf16.gmra.mxu0 %v2209
    %v2418 = vpop.f32.mrf.mxu0
    %v2419 = vadd.f32 0.0, %v2418
    %v2420 = vpop.f32.mrf.mxu0
    %v2421 = vpop.f32.mrf.mxu0
    %v2422 = vadd.f32 0.0, %v2421
    %v2423 = vpop.f32.mrf.mxu0
    %2424 = vmatprep.mubr.bf16.mxu0 0
    %2425 = vmatmul.mubr.bf16.gmra.mxu0 %v2212
    %v2426 = vpop.f32.mrf.mxu0
    %v2427 = vadd.f32 0.0, %v2426
    %v2428 = vpop.f32.mrf.mxu0
    %v2429 = vpop.f32.mrf.mxu0
    %v2430 = vadd.f32 0.0, %v2429
    %v2431 = vpop.f32.mrf.mxu0
    %2432 = vmatprep.mubr.bf16.mxu0 0
    %2433 = vmatmul.mubr.bf16.gmra.mxu0 %v2215
    %v2434 = vpop.f32.mrf.mxu0
    %v2435 = vadd.f32 0.0, %v2434
    %v2436 = vpop.f32.mrf.mxu0
    %v2437 = vpop.f32.mrf.mxu0
    %v2438 = vadd.f32 0.0, %v2437
    %v2439 = vpop.f32.mrf.mxu0
    %2440 = vmatprep.mubr.bf16.mxu0 0
    %2441 = vmatmul.mubr.bf16.gmra.mxu0 %v2218
    %v2442 = vpop.f32.mrf.mxu0
    %v2443 = vadd.f32 0.0, %v2442
    %v2444 = vpop.f32.mrf.mxu0
    %v2445 = vpop.f32.mrf.mxu0
    %v2446 = vadd.f32 0.0, %v2445
    %v2447 = vpop.f32.mrf.mxu0
    %2448 = vmatprep.mubr.bf16.mxu0 0
    %2449 = vmatmul.mubr.bf16.gmra.mxu0 %v2221
    %v2450 = vpop.f32.mrf.mxu0
    %v2451 = vadd.f32 0.0, %v2450
    %v2452 = vpop.f32.mrf.mxu0
    %v2453 = vpop.f32.mrf.mxu0
    %v2454 = vadd.f32 0.0, %v2453
    %v2455 = vpop.f32.mrf.mxu0
    %2456 = vmatprep.mubr.bf16.mxu0 0
    %2457 = vmatmul.mubr.bf16.gmra.mxu0 %v2224
    %v2458 = vpop.f32.mrf.mxu0
    %v2459 = vadd.f32 0.0, %v2458
    %v2460 = vpop.f32.mrf.mxu0
    %v2461 = vpop.f32.mrf.mxu0
    %v2462 = vadd.f32 0.0, %v2461
    %v2463 = vpop.f32.mrf.mxu0
    %2464 = vmatprep.mubr.bf16.mxu0 0
    %2465 = vmatmul.mubr.bf16.gmra.mxu0 %v2227
    %v2466 = vpop.f32.mrf.mxu0
    %v2467 = vadd.f32 0.0, %v2466
    %v2468 = vpop.f32.mrf.mxu0
    %v2469 = vpop.f32.mrf.mxu0
    %v2470 = vadd.f32 0.0, %v2469
    %v2471 = vpop.f32.mrf.mxu0
    %2472 = vmatprep.mubr.bf16.mxu0 0
    %2473 = vmatmul.mubr.bf16.gmra.mxu0 %v2230
    %v2474 = vpop.f32.mrf.mxu0
    %v2475 = vadd.f32 0.0, %v2474
    %v2476 = vpop.f32.mrf.mxu0
    %v2477 = vpop.f32.mrf.mxu0
    %v2478 = vadd.f32 0.0, %v2477
    %v2479 = vpop.f32.mrf.mxu0
    %2480 = vmatprep.mubr.bf16.mxu0 0
    %2481 = vmatmul.mubr.bf16.gmra.mxu0 %v2233
    %v2482 = vpop.f32.mrf.mxu0
    %v2483 = vadd.f32 0.0, %v2482
    %v2484 = vpop.f32.mrf.mxu0
    %v2485 = vpop.f32.mrf.mxu0
    %v2486 = vadd.f32 0.0, %v2485
    %v2487 = vpop.f32.mrf.mxu0
    %2488 = vmatprep.mubr.bf16.mxu0 0
    %2489 = vmatmul.mubr.bf16.gmra.mxu0 %v2236
    %v2490 = vpop.f32.mrf.mxu0
    %v2491 = vadd.f32 0.0, %v2490
    %v2492 = vpop.f32.mrf.mxu0
    %v2493 = vpop.f32.mrf.mxu0
    %v2494 = vadd.f32 0.0, %v2493
    %v2495 = vpop.f32.mrf.mxu0
    %2496 = vmatprep.mubr.bf16.mxu0 0
    %2497 = vmatmul.mubr.bf16.gmra.mxu0 %v2239
    %v2498 = vpop.f32.mrf.mxu0
    %v2499 = vadd.f32 0.0, %v2498
    %v2500 = vpop.f32.mrf.mxu0
    %v2501 = vpop.f32.mrf.mxu0
    %v2502 = vadd.f32 0.0, %v2501
    %v2503 = vpop.f32.mrf.mxu0
    %2504 = vmatprep.mubr.bf16.mxu0 0
    %2505 = vmatmul.mubr.bf16.gmra.mxu0 %v2242
    %v2506 = vpop.f32.mrf.mxu0
    %v2507 = vadd.f32 0.0, %v2506
    %v2508 = vpop.f32.mrf.mxu0
    %v2509 = vpop.f32.mrf.mxu0
    %v2510 = vadd.f32 0.0, %v2509
    %v2511 = vpop.f32.mrf.mxu0
    %2512 = vmatprep.mubr.bf16.mxu0 0
    %2513 = vmatmul.mubr.bf16.gmra.mxu0 %v2245
    %v2514 = vpop.f32.mrf.mxu0
    %v2515 = vadd.f32 0.0, %v2514
    %v2516 = vpop.f32.mrf.mxu0
    %v2517 = vpop.f32.mrf.mxu0
    %v2518 = vadd.f32 0.0, %v2517
    %v2519 = vpop.f32.mrf.mxu0
    %2520 = vmatprep.mubr.bf16.mxu0 0
    %2521 = vmatmul.mubr.bf16.gmra.mxu0 %v2248
    %v2522 = vpop.f32.mrf.mxu0
    %v2523 = vadd.f32 0.0, %v2522
    %v2524 = vpop.f32.mrf.mxu0
    %v2525 = vpop.f32.mrf.mxu0
    %v2526 = vadd.f32 0.0, %v2525
    %v2527 = vpop.f32.mrf.mxu0
    %2528 = vmatprep.mubr.bf16.mxu0 0
    %2529 = vmatmul.mubr.bf16.gmra.mxu0 %v2251
    %v2530 = vpop.f32.mrf.mxu0
    %v2531 = vadd.f32 0.0, %v2530
    %v2532 = vpop.f32.mrf.mxu0
    %v2533 = vpop.f32.mrf.mxu0
    %v2534 = vadd.f32 0.0, %v2533
    %v2535 = vpop.f32.mrf.mxu0
    %2536 = vmatprep.mubr.bf16.mxu0 0
    %2537 = vmatmul.mubr.bf16.gmra.mxu0 %v2254
    %v2538 = vpop.f32.mrf.mxu0
    %v2539 = vadd.f32 0.0, %v2538
    %v2540 = vpop.f32.mrf.mxu0
    %v2541 = vpop.f32.mrf.mxu0
    %v2542 = vadd.f32 0.0, %v2541
    %v2543 = vpop.f32.mrf.mxu0
    %2544 = vdwg.mxu0
    %v2553 = vunpack.c.l.b16 %v2015
    %v2554 = vunpack.c.l.b16 %v2016
    %v2555 = vunpack.c.l.b16 %v2017
    %v2556 = vunpack.c.l.b16 %v2018
    %v2557 = vunpack.c.l.b16 %v2019
    %v2558 = vunpack.c.l.b16 %v2020
    %v2559 = vunpack.c.l.b16 %v2021
    %v2560 = vunpack.c.l.b16 %v2022
    %v2561 = vpack.c.b16 %v2554, %v2553
    %v2562 = vpack.c.b16 %v2556, %v2555
    %v2563 = vpack.c.b16 %v2558, %v2557
    %v2564 = vpack.c.b16 %v2560, %v2559
    %v2570 = vsel %vm2168, %v2088, 0
    %v2573 = vsel %vm2168, %v2089, 0
    %v2576 = vsel %vm2168, %v2090, 0
    %v2579 = vsel %vm2168, %v2091, 0
    %v2582 = vsel %vm2168, %v2092, 0
    %v2585 = vsel %vm2168, %v2093, 0
    %v2588 = vsel %vm2168, %v2094, 0
    %v2591 = vsel %vm2168, %v2095, 0
    %v2594 = vsel %vm2168, %v2096, 0
    %v2597 = vsel %vm2168, %v2097, 0
    %v2600 = vsel %vm2168, %v2098, 0
    %v2603 = vsel %vm2168, %v2099, 0
    %v2606 = vsel %vm2168, %v2100, 0
    %v2609 = vsel %vm2168, %v2101, 0
    %v2612 = vsel %vm2168, %v2102, 0
    %v2615 = vsel %vm2168, %v2103, 0
    %v2618 = vsel %vm2168, %v2104, 0
    %v2621 = vsel %vm2168, %v2105, 0
    %v2624 = vsel %vm2168, %v2106, 0
    %v2627 = vsel %vm2168, %v2107, 0
    %v2630 = vsel %vm2168, %v2108, 0
    %v2633 = vsel %vm2168, %v2109, 0
    %v2636 = vsel %vm2168, %v2110, 0
    %v2639 = vsel %vm2168, %v2111, 0
    %v2642 = vsel %vm2168, %v2112, 0
    %v2645 = vsel %vm2168, %v2113, 0
    %v2648 = vsel %vm2168, %v2114, 0
    %v2651 = vsel %vm2168, %v2115, 0
    %2653 = vmatprep.subr.bf16.mxu0 0
    %2654 = vmatpush1.bf16.msra.mxu0 0
    %2655 = vmatprep.subr.bf16.mxu0 0
    %2656 = vmatpush1.bf16.msra.mxu0 0
    %2657 = vmatprep.subr.bf16.mxu0 0
    %2658 = vmatpush1.bf16.msra.mxu0 0
    %2659 = vmatprep.subr.bf16.mxu0 0
    %2660 = vmatpush1.bf16.msra.mxu0 0
    %2661 = vmatprep.subr.bf16.mxu0 0
    %2662 = vmatpush1.bf16.msra.mxu0 %v2564
    %2663 = vmatprep.subr.bf16.mxu0 0
    %2664 = vmatpush1.bf16.msra.mxu0 %v2563
    %2665 = vmatprep.subr.bf16.mxu0 0
    %2666 = vmatpush1.bf16.msra.mxu0 %v2562
    %2667 = vmatprep.subr.bf16.mxu0 0
    %2668 = vmatpush1.bf16.msra.mxu0 %v2561
    %2669 = vmatprep.subr.bf16.mxu0 0
    %2670 = vmatpush2.bf16.msra.mxu0 0
    %2671 = vmatprep.subr.bf16.mxu0 0
    %2672 = vmatpush2.bf16.msra.mxu0 0
    %2673 = vmatprep.subr.bf16.mxu0 0
    %2674 = vmatpush2.bf16.msra.mxu0 0
    %2675 = vmatprep.subr.bf16.mxu0 0
    %2676 = vmatpush2.bf16.msra.mxu0 0
    %2677 = vmatprep.subr.bf16.mxu0 0
    %2678 = vmatpush2.bf16.msra.mxu0 0
    %2679 = vmatprep.subr.bf16.mxu0 0
    %2680 = vmatpush2.bf16.msra.mxu0 0
    %2681 = vmatprep.subr.bf16.mxu0 0
    %2682 = vmatpush2.bf16.msra.mxu0 0
    %2683 = vmatprep.subr.bf16.mxu0 0
    %2684 = vmatpush2.bf16.msra.mxu0 0
    %2685 = vmatprep.mubr.bf16.mxu0 0
    %2686 = vmatmul.mubr.bf16.gmra.mxu0 %v2170
    %v2687 = vpop.f32.mrf.mxu0
    %v2688 = vadd.f32 %v2291, %v2687
    %v2689 = vpop.f32.mrf.mxu0
    %v2690 = vpop.f32.mrf.mxu0
    %v2691 = vadd.f32 %v2294, %v2690
    %v2692 = vpop.f32.mrf.mxu0
    %2693 = vmatprep.mubr.bf16.mxu0 0
    %2694 = vmatmul.mubr.bf16.gmra.mxu0 %v2170
    %v2695 = vpop.f32.mrf.mxu0
    %v2696 = vadd.f32 %v2299, %v2695
    %v2697 = vpop.f32.mrf.mxu0
    %v2698 = vpop.f32.mrf.mxu0
    %v2699 = vadd.f32 %v2302, %v2698
    %v2700 = vpop.f32.mrf.mxu0
    %2701 = vmatprep.mubr.bf16.mxu0 0
    %2702 = vmatmul.mubr.bf16.gmra.mxu0 %v2170
    %v2703 = vpop.f32.mrf.mxu0
    %v2704 = vadd.f32 %v2307, %v2703
    %v2705 = vpop.f32.mrf.mxu0
    %v2706 = vpop.f32.mrf.mxu0
    %v2707 = vadd.f32 %v2310, %v2706
    %v2708 = vpop.f32.mrf.mxu0
    %2709 = vmatprep.mubr.bf16.mxu0 0
    %2710 = vmatmul.mubr.bf16.gmra.mxu0 %v2170
    %v2711 = vpop.f32.mrf.mxu0
    %v2712 = vadd.f32 %v2315, %v2711
    %v2713 = vpop.f32.mrf.mxu0
    %v2714 = vpop.f32.mrf.mxu0
    %v2715 = vadd.f32 %v2318, %v2714
    %v2716 = vpop.f32.mrf.mxu0
    %2717 = vmatprep.mubr.bf16.mxu0 0
    %2718 = vmatmul.mubr.bf16.gmra.mxu0 %v2570
    %v2719 = vpop.f32.mrf.mxu0
    %v2720 = vadd.f32 %v2323, %v2719
    %v2721 = vpop.f32.mrf.mxu0
    %v2722 = vpop.f32.mrf.mxu0
    %v2723 = vadd.f32 %v2326, %v2722
    %v2724 = vpop.f32.mrf.mxu0
    %2725 = vmatprep.mubr.bf16.mxu0 0
    %2726 = vmatmul.mubr.bf16.gmra.mxu0 %v2573
    %v2727 = vpop.f32.mrf.mxu0
    %v2728 = vadd.f32 %v2331, %v2727
    %v2729 = vpop.f32.mrf.mxu0
    %v2730 = vpop.f32.mrf.mxu0
    %v2731 = vadd.f32 %v2334, %v2730
    %v2732 = vpop.f32.mrf.mxu0
    %2733 = vmatprep.mubr.bf16.mxu0 0
    %2734 = vmatmul.mubr.bf16.gmra.mxu0 %v2576
    %v2735 = vpop.f32.mrf.mxu0
    %v2736 = vadd.f32 %v2339, %v2735
    %v2737 = vpop.f32.mrf.mxu0
    %v2738 = vpop.f32.mrf.mxu0
    %v2739 = vadd.f32 %v2342, %v2738
    %v2740 = vpop.f32.mrf.mxu0
    %2741 = vmatprep.mubr.bf16.mxu0 0
    %2742 = vmatmul.mubr.bf16.gmra.mxu0 %v2579
    %v2743 = vpop.f32.mrf.mxu0
    %v2744 = vadd.f32 %v2347, %v2743
    %v2745 = vpop.f32.mrf.mxu0
    %v2746 = vpop.f32.mrf.mxu0
    %v2747 = vadd.f32 %v2350, %v2746
    %v2748 = vpop.f32.mrf.mxu0
    %2749 = vmatprep.mubr.bf16.mxu0 0
    %2750 = vmatmul.mubr.bf16.gmra.mxu0 %v2582
    %v2751 = vpop.f32.mrf.mxu0
    %v2752 = vadd.f32 %v2355, %v2751
    %v2753 = vpop.f32.mrf.mxu0
    %v2754 = vpop.f32.mrf.mxu0
    %v2755 = vadd.f32 %v2358, %v2754
    %v2756 = vpop.f32.mrf.mxu0
    %2757 = vmatprep.mubr.bf16.mxu0 0
    %2758 = vmatmul.mubr.bf16.gmra.mxu0 %v2585
    %v2759 = vpop.f32.mrf.mxu0
    %v2760 = vadd.f32 %v2363, %v2759
    %v2761 = vpop.f32.mrf.mxu0
    %v2762 = vpop.f32.mrf.mxu0
    %v2763 = vadd.f32 %v2366, %v2762
    %v2764 = vpop.f32.mrf.mxu0
    %2765 = vmatprep.mubr.bf16.mxu0 0
    %2766 = vmatmul.mubr.bf16.gmra.mxu0 %v2588
    %v2767 = vpop.f32.mrf.mxu0
    %v2768 = vadd.f32 %v2371, %v2767
    %v2769 = vpop.f32.mrf.mxu0
    %v2770 = vpop.f32.mrf.mxu0
    %v2771 = vadd.f32 %v2374, %v2770
    %v2772 = vpop.f32.mrf.mxu0
    %2773 = vmatprep.mubr.bf16.mxu0 0
    %2774 = vmatmul.mubr.bf16.gmra.mxu0 %v2591
    %v2775 = vpop.f32.mrf.mxu0
    %v2776 = vadd.f32 %v2379, %v2775
    %v2777 = vpop.f32.mrf.mxu0
    %v2778 = vpop.f32.mrf.mxu0
    %v2779 = vadd.f32 %v2382, %v2778
    %v2780 = vpop.f32.mrf.mxu0
    %2781 = vmatprep.mubr.bf16.mxu0 0
    %2782 = vmatmul.mubr.bf16.gmra.mxu0 %v2594
    %v2783 = vpop.f32.mrf.mxu0
    %v2784 = vadd.f32 %v2387, %v2783
    %v2785 = vpop.f32.mrf.mxu0
    %v2786 = vpop.f32.mrf.mxu0
    %v2787 = vadd.f32 %v2390, %v2786
    %v2788 = vpop.f32.mrf.mxu0
    %2789 = vmatprep.mubr.bf16.mxu0 0
    %2790 = vmatmul.mubr.bf16.gmra.mxu0 %v2597
    %v2791 = vpop.f32.mrf.mxu0
    %v2792 = vadd.f32 %v2395, %v2791
    %v2793 = vpop.f32.mrf.mxu0
    %v2794 = vpop.f32.mrf.mxu0
    %v2795 = vadd.f32 %v2398, %v2794
    %v2796 = vpop.f32.mrf.mxu0
    %2797 = vmatprep.mubr.bf16.mxu0 0
    %2798 = vmatmul.mubr.bf16.gmra.mxu0 %v2600
    %v2799 = vpop.f32.mrf.mxu0
    %v2800 = vadd.f32 %v2403, %v2799
    %v2801 = vpop.f32.mrf.mxu0
    %v2802 = vpop.f32.mrf.mxu0
    %v2803 = vadd.f32 %v2406, %v2802
    %v2804 = vpop.f32.mrf.mxu0
    %2805 = vmatprep.mubr.bf16.mxu0 0
    %2806 = vmatmul.mubr.bf16.gmra.mxu0 %v2603
    %v2807 = vpop.f32.mrf.mxu0
    %v2808 = vadd.f32 %v2411, %v2807
    %v2809 = vpop.f32.mrf.mxu0
    %v2810 = vpop.f32.mrf.mxu0
    %v2811 = vadd.f32 %v2414, %v2810
    %v2812 = vpop.f32.mrf.mxu0
    %2813 = vmatprep.mubr.bf16.mxu0 0
    %2814 = vmatmul.mubr.bf16.gmra.mxu0 %v2606
    %v2815 = vpop.f32.mrf.mxu0
    %v2816 = vadd.f32 %v2419, %v2815
    %v2817 = vpop.f32.mrf.mxu0
    %v2818 = vpop.f32.mrf.mxu0
    %v2819 = vadd.f32 %v2422, %v2818
    %v2820 = vpop.f32.mrf.mxu0
    %2821 = vmatprep.mubr.bf16.mxu0 0
    %2822 = vmatmul.mubr.bf16.gmra.mxu0 %v2609
    %v2823 = vpop.f32.mrf.mxu0
    %v2824 = vadd.f32 %v2427, %v2823
    %v2825 = vpop.f32.mrf.mxu0
    %v2826 = vpop.f32.mrf.mxu0
    %v2827 = vadd.f32 %v2430, %v2826
    %v2828 = vpop.f32.mrf.mxu0
    %2829 = vmatprep.mubr.bf16.mxu0 0
    %2830 = vmatmul.mubr.bf16.gmra.mxu0 %v2612
    %v2831 = vpop.f32.mrf.mxu0
    %v2832 = vadd.f32 %v2435, %v2831
    %v2833 = vpop.f32.mrf.mxu0
    %v2834 = vpop.f32.mrf.mxu0
    %v2835 = vadd.f32 %v2438, %v2834
    %v2836 = vpop.f32.mrf.mxu0
    %2837 = vmatprep.mubr.bf16.mxu0 0
    %2838 = vmatmul.mubr.bf16.gmra.mxu0 %v2615
    %v2839 = vpop.f32.mrf.mxu0
    %v2840 = vadd.f32 %v2443, %v2839
    %v2841 = vpop.f32.mrf.mxu0
    %v2842 = vpop.f32.mrf.mxu0
    %v2843 = vadd.f32 %v2446, %v2842
    %v2844 = vpop.f32.mrf.mxu0
    %2845 = vmatprep.mubr.bf16.mxu0 0
    %2846 = vmatmul.mubr.bf16.gmra.mxu0 %v2618
    %v2847 = vpop.f32.mrf.mxu0
    %v2848 = vadd.f32 %v2451, %v2847
    %v2849 = vpop.f32.mrf.mxu0
    %v2850 = vpop.f32.mrf.mxu0
    %v2851 = vadd.f32 %v2454, %v2850
    %v2852 = vpop.f32.mrf.mxu0
    %2853 = vmatprep.mubr.bf16.mxu0 0
    %2854 = vmatmul.mubr.bf16.gmra.mxu0 %v2621
    %v2855 = vpop.f32.mrf.mxu0
    %v2856 = vadd.f32 %v2459, %v2855
    %v2857 = vpop.f32.mrf.mxu0
    %v2858 = vpop.f32.mrf.mxu0
    %v2859 = vadd.f32 %v2462, %v2858
    %v2860 = vpop.f32.mrf.mxu0
    %2861 = vmatprep.mubr.bf16.mxu0 0
    %2862 = vmatmul.mubr.bf16.gmra.mxu0 %v2624
    %v2863 = vpop.f32.mrf.mxu0
    %v2864 = vadd.f32 %v2467, %v2863
    %v2865 = vpop.f32.mrf.mxu0
    %v2866 = vpop.f32.mrf.mxu0
    %v2867 = vadd.f32 %v2470, %v2866
    %v2868 = vpop.f32.mrf.mxu0
    %2869 = vmatprep.mubr.bf16.mxu0 0
    %2870 = vmatmul.mubr.bf16.gmra.mxu0 %v2627
    %v2871 = vpop.f32.mrf.mxu0
    %v2872 = vadd.f32 %v2475, %v2871
    %v2873 = vpop.f32.mrf.mxu0
    %v2874 = vpop.f32.mrf.mxu0
    %v2875 = vadd.f32 %v2478, %v2874
    %v2876 = vpop.f32.mrf.mxu0
    %2877 = vmatprep.mubr.bf16.mxu0 0
    %2878 = vmatmul.mubr.bf16.gmra.mxu0 %v2630
    %v2879 = vpop.f32.mrf.mxu0
    %v2880 = vadd.f32 %v2483, %v2879
    %v2881 = vpop.f32.mrf.mxu0
    %v2882 = vpop.f32.mrf.mxu0
    %v2883 = vadd.f32 %v2486, %v2882
    %v2884 = vpop.f32.mrf.mxu0
    %2885 = vmatprep.mubr.bf16.mxu0 0
    %2886 = vmatmul.mubr.bf16.gmra.mxu0 %v2633
    %v2887 = vpop.f32.mrf.mxu0
    %v2888 = vadd.f32 %v2491, %v2887
    %v2889 = vpop.f32.mrf.mxu0
    %v2890 = vpop.f32.mrf.mxu0
    %v2891 = vadd.f32 %v2494, %v2890
    %v2892 = vpop.f32.mrf.mxu0
    %2893 = vmatprep.mubr.bf16.mxu0 0
    %2894 = vmatmul.mubr.bf16.gmra.mxu0 %v2636
    %v2895 = vpop.f32.mrf.mxu0
    %v2896 = vadd.f32 %v2499, %v2895
    %v2897 = vpop.f32.mrf.mxu0
    %v2898 = vpop.f32.mrf.mxu0
    %v2899 = vadd.f32 %v2502, %v2898
    %v2900 = vpop.f32.mrf.mxu0
    %2901 = vmatprep.mubr.bf16.mxu0 0
    %2902 = vmatmul.mubr.bf16.gmra.mxu0 %v2639
    %v2903 = vpop.f32.mrf.mxu0
    %v2904 = vadd.f32 %v2507, %v2903
    %v2905 = vpop.f32.mrf.mxu0
    %v2906 = vpop.f32.mrf.mxu0
    %v2907 = vadd.f32 %v2510, %v2906
    %v2908 = vpop.f32.mrf.mxu0
    %2909 = vmatprep.mubr.bf16.mxu0 0
    %2910 = vmatmul.mubr.bf16.gmra.mxu0 %v2642
    %v2911 = vpop.f32.mrf.mxu0
    %v2912 = vadd.f32 %v2515, %v2911
    %v2913 = vpop.f32.mrf.mxu0
    %v2914 = vpop.f32.mrf.mxu0
    %v2915 = vadd.f32 %v2518, %v2914
    %v2916 = vpop.f32.mrf.mxu0
    %2917 = vmatprep.mubr.bf16.mxu0 0
    %2918 = vmatmul.mubr.bf16.gmra.mxu0 %v2645
    %v2919 = vpop.f32.mrf.mxu0
    %v2920 = vadd.f32 %v2523, %v2919
    %v2921 = vpop.f32.mrf.mxu0
    %v2922 = vpop.f32.mrf.mxu0
    %v2923 = vadd.f32 %v2526, %v2922
    %v2924 = vpop.f32.mrf.mxu0
    %2925 = vmatprep.mubr.bf16.mxu0 0
    %2926 = vmatmul.mubr.bf16.gmra.mxu0 %v2648
    %v2927 = vpop.f32.mrf.mxu0
    %v2928 = vadd.f32 %v2531, %v2927
    %v2929 = vpop.f32.mrf.mxu0
    %v2930 = vpop.f32.mrf.mxu0
    %v2931 = vadd.f32 %v2534, %v2930
    %v2932 = vpop.f32.mrf.mxu0
    %2933 = vmatprep.mubr.bf16.mxu0 0
    %2934 = vmatmul.mubr.bf16.gmra.mxu0 %v2651
    %v2935 = vpop.f32.mrf.mxu0
    %v2936 = vadd.f32 %v2539, %v2935
    %v2937 = vpop.f32.mrf.mxu0
    %v2938 = vpop.f32.mrf.mxu0
    %v2939 = vadd.f32 %v2542, %v2938
    %v2940 = vpop.f32.mrf.mxu0
    %2941 = vdwg.mxu0
    %v2942 = vpack.c.bf16 0.0, %v1958
    %v2943 = vpack.c.bf16 0.0, %v1966
    %v2944 = vpack.c.bf16 0.0, %v1974
    %v2945 = vpack.c.bf16 0.0, %v1982
    %v2946 = vpack.c.bf16 0.0, %v1990
    %v2947 = vpack.c.bf16 0.0, %v1998
    %v2948 = vpack.c.bf16 0.0, %v2006
    %v2957 = vunpack.c.l.b16 %v2031
    %v2958 = vunpack.c.l.b16 %v2032
    %v2959 = vunpack.c.l.b16 %v2033
    %v2960 = vunpack.c.l.b16 %v2034
    %v2961 = vunpack.c.l.b16 %v2035
    %v2962 = vunpack.c.l.b16 %v2036
    %v2963 = vunpack.c.l.b16 %v2037
    %v2964 = vunpack.c.l.b16 %v2038
    %v2965 = vpack.c.b16 %v2958, %v2957
    %v2966 = vpack.c.b16 %v2960, %v2959
    %v2967 = vpack.c.b16 %v2962, %v2961
    %v2968 = vpack.c.b16 %v2964, %v2963
    %v2974 = vsel %vm2168, %v2942, 0
    %v2977 = vsel %vm2168, %v2943, 0
    %v2980 = vsel %vm2168, %v2944, 0
    %v2983 = vsel %vm2168, %v2945, 0
    %v2986 = vsel %vm2168, %v2946, 0
    %v2989 = vsel %vm2168, %v2947, 0
    %v2992 = vsel %vm2168, %v2948, 0
    %2994 = vmatprep.subr.bf16.mxu0 0
    %2995 = vmatpush1.bf16.msra.mxu0 0
    %2996 = vmatprep.subr.bf16.mxu0 0
    %2997 = vmatpush1.bf16.msra.mxu0 0
    %2998 = vmatprep.subr.bf16.mxu0 0
    %2999 = vmatpush1.bf16.msra.mxu0 0
    %3000 = vmatprep.subr.bf16.mxu0 0
    %3001 = vmatpush1.bf16.msra.mxu0 0
    %3002 = vmatprep.subr.bf16.mxu0 0
    %3003 = vmatpush1.bf16.msra.mxu0 %v2968
    %3004 = vmatprep.subr.bf16.mxu0 0
    %3005 = vmatpush1.bf16.msra.mxu0 %v2967
    %3006 = vmatprep.subr.bf16.mxu0 0
    %3007 = vmatpush1.bf16.msra.mxu0 %v2966
    %3008 = vmatprep.subr.bf16.mxu0 0
    %3009 = vmatpush1.bf16.msra.mxu0 %v2965
    %3010 = vmatprep.subr.bf16.mxu0 0
    %3011 = vmatpush2.bf16.msra.mxu0 0
    %3012 = vmatprep.subr.bf16.mxu0 0
    %3013 = vmatpush2.bf16.msra.mxu0 0
    %3014 = vmatprep.subr.bf16.mxu0 0
    %3015 = vmatpush2.bf16.msra.mxu0 0
    %3016 = vmatprep.subr.bf16.mxu0 0
    %3017 = vmatpush2.bf16.msra.mxu0 0
    %3018 = vmatprep.subr.bf16.mxu0 0
    %3019 = vmatpush2.bf16.msra.mxu0 0
    %3020 = vmatprep.subr.bf16.mxu0 0
    %3021 = vmatpush2.bf16.msra.mxu0 0
    %3022 = vmatprep.subr.bf16.mxu0 0
    %3023 = vmatpush2.bf16.msra.mxu0 0
    %3024 = vmatprep.subr.bf16.mxu0 0
    %3025 = vmatpush2.bf16.msra.mxu0 0
    %3026 = vmatprep.mubr.bf16.mxu0 0
    %3027 = vmatmul.mubr.bf16.gmra.mxu0 %v2170
    %v3028 = vpop.f32.mrf.mxu0
    %v3029 = vadd.f32 0.0, %v3028
    %v3030 = vpop.f32.mrf.mxu0
    %v3031 = vpop.f32.mrf.mxu0
    %v3032 = vadd.f32 0.0, %v3031
    %v3033 = vpop.f32.mrf.mxu0
    %3034 = vmatprep.mubr.bf16.mxu0 0
    %3035 = vmatmul.mubr.bf16.gmra.mxu0 %v2170
    %v3036 = vpop.f32.mrf.mxu0
    %v3037 = vadd.f32 0.0, %v3036
    %v3038 = vpop.f32.mrf.mxu0
    %v3039 = vpop.f32.mrf.mxu0
    %v3040 = vadd.f32 0.0, %v3039
    %v3041 = vpop.f32.mrf.mxu0
    %3042 = vmatprep.mubr.bf16.mxu0 0
    %3043 = vmatmul.mubr.bf16.gmra.mxu0 %v2170
    %v3044 = vpop.f32.mrf.mxu0
    %v3045 = vadd.f32 0.0, %v3044
    %v3046 = vpop.f32.mrf.mxu0
    %v3047 = vpop.f32.mrf.mxu0
    %v3048 = vadd.f32 0.0, %v3047
    %v3049 = vpop.f32.mrf.mxu0
    %3050 = vmatprep.mubr.bf16.mxu0 0
    %3051 = vmatmul.mubr.bf16.gmra.mxu0 %v2170
    %v3052 = vpop.f32.mrf.mxu0
    %v3053 = vadd.f32 0.0, %v3052
    %v3054 = vpop.f32.mrf.mxu0
    %v3055 = vpop.f32.mrf.mxu0
    %v3056 = vadd.f32 0.0, %v3055
    %v3057 = vpop.f32.mrf.mxu0
    %3058 = vmatprep.mubr.bf16.mxu0 0
    %3059 = vmatmul.mubr.bf16.gmra.mxu0 %v2573
    %v3060 = vpop.f32.mrf.mxu0
    %v3061 = vadd.f32 0.0, %v3060
    %v3062 = vpop.f32.mrf.mxu0
    %v3063 = vpop.f32.mrf.mxu0
    %v3064 = vadd.f32 0.0, %v3063
    %v3065 = vpop.f32.mrf.mxu0
    %3066 = vmatprep.mubr.bf16.mxu0 0
    %3067 = vmatmul.mubr.bf16.gmra.mxu0 %v2576
    %v3068 = vpop.f32.mrf.mxu0
    %v3069 = vadd.f32 0.0, %v3068
    %v3070 = vpop.f32.mrf.mxu0
    %v3071 = vpop.f32.mrf.mxu0
    %v3072 = vadd.f32 0.0, %v3071
    %v3073 = vpop.f32.mrf.mxu0
    %3074 = vmatprep.mubr.bf16.mxu0 0
    %3075 = vmatmul.mubr.bf16.gmra.mxu0 %v2579
    %v3076 = vpop.f32.mrf.mxu0
    %v3077 = vadd.f32 0.0, %v3076
    %v3078 = vpop.f32.mrf.mxu0
    %v3079 = vpop.f32.mrf.mxu0
    %v3080 = vadd.f32 0.0, %v3079
    %v3081 = vpop.f32.mrf.mxu0
    %3082 = vmatprep.mubr.bf16.mxu0 0
    %3083 = vmatmul.mubr.bf16.gmra.mxu0 %v2974
    %v3084 = vpop.f32.mrf.mxu0
    %v3085 = vadd.f32 0.0, %v3084
    %v3086 = vpop.f32.mrf.mxu0
    %v3087 = vpop.f32.mrf.mxu0
    %v3088 = vadd.f32 0.0, %v3087
    %v3089 = vpop.f32.mrf.mxu0
    %3090 = vmatprep.mubr.bf16.mxu0 0
    %3091 = vmatmul.mubr.bf16.gmra.mxu0 %v2585
    %v3092 = vpop.f32.mrf.mxu0
    %v3093 = vadd.f32 0.0, %v3092
    %v3094 = vpop.f32.mrf.mxu0
    %v3095 = vpop.f32.mrf.mxu0
    %v3096 = vadd.f32 0.0, %v3095
    %v3097 = vpop.f32.mrf.mxu0
    %3098 = vmatprep.mubr.bf16.mxu0 0
    %3099 = vmatmul.mubr.bf16.gmra.mxu0 %v2588
    %v3100 = vpop.f32.mrf.mxu0
    %v3101 = vadd.f32 0.0, %v3100
    %v3102 = vpop.f32.mrf.mxu0
    %v3103 = vpop.f32.mrf.mxu0
    %v3104 = vadd.f32 0.0, %v3103
    %v3105 = vpop.f32.mrf.mxu0
    %3106 = vmatprep.mubr.bf16.mxu0 0
    %3107 = vmatmul.mubr.bf16.gmra.mxu0 %v2591
    %v3108 = vpop.f32.mrf.mxu0
    %v3109 = vadd.f32 0.0, %v3108
    %v3110 = vpop.f32.mrf.mxu0
    %v3111 = vpop.f32.mrf.mxu0
    %v3112 = vadd.f32 0.0, %v3111
    %v3113 = vpop.f32.mrf.mxu0
    %3114 = vmatprep.mubr.bf16.mxu0 0
    %3115 = vmatmul.mubr.bf16.gmra.mxu0 %v2977
    %v3116 = vpop.f32.mrf.mxu0
    %v3117 = vadd.f32 0.0, %v3116
    %v3118 = vpop.f32.mrf.mxu0
    %v3119 = vpop.f32.mrf.mxu0
    %v3120 = vadd.f32 0.0, %v3119
    %v3121 = vpop.f32.mrf.mxu0
    %3122 = vmatprep.mubr.bf16.mxu0 0
    %3123 = vmatmul.mubr.bf16.gmra.mxu0 %v2597
    %v3124 = vpop.f32.mrf.mxu0
    %v3125 = vadd.f32 0.0, %v3124
    %v3126 = vpop.f32.mrf.mxu0
    %v3127 = vpop.f32.mrf.mxu0
    %v3128 = vadd.f32 0.0, %v3127
    %v3129 = vpop.f32.mrf.mxu0
    %3130 = vmatprep.mubr.bf16.mxu0 0
    %3131 = vmatmul.mubr.bf16.gmra.mxu0 %v2600
    %v3132 = vpop.f32.mrf.mxu0
    %v3133 = vadd.f32 0.0, %v3132
    %v3134 = vpop.f32.mrf.mxu0
    %v3135 = vpop.f32.mrf.mxu0
    %v3136 = vadd.f32 0.0, %v3135
    %v3137 = vpop.f32.mrf.mxu0
    %3138 = vmatprep.mubr.bf16.mxu0 0
    %3139 = vmatmul.mubr.bf16.gmra.mxu0 %v2603
    %v3140 = vpop.f32.mrf.mxu0
    %v3141 = vadd.f32 0.0, %v3140
    %v3142 = vpop.f32.mrf.mxu0
    %v3143 = vpop.f32.mrf.mxu0
    %v3144 = vadd.f32 0.0, %v3143
    %v3145 = vpop.f32.mrf.mxu0
    %3146 = vmatprep.mubr.bf16.mxu0 0
    %3147 = vmatmul.mubr.bf16.gmra.mxu0 %v2980
    %v3148 = vpop.f32.mrf.mxu0
    %v3149 = vadd.f32 0.0, %v3148
    %v3150 = vpop.f32.mrf.mxu0
    %v3151 = vpop.f32.mrf.mxu0
    %v3152 = vadd.f32 0.0, %v3151
    %v3153 = vpop.f32.mrf.mxu0
    %3154 = vmatprep.mubr.bf16.mxu0 0
    %3155 = vmatmul.mubr.bf16.gmra.mxu0 %v2609
    %v3156 = vpop.f32.mrf.mxu0
    %v3157 = vadd.f32 0.0, %v3156
    %v3158 = vpop.f32.mrf.mxu0
    %v3159 = vpop.f32.mrf.mxu0
    %v3160 = vadd.f32 0.0, %v3159
    %v3161 = vpop.f32.mrf.mxu0
    %3162 = vmatprep.mubr.bf16.mxu0 0
    %3163 = vmatmul.mubr.bf16.gmra.mxu0 %v2612
    %v3164 = vpop.f32.mrf.mxu0
    %v3165 = vadd.f32 0.0, %v3164
    %v3166 = vpop.f32.mrf.mxu0
    %v3167 = vpop.f32.mrf.mxu0
    %v3168 = vadd.f32 0.0, %v3167
    %v3169 = vpop.f32.mrf.mxu0
    %3170 = vmatprep.mubr.bf16.mxu0 0
    %3171 = vmatmul.mubr.bf16.gmra.mxu0 %v2615
    %v3172 = vpop.f32.mrf.mxu0
    %v3173 = vadd.f32 0.0, %v3172
    %v3174 = vpop.f32.mrf.mxu0
    %v3175 = vpop.f32.mrf.mxu0
    %v3176 = vadd.f32 0.0, %v3175
    %v3177 = vpop.f32.mrf.mxu0
    %3178 = vmatprep.mubr.bf16.mxu0 0
    %3179 = vmatmul.mubr.bf16.gmra.mxu0 %v2983
    %v3180 = vpop.f32.mrf.mxu0
    %v3181 = vadd.f32 0.0, %v3180
    %v3182 = vpop.f32.mrf.mxu0
    %v3183 = vpop.f32.mrf.mxu0
    %v3184 = vadd.f32 0.0, %v3183
    %v3185 = vpop.f32.mrf.mxu0
    %3186 = vmatprep.mubr.bf16.mxu0 0
    %3187 = vmatmul.mubr.bf16.gmra.mxu0 %v2621
    %v3188 = vpop.f32.mrf.mxu0
    %v3189 = vadd.f32 0.0, %v3188
    %v3190 = vpop.f32.mrf.mxu0
    %v3191 = vpop.f32.mrf.mxu0
    %v3192 = vadd.f32 0.0, %v3191
    %v3193 = vpop.f32.mrf.mxu0
    %3194 = vmatprep.mubr.bf16.mxu0 0
    %3195 = vmatmul.mubr.bf16.gmra.mxu0 %v2624
    %v3196 = vpop.f32.mrf.mxu0
    %v3197 = vadd.f32 0.0, %v3196
    %v3198 = vpop.f32.mrf.mxu0
    %v3199 = vpop.f32.mrf.mxu0
    %v3200 = vadd.f32 0.0, %v3199
    %v3201 = vpop.f32.mrf.mxu0
    %3202 = vmatprep.mubr.bf16.mxu0 0
    %3203 = vmatmul.mubr.bf16.gmra.mxu0 %v2627
    %v3204 = vpop.f32.mrf.mxu0
    %v3205 = vadd.f32 0.0, %v3204
    %v3206 = vpop.f32.mrf.mxu0
    %v3207 = vpop.f32.mrf.mxu0
    %v3208 = vadd.f32 0.0, %v3207
    %v3209 = vpop.f32.mrf.mxu0
    %3210 = vmatprep.mubr.bf16.mxu0 0
    %3211 = vmatmul.mubr.bf16.gmra.mxu0 %v2986
    %v3212 = vpop.f32.mrf.mxu0
    %v3213 = vadd.f32 0.0, %v3212
    %v3214 = vpop.f32.mrf.mxu0
    %v3215 = vpop.f32.mrf.mxu0
    %v3216 = vadd.f32 0.0, %v3215
    %v3217 = vpop.f32.mrf.mxu0
    %3218 = vmatprep.mubr.bf16.mxu0 0
    %3219 = vmatmul.mubr.bf16.gmra.mxu0 %v2633
    %v3220 = vpop.f32.mrf.mxu0
    %v3221 = vadd.f32 0.0, %v3220
    %v3222 = vpop.f32.mrf.mxu0
    %v3223 = vpop.f32.mrf.mxu0
    %v3224 = vadd.f32 0.0, %v3223
    %v3225 = vpop.f32.mrf.mxu0
    %3226 = vmatprep.mubr.bf16.mxu0 0
    %3227 = vmatmul.mubr.bf16.gmra.mxu0 %v2636
    %v3228 = vpop.f32.mrf.mxu0
    %v3229 = vadd.f32 0.0, %v3228
    %v3230 = vpop.f32.mrf.mxu0
    %v3231 = vpop.f32.mrf.mxu0
    %v3232 = vadd.f32 0.0, %v3231
    %v3233 = vpop.f32.mrf.mxu0
    %3234 = vmatprep.mubr.bf16.mxu0 0
    %3235 = vmatmul.mubr.bf16.gmra.mxu0 %v2639
    %v3236 = vpop.f32.mrf.mxu0
    %v3237 = vadd.f32 0.0, %v3236
    %v3238 = vpop.f32.mrf.mxu0
    %v3239 = vpop.f32.mrf.mxu0
    %v3240 = vadd.f32 0.0, %v3239
    %v3241 = vpop.f32.mrf.mxu0
    %3242 = vmatprep.mubr.bf16.mxu0 0
    %3243 = vmatmul.mubr.bf16.gmra.mxu0 %v2989
    %v3244 = vpop.f32.mrf.mxu0
    %v3245 = vadd.f32 0.0, %v3244
    %v3246 = vpop.f32.mrf.mxu0
    %v3247 = vpop.f32.mrf.mxu0
    %v3248 = vadd.f32 0.0, %v3247
    %v3249 = vpop.f32.mrf.mxu0
    %3250 = vmatprep.mubr.bf16.mxu0 0
    %3251 = vmatmul.mubr.bf16.gmra.mxu0 %v2645
    %v3252 = vpop.f32.mrf.mxu0
    %v3253 = vadd.f32 0.0, %v3252
    %v3254 = vpop.f32.mrf.mxu0
    %v3255 = vpop.f32.mrf.mxu0
    %v3256 = vadd.f32 0.0, %v3255
    %v3257 = vpop.f32.mrf.mxu0
    %3258 = vmatprep.mubr.bf16.mxu0 0
    %3259 = vmatmul.mubr.bf16.gmra.mxu0 %v2648
    %v3260 = vpop.f32.mrf.mxu0
    %v3261 = vadd.f32 0.0, %v3260
    %v3262 = vpop.f32.mrf.mxu0
    %v3263 = vpop.f32.mrf.mxu0
    %v3264 = vadd.f32 0.0, %v3263
    %v3265 = vpop.f32.mrf.mxu0
    %3266 = vmatprep.mubr.bf16.mxu0 0
    %3267 = vmatmul.mubr.bf16.gmra.mxu0 %v2651
    %v3268 = vpop.f32.mrf.mxu0
    %v3269 = vadd.f32 0.0, %v3268
    %v3270 = vpop.f32.mrf.mxu0
    %v3271 = vpop.f32.mrf.mxu0
    %v3272 = vadd.f32 0.0, %v3271
    %v3273 = vpop.f32.mrf.mxu0
    %3274 = vmatprep.mubr.bf16.mxu0 0
    %3275 = vmatmul.mubr.bf16.gmra.mxu0 %v2992
    %v3276 = vpop.f32.mrf.mxu0
    %v3277 = vadd.f32 0.0, %v3276
    %v3278 = vpop.f32.mrf.mxu0
    %v3279 = vpop.f32.mrf.mxu0
    %v3280 = vadd.f32 0.0, %v3279
    %v3281 = vpop.f32.mrf.mxu0
    %3282 = vdwg.mxu0
    %v3283 = vadd.f32 %v2688, %v3029
    %v3284 = vadd.f32 %v2691, %v3032
    %v3285 = vadd.f32 %v2696, %v3037
    %v3286 = vadd.f32 %v2699, %v3040
    %v3287 = vadd.f32 %v2704, %v3045
    %v3288 = vadd.f32 %v2707, %v3048
    %v3289 = vadd.f32 %v2712, %v3053
    %v3290 = vadd.f32 %v2715, %v3056
    %v3291 = vadd.f32 %v2720, %v3061
    %v3292 = vadd.f32 %v2723, %v3064
    %v3293 = vadd.f32 %v2728, %v3069
    %v3294 = vadd.f32 %v2731, %v3072
    %v3295 = vadd.f32 %v2736, %v3077
    %v3296 = vadd.f32 %v2739, %v3080
    %v3297 = vadd.f32 %v2744, %v3085
    %v3298 = vadd.f32 %v2747, %v3088
    %v3299 = vadd.f32 %v2752, %v3093
    %v3300 = vadd.f32 %v2755, %v3096
    %v3301 = vadd.f32 %v2760, %v3101
    %v3302 = vadd.f32 %v2763, %v3104
    %v3303 = vadd.f32 %v2768, %v3109
    %v3304 = vadd.f32 %v2771, %v3112
    %v3305 = vadd.f32 %v2776, %v3117
    %v3306 = vadd.f32 %v2779, %v3120
    %v3307 = vadd.f32 %v2784, %v3125
    %v3308 = vadd.f32 %v2787, %v3128
    %v3309 = vadd.f32 %v2792, %v3133
    %v3310 = vadd.f32 %v2795, %v3136
    %v3311 = vadd.f32 %v2800, %v3141
    %v3312 = vadd.f32 %v2803, %v3144
    %v3313 = vadd.f32 %v2808, %v3149
    %v3314 = vadd.f32 %v2811, %v3152
    %v3315 = vadd.f32 %v2816, %v3157
    %v3316 = vadd.f32 %v2819, %v3160
    %v3317 = vadd.f32 %v2824, %v3165
    %v3318 = vadd.f32 %v2827, %v3168
    %v3319 = vadd.f32 %v2832, %v3173
    %v3320 = vadd.f32 %v2835, %v3176
    %v3321 = vadd.f32 %v2840, %v3181
    %v3322 = vadd.f32 %v2843, %v3184
    %v3323 = vadd.f32 %v2848, %v3189
    %v3324 = vadd.f32 %v2851, %v3192
    %v3325 = vadd.f32 %v2856, %v3197
    %v3326 = vadd.f32 %v2859, %v3200
    %v3327 = vadd.f32 %v2864, %v3205
    %v3328 = vadd.f32 %v2867, %v3208
    %v3329 = vadd.f32 %v2872, %v3213
    %v3330 = vadd.f32 %v2875, %v3216
    %v3331 = vadd.f32 %v2880, %v3221
    %v3332 = vadd.f32 %v2883, %v3224
    %v3333 = vadd.f32 %v2888, %v3229
    %v3334 = vadd.f32 %v2891, %v3232
    %v3335 = vadd.f32 %v2896, %v3237
    %v3336 = vadd.f32 %v2899, %v3240
    %v3337 = vadd.f32 %v2904, %v3245
    %v3338 = vadd.f32 %v2907, %v3248
    %v3339 = vadd.f32 %v2912, %v3253
    %v3340 = vadd.f32 %v2915, %v3256
    %v3341 = vadd.f32 %v2920, %v3261
    %v3342 = vadd.f32 %v2923, %v3264
    %v3343 = vadd.f32 %v2928, %v3269
    %v3344 = vadd.f32 %v2931, %v3272
    %v3345 = vadd.f32 %v2936, %v3277
    %v3346 = vadd.f32 %v2939, %v3280
    %v3347 = vpack.c.bf16 %v2007, 0.0
    %v3348 = vpack.c.bf16 %v2009, %v2008
    %v3349 = vpack.c.bf16 %v2011, %v2010
    %v3350 = vpack.c.bf16 %v2013, %v2012
    %v3359 = vunpack.c.l.b16 %v2039
    %v3360 = vunpack.c.l.b16 %v2040
    %v3361 = vunpack.c.l.b16 %v2041
    %v3362 = vunpack.c.l.b16 %v2042
    %v3363 = vunpack.c.l.b16 %v2043
    %v3364 = vunpack.c.l.b16 %v2044
    %v3365 = vunpack.c.l.b16 %v2045
    %v3366 = vunpack.c.l.b16 %v2046
    %v3367 = vpack.c.b16 %v3360, %v3359
    %v3368 = vpack.c.b16 %v3362, %v3361
    %v3369 = vpack.c.b16 %v3364, %v3363
    %v3370 = vpack.c.b16 %v3366, %v3365
    %v3376 = vsel %vm2168, %v3347, 0
    %v3379 = vsel %vm2168, %v3348, 0
    %v3382 = vsel %vm2168, %v3349, 0
    %v3385 = vsel %vm2168, %v3350, 0
    %3387 = vmatprep.subr.bf16.mxu0 0
    %3388 = vmatpush1.bf16.msra.mxu0 0
    %3389 = vmatprep.subr.bf16.mxu0 0
    %3390 = vmatpush1.bf16.msra.mxu0 0
    %3391 = vmatprep.subr.bf16.mxu0 0
    %3392 = vmatpush1.bf16.msra.mxu0 0
    %3393 = vmatprep.subr.bf16.mxu0 0
    %3394 = vmatpush1.bf16.msra.mxu0 0
    %3395 = vmatprep.subr.bf16.mxu0 0
    %3396 = vmatpush1.bf16.msra.mxu0 %v3370
    %3397 = vmatprep.subr.bf16.mxu0 0
    %3398 = vmatpush1.bf16.msra.mxu0 %v3369
    %3399 = vmatprep.subr.bf16.mxu0 0
    %3400 = vmatpush1.bf16.msra.mxu0 %v3368
    %3401 = vmatprep.subr.bf16.mxu0 0
    %3402 = vmatpush1.bf16.msra.mxu0 %v3367
    %3403 = vmatprep.subr.bf16.mxu0 0
    %3404 = vmatpush2.bf16.msra.mxu0 0
    %3405 = vmatprep.subr.bf16.mxu0 0
    %3406 = vmatpush2.bf16.msra.mxu0 0
    %3407 = vmatprep.subr.bf16.mxu0 0
    %3408 = vmatpush2.bf16.msra.mxu0 0
    %3409 = vmatprep.subr.bf16.mxu0 0
    %3410 = vmatpush2.bf16.msra.mxu0 0
    %3411 = vmatprep.subr.bf16.mxu0 0
    %3412 = vmatpush2.bf16.msra.mxu0 0
    %3413 = vmatprep.subr.bf16.mxu0 0
    %3414 = vmatpush2.bf16.msra.mxu0 0
    %3415 = vmatprep.subr.bf16.mxu0 0
    %3416 = vmatpush2.bf16.msra.mxu0 0
    %3417 = vmatprep.subr.bf16.mxu0 0
    %3418 = vmatpush2.bf16.msra.mxu0 0
    %3419 = vmatprep.mubr.bf16.mxu0 0
    %3420 = vmatmul.mubr.bf16.gmra.mxu0 %v2570
    %v3421 = vpop.f32.mrf.mxu0
    %v3422 = vadd.f32 0.0, %v3421
    %v3423 = vpop.f32.mrf.mxu0
    %v3424 = vpop.f32.mrf.mxu0
    %v3425 = vadd.f32 0.0, %v3424
    %v3426 = vpop.f32.mrf.mxu0
    %3427 = vmatprep.mubr.bf16.mxu0 0
    %3428 = vmatmul.mubr.bf16.gmra.mxu0 %v2573
    %v3429 = vpop.f32.mrf.mxu0
    %v3430 = vadd.f32 0.0, %v3429
    %v3431 = vpop.f32.mrf.mxu0
    %v3432 = vpop.f32.mrf.mxu0
    %v3433 = vadd.f32 0.0, %v3432
    %v3434 = vpop.f32.mrf.mxu0
    %3435 = vmatprep.mubr.bf16.mxu0 0
    %3436 = vmatmul.mubr.bf16.gmra.mxu0 %v2576
    %v3437 = vpop.f32.mrf.mxu0
    %v3438 = vadd.f32 0.0, %v3437
    %v3439 = vpop.f32.mrf.mxu0
    %v3440 = vpop.f32.mrf.mxu0
    %v3441 = vadd.f32 0.0, %v3440
    %v3442 = vpop.f32.mrf.mxu0
    %3443 = vmatprep.mubr.bf16.mxu0 0
    %3444 = vmatmul.mubr.bf16.gmra.mxu0 %v2579
    %v3445 = vpop.f32.mrf.mxu0
    %v3446 = vadd.f32 0.0, %v3445
    %v3447 = vpop.f32.mrf.mxu0
    %v3448 = vpop.f32.mrf.mxu0
    %v3449 = vadd.f32 0.0, %v3448
    %v3450 = vpop.f32.mrf.mxu0
    %3451 = vmatprep.mubr.bf16.mxu0 0
    %3452 = vmatmul.mubr.bf16.gmra.mxu0 %v2582
    %v3453 = vpop.f32.mrf.mxu0
    %v3454 = vadd.f32 0.0, %v3453
    %v3455 = vpop.f32.mrf.mxu0
    %v3456 = vpop.f32.mrf.mxu0
    %v3457 = vadd.f32 0.0, %v3456
    %v3458 = vpop.f32.mrf.mxu0
    %3459 = vmatprep.mubr.bf16.mxu0 0
    %3460 = vmatmul.mubr.bf16.gmra.mxu0 %v2585
    %v3461 = vpop.f32.mrf.mxu0
    %v3462 = vadd.f32 0.0, %v3461
    %v3463 = vpop.f32.mrf.mxu0
    %v3464 = vpop.f32.mrf.mxu0
    %v3465 = vadd.f32 0.0, %v3464
    %v3466 = vpop.f32.mrf.mxu0
    %3467 = vmatprep.mubr.bf16.mxu0 0
    %3468 = vmatmul.mubr.bf16.gmra.mxu0 %v2588
    %v3469 = vpop.f32.mrf.mxu0
    %v3470 = vadd.f32 0.0, %v3469
    %v3471 = vpop.f32.mrf.mxu0
    %v3472 = vpop.f32.mrf.mxu0
    %v3473 = vadd.f32 0.0, %v3472
    %v3474 = vpop.f32.mrf.mxu0
    %3475 = vmatprep.mubr.bf16.mxu0 0
    %3476 = vmatmul.mubr.bf16.gmra.mxu0 %v2591
    %v3477 = vpop.f32.mrf.mxu0
    %v3478 = vadd.f32 0.0, %v3477
    %v3479 = vpop.f32.mrf.mxu0
    %v3480 = vpop.f32.mrf.mxu0
    %v3481 = vadd.f32 0.0, %v3480
    %v3482 = vpop.f32.mrf.mxu0
    %3483 = vmatprep.mubr.bf16.mxu0 0
    %3484 = vmatmul.mubr.bf16.gmra.mxu0 %v2594
    %v3485 = vpop.f32.mrf.mxu0
    %v3486 = vadd.f32 0.0, %v3485
    %v3487 = vpop.f32.mrf.mxu0
    %v3488 = vpop.f32.mrf.mxu0
    %v3489 = vadd.f32 0.0, %v3488
    %v3490 = vpop.f32.mrf.mxu0
    %3491 = vmatprep.mubr.bf16.mxu0 0
    %3492 = vmatmul.mubr.bf16.gmra.mxu0 %v2597
    %v3493 = vpop.f32.mrf.mxu0
    %v3494 = vadd.f32 0.0, %v3493
    %v3495 = vpop.f32.mrf.mxu0
    %v3496 = vpop.f32.mrf.mxu0
    %v3497 = vadd.f32 0.0, %v3496
    %v3498 = vpop.f32.mrf.mxu0
    %3499 = vmatprep.mubr.bf16.mxu0 0
    %3500 = vmatmul.mubr.bf16.gmra.mxu0 %v2600
    %v3501 = vpop.f32.mrf.mxu0
    %v3502 = vadd.f32 0.0, %v3501
    %v3503 = vpop.f32.mrf.mxu0
    %v3504 = vpop.f32.mrf.mxu0
    %v3505 = vadd.f32 0.0, %v3504
    %v3506 = vpop.f32.mrf.mxu0
    %3507 = vmatprep.mubr.bf16.mxu0 0
    %3508 = vmatmul.mubr.bf16.gmra.mxu0 %v2603
    %v3509 = vpop.f32.mrf.mxu0
    %v3510 = vadd.f32 0.0, %v3509
    %v3511 = vpop.f32.mrf.mxu0
    %v3512 = vpop.f32.mrf.mxu0
    %v3513 = vadd.f32 0.0, %v3512
    %v3514 = vpop.f32.mrf.mxu0
    %3515 = vmatprep.mubr.bf16.mxu0 0
    %3516 = vmatmul.mubr.bf16.gmra.mxu0 %v2606
    %v3517 = vpop.f32.mrf.mxu0
    %v3518 = vadd.f32 0.0, %v3517
    %v3519 = vpop.f32.mrf.mxu0
    %v3520 = vpop.f32.mrf.mxu0
    %v3521 = vadd.f32 0.0, %v3520
    %v3522 = vpop.f32.mrf.mxu0
    %3523 = vmatprep.mubr.bf16.mxu0 0
    %3524 = vmatmul.mubr.bf16.gmra.mxu0 %v2609
    %v3525 = vpop.f32.mrf.mxu0
    %v3526 = vadd.f32 0.0, %v3525
    %v3527 = vpop.f32.mrf.mxu0
    %v3528 = vpop.f32.mrf.mxu0
    %v3529 = vadd.f32 0.0, %v3528
    %v3530 = vpop.f32.mrf.mxu0
    %3531 = vmatprep.mubr.bf16.mxu0 0
    %3532 = vmatmul.mubr.bf16.gmra.mxu0 %v2612
    %v3533 = vpop.f32.mrf.mxu0
    %v3534 = vadd.f32 0.0, %v3533
    %v3535 = vpop.f32.mrf.mxu0
    %v3536 = vpop.f32.mrf.mxu0
    %v3537 = vadd.f32 0.0, %v3536
    %v3538 = vpop.f32.mrf.mxu0
    %3539 = vmatprep.mubr.bf16.mxu0 0
    %3540 = vmatmul.mubr.bf16.gmra.mxu0 %v2615
    %v3541 = vpop.f32.mrf.mxu0
    %v3542 = vadd.f32 0.0, %v3541
    %v3543 = vpop.f32.mrf.mxu0
    %v3544 = vpop.f32.mrf.mxu0
    %v3545 = vadd.f32 0.0, %v3544
    %v3546 = vpop.f32.mrf.mxu0
    %3547 = vmatprep.mubr.bf16.mxu0 0
    %3548 = vmatmul.mubr.bf16.gmra.mxu0 %v2618
    %v3549 = vpop.f32.mrf.mxu0
    %v3550 = vadd.f32 0.0, %v3549
    %v3551 = vpop.f32.mrf.mxu0
    %v3552 = vpop.f32.mrf.mxu0
    %v3553 = vadd.f32 0.0, %v3552
    %v3554 = vpop.f32.mrf.mxu0
    %3555 = vmatprep.mubr.bf16.mxu0 0
    %3556 = vmatmul.mubr.bf16.gmra.mxu0 %v2621
    %v3557 = vpop.f32.mrf.mxu0
    %v3558 = vadd.f32 0.0, %v3557
    %v3559 = vpop.f32.mrf.mxu0
    %v3560 = vpop.f32.mrf.mxu0
    %v3561 = vadd.f32 0.0, %v3560
    %v3562 = vpop.f32.mrf.mxu0
    %3563 = vmatprep.mubr.bf16.mxu0 0
    %3564 = vmatmul.mubr.bf16.gmra.mxu0 %v2624
    %v3565 = vpop.f32.mrf.mxu0
    %v3566 = vadd.f32 0.0, %v3565
    %v3567 = vpop.f32.mrf.mxu0
    %v3568 = vpop.f32.mrf.mxu0
    %v3569 = vadd.f32 0.0, %v3568
    %v3570 = vpop.f32.mrf.mxu0
    %3571 = vmatprep.mubr.bf16.mxu0 0
    %3572 = vmatmul.mubr.bf16.gmra.mxu0 %v2627
    %v3573 = vpop.f32.mrf.mxu0
    %v3574 = vadd.f32 0.0, %v3573
    %v3575 = vpop.f32.mrf.mxu0
    %v3576 = vpop.f32.mrf.mxu0
    %v3577 = vadd.f32 0.0, %v3576
    %v3578 = vpop.f32.mrf.mxu0
    %3579 = vmatprep.mubr.bf16.mxu0 0
    %3580 = vmatmul.mubr.bf16.gmra.mxu0 %v2630
    %v3581 = vpop.f32.mrf.mxu0
    %v3582 = vadd.f32 0.0, %v3581
    %v3583 = vpop.f32.mrf.mxu0
    %v3584 = vpop.f32.mrf.mxu0
    %v3585 = vadd.f32 0.0, %v3584
    %v3586 = vpop.f32.mrf.mxu0
    %3587 = vmatprep.mubr.bf16.mxu0 0
    %3588 = vmatmul.mubr.bf16.gmra.mxu0 %v2633
    %v3589 = vpop.f32.mrf.mxu0
    %v3590 = vadd.f32 0.0, %v3589
    %v3591 = vpop.f32.mrf.mxu0
    %v3592 = vpop.f32.mrf.mxu0
    %v3593 = vadd.f32 0.0, %v3592
    %v3594 = vpop.f32.mrf.mxu0
    %3595 = vmatprep.mubr.bf16.mxu0 0
    %3596 = vmatmul.mubr.bf16.gmra.mxu0 %v2636
    %v3597 = vpop.f32.mrf.mxu0
    %v3598 = vadd.f32 0.0, %v3597
    %v3599 = vpop.f32.mrf.mxu0
    %v3600 = vpop.f32.mrf.mxu0
    %v3601 = vadd.f32 0.0, %v3600
    %v3602 = vpop.f32.mrf.mxu0
    %3603 = vmatprep.mubr.bf16.mxu0 0
    %3604 = vmatmul.mubr.bf16.gmra.mxu0 %v2639
    %v3605 = vpop.f32.mrf.mxu0
    %v3606 = vadd.f32 0.0, %v3605
    %v3607 = vpop.f32.mrf.mxu0
    %v3608 = vpop.f32.mrf.mxu0
    %v3609 = vadd.f32 0.0, %v3608
    %v3610 = vpop.f32.mrf.mxu0
    %3611 = vmatprep.mubr.bf16.mxu0 0
    %3612 = vmatmul.mubr.bf16.gmra.mxu0 %v2642
    %v3613 = vpop.f32.mrf.mxu0
    %v3614 = vadd.f32 0.0, %v3613
    %v3615 = vpop.f32.mrf.mxu0
    %v3616 = vpop.f32.mrf.mxu0
    %v3617 = vadd.f32 0.0, %v3616
    %v3618 = vpop.f32.mrf.mxu0
    %3619 = vmatprep.mubr.bf16.mxu0 0
    %3620 = vmatmul.mubr.bf16.gmra.mxu0 %v2645
    %v3621 = vpop.f32.mrf.mxu0
    %v3622 = vadd.f32 0.0, %v3621
    %v3623 = vpop.f32.mrf.mxu0
    %v3624 = vpop.f32.mrf.mxu0
    %v3625 = vadd.f32 0.0, %v3624
    %v3626 = vpop.f32.mrf.mxu0
    %3627 = vmatprep.mubr.bf16.mxu0 0
    %3628 = vmatmul.mubr.bf16.gmra.mxu0 %v2648
    %v3629 = vpop.f32.mrf.mxu0
    %v3630 = vadd.f32 0.0, %v3629
    %v3631 = vpop.f32.mrf.mxu0
    %v3632 = vpop.f32.mrf.mxu0
    %v3633 = vadd.f32 0.0, %v3632
    %v3634 = vpop.f32.mrf.mxu0
    %3635 = vmatprep.mubr.bf16.mxu0 0
    %3636 = vmatmul.mubr.bf16.gmra.mxu0 %v2651
    %v3637 = vpop.f32.mrf.mxu0
    %v3638 = vadd.f32 0.0, %v3637
    %v3639 = vpop.f32.mrf.mxu0
    %v3640 = vpop.f32.mrf.mxu0
    %v3641 = vadd.f32 0.0, %v3640
    %v3642 = vpop.f32.mrf.mxu0
    %3643 = vmatprep.mubr.bf16.mxu0 0
    %3644 = vmatmul.mubr.bf16.gmra.mxu0 %v3376
    %v3645 = vpop.f32.mrf.mxu0
    %v3646 = vadd.f32 0.0, %v3645
    %v3647 = vpop.f32.mrf.mxu0
    %v3648 = vpop.f32.mrf.mxu0
    %v3649 = vadd.f32 0.0, %v3648
    %v3650 = vpop.f32.mrf.mxu0
    %3651 = vmatprep.mubr.bf16.mxu0 0
    %3652 = vmatmul.mubr.bf16.gmra.mxu0 %v3379
    %v3653 = vpop.f32.mrf.mxu0
    %v3654 = vadd.f32 0.0, %v3653
    %v3655 = vpop.f32.mrf.mxu0
    %v3656 = vpop.f32.mrf.mxu0
    %v3657 = vadd.f32 0.0, %v3656
    %v3658 = vpop.f32.mrf.mxu0
    %3659 = vmatprep.mubr.bf16.mxu0 0
    %3660 = vmatmul.mubr.bf16.gmra.mxu0 %v3382
    %v3661 = vpop.f32.mrf.mxu0
    %v3662 = vadd.f32 0.0, %v3661
    %v3663 = vpop.f32.mrf.mxu0
    %v3664 = vpop.f32.mrf.mxu0
    %v3665 = vadd.f32 0.0, %v3664
    %v3666 = vpop.f32.mrf.mxu0
    %3667 = vmatprep.mubr.bf16.mxu0 0
    %3668 = vmatmul.mubr.bf16.gmra.mxu0 %v3385
    %v3669 = vpop.f32.mrf.mxu0
    %v3670 = vadd.f32 0.0, %v3669
    %v3671 = vpop.f32.mrf.mxu0
    %v3672 = vpop.f32.mrf.mxu0
    %v3673 = vadd.f32 0.0, %v3672
    %v3674 = vpop.f32.mrf.mxu0
    %3675 = vdwg.mxu0
    %v3676 = vadd.f32 %v3283, %v3422
    %v3677 = vadd.f32 %v3284, %v3425
    %v3678 = vadd.f32 %v3285, %v3430
    %v3679 = vadd.f32 %v3286, %v3433
    %v3680 = vadd.f32 %v3287, %v3438
    %v3681 = vadd.f32 %v3288, %v3441
    %v3682 = vadd.f32 %v3289, %v3446
    %v3683 = vadd.f32 %v3290, %v3449
    %v3684 = vadd.f32 %v3291, %v3454
    %v3685 = vadd.f32 %v3292, %v3457
    %v3686 = vadd.f32 %v3293, %v3462
    %v3687 = vadd.f32 %v3294, %v3465
    %v3688 = vadd.f32 %v3295, %v3470
    %v3689 = vadd.f32 %v3296, %v3473
    %v3690 = vadd.f32 %v3297, %v3478
    %v3691 = vadd.f32 %v3298, %v3481
    %v3692 = vadd.f32 %v3299, %v3486
    %v3693 = vadd.f32 %v3300, %v3489
    %v3694 = vadd.f32 %v3301, %v3494
    %v3695 = vadd.f32 %v3302, %v3497
    %v3696 = vadd.f32 %v3303, %v3502
    %v3697 = vadd.f32 %v3304, %v3505
    %v3698 = vadd.f32 %v3305, %v3510
    %v3699 = vadd.f32 %v3306, %v3513
    %v3700 = vadd.f32 %v3307, %v3518
    %v3701 = vadd.f32 %v3308, %v3521
    %v3702 = vadd.f32 %v3309, %v3526
    %v3703 = vadd.f32 %v3310, %v3529
    %v3704 = vadd.f32 %v3311, %v3534
    %v3705 = vadd.f32 %v3312, %v3537
    %v3706 = vadd.f32 %v3313, %v3542
    %v3707 = vadd.f32 %v3314, %v3545
    %v3708 = vadd.f32 %v3315, %v3550
    %v3709 = vadd.f32 %v3316, %v3553
    %v3710 = vadd.f32 %v3317, %v3558
    %v3711 = vadd.f32 %v3318, %v3561
    %v3712 = vadd.f32 %v3319, %v3566
    %v3713 = vadd.f32 %v3320, %v3569
    %v3714 = vadd.f32 %v3321, %v3574
    %v3715 = vadd.f32 %v3322, %v3577
    %v3716 = vadd.f32 %v3323, %v3582
    %v3717 = vadd.f32 %v3324, %v3585
    %v3718 = vadd.f32 %v3325, %v3590
    %v3719 = vadd.f32 %v3326, %v3593
    %v3720 = vadd.f32 %v3327, %v3598
    %v3721 = vadd.f32 %v3328, %v3601
    %v3722 = vadd.f32 %v3329, %v3606
    %v3723 = vadd.f32 %v3330, %v3609
    %v3724 = vadd.f32 %v3331, %v3614
    %v3725 = vadd.f32 %v3332, %v3617
    %v3726 = vadd.f32 %v3333, %v3622
    %v3727 = vadd.f32 %v3334, %v3625
    %v3728 = vadd.f32 %v3335, %v3630
    %v3729 = vadd.f32 %v3336, %v3633
    %v3730 = vadd.f32 %v3337, %v3638
    %v3731 = vadd.f32 %v3338, %v3641
    %v3732 = vadd.f32 %v3339, %v3646
    %v3733 = vadd.f32 %v3340, %v3649
    %v3734 = vadd.f32 %v3341, %v3654
    %v3735 = vadd.f32 %v3342, %v3657
    %v3736 = vadd.f32 %v3343, %v3662
    %v3737 = vadd.f32 %v3344, %v3665
    %v3738 = vadd.f32 %v3345, %v3670
    %v3739 = vadd.f32 %v3346, %v3673
    %v3740 = vpack.c.bf16 %v2008, %v2007
    %v3741 = vpack.c.bf16 %v2010, %v2009
    %v3742 = vpack.c.bf16 %v2012, %v2011
    %v3743 = vpack.c.bf16 %v2014, %v2013
    %v3752 = vunpack.c.l.b16 %v2047
    %v3753 = vunpack.c.l.b16 %v2048
    %v3754 = vunpack.c.l.b16 %v2049
    %v3755 = vunpack.c.l.b16 %v2050
    %v3756 = vunpack.c.l.b16 %v2051
    %v3757 = vunpack.c.l.b16 %v2052
    %v3758 = vunpack.c.l.b16 %v2053
    %v3759 = vunpack.c.l.b16 %v2054
    %v3760 = vpack.c.b16 %v3753, %v3752
    %v3761 = vpack.c.b16 %v3755, %v3754
    %v3762 = vpack.c.b16 %v3757, %v3756
    %v3763 = vpack.c.b16 %v3759, %v3758
    %v3769 = vsel %vm2168, %v3740, 0
    %v3772 = vsel %vm2168, %v3741, 0
    %v3775 = vsel %vm2168, %v3742, 0
    %v3778 = vsel %vm2168, %v3743, 0
    %3780 = vmatprep.subr.bf16.mxu0 0
    %3781 = vmatpush1.bf16.msra.mxu0 0
    %3782 = vmatprep.subr.bf16.mxu0 0
    %3783 = vmatpush1.bf16.msra.mxu0 0
    %3784 = vmatprep.subr.bf16.mxu0 0
    %3785 = vmatpush1.bf16.msra.mxu0 0
    %3786 = vmatprep.subr.bf16.mxu0 0
    %3787 = vmatpush1.bf16.msra.mxu0 0
    %3788 = vmatprep.subr.bf16.mxu0 0
    %3789 = vmatpush1.bf16.msra.mxu0 %v3763
    %3790 = vmatprep.subr.bf16.mxu0 0
    %3791 = vmatpush1.bf16.msra.mxu0 %v3762
    %3792 = vmatprep.subr.bf16.mxu0 0
    %3793 = vmatpush1.bf16.msra.mxu0 %v3761
    %3794 = vmatprep.subr.bf16.mxu0 0
    %3795 = vmatpush1.bf16.msra.mxu0 %v3760
    %3796 = vmatprep.subr.bf16.mxu0 0
    %3797 = vmatpush2.bf16.msra.mxu0 0
    %3798 = vmatprep.subr.bf16.mxu0 0
    %3799 = vmatpush2.bf16.msra.mxu0 0
    %3800 = vmatprep.subr.bf16.mxu0 0
    %3801 = vmatpush2.bf16.msra.mxu0 0
    %3802 = vmatprep.subr.bf16.mxu0 0
    %3803 = vmatpush2.bf16.msra.mxu0 0
    %3804 = vmatprep.subr.bf16.mxu0 0
    %3805 = vmatpush2.bf16.msra.mxu0 0
    %3806 = vmatprep.subr.bf16.mxu0 0
    %3807 = vmatpush2.bf16.msra.mxu0 0
    %3808 = vmatprep.subr.bf16.mxu0 0
    %3809 = vmatpush2.bf16.msra.mxu0 0
    %3810 = vmatprep.subr.bf16.mxu0 0
    %3811 = vmatpush2.bf16.msra.mxu0 0
    %3812 = vmatprep.mubr.bf16.mxu0 0
    %3813 = vmatmul.mubr.bf16.gmra.mxu0 %v2173
    %v3814 = vpop.f32.mrf.mxu0
    %v3815 = vadd.f32 0.0, %v3814
    %v3816 = vpop.f32.mrf.mxu0
    %v3817 = vpop.f32.mrf.mxu0
    %v3818 = vadd.f32 0.0, %v3817
    %v3819 = vpop.f32.mrf.mxu0
    %3820 = vmatprep.mubr.bf16.mxu0 0
    %3821 = vmatmul.mubr.bf16.gmra.mxu0 %v2176
    %v3822 = vpop.f32.mrf.mxu0
    %v3823 = vadd.f32 0.0, %v3822
    %v3824 = vpop.f32.mrf.mxu0
    %v3825 = vpop.f32.mrf.mxu0
    %v3826 = vadd.f32 0.0, %v3825
    %v3827 = vpop.f32.mrf.mxu0
    %3828 = vmatprep.mubr.bf16.mxu0 0
    %3829 = vmatmul.mubr.bf16.gmra.mxu0 %v2179
    %v3830 = vpop.f32.mrf.mxu0
    %v3831 = vadd.f32 0.0, %v3830
    %v3832 = vpop.f32.mrf.mxu0
    %v3833 = vpop.f32.mrf.mxu0
    %v3834 = vadd.f32 0.0, %v3833
    %v3835 = vpop.f32.mrf.mxu0
    %3836 = vmatprep.mubr.bf16.mxu0 0
    %3837 = vmatmul.mubr.bf16.gmra.mxu0 %v2182
    %v3838 = vpop.f32.mrf.mxu0
    %v3839 = vadd.f32 0.0, %v3838
    %v3840 = vpop.f32.mrf.mxu0
    %v3841 = vpop.f32.mrf.mxu0
    %v3842 = vadd.f32 0.0, %v3841
    %v3843 = vpop.f32.mrf.mxu0
    %3844 = vmatprep.mubr.bf16.mxu0 0
    %3845 = vmatmul.mubr.bf16.gmra.mxu0 %v2185
    %v3846 = vpop.f32.mrf.mxu0
    %v3847 = vadd.f32 0.0, %v3846
    %v3848 = vpop.f32.mrf.mxu0
    %v3849 = vpop.f32.mrf.mxu0
    %v3850 = vadd.f32 0.0, %v3849
    %v3851 = vpop.f32.mrf.mxu0
    %3852 = vmatprep.mubr.bf16.mxu0 0
    %3853 = vmatmul.mubr.bf16.gmra.mxu0 %v2188
    %v3854 = vpop.f32.mrf.mxu0
    %v3855 = vadd.f32 0.0, %v3854
    %v3856 = vpop.f32.mrf.mxu0
    %v3857 = vpop.f32.mrf.mxu0
    %v3858 = vadd.f32 0.0, %v3857
    %v3859 = vpop.f32.mrf.mxu0
    %3860 = vmatprep.mubr.bf16.mxu0 0
    %3861 = vmatmul.mubr.bf16.gmra.mxu0 %v2191
    %v3862 = vpop.f32.mrf.mxu0
    %v3863 = vadd.f32 0.0, %v3862
    %v3864 = vpop.f32.mrf.mxu0
    %v3865 = vpop.f32.mrf.mxu0
    %v3866 = vadd.f32 0.0, %v3865
    %v3867 = vpop.f32.mrf.mxu0
    %3868 = vmatprep.mubr.bf16.mxu0 0
    %3869 = vmatmul.mubr.bf16.gmra.mxu0 %v2194
    %v3870 = vpop.f32.mrf.mxu0
    %v3871 = vadd.f32 0.0, %v3870
    %v3872 = vpop.f32.mrf.mxu0
    %v3873 = vpop.f32.mrf.mxu0
    %v3874 = vadd.f32 0.0, %v3873
    %v3875 = vpop.f32.mrf.mxu0
    %3876 = vmatprep.mubr.bf16.mxu0 0
    %3877 = vmatmul.mubr.bf16.gmra.mxu0 %v2197
    %v3878 = vpop.f32.mrf.mxu0
    %v3879 = vadd.f32 0.0, %v3878
    %v3880 = vpop.f32.mrf.mxu0
    %v3881 = vpop.f32.mrf.mxu0
    %v3882 = vadd.f32 0.0, %v3881
    %v3883 = vpop.f32.mrf.mxu0
    %3884 = vmatprep.mubr.bf16.mxu0 0
    %3885 = vmatmul.mubr.bf16.gmra.mxu0 %v2200
    %v3886 = vpop.f32.mrf.mxu0
    %v3887 = vadd.f32 0.0, %v3886
    %v3888 = vpop.f32.mrf.mxu0
    %v3889 = vpop.f32.mrf.mxu0
    %v3890 = vadd.f32 0.0, %v3889
    %v3891 = vpop.f32.mrf.mxu0
    %3892 = vmatprep.mubr.bf16.mxu0 0
    %3893 = vmatmul.mubr.bf16.gmra.mxu0 %v2203
    %v3894 = vpop.f32.mrf.mxu0
    %v3895 = vadd.f32 0.0, %v3894
    %v3896 = vpop.f32.mrf.mxu0
    %v3897 = vpop.f32.mrf.mxu0
    %v3898 = vadd.f32 0.0, %v3897
    %v3899 = vpop.f32.mrf.mxu0
    %3900 = vmatprep.mubr.bf16.mxu0 0
    %3901 = vmatmul.mubr.bf16.gmra.mxu0 %v2206
    %v3902 = vpop.f32.mrf.mxu0
    %v3903 = vadd.f32 0.0, %v3902
    %v3904 = vpop.f32.mrf.mxu0
    %v3905 = vpop.f32.mrf.mxu0
    %v3906 = vadd.f32 0.0, %v3905
    %v3907 = vpop.f32.mrf.mxu0
    %3908 = vmatprep.mubr.bf16.mxu0 0
    %3909 = vmatmul.mubr.bf16.gmra.mxu0 %v2209
    %v3910 = vpop.f32.mrf.mxu0
    %v3911 = vadd.f32 0.0, %v3910
    %v3912 = vpop.f32.mrf.mxu0
    %v3913 = vpop.f32.mrf.mxu0
    %v3914 = vadd.f32 0.0, %v3913
    %v3915 = vpop.f32.mrf.mxu0
    %3916 = vmatprep.mubr.bf16.mxu0 0
    %3917 = vmatmul.mubr.bf16.gmra.mxu0 %v2212
    %v3918 = vpop.f32.mrf.mxu0
    %v3919 = vadd.f32 0.0, %v3918
    %v3920 = vpop.f32.mrf.mxu0
    %v3921 = vpop.f32.mrf.mxu0
    %v3922 = vadd.f32 0.0, %v3921
    %v3923 = vpop.f32.mrf.mxu0
    %3924 = vmatprep.mubr.bf16.mxu0 0
    %3925 = vmatmul.mubr.bf16.gmra.mxu0 %v2215
    %v3926 = vpop.f32.mrf.mxu0
    %v3927 = vadd.f32 0.0, %v3926
    %v3928 = vpop.f32.mrf.mxu0
    %v3929 = vpop.f32.mrf.mxu0
    %v3930 = vadd.f32 0.0, %v3929
    %v3931 = vpop.f32.mrf.mxu0
    %3932 = vmatprep.mubr.bf16.mxu0 0
    %3933 = vmatmul.mubr.bf16.gmra.mxu0 %v2218
    %v3934 = vpop.f32.mrf.mxu0
    %v3935 = vadd.f32 0.0, %v3934
    %v3936 = vpop.f32.mrf.mxu0
    %v3937 = vpop.f32.mrf.mxu0
    %v3938 = vadd.f32 0.0, %v3937
    %v3939 = vpop.f32.mrf.mxu0
    %3940 = vmatprep.mubr.bf16.mxu0 0
    %3941 = vmatmul.mubr.bf16.gmra.mxu0 %v2221
    %v3942 = vpop.f32.mrf.mxu0
    %v3943 = vadd.f32 0.0, %v3942
    %v3944 = vpop.f32.mrf.mxu0
    %v3945 = vpop.f32.mrf.mxu0
    %v3946 = vadd.f32 0.0, %v3945
    %v3947 = vpop.f32.mrf.mxu0
    %3948 = vmatprep.mubr.bf16.mxu0 0
    %3949 = vmatmul.mubr.bf16.gmra.mxu0 %v2224
    %v3950 = vpop.f32.mrf.mxu0
    %v3951 = vadd.f32 0.0, %v3950
    %v3952 = vpop.f32.mrf.mxu0
    %v3953 = vpop.f32.mrf.mxu0
    %v3954 = vadd.f32 0.0, %v3953
    %v3955 = vpop.f32.mrf.mxu0
    %3956 = vmatprep.mubr.bf16.mxu0 0
    %3957 = vmatmul.mubr.bf16.gmra.mxu0 %v2227
    %v3958 = vpop.f32.mrf.mxu0
    %v3959 = vadd.f32 0.0, %v3958
    %v3960 = vpop.f32.mrf.mxu0
    %v3961 = vpop.f32.mrf.mxu0
    %v3962 = vadd.f32 0.0, %v3961
    %v3963 = vpop.f32.mrf.mxu0
    %3964 = vmatprep.mubr.bf16.mxu0 0
    %3965 = vmatmul.mubr.bf16.gmra.mxu0 %v2230
    %v3966 = vpop.f32.mrf.mxu0
    %v3967 = vadd.f32 0.0, %v3966
    %v3968 = vpop.f32.mrf.mxu0
    %v3969 = vpop.f32.mrf.mxu0
    %v3970 = vadd.f32 0.0, %v3969
    %v3971 = vpop.f32.mrf.mxu0
    %3972 = vmatprep.mubr.bf16.mxu0 0
    %3973 = vmatmul.mubr.bf16.gmra.mxu0 %v2233
    %v3974 = vpop.f32.mrf.mxu0
    %v3975 = vadd.f32 0.0, %v3974
    %v3976 = vpop.f32.mrf.mxu0
    %v3977 = vpop.f32.mrf.mxu0
    %v3978 = vadd.f32 0.0, %v3977
    %v3979 = vpop.f32.mrf.mxu0
    %3980 = vmatprep.mubr.bf16.mxu0 0
    %3981 = vmatmul.mubr.bf16.gmra.mxu0 %v2236
    %v3982 = vpop.f32.mrf.mxu0
    %v3983 = vadd.f32 0.0, %v3982
    %v3984 = vpop.f32.mrf.mxu0
    %v3985 = vpop.f32.mrf.mxu0
    %v3986 = vadd.f32 0.0, %v3985
    %v3987 = vpop.f32.mrf.mxu0
    %3988 = vmatprep.mubr.bf16.mxu0 0
    %3989 = vmatmul.mubr.bf16.gmra.mxu0 %v2239
    %v3990 = vpop.f32.mrf.mxu0
    %v3991 = vadd.f32 0.0, %v3990
    %v3992 = vpop.f32.mrf.mxu0
    %v3993 = vpop.f32.mrf.mxu0
    %v3994 = vadd.f32 0.0, %v3993
    %v3995 = vpop.f32.mrf.mxu0
    %3996 = vmatprep.mubr.bf16.mxu0 0
    %3997 = vmatmul.mubr.bf16.gmra.mxu0 %v2242
    %v3998 = vpop.f32.mrf.mxu0
    %v3999 = vadd.f32 0.0, %v3998
    %v4000 = vpop.f32.mrf.mxu0
    %v4001 = vpop.f32.mrf.mxu0
    %v4002 = vadd.f32 0.0, %v4001
    %v4003 = vpop.f32.mrf.mxu0
    %4004 = vmatprep.mubr.bf16.mxu0 0
    %4005 = vmatmul.mubr.bf16.gmra.mxu0 %v2245
    %v4006 = vpop.f32.mrf.mxu0
    %v4007 = vadd.f32 0.0, %v4006
    %v4008 = vpop.f32.mrf.mxu0
    %v4009 = vpop.f32.mrf.mxu0
    %v4010 = vadd.f32 0.0, %v4009
    %v4011 = vpop.f32.mrf.mxu0
    %4012 = vmatprep.mubr.bf16.mxu0 0
    %4013 = vmatmul.mubr.bf16.gmra.mxu0 %v2248
    %v4014 = vpop.f32.mrf.mxu0
    %v4015 = vadd.f32 0.0, %v4014
    %v4016 = vpop.f32.mrf.mxu0
    %v4017 = vpop.f32.mrf.mxu0
    %v4018 = vadd.f32 0.0, %v4017
    %v4019 = vpop.f32.mrf.mxu0
    %4020 = vmatprep.mubr.bf16.mxu0 0
    %4021 = vmatmul.mubr.bf16.gmra.mxu0 %v2251
    %v4022 = vpop.f32.mrf.mxu0
    %v4023 = vadd.f32 0.0, %v4022
    %v4024 = vpop.f32.mrf.mxu0
    %v4025 = vpop.f32.mrf.mxu0
    %v4026 = vadd.f32 0.0, %v4025
    %v4027 = vpop.f32.mrf.mxu0
    %4028 = vmatprep.mubr.bf16.mxu0 0
    %4029 = vmatmul.mubr.bf16.gmra.mxu0 %v2254
    %v4030 = vpop.f32.mrf.mxu0
    %v4031 = vadd.f32 0.0, %v4030
    %v4032 = vpop.f32.mrf.mxu0
    %v4033 = vpop.f32.mrf.mxu0
    %v4034 = vadd.f32 0.0, %v4033
    %v4035 = vpop.f32.mrf.mxu0
    %4036 = vmatprep.mubr.bf16.mxu0 0
    %4037 = vmatmul.mubr.bf16.gmra.mxu0 %v3769
    %v4038 = vpop.f32.mrf.mxu0
    %v4039 = vadd.f32 0.0, %v4038
    %v4040 = vpop.f32.mrf.mxu0
    %v4041 = vpop.f32.mrf.mxu0
    %v4042 = vadd.f32 0.0, %v4041
    %v4043 = vpop.f32.mrf.mxu0
    %4044 = vmatprep.mubr.bf16.mxu0 0
    %4045 = vmatmul.mubr.bf16.gmra.mxu0 %v3772
    %v4046 = vpop.f32.mrf.mxu0
    %v4047 = vadd.f32 0.0, %v4046
    %v4048 = vpop.f32.mrf.mxu0
    %v4049 = vpop.f32.mrf.mxu0
    %v4050 = vadd.f32 0.0, %v4049
    %v4051 = vpop.f32.mrf.mxu0
    %4052 = vmatprep.mubr.bf16.mxu0 0
    %4053 = vmatmul.mubr.bf16.gmra.mxu0 %v3775
    %v4054 = vpop.f32.mrf.mxu0
    %v4055 = vadd.f32 0.0, %v4054
    %v4056 = vpop.f32.mrf.mxu0
    %v4057 = vpop.f32.mrf.mxu0
    %v4058 = vadd.f32 0.0, %v4057
    %v4059 = vpop.f32.mrf.mxu0
    %4060 = vmatprep.mubr.bf16.mxu0 0
    %4061 = vmatmul.mubr.bf16.gmra.mxu0 %v3778
    %v4062 = vpop.f32.mrf.mxu0
    %v4063 = vadd.f32 0.0, %v4062
    %v4064 = vpop.f32.mrf.mxu0
    %v4065 = vpop.f32.mrf.mxu0
    %v4066 = vadd.f32 0.0, %v4065
    %v4067 = vpop.f32.mrf.mxu0
    %4068 = vdwg.mxu0
    %v4069 = vadd.f32 %v3676, %v3815
    %v4070 = vadd.f32 %v3677, %v3818
    %v4071 = vadd.f32 %v3678, %v3823
    %v4072 = vadd.f32 %v3679, %v3826
    %v4073 = vadd.f32 %v3680, %v3831
    %v4074 = vadd.f32 %v3681, %v3834
    %v4075 = vadd.f32 %v3682, %v3839
    %v4076 = vadd.f32 %v3683, %v3842
    %v4077 = vadd.f32 %v3684, %v3847
    %v4078 = vadd.f32 %v3685, %v3850
    %v4079 = vadd.f32 %v3686, %v3855
    %v4080 = vadd.f32 %v3687, %v3858
    %v4081 = vadd.f32 %v3688, %v3863
    %v4082 = vadd.f32 %v3689, %v3866
    %v4083 = vadd.f32 %v3690, %v3871
    %v4084 = vadd.f32 %v3691, %v3874
    %v4085 = vadd.f32 %v3692, %v3879
    %v4086 = vadd.f32 %v3693, %v3882
    %v4087 = vadd.f32 %v3694, %v3887
    %v4088 = vadd.f32 %v3695, %v3890
    %v4089 = vadd.f32 %v3696, %v3895
    %v4090 = vadd.f32 %v3697, %v3898
    %v4091 = vadd.f32 %v3698, %v3903
    %v4092 = vadd.f32 %v3699, %v3906
    %v4093 = vadd.f32 %v3700, %v3911
    %v4094 = vadd.f32 %v3701, %v3914
    %v4095 = vadd.f32 %v3702, %v3919
    %v4096 = vadd.f32 %v3703, %v3922
    %v4097 = vadd.f32 %v3704, %v3927
    %v4098 = vadd.f32 %v3705, %v3930
    %v4099 = vadd.f32 %v3706, %v3935
    %v4100 = vadd.f32 %v3707, %v3938
    %v4101 = vadd.f32 %v3708, %v3943
    %v4102 = vadd.f32 %v3709, %v3946
    %v4103 = vadd.f32 %v3710, %v3951
    %v4104 = vadd.f32 %v3711, %v3954
    %v4105 = vadd.f32 %v3712, %v3959
    %v4106 = vadd.f32 %v3713, %v3962
    %v4107 = vadd.f32 %v3714, %v3967
    %v4108 = vadd.f32 %v3715, %v3970
    %v4109 = vadd.f32 %v3716, %v3975
    %v4110 = vadd.f32 %v3717, %v3978
    %v4111 = vadd.f32 %v3718, %v3983
    %v4112 = vadd.f32 %v3719, %v3986
    %v4113 = vadd.f32 %v3720, %v3991
    %v4114 = vadd.f32 %v3721, %v3994
    %v4115 = vadd.f32 %v3722, %v3999
    %v4116 = vadd.f32 %v3723, %v4002
    %v4117 = vadd.f32 %v3724, %v4007
    %v4118 = vadd.f32 %v3725, %v4010
    %v4119 = vadd.f32 %v3726, %v4015
    %v4120 = vadd.f32 %v3727, %v4018
    %v4121 = vadd.f32 %v3728, %v4023
    %v4122 = vadd.f32 %v3729, %v4026
    %v4123 = vadd.f32 %v3730, %v4031
    %v4124 = vadd.f32 %v3731, %v4034
    %v4125 = vadd.f32 %v3732, %v4039
    %v4126 = vadd.f32 %v3733, %v4042
    %v4127 = vadd.f32 %v3734, %v4047
    %v4128 = vadd.f32 %v3735, %v4050
    %v4129 = vadd.f32 %v3736, %v4055
    %v4130 = vadd.f32 %v3737, %v4058
    %v4131 = vadd.f32 %v3738, %v4063
    %v4132 = vadd.f32 %v3739, %v4066
    %v4133 = vpack.c.bf16 0.0, %v2014
    %v4142 = vunpack.c.l.b16 %v2055
    %v4143 = vunpack.c.l.b16 %v2056
    %v4144 = vunpack.c.l.b16 %v2057
    %v4145 = vunpack.c.l.b16 %v2058
    %v4146 = vunpack.c.l.b16 %v2059
    %v4147 = vunpack.c.l.b16 %v2060
    %v4148 = vunpack.c.l.b16 %v2061
    %v4149 = vunpack.c.l.b16 %v2062
    %v4150 = vpack.c.b16 %v4143, %v4142
    %v4151 = vpack.c.b16 %v4145, %v4144
    %v4152 = vpack.c.b16 %v4147, %v4146
    %v4153 = vpack.c.b16 %v4149, %v4148
    %v4159 = vsel %vm2168, %v4133, 0
    %4161 = vmatprep.subr.bf16.mxu0 0
    %4162 = vmatpush1.bf16.msra.mxu0 0
    %4163 = vmatprep.subr.bf16.mxu0 0
    %4164 = vmatpush1.bf16.msra.mxu0 0
    %4165 = vmatprep.subr.bf16.mxu0 0
    %4166 = vmatpush1.bf16.msra.mxu0 0
    %4167 = vmatprep.subr.bf16.mxu0 0
    %4168 = vmatpush1.bf16.msra.mxu0 0
    %4169 = vmatprep.subr.bf16.mxu0 0
    %4170 = vmatpush1.bf16.msra.mxu0 %v4153
    %4171 = vmatprep.subr.bf16.mxu0 0
    %4172 = vmatpush1.bf16.msra.mxu0 %v4152
    %4173 = vmatprep.subr.bf16.mxu0 0
    %4174 = vmatpush1.bf16.msra.mxu0 %v4151
    %4175 = vmatprep.subr.bf16.mxu0 0
    %4176 = vmatpush1.bf16.msra.mxu0 %v4150
    %4177 = vmatprep.subr.bf16.mxu0 0
    %4178 = vmatpush2.bf16.msra.mxu0 0
    %4179 = vmatprep.subr.bf16.mxu0 0
    %4180 = vmatpush2.bf16.msra.mxu0 0
    %4181 = vmatprep.subr.bf16.mxu0 0
    %4182 = vmatpush2.bf16.msra.mxu0 0
    %4183 = vmatprep.subr.bf16.mxu0 0
    %4184 = vmatpush2.bf16.msra.mxu0 0
    %4185 = vmatprep.subr.bf16.mxu0 0
    %4186 = vmatpush2.bf16.msra.mxu0 0
    %4187 = vmatprep.subr.bf16.mxu0 0
    %4188 = vmatpush2.bf16.msra.mxu0 0
    %4189 = vmatprep.subr.bf16.mxu0 0
    %4190 = vmatpush2.bf16.msra.mxu0 0
    %4191 = vmatprep.subr.bf16.mxu0 0
    %4192 = vmatpush2.bf16.msra.mxu0 0
    %4193 = vmatprep.mubr.bf16.mxu0 0
    %4194 = vmatmul.mubr.bf16.gmra.mxu0 %v2573
    %v4195 = vpop.f32.mrf.mxu0
    %v4196 = vadd.f32 0.0, %v4195
    %v4197 = vpop.f32.mrf.mxu0
    %v4198 = vpop.f32.mrf.mxu0
    %v4199 = vadd.f32 0.0, %v4198
    %v4200 = vpop.f32.mrf.mxu0
    %4201 = vmatprep.mubr.bf16.mxu0 0
    %4202 = vmatmul.mubr.bf16.gmra.mxu0 %v2576
    %v4203 = vpop.f32.mrf.mxu0
    %v4204 = vadd.f32 0.0, %v4203
    %v4205 = vpop.f32.mrf.mxu0
    %v4206 = vpop.f32.mrf.mxu0
    %v4207 = vadd.f32 0.0, %v4206
    %v4208 = vpop.f32.mrf.mxu0
    %4209 = vmatprep.mubr.bf16.mxu0 0
    %4210 = vmatmul.mubr.bf16.gmra.mxu0 %v2579
    %v4211 = vpop.f32.mrf.mxu0
    %v4212 = vadd.f32 0.0, %v4211
    %v4213 = vpop.f32.mrf.mxu0
    %v4214 = vpop.f32.mrf.mxu0
    %v4215 = vadd.f32 0.0, %v4214
    %v4216 = vpop.f32.mrf.mxu0
    %4217 = vmatprep.mubr.bf16.mxu0 0
    %4218 = vmatmul.mubr.bf16.gmra.mxu0 %v2974
    %v4219 = vpop.f32.mrf.mxu0
    %v4220 = vadd.f32 0.0, %v4219
    %v4221 = vpop.f32.mrf.mxu0
    %v4222 = vpop.f32.mrf.mxu0
    %v4223 = vadd.f32 0.0, %v4222
    %v4224 = vpop.f32.mrf.mxu0
    %4225 = vmatprep.mubr.bf16.mxu0 0
    %4226 = vmatmul.mubr.bf16.gmra.mxu0 %v2585
    %v4227 = vpop.f32.mrf.mxu0
    %v4228 = vadd.f32 0.0, %v4227
    %v4229 = vpop.f32.mrf.mxu0
    %v4230 = vpop.f32.mrf.mxu0
    %v4231 = vadd.f32 0.0, %v4230
    %v4232 = vpop.f32.mrf.mxu0
    %4233 = vmatprep.mubr.bf16.mxu0 0
    %4234 = vmatmul.mubr.bf16.gmra.mxu0 %v2588
    %v4235 = vpop.f32.mrf.mxu0
    %v4236 = vadd.f32 0.0, %v4235
    %v4237 = vpop.f32.mrf.mxu0
    %v4238 = vpop.f32.mrf.mxu0
    %v4239 = vadd.f32 0.0, %v4238
    %v4240 = vpop.f32.mrf.mxu0
    %4241 = vmatprep.mubr.bf16.mxu0 0
    %4242 = vmatmul.mubr.bf16.gmra.mxu0 %v2591
    %v4243 = vpop.f32.mrf.mxu0
    %v4244 = vadd.f32 0.0, %v4243
    %v4245 = vpop.f32.mrf.mxu0
    %v4246 = vpop.f32.mrf.mxu0
    %v4247 = vadd.f32 0.0, %v4246
    %v4248 = vpop.f32.mrf.mxu0
    %4249 = vmatprep.mubr.bf16.mxu0 0
    %4250 = vmatmul.mubr.bf16.gmra.mxu0 %v2977
    %v4251 = vpop.f32.mrf.mxu0
    %v4252 = vadd.f32 0.0, %v4251
    %v4253 = vpop.f32.mrf.mxu0
    %v4254 = vpop.f32.mrf.mxu0
    %v4255 = vadd.f32 0.0, %v4254
    %v4256 = vpop.f32.mrf.mxu0
    %4257 = vmatprep.mubr.bf16.mxu0 0
    %4258 = vmatmul.mubr.bf16.gmra.mxu0 %v2597
    %v4259 = vpop.f32.mrf.mxu0
    %v4260 = vadd.f32 0.0, %v4259
    %v4261 = vpop.f32.mrf.mxu0
    %v4262 = vpop.f32.mrf.mxu0
    %v4263 = vadd.f32 0.0, %v4262
    %v4264 = vpop.f32.mrf.mxu0
    %4265 = vmatprep.mubr.bf16.mxu0 0
    %4266 = vmatmul.mubr.bf16.gmra.mxu0 %v2600
    %v4267 = vpop.f32.mrf.mxu0
    %v4268 = vadd.f32 0.0, %v4267
    %v4269 = vpop.f32.mrf.mxu0
    %v4270 = vpop.f32.mrf.mxu0
    %v4271 = vadd.f32 0.0, %v4270
    %v4272 = vpop.f32.mrf.mxu0
    %4273 = vmatprep.mubr.bf16.mxu0 0
    %4274 = vmatmul.mubr.bf16.gmra.mxu0 %v2603
    %v4275 = vpop.f32.mrf.mxu0
    %v4276 = vadd.f32 0.0, %v4275
    %v4277 = vpop.f32.mrf.mxu0
    %v4278 = vpop.f32.mrf.mxu0
    %v4279 = vadd.f32 0.0, %v4278
    %v4280 = vpop.f32.mrf.mxu0
    %4281 = vmatprep.mubr.bf16.mxu0 0
    %4282 = vmatmul.mubr.bf16.gmra.mxu0 %v2980
    %v4283 = vpop.f32.mrf.mxu0
    %v4284 = vadd.f32 0.0, %v4283
    %v4285 = vpop.f32.mrf.mxu0
    %v4286 = vpop.f32.mrf.mxu0
    %v4287 = vadd.f32 0.0, %v4286
    %v4288 = vpop.f32.mrf.mxu0
    %4289 = vmatprep.mubr.bf16.mxu0 0
    %4290 = vmatmul.mubr.bf16.gmra.mxu0 %v2609
    %v4291 = vpop.f32.mrf.mxu0
    %v4292 = vadd.f32 0.0, %v4291
    %v4293 = vpop.f32.mrf.mxu0
    %v4294 = vpop.f32.mrf.mxu0
    %v4295 = vadd.f32 0.0, %v4294
    %v4296 = vpop.f32.mrf.mxu0
    %4297 = vmatprep.mubr.bf16.mxu0 0
    %4298 = vmatmul.mubr.bf16.gmra.mxu0 %v2612
    %v4299 = vpop.f32.mrf.mxu0
    %v4300 = vadd.f32 0.0, %v4299
    %v4301 = vpop.f32.mrf.mxu0
    %v4302 = vpop.f32.mrf.mxu0
    %v4303 = vadd.f32 0.0, %v4302
    %v4304 = vpop.f32.mrf.mxu0
    %4305 = vmatprep.mubr.bf16.mxu0 0
    %4306 = vmatmul.mubr.bf16.gmra.mxu0 %v2615
    %v4307 = vpop.f32.mrf.mxu0
    %v4308 = vadd.f32 0.0, %v4307
    %v4309 = vpop.f32.mrf.mxu0
    %v4310 = vpop.f32.mrf.mxu0
    %v4311 = vadd.f32 0.0, %v4310
    %v4312 = vpop.f32.mrf.mxu0
    %4313 = vmatprep.mubr.bf16.mxu0 0
    %4314 = vmatmul.mubr.bf16.gmra.mxu0 %v2983
    %v4315 = vpop.f32.mrf.mxu0
    %v4316 = vadd.f32 0.0, %v4315
    %v4317 = vpop.f32.mrf.mxu0
    %v4318 = vpop.f32.mrf.mxu0
    %v4319 = vadd.f32 0.0, %v4318
    %v4320 = vpop.f32.mrf.mxu0
    %4321 = vmatprep.mubr.bf16.mxu0 0
    %4322 = vmatmul.mubr.bf16.gmra.mxu0 %v2621
    %v4323 = vpop.f32.mrf.mxu0
    %v4324 = vadd.f32 0.0, %v4323
    %v4325 = vpop.f32.mrf.mxu0
    %v4326 = vpop.f32.mrf.mxu0
    %v4327 = vadd.f32 0.0, %v4326
    %v4328 = vpop.f32.mrf.mxu0
    %4329 = vmatprep.mubr.bf16.mxu0 0
    %4330 = vmatmul.mubr.bf16.gmra.mxu0 %v2624
    %v4331 = vpop.f32.mrf.mxu0
    %v4332 = vadd.f32 0.0, %v4331
    %v4333 = vpop.f32.mrf.mxu0
    %v4334 = vpop.f32.mrf.mxu0
    %v4335 = vadd.f32 0.0, %v4334
    %v4336 = vpop.f32.mrf.mxu0
    %4337 = vmatprep.mubr.bf16.mxu0 0
    %4338 = vmatmul.mubr.bf16.gmra.mxu0 %v2627
    %v4339 = vpop.f32.mrf.mxu0
    %v4340 = vadd.f32 0.0, %v4339
    %v4341 = vpop.f32.mrf.mxu0
    %v4342 = vpop.f32.mrf.mxu0
    %v4343 = vadd.f32 0.0, %v4342
    %v4344 = vpop.f32.mrf.mxu0
    %4345 = vmatprep.mubr.bf16.mxu0 0
    %4346 = vmatmul.mubr.bf16.gmra.mxu0 %v2986
    %v4347 = vpop.f32.mrf.mxu0
    %v4348 = vadd.f32 0.0, %v4347
    %v4349 = vpop.f32.mrf.mxu0
    %v4350 = vpop.f32.mrf.mxu0
    %v4351 = vadd.f32 0.0, %v4350
    %v4352 = vpop.f32.mrf.mxu0
    %4353 = vmatprep.mubr.bf16.mxu0 0
    %4354 = vmatmul.mubr.bf16.gmra.mxu0 %v2633
    %v4355 = vpop.f32.mrf.mxu0
    %v4356 = vadd.f32 0.0, %v4355
    %v4357 = vpop.f32.mrf.mxu0
    %v4358 = vpop.f32.mrf.mxu0
    %v4359 = vadd.f32 0.0, %v4358
    %v4360 = vpop.f32.mrf.mxu0
    %4361 = vmatprep.mubr.bf16.mxu0 0
    %4362 = vmatmul.mubr.bf16.gmra.mxu0 %v2636
    %v4363 = vpop.f32.mrf.mxu0
    %v4364 = vadd.f32 0.0, %v4363
    %v4365 = vpop.f32.mrf.mxu0
    %v4366 = vpop.f32.mrf.mxu0
    %v4367 = vadd.f32 0.0, %v4366
    %v4368 = vpop.f32.mrf.mxu0
    %4369 = vmatprep.mubr.bf16.mxu0 0
    %4370 = vmatmul.mubr.bf16.gmra.mxu0 %v2639
    %v4371 = vpop.f32.mrf.mxu0
    %v4372 = vadd.f32 0.0, %v4371
    %v4373 = vpop.f32.mrf.mxu0
    %v4374 = vpop.f32.mrf.mxu0
    %v4375 = vadd.f32 0.0, %v4374
    %v4376 = vpop.f32.mrf.mxu0
    %4377 = vmatprep.mubr.bf16.mxu0 0
    %4378 = vmatmul.mubr.bf16.gmra.mxu0 %v2989
    %v4379 = vpop.f32.mrf.mxu0
    %v4380 = vadd.f32 0.0, %v4379
    %v4381 = vpop.f32.mrf.mxu0
    %v4382 = vpop.f32.mrf.mxu0
    %v4383 = vadd.f32 0.0, %v4382
    %v4384 = vpop.f32.mrf.mxu0
    %4385 = vmatprep.mubr.bf16.mxu0 0
    %4386 = vmatmul.mubr.bf16.gmra.mxu0 %v2645
    %v4387 = vpop.f32.mrf.mxu0
    %v4388 = vadd.f32 0.0, %v4387
    %v4389 = vpop.f32.mrf.mxu0
    %v4390 = vpop.f32.mrf.mxu0
    %v4391 = vadd.f32 0.0, %v4390
    %v4392 = vpop.f32.mrf.mxu0
    %4393 = vmatprep.mubr.bf16.mxu0 0
    %4394 = vmatmul.mubr.bf16.gmra.mxu0 %v2648
    %v4395 = vpop.f32.mrf.mxu0
    %v4396 = vadd.f32 0.0, %v4395
    %v4397 = vpop.f32.mrf.mxu0
    %v4398 = vpop.f32.mrf.mxu0
    %v4399 = vadd.f32 0.0, %v4398
    %v4400 = vpop.f32.mrf.mxu0
    %4401 = vmatprep.mubr.bf16.mxu0 0
    %4402 = vmatmul.mubr.bf16.gmra.mxu0 %v2651
    %v4403 = vpop.f32.mrf.mxu0
    %v4404 = vadd.f32 0.0, %v4403
    %v4405 = vpop.f32.mrf.mxu0
    %v4406 = vpop.f32.mrf.mxu0
    %v4407 = vadd.f32 0.0, %v4406
    %v4408 = vpop.f32.mrf.mxu0
    %4409 = vmatprep.mubr.bf16.mxu0 0
    %4410 = vmatmul.mubr.bf16.gmra.mxu0 %v2992
    %v4411 = vpop.f32.mrf.mxu0
    %v4412 = vadd.f32 0.0, %v4411
    %v4413 = vpop.f32.mrf.mxu0
    %v4414 = vpop.f32.mrf.mxu0
    %v4415 = vadd.f32 0.0, %v4414
    %v4416 = vpop.f32.mrf.mxu0
    %4417 = vmatprep.mubr.bf16.mxu0 0
    %4418 = vmatmul.mubr.bf16.gmra.mxu0 %v3379
    %v4419 = vpop.f32.mrf.mxu0
    %v4420 = vadd.f32 0.0, %v4419
    %v4421 = vpop.f32.mrf.mxu0
    %v4422 = vpop.f32.mrf.mxu0
    %v4423 = vadd.f32 0.0, %v4422
    %v4424 = vpop.f32.mrf.mxu0
    %4425 = vmatprep.mubr.bf16.mxu0 0
    %4426 = vmatmul.mubr.bf16.gmra.mxu0 %v3382
    %v4427 = vpop.f32.mrf.mxu0
    %v4428 = vadd.f32 0.0, %v4427
    %v4429 = vpop.f32.mrf.mxu0
    %v4430 = vpop.f32.mrf.mxu0
    %v4431 = vadd.f32 0.0, %v4430
    %v4432 = vpop.f32.mrf.mxu0
    %4433 = vmatprep.mubr.bf16.mxu0 0
    %4434 = vmatmul.mubr.bf16.gmra.mxu0 %v3385
    %v4435 = vpop.f32.mrf.mxu0
    %v4436 = vadd.f32 0.0, %v4435
    %v4437 = vpop.f32.mrf.mxu0
    %v4438 = vpop.f32.mrf.mxu0
    %v4439 = vadd.f32 0.0, %v4438
    %v4440 = vpop.f32.mrf.mxu0
    %4441 = vmatprep.mubr.bf16.mxu0 0
    %4442 = vmatmul.mubr.bf16.gmra.mxu0 %v4159
    %v4443 = vpop.f32.mrf.mxu0
    %v4444 = vadd.f32 0.0, %v4443
    %v4445 = vpop.f32.mrf.mxu0
    %v4446 = vpop.f32.mrf.mxu0
    %v4447 = vadd.f32 0.0, %v4446
    %v4448 = vpop.f32.mrf.mxu0
    %4449 = vdwg.mxu0
    %v4450 = vadd.f32 %v4069, %v4196
    %v4451 = vadd.f32 %v4070, %v4199
    %v4452 = vadd.f32 %v4071, %v4204
    %v4453 = vadd.f32 %v4072, %v4207
    %v4454 = vadd.f32 %v4073, %v4212
    %v4455 = vadd.f32 %v4074, %v4215
    %v4456 = vadd.f32 %v4075, %v4220
    %v4457 = vadd.f32 %v4076, %v4223
    %v4458 = vadd.f32 %v4077, %v4228
    %v4459 = vadd.f32 %v4078, %v4231
    %v4460 = vadd.f32 %v4079, %v4236
    %v4461 = vadd.f32 %v4080, %v4239
    %v4462 = vadd.f32 %v4081, %v4244
    %v4463 = vadd.f32 %v4082, %v4247
    %v4464 = vadd.f32 %v4083, %v4252
    %v4465 = vadd.f32 %v4084, %v4255
    %v4466 = vadd.f32 %v4085, %v4260
    %v4467 = vadd.f32 %v4086, %v4263
    %v4468 = vadd.f32 %v4087, %v4268
    %v4469 = vadd.f32 %v4088, %v4271
    %v4470 = vadd.f32 %v4089, %v4276
    %v4471 = vadd.f32 %v4090, %v4279
    %v4472 = vadd.f32 %v4091, %v4284
    %v4473 = vadd.f32 %v4092, %v4287
    %v4474 = vadd.f32 %v4093, %v4292
    %v4475 = vadd.f32 %v4094, %v4295
    %v4476 = vadd.f32 %v4095, %v4300
    %v4477 = vadd.f32 %v4096, %v4303
    %v4478 = vadd.f32 %v4097, %v4308
    %v4479 = vadd.f32 %v4098, %v4311
    %v4480 = vadd.f32 %v4099, %v4316
    %v4481 = vadd.f32 %v4100, %v4319
    %v4482 = vadd.f32 %v4101, %v4324
    %v4483 = vadd.f32 %v4102, %v4327
    %v4484 = vadd.f32 %v4103, %v4332
    %v4485 = vadd.f32 %v4104, %v4335
    %v4486 = vadd.f32 %v4105, %v4340
    %v4487 = vadd.f32 %v4106, %v4343
    %v4488 = vadd.f32 %v4107, %v4348
    %v4489 = vadd.f32 %v4108, %v4351
    %v4490 = vadd.f32 %v4109, %v4356
    %v4491 = vadd.f32 %v4110, %v4359
    %v4492 = vadd.f32 %v4111, %v4364
    %v4493 = vadd.f32 %v4112, %v4367
    %v4494 = vadd.f32 %v4113, %v4372
    %v4495 = vadd.f32 %v4114, %v4375
    %v4496 = vadd.f32 %v4115, %v4380
    %v4497 = vadd.f32 %v4116, %v4383
    %v4498 = vadd.f32 %v4117, %v4388
    %v4499 = vadd.f32 %v4118, %v4391
    %v4500 = vadd.f32 %v4119, %v4396
    %v4501 = vadd.f32 %v4120, %v4399
    %v4502 = vadd.f32 %v4121, %v4404
    %v4503 = vadd.f32 %v4122, %v4407
    %v4504 = vadd.f32 %v4123, %v4412
    %v4505 = vadd.f32 %v4124, %v4415
    %v4506 = vadd.f32 %v4125, %v4420
    %v4507 = vadd.f32 %v4126, %v4423
    %v4508 = vadd.f32 %v4127, %v4428
    %v4509 = vadd.f32 %v4128, %v4431
    %v4510 = vadd.f32 %v4129, %v4436
    %v4511 = vadd.f32 %v4130, %v4439
    %v4512 = vadd.f32 %v4131, %v4444
    %v4513 = vadd.f32 %v4132, %v4447
    %v4522 = vunpack.c.l.b16 %v2063
    %v4523 = vunpack.c.l.b16 %v2064
    %v4524 = vunpack.c.l.b16 %v2065
    %v4525 = vunpack.c.l.b16 %v2066
    %v4526 = vunpack.c.l.b16 %v2067
    %v4527 = vunpack.c.l.b16 %v2068
    %v4528 = vunpack.c.l.b16 %v2069
    %v4529 = vunpack.c.l.b16 %v2070
    %v4530 = vpack.c.b16 %v4523, %v4522
    %v4531 = vpack.c.b16 %v4525, %v4524
    %v4532 = vpack.c.b16 %v4527, %v4526
    %v4533 = vpack.c.b16 %v4529, %v4528
    %4538 = vmatprep.subr.bf16.mxu0 0
    %4539 = vmatpush1.bf16.msra.mxu0 0
    %4540 = vmatprep.subr.bf16.mxu0 0
    %4541 = vmatpush1.bf16.msra.mxu0 0
    %4542 = vmatprep.subr.bf16.mxu0 0
    %4543 = vmatpush1.bf16.msra.mxu0 0
    %4544 = vmatprep.subr.bf16.mxu0 0
    %4545 = vmatpush1.bf16.msra.mxu0 0
    %4546 = vmatprep.subr.bf16.mxu0 0
    %4547 = vmatpush1.bf16.msra.mxu0 %v4533
    %4548 = vmatprep.subr.bf16.mxu0 0
    %4549 = vmatpush1.bf16.msra.mxu0 %v4532
    %4550 = vmatprep.subr.bf16.mxu0 0
    %4551 = vmatpush1.bf16.msra.mxu0 %v4531
    %4552 = vmatprep.subr.bf16.mxu0 0
    %4553 = vmatpush1.bf16.msra.mxu0 %v4530
    %4554 = vmatprep.subr.bf16.mxu0 0
    %4555 = vmatpush2.bf16.msra.mxu0 0
    %4556 = vmatprep.subr.bf16.mxu0 0
    %4557 = vmatpush2.bf16.msra.mxu0 0
    %4558 = vmatprep.subr.bf16.mxu0 0
    %4559 = vmatpush2.bf16.msra.mxu0 0
    %4560 = vmatprep.subr.bf16.mxu0 0
    %4561 = vmatpush2.bf16.msra.mxu0 0
    %4562 = vmatprep.subr.bf16.mxu0 0
    %4563 = vmatpush2.bf16.msra.mxu0 0
    %4564 = vmatprep.subr.bf16.mxu0 0
    %4565 = vmatpush2.bf16.msra.mxu0 0
    %4566 = vmatprep.subr.bf16.mxu0 0
    %4567 = vmatpush2.bf16.msra.mxu0 0
    %4568 = vmatprep.subr.bf16.mxu0 0
    %4569 = vmatpush2.bf16.msra.mxu0 0
    %4570 = vmatprep.mubr.bf16.mxu0 0
    %4571 = vmatmul.mubr.bf16.gmra.mxu0 %v2582
    %v4572 = vpop.f32.mrf.mxu0
    %v4573 = vadd.f32 0.0, %v4572
    %v4574 = vpop.f32.mrf.mxu0
    %v4575 = vpop.f32.mrf.mxu0
    %v4576 = vadd.f32 0.0, %v4575
    %v4577 = vpop.f32.mrf.mxu0
    %4578 = vmatprep.mubr.bf16.mxu0 0
    %4579 = vmatmul.mubr.bf16.gmra.mxu0 %v2585
    %v4580 = vpop.f32.mrf.mxu0
    %v4581 = vadd.f32 0.0, %v4580
    %v4582 = vpop.f32.mrf.mxu0
    %v4583 = vpop.f32.mrf.mxu0
    %v4584 = vadd.f32 0.0, %v4583
    %v4585 = vpop.f32.mrf.mxu0
    %4586 = vmatprep.mubr.bf16.mxu0 0
    %4587 = vmatmul.mubr.bf16.gmra.mxu0 %v2588
    %v4588 = vpop.f32.mrf.mxu0
    %v4589 = vadd.f32 0.0, %v4588
    %v4590 = vpop.f32.mrf.mxu0
    %v4591 = vpop.f32.mrf.mxu0
    %v4592 = vadd.f32 0.0, %v4591
    %v4593 = vpop.f32.mrf.mxu0
    %4594 = vmatprep.mubr.bf16.mxu0 0
    %4595 = vmatmul.mubr.bf16.gmra.mxu0 %v2591
    %v4596 = vpop.f32.mrf.mxu0
    %v4597 = vadd.f32 0.0, %v4596
    %v4598 = vpop.f32.mrf.mxu0
    %v4599 = vpop.f32.mrf.mxu0
    %v4600 = vadd.f32 0.0, %v4599
    %v4601 = vpop.f32.mrf.mxu0
    %4602 = vmatprep.mubr.bf16.mxu0 0
    %4603 = vmatmul.mubr.bf16.gmra.mxu0 %v2594
    %v4604 = vpop.f32.mrf.mxu0
    %v4605 = vadd.f32 0.0, %v4604
    %v4606 = vpop.f32.mrf.mxu0
    %v4607 = vpop.f32.mrf.mxu0
    %v4608 = vadd.f32 0.0, %v4607
    %v4609 = vpop.f32.mrf.mxu0
    %4610 = vmatprep.mubr.bf16.mxu0 0
    %4611 = vmatmul.mubr.bf16.gmra.mxu0 %v2597
    %v4612 = vpop.f32.mrf.mxu0
    %v4613 = vadd.f32 0.0, %v4612
    %v4614 = vpop.f32.mrf.mxu0
    %v4615 = vpop.f32.mrf.mxu0
    %v4616 = vadd.f32 0.0, %v4615
    %v4617 = vpop.f32.mrf.mxu0
    %4618 = vmatprep.mubr.bf16.mxu0 0
    %4619 = vmatmul.mubr.bf16.gmra.mxu0 %v2600
    %v4620 = vpop.f32.mrf.mxu0
    %v4621 = vadd.f32 0.0, %v4620
    %v4622 = vpop.f32.mrf.mxu0
    %v4623 = vpop.f32.mrf.mxu0
    %v4624 = vadd.f32 0.0, %v4623
    %v4625 = vpop.f32.mrf.mxu0
    %4626 = vmatprep.mubr.bf16.mxu0 0
    %4627 = vmatmul.mubr.bf16.gmra.mxu0 %v2603
    %v4628 = vpop.f32.mrf.mxu0
    %v4629 = vadd.f32 0.0, %v4628
    %v4630 = vpop.f32.mrf.mxu0
    %v4631 = vpop.f32.mrf.mxu0
    %v4632 = vadd.f32 0.0, %v4631
    %v4633 = vpop.f32.mrf.mxu0
    %4634 = vmatprep.mubr.bf16.mxu0 0
    %4635 = vmatmul.mubr.bf16.gmra.mxu0 %v2606
    %v4636 = vpop.f32.mrf.mxu0
    %v4637 = vadd.f32 0.0, %v4636
    %v4638 = vpop.f32.mrf.mxu0
    %v4639 = vpop.f32.mrf.mxu0
    %v4640 = vadd.f32 0.0, %v4639
    %v4641 = vpop.f32.mrf.mxu0
    %4642 = vmatprep.mubr.bf16.mxu0 0
    %4643 = vmatmul.mubr.bf16.gmra.mxu0 %v2609
    %v4644 = vpop.f32.mrf.mxu0
    %v4645 = vadd.f32 0.0, %v4644
    %v4646 = vpop.f32.mrf.mxu0
    %v4647 = vpop.f32.mrf.mxu0
    %v4648 = vadd.f32 0.0, %v4647
    %v4649 = vpop.f32.mrf.mxu0
    %4650 = vmatprep.mubr.bf16.mxu0 0
    %4651 = vmatmul.mubr.bf16.gmra.mxu0 %v2612
    %v4652 = vpop.f32.mrf.mxu0
    %v4653 = vadd.f32 0.0, %v4652
    %v4654 = vpop.f32.mrf.mxu0
    %v4655 = vpop.f32.mrf.mxu0
    %v4656 = vadd.f32 0.0, %v4655
    %v4657 = vpop.f32.mrf.mxu0
    %4658 = vmatprep.mubr.bf16.mxu0 0
    %4659 = vmatmul.mubr.bf16.gmra.mxu0 %v2615
    %v4660 = vpop.f32.mrf.mxu0
    %v4661 = vadd.f32 0.0, %v4660
    %v4662 = vpop.f32.mrf.mxu0
    %v4663 = vpop.f32.mrf.mxu0
    %v4664 = vadd.f32 0.0, %v4663
    %v4665 = vpop.f32.mrf.mxu0
    %4666 = vmatprep.mubr.bf16.mxu0 0
    %4667 = vmatmul.mubr.bf16.gmra.mxu0 %v2618
    %v4668 = vpop.f32.mrf.mxu0
    %v4669 = vadd.f32 0.0, %v4668
    %v4670 = vpop.f32.mrf.mxu0
    %v4671 = vpop.f32.mrf.mxu0
    %v4672 = vadd.f32 0.0, %v4671
    %v4673 = vpop.f32.mrf.mxu0
    %4674 = vmatprep.mubr.bf16.mxu0 0
    %4675 = vmatmul.mubr.bf16.gmra.mxu0 %v2621
    %v4676 = vpop.f32.mrf.mxu0
    %v4677 = vadd.f32 0.0, %v4676
    %v4678 = vpop.f32.mrf.mxu0
    %v4679 = vpop.f32.mrf.mxu0
    %v4680 = vadd.f32 0.0, %v4679
    %v4681 = vpop.f32.mrf.mxu0
    %4682 = vmatprep.mubr.bf16.mxu0 0
    %4683 = vmatmul.mubr.bf16.gmra.mxu0 %v2624
    %v4684 = vpop.f32.mrf.mxu0
    %v4685 = vadd.f32 0.0, %v4684
    %v4686 = vpop.f32.mrf.mxu0
    %v4687 = vpop.f32.mrf.mxu0
    %v4688 = vadd.f32 0.0, %v4687
    %v4689 = vpop.f32.mrf.mxu0
    %4690 = vmatprep.mubr.bf16.mxu0 0
    %4691 = vmatmul.mubr.bf16.gmra.mxu0 %v2627
    %v4692 = vpop.f32.mrf.mxu0
    %v4693 = vadd.f32 0.0, %v4692
    %v4694 = vpop.f32.mrf.mxu0
    %v4695 = vpop.f32.mrf.mxu0
    %v4696 = vadd.f32 0.0, %v4695
    %v4697 = vpop.f32.mrf.mxu0
    %4698 = vmatprep.mubr.bf16.mxu0 0
    %4699 = vmatmul.mubr.bf16.gmra.mxu0 %v2630
    %v4700 = vpop.f32.mrf.mxu0
    %v4701 = vadd.f32 0.0, %v4700
    %v4702 = vpop.f32.mrf.mxu0
    %v4703 = vpop.f32.mrf.mxu0
    %v4704 = vadd.f32 0.0, %v4703
    %v4705 = vpop.f32.mrf.mxu0
    %4706 = vmatprep.mubr.bf16.mxu0 0
    %4707 = vmatmul.mubr.bf16.gmra.mxu0 %v2633
    %v4708 = vpop.f32.mrf.mxu0
    %v4709 = vadd.f32 0.0, %v4708
    %v4710 = vpop.f32.mrf.mxu0
    %v4711 = vpop.f32.mrf.mxu0
    %v4712 = vadd.f32 0.0, %v4711
    %v4713 = vpop.f32.mrf.mxu0
    %4714 = vmatprep.mubr.bf16.mxu0 0
    %4715 = vmatmul.mubr.bf16.gmra.mxu0 %v2636
    %v4716 = vpop.f32.mrf.mxu0
    %v4717 = vadd.f32 0.0, %v4716
    %v4718 = vpop.f32.mrf.mxu0
    %v4719 = vpop.f32.mrf.mxu0
    %v4720 = vadd.f32 0.0, %v4719
    %v4721 = vpop.f32.mrf.mxu0
    %4722 = vmatprep.mubr.bf16.mxu0 0
    %4723 = vmatmul.mubr.bf16.gmra.mxu0 %v2639
    %v4724 = vpop.f32.mrf.mxu0
    %v4725 = vadd.f32 0.0, %v4724
    %v4726 = vpop.f32.mrf.mxu0
    %v4727 = vpop.f32.mrf.mxu0
    %v4728 = vadd.f32 0.0, %v4727
    %v4729 = vpop.f32.mrf.mxu0
    %4730 = vmatprep.mubr.bf16.mxu0 0
    %4731 = vmatmul.mubr.bf16.gmra.mxu0 %v2642
    %v4732 = vpop.f32.mrf.mxu0
    %v4733 = vadd.f32 0.0, %v4732
    %v4734 = vpop.f32.mrf.mxu0
    %v4735 = vpop.f32.mrf.mxu0
    %v4736 = vadd.f32 0.0, %v4735
    %v4737 = vpop.f32.mrf.mxu0
    %4738 = vmatprep.mubr.bf16.mxu0 0
    %4739 = vmatmul.mubr.bf16.gmra.mxu0 %v2645
    %v4740 = vpop.f32.mrf.mxu0
    %v4741 = vadd.f32 0.0, %v4740
    %v4742 = vpop.f32.mrf.mxu0
    %v4743 = vpop.f32.mrf.mxu0
    %v4744 = vadd.f32 0.0, %v4743
    %v4745 = vpop.f32.mrf.mxu0
    %4746 = vmatprep.mubr.bf16.mxu0 0
    %4747 = vmatmul.mubr.bf16.gmra.mxu0 %v2648
    %v4748 = vpop.f32.mrf.mxu0
    %v4749 = vadd.f32 0.0, %v4748
    %v4750 = vpop.f32.mrf.mxu0
    %v4751 = vpop.f32.mrf.mxu0
    %v4752 = vadd.f32 0.0, %v4751
    %v4753 = vpop.f32.mrf.mxu0
    %4754 = vmatprep.mubr.bf16.mxu0 0
    %4755 = vmatmul.mubr.bf16.gmra.mxu0 %v2651
    %v4756 = vpop.f32.mrf.mxu0
    %v4757 = vadd.f32 0.0, %v4756
    %v4758 = vpop.f32.mrf.mxu0
    %v4759 = vpop.f32.mrf.mxu0
    %v4760 = vadd.f32 0.0, %v4759
    %v4761 = vpop.f32.mrf.mxu0
    %4762 = vmatprep.mubr.bf16.mxu0 0
    %4763 = vmatmul.mubr.bf16.gmra.mxu0 %v3376
    %v4764 = vpop.f32.mrf.mxu0
    %v4765 = vadd.f32 0.0, %v4764
    %v4766 = vpop.f32.mrf.mxu0
    %v4767 = vpop.f32.mrf.mxu0
    %v4768 = vadd.f32 0.0, %v4767
    %v4769 = vpop.f32.mrf.mxu0
    %4770 = vmatprep.mubr.bf16.mxu0 0
    %4771 = vmatmul.mubr.bf16.gmra.mxu0 %v3379
    %v4772 = vpop.f32.mrf.mxu0
    %v4773 = vadd.f32 0.0, %v4772
    %v4774 = vpop.f32.mrf.mxu0
    %v4775 = vpop.f32.mrf.mxu0
    %v4776 = vadd.f32 0.0, %v4775
    %v4777 = vpop.f32.mrf.mxu0
    %4778 = vmatprep.mubr.bf16.mxu0 0
    %4779 = vmatmul.mubr.bf16.gmra.mxu0 %v3382
    %v4780 = vpop.f32.mrf.mxu0
    %v4781 = vadd.f32 0.0, %v4780
    %v4782 = vpop.f32.mrf.mxu0
    %v4783 = vpop.f32.mrf.mxu0
    %v4784 = vadd.f32 0.0, %v4783
    %v4785 = vpop.f32.mrf.mxu0
    %4786 = vmatprep.mubr.bf16.mxu0 0
    %4787 = vmatmul.mubr.bf16.gmra.mxu0 %v3385
    %v4788 = vpop.f32.mrf.mxu0
    %v4789 = vadd.f32 0.0, %v4788
    %v4790 = vpop.f32.mrf.mxu0
    %v4791 = vpop.f32.mrf.mxu0
    %v4792 = vadd.f32 0.0, %v4791
    %v4793 = vpop.f32.mrf.mxu0
    %4794 = vmatprep.mubr.bf16.mxu0 0
    %4795 = vmatmul.mubr.bf16.gmra.mxu0 %v2170
    %v4796 = vpop.f32.mrf.mxu0
    %v4797 = vadd.f32 0.0, %v4796
    %v4798 = vpop.f32.mrf.mxu0
    %v4799 = vpop.f32.mrf.mxu0
    %v4800 = vadd.f32 0.0, %v4799
    %v4801 = vpop.f32.mrf.mxu0
    %4802 = vmatprep.mubr.bf16.mxu0 0
    %4803 = vmatmul.mubr.bf16.gmra.mxu0 %v2170
    %v4804 = vpop.f32.mrf.mxu0
    %v4805 = vadd.f32 0.0, %v4804
    %v4806 = vpop.f32.mrf.mxu0
    %v4807 = vpop.f32.mrf.mxu0
    %v4808 = vadd.f32 0.0, %v4807
    %v4809 = vpop.f32.mrf.mxu0
    %4810 = vmatprep.mubr.bf16.mxu0 0
    %4811 = vmatmul.mubr.bf16.gmra.mxu0 %v2170
    %v4812 = vpop.f32.mrf.mxu0
    %v4813 = vadd.f32 0.0, %v4812
    %v4814 = vpop.f32.mrf.mxu0
    %v4815 = vpop.f32.mrf.mxu0
    %v4816 = vadd.f32 0.0, %v4815
    %v4817 = vpop.f32.mrf.mxu0
    %4818 = vmatprep.mubr.bf16.mxu0 0
    %4819 = vmatmul.mubr.bf16.gmra.mxu0 %v2170
    %v4820 = vpop.f32.mrf.mxu0
    %v4821 = vadd.f32 0.0, %v4820
    %v4822 = vpop.f32.mrf.mxu0
    %v4823 = vpop.f32.mrf.mxu0
    %v4824 = vadd.f32 0.0, %v4823
    %v4825 = vpop.f32.mrf.mxu0
    %4826 = vdwg.mxu0
    %v4827 = vadd.f32 %v4450, %v4573
    %v4828 = vadd.f32 %v4451, %v4576
    %v4829 = vadd.f32 %v4452, %v4581
    %v4830 = vadd.f32 %v4453, %v4584
    %v4831 = vadd.f32 %v4454, %v4589
    %v4832 = vadd.f32 %v4455, %v4592
    %v4833 = vadd.f32 %v4456, %v4597
    %v4834 = vadd.f32 %v4457, %v4600
    %v4835 = vadd.f32 %v4458, %v4605
    %v4836 = vadd.f32 %v4459, %v4608
    %v4837 = vadd.f32 %v4460, %v4613
    %v4838 = vadd.f32 %v4461, %v4616
    %v4839 = vadd.f32 %v4462, %v4621
    %v4840 = vadd.f32 %v4463, %v4624
    %v4841 = vadd.f32 %v4464, %v4629
    %v4842 = vadd.f32 %v4465, %v4632
    %v4843 = vadd.f32 %v4466, %v4637
    %v4844 = vadd.f32 %v4467, %v4640
    %v4845 = vadd.f32 %v4468, %v4645
    %v4846 = vadd.f32 %v4469, %v4648
    %v4847 = vadd.f32 %v4470, %v4653
    %v4848 = vadd.f32 %v4471, %v4656
    %v4849 = vadd.f32 %v4472, %v4661
    %v4850 = vadd.f32 %v4473, %v4664
    %v4851 = vadd.f32 %v4474, %v4669
    %v4852 = vadd.f32 %v4475, %v4672
    %v4853 = vadd.f32 %v4476, %v4677
    %v4854 = vadd.f32 %v4477, %v4680
    %v4855 = vadd.f32 %v4478, %v4685
    %v4856 = vadd.f32 %v4479, %v4688
    %v4857 = vadd.f32 %v4480, %v4693
    %v4858 = vadd.f32 %v4481, %v4696
    %v4859 = vadd.f32 %v4482, %v4701
    %v4860 = vadd.f32 %v4483, %v4704
    %v4861 = vadd.f32 %v4484, %v4709
    %v4862 = vadd.f32 %v4485, %v4712
    %v4863 = vadd.f32 %v4486, %v4717
    %v4864 = vadd.f32 %v4487, %v4720
    %v4865 = vadd.f32 %v4488, %v4725
    %v4866 = vadd.f32 %v4489, %v4728
    %v4867 = vadd.f32 %v4490, %v4733
    %v4868 = vadd.f32 %v4491, %v4736
    %v4869 = vadd.f32 %v4492, %v4741
    %v4870 = vadd.f32 %v4493, %v4744
    %v4871 = vadd.f32 %v4494, %v4749
    %v4872 = vadd.f32 %v4495, %v4752
    %v4873 = vadd.f32 %v4496, %v4757
    %v4874 = vadd.f32 %v4497, %v4760
    %v4875 = vadd.f32 %v4498, %v4765
    %v4876 = vadd.f32 %v4499, %v4768
    %v4877 = vadd.f32 %v4500, %v4773
    %v4878 = vadd.f32 %v4501, %v4776
    %v4879 = vadd.f32 %v4502, %v4781
    %v4880 = vadd.f32 %v4503, %v4784
    %v4881 = vadd.f32 %v4504, %v4789
    %v4882 = vadd.f32 %v4505, %v4792
    %v4883 = vadd.f32 %v4506, %v4797
    %v4884 = vadd.f32 %v4507, %v4800
    %v4885 = vadd.f32 %v4508, %v4805
    %v4886 = vadd.f32 %v4509, %v4808
    %v4887 = vadd.f32 %v4510, %v4813
    %v4888 = vadd.f32 %v4511, %v4816
    %v4889 = vadd.f32 %v4512, %v4821
    %v4890 = vadd.f32 %v4513, %v4824
    %v4899 = vunpack.c.l.b16 %v2071
    %v4900 = vunpack.c.l.b16 %v2072
    %v4901 = vunpack.c.l.b16 %v2073
    %v4902 = vunpack.c.l.b16 %v2074
    %v4903 = vunpack.c.l.b16 %v2075
    %v4904 = vunpack.c.l.b16 %v2076
    %v4905 = vunpack.c.l.b16 %v2077
    %v4906 = vunpack.c.l.b16 %v2078
    %v4907 = vpack.c.b16 %v4900, %v4899
    %v4908 = vpack.c.b16 %v4902, %v4901
    %v4909 = vpack.c.b16 %v4904, %v4903
    %v4910 = vpack.c.b16 %v4906, %v4905
    %4915 = vmatprep.subr.bf16.mxu0 0
    %4916 = vmatpush1.bf16.msra.mxu0 0
    %4917 = vmatprep.subr.bf16.mxu0 0
    %4918 = vmatpush1.bf16.msra.mxu0 0
    %4919 = vmatprep.subr.bf16.mxu0 0
    %4920 = vmatpush1.bf16.msra.mxu0 0
    %4921 = vmatprep.subr.bf16.mxu0 0
    %4922 = vmatpush1.bf16.msra.mxu0 0
    %4923 = vmatprep.subr.bf16.mxu0 0
    %4924 = vmatpush1.bf16.msra.mxu0 %v4910
    %4925 = vmatprep.subr.bf16.mxu0 0
    %4926 = vmatpush1.bf16.msra.mxu0 %v4909
    %4927 = vmatprep.subr.bf16.mxu0 0
    %4928 = vmatpush1.bf16.msra.mxu0 %v4908
    %4929 = vmatprep.subr.bf16.mxu0 0
    %4930 = vmatpush1.bf16.msra.mxu0 %v4907
    %4931 = vmatprep.subr.bf16.mxu0 0
    %4932 = vmatpush2.bf16.msra.mxu0 0
    %4933 = vmatprep.subr.bf16.mxu0 0
    %4934 = vmatpush2.bf16.msra.mxu0 0
    %4935 = vmatprep.subr.bf16.mxu0 0
    %4936 = vmatpush2.bf16.msra.mxu0 0
    %4937 = vmatprep.subr.bf16.mxu0 0
    %4938 = vmatpush2.bf16.msra.mxu0 0
    %4939 = vmatprep.subr.bf16.mxu0 0
    %4940 = vmatpush2.bf16.msra.mxu0 0
    %4941 = vmatprep.subr.bf16.mxu0 0
    %4942 = vmatpush2.bf16.msra.mxu0 0
    %4943 = vmatprep.subr.bf16.mxu0 0
    %4944 = vmatpush2.bf16.msra.mxu0 0
    %4945 = vmatprep.subr.bf16.mxu0 0
    %4946 = vmatpush2.bf16.msra.mxu0 0
    %4947 = vmatprep.mubr.bf16.mxu0 0
    %4948 = vmatmul.mubr.bf16.gmra.mxu0 %v2185
    %v4949 = vpop.f32.mrf.mxu0
    %v4950 = vadd.f32 0.0, %v4949
    %v4951 = vpop.f32.mrf.mxu0
    %v4952 = vpop.f32.mrf.mxu0
    %v4953 = vadd.f32 0.0, %v4952
    %v4954 = vpop.f32.mrf.mxu0
    %4955 = vmatprep.mubr.bf16.mxu0 0
    %4956 = vmatmul.mubr.bf16.gmra.mxu0 %v2188
    %v4957 = vpop.f32.mrf.mxu0
    %v4958 = vadd.f32 0.0, %v4957
    %v4959 = vpop.f32.mrf.mxu0
    %v4960 = vpop.f32.mrf.mxu0
    %v4961 = vadd.f32 0.0, %v4960
    %v4962 = vpop.f32.mrf.mxu0
    %4963 = vmatprep.mubr.bf16.mxu0 0
    %4964 = vmatmul.mubr.bf16.gmra.mxu0 %v2191
    %v4965 = vpop.f32.mrf.mxu0
    %v4966 = vadd.f32 0.0, %v4965
    %v4967 = vpop.f32.mrf.mxu0
    %v4968 = vpop.f32.mrf.mxu0
    %v4969 = vadd.f32 0.0, %v4968
    %v4970 = vpop.f32.mrf.mxu0
    %4971 = vmatprep.mubr.bf16.mxu0 0
    %4972 = vmatmul.mubr.bf16.gmra.mxu0 %v2194
    %v4973 = vpop.f32.mrf.mxu0
    %v4974 = vadd.f32 0.0, %v4973
    %v4975 = vpop.f32.mrf.mxu0
    %v4976 = vpop.f32.mrf.mxu0
    %v4977 = vadd.f32 0.0, %v4976
    %v4978 = vpop.f32.mrf.mxu0
    %4979 = vmatprep.mubr.bf16.mxu0 0
    %4980 = vmatmul.mubr.bf16.gmra.mxu0 %v2197
    %v4981 = vpop.f32.mrf.mxu0
    %v4982 = vadd.f32 0.0, %v4981
    %v4983 = vpop.f32.mrf.mxu0
    %v4984 = vpop.f32.mrf.mxu0
    %v4985 = vadd.f32 0.0, %v4984
    %v4986 = vpop.f32.mrf.mxu0
    %4987 = vmatprep.mubr.bf16.mxu0 0
    %4988 = vmatmul.mubr.bf16.gmra.mxu0 %v2200
    %v4989 = vpop.f32.mrf.mxu0
    %v4990 = vadd.f32 0.0, %v4989
    %v4991 = vpop.f32.mrf.mxu0
    %v4992 = vpop.f32.mrf.mxu0
    %v4993 = vadd.f32 0.0, %v4992
    %v4994 = vpop.f32.mrf.mxu0
    %4995 = vmatprep.mubr.bf16.mxu0 0
    %4996 = vmatmul.mubr.bf16.gmra.mxu0 %v2203
    %v4997 = vpop.f32.mrf.mxu0
    %v4998 = vadd.f32 0.0, %v4997
    %v4999 = vpop.f32.mrf.mxu0
    %v5000 = vpop.f32.mrf.mxu0
    %v5001 = vadd.f32 0.0, %v5000
    %v5002 = vpop.f32.mrf.mxu0
    %5003 = vmatprep.mubr.bf16.mxu0 0
    %5004 = vmatmul.mubr.bf16.gmra.mxu0 %v2206
    %v5005 = vpop.f32.mrf.mxu0
    %v5006 = vadd.f32 0.0, %v5005
    %v5007 = vpop.f32.mrf.mxu0
    %v5008 = vpop.f32.mrf.mxu0
    %v5009 = vadd.f32 0.0, %v5008
    %v5010 = vpop.f32.mrf.mxu0
    %5011 = vmatprep.mubr.bf16.mxu0 0
    %5012 = vmatmul.mubr.bf16.gmra.mxu0 %v2209
    %v5013 = vpop.f32.mrf.mxu0
    %v5014 = vadd.f32 0.0, %v5013
    %v5015 = vpop.f32.mrf.mxu0
    %v5016 = vpop.f32.mrf.mxu0
    %v5017 = vadd.f32 0.0, %v5016
    %v5018 = vpop.f32.mrf.mxu0
    %5019 = vmatprep.mubr.bf16.mxu0 0
    %5020 = vmatmul.mubr.bf16.gmra.mxu0 %v2212
    %v5021 = vpop.f32.mrf.mxu0
    %v5022 = vadd.f32 0.0, %v5021
    %v5023 = vpop.f32.mrf.mxu0
    %v5024 = vpop.f32.mrf.mxu0
    %v5025 = vadd.f32 0.0, %v5024
    %v5026 = vpop.f32.mrf.mxu0
    %5027 = vmatprep.mubr.bf16.mxu0 0
    %5028 = vmatmul.mubr.bf16.gmra.mxu0 %v2215
    %v5029 = vpop.f32.mrf.mxu0
    %v5030 = vadd.f32 0.0, %v5029
    %v5031 = vpop.f32.mrf.mxu0
    %v5032 = vpop.f32.mrf.mxu0
    %v5033 = vadd.f32 0.0, %v5032
    %v5034 = vpop.f32.mrf.mxu0
    %5035 = vmatprep.mubr.bf16.mxu0 0
    %5036 = vmatmul.mubr.bf16.gmra.mxu0 %v2218
    %v5037 = vpop.f32.mrf.mxu0
    %v5038 = vadd.f32 0.0, %v5037
    %v5039 = vpop.f32.mrf.mxu0
    %v5040 = vpop.f32.mrf.mxu0
    %v5041 = vadd.f32 0.0, %v5040
    %v5042 = vpop.f32.mrf.mxu0
    %5043 = vmatprep.mubr.bf16.mxu0 0
    %5044 = vmatmul.mubr.bf16.gmra.mxu0 %v2221
    %v5045 = vpop.f32.mrf.mxu0
    %v5046 = vadd.f32 0.0, %v5045
    %v5047 = vpop.f32.mrf.mxu0
    %v5048 = vpop.f32.mrf.mxu0
    %v5049 = vadd.f32 0.0, %v5048
    %v5050 = vpop.f32.mrf.mxu0
    %5051 = vmatprep.mubr.bf16.mxu0 0
    %5052 = vmatmul.mubr.bf16.gmra.mxu0 %v2224
    %v5053 = vpop.f32.mrf.mxu0
    %v5054 = vadd.f32 0.0, %v5053
    %v5055 = vpop.f32.mrf.mxu0
    %v5056 = vpop.f32.mrf.mxu0
    %v5057 = vadd.f32 0.0, %v5056
    %v5058 = vpop.f32.mrf.mxu0
    %5059 = vmatprep.mubr.bf16.mxu0 0
    %5060 = vmatmul.mubr.bf16.gmra.mxu0 %v2227
    %v5061 = vpop.f32.mrf.mxu0
    %v5062 = vadd.f32 0.0, %v5061
    %v5063 = vpop.f32.mrf.mxu0
    %v5064 = vpop.f32.mrf.mxu0
    %v5065 = vadd.f32 0.0, %v5064
    %v5066 = vpop.f32.mrf.mxu0
    %5067 = vmatprep.mubr.bf16.mxu0 0
    %5068 = vmatmul.mubr.bf16.gmra.mxu0 %v2230
    %v5069 = vpop.f32.mrf.mxu0
    %v5070 = vadd.f32 0.0, %v5069
    %v5071 = vpop.f32.mrf.mxu0
    %v5072 = vpop.f32.mrf.mxu0
    %v5073 = vadd.f32 0.0, %v5072
    %v5074 = vpop.f32.mrf.mxu0
    %5075 = vmatprep.mubr.bf16.mxu0 0
    %5076 = vmatmul.mubr.bf16.gmra.mxu0 %v2233
    %v5077 = vpop.f32.mrf.mxu0
    %v5078 = vadd.f32 0.0, %v5077
    %v5079 = vpop.f32.mrf.mxu0
    %v5080 = vpop.f32.mrf.mxu0
    %v5081 = vadd.f32 0.0, %v5080
    %v5082 = vpop.f32.mrf.mxu0
    %5083 = vmatprep.mubr.bf16.mxu0 0
    %5084 = vmatmul.mubr.bf16.gmra.mxu0 %v2236
    %v5085 = vpop.f32.mrf.mxu0
    %v5086 = vadd.f32 0.0, %v5085
    %v5087 = vpop.f32.mrf.mxu0
    %v5088 = vpop.f32.mrf.mxu0
    %v5089 = vadd.f32 0.0, %v5088
    %v5090 = vpop.f32.mrf.mxu0
    %5091 = vmatprep.mubr.bf16.mxu0 0
    %5092 = vmatmul.mubr.bf16.gmra.mxu0 %v2239
    %v5093 = vpop.f32.mrf.mxu0
    %v5094 = vadd.f32 0.0, %v5093
    %v5095 = vpop.f32.mrf.mxu0
    %v5096 = vpop.f32.mrf.mxu0
    %v5097 = vadd.f32 0.0, %v5096
    %v5098 = vpop.f32.mrf.mxu0
    %5099 = vmatprep.mubr.bf16.mxu0 0
    %5100 = vmatmul.mubr.bf16.gmra.mxu0 %v2242
    %v5101 = vpop.f32.mrf.mxu0
    %v5102 = vadd.f32 0.0, %v5101
    %v5103 = vpop.f32.mrf.mxu0
    %v5104 = vpop.f32.mrf.mxu0
    %v5105 = vadd.f32 0.0, %v5104
    %v5106 = vpop.f32.mrf.mxu0
    %5107 = vmatprep.mubr.bf16.mxu0 0
    %5108 = vmatmul.mubr.bf16.gmra.mxu0 %v2245
    %v5109 = vpop.f32.mrf.mxu0
    %v5110 = vadd.f32 0.0, %v5109
    %v5111 = vpop.f32.mrf.mxu0
    %v5112 = vpop.f32.mrf.mxu0
    %v5113 = vadd.f32 0.0, %v5112
    %v5114 = vpop.f32.mrf.mxu0
    %5115 = vmatprep.mubr.bf16.mxu0 0
    %5116 = vmatmul.mubr.bf16.gmra.mxu0 %v2248
    %v5117 = vpop.f32.mrf.mxu0
    %v5118 = vadd.f32 0.0, %v5117
    %v5119 = vpop.f32.mrf.mxu0
    %v5120 = vpop.f32.mrf.mxu0
    %v5121 = vadd.f32 0.0, %v5120
    %v5122 = vpop.f32.mrf.mxu0
    %5123 = vmatprep.mubr.bf16.mxu0 0
    %5124 = vmatmul.mubr.bf16.gmra.mxu0 %v2251
    %v5125 = vpop.f32.mrf.mxu0
    %v5126 = vadd.f32 0.0, %v5125
    %v5127 = vpop.f32.mrf.mxu0
    %v5128 = vpop.f32.mrf.mxu0
    %v5129 = vadd.f32 0.0, %v5128
    %v5130 = vpop.f32.mrf.mxu0
    %5131 = vmatprep.mubr.bf16.mxu0 0
    %5132 = vmatmul.mubr.bf16.gmra.mxu0 %v2254
    %v5133 = vpop.f32.mrf.mxu0
    %v5134 = vadd.f32 0.0, %v5133
    %v5135 = vpop.f32.mrf.mxu0
    %v5136 = vpop.f32.mrf.mxu0
    %v5137 = vadd.f32 0.0, %v5136
    %v5138 = vpop.f32.mrf.mxu0
    %5139 = vmatprep.mubr.bf16.mxu0 0
    %5140 = vmatmul.mubr.bf16.gmra.mxu0 %v3769
    %v5141 = vpop.f32.mrf.mxu0
    %v5142 = vadd.f32 0.0, %v5141
    %v5143 = vpop.f32.mrf.mxu0
    %v5144 = vpop.f32.mrf.mxu0
    %v5145 = vadd.f32 0.0, %v5144
    %v5146 = vpop.f32.mrf.mxu0
    %5147 = vmatprep.mubr.bf16.mxu0 0
    %5148 = vmatmul.mubr.bf16.gmra.mxu0 %v3772
    %v5149 = vpop.f32.mrf.mxu0
    %v5150 = vadd.f32 0.0, %v5149
    %v5151 = vpop.f32.mrf.mxu0
    %v5152 = vpop.f32.mrf.mxu0
    %v5153 = vadd.f32 0.0, %v5152
    %v5154 = vpop.f32.mrf.mxu0
    %5155 = vmatprep.mubr.bf16.mxu0 0
    %5156 = vmatmul.mubr.bf16.gmra.mxu0 %v3775
    %v5157 = vpop.f32.mrf.mxu0
    %v5158 = vadd.f32 0.0, %v5157
    %v5159 = vpop.f32.mrf.mxu0
    %v5160 = vpop.f32.mrf.mxu0
    %v5161 = vadd.f32 0.0, %v5160
    %v5162 = vpop.f32.mrf.mxu0
    %5163 = vmatprep.mubr.bf16.mxu0 0
    %5164 = vmatmul.mubr.bf16.gmra.mxu0 %v3778
    %v5165 = vpop.f32.mrf.mxu0
    %v5166 = vadd.f32 0.0, %v5165
    %v5167 = vpop.f32.mrf.mxu0
    %v5168 = vpop.f32.mrf.mxu0
    %v5169 = vadd.f32 0.0, %v5168
    %v5170 = vpop.f32.mrf.mxu0
    %5171 = vmatprep.mubr.bf16.mxu0 0
    %5172 = vmatmul.mubr.bf16.gmra.mxu0 %v2170
    %v5173 = vpop.f32.mrf.mxu0
    %v5174 = vadd.f32 0.0, %v5173
    %v5175 = vpop.f32.mrf.mxu0
    %v5176 = vpop.f32.mrf.mxu0
    %v5177 = vadd.f32 0.0, %v5176
    %v5178 = vpop.f32.mrf.mxu0
    %5179 = vmatprep.mubr.bf16.mxu0 0
    %5180 = vmatmul.mubr.bf16.gmra.mxu0 %v2170
    %v5181 = vpop.f32.mrf.mxu0
    %v5182 = vadd.f32 0.0, %v5181
    %v5183 = vpop.f32.mrf.mxu0
    %v5184 = vpop.f32.mrf.mxu0
    %v5185 = vadd.f32 0.0, %v5184
    %v5186 = vpop.f32.mrf.mxu0
    %5187 = vmatprep.mubr.bf16.mxu0 0
    %5188 = vmatmul.mubr.bf16.gmra.mxu0 %v2170
    %v5189 = vpop.f32.mrf.mxu0
    %v5190 = vadd.f32 0.0, %v5189
    %v5191 = vpop.f32.mrf.mxu0
    %v5192 = vpop.f32.mrf.mxu0
    %v5193 = vadd.f32 0.0, %v5192
    %v5194 = vpop.f32.mrf.mxu0
    %5195 = vmatprep.mubr.bf16.mxu0 0
    %5196 = vmatmul.mubr.bf16.gmra.mxu0 %v2170
    %v5197 = vpop.f32.mrf.mxu0
    %v5198 = vadd.f32 0.0, %v5197
    %v5199 = vpop.f32.mrf.mxu0
    %v5200 = vpop.f32.mrf.mxu0
    %v5201 = vadd.f32 0.0, %v5200
    %v5202 = vpop.f32.mrf.mxu0
    %5203 = vdwg.mxu0
    %v5204 = vadd.f32 %v4827, %v4950
    %v5205 = vadd.f32 %v4828, %v4953
    %v5206 = vadd.f32 %v4829, %v4958
    %v5207 = vadd.f32 %v4830, %v4961
    %v5208 = vadd.f32 %v4831, %v4966
    %v5209 = vadd.f32 %v4832, %v4969
    %v5210 = vadd.f32 %v4833, %v4974
    %v5211 = vadd.f32 %v4834, %v4977
    %v5212 = vadd.f32 %v4835, %v4982
    %v5213 = vadd.f32 %v4836, %v4985
    %v5214 = vadd.f32 %v4837, %v4990
    %v5215 = vadd.f32 %v4838, %v4993
    %v5216 = vadd.f32 %v4839, %v4998
    %v5217 = vadd.f32 %v4840, %v5001
    %v5218 = vadd.f32 %v4841, %v5006
    %v5219 = vadd.f32 %v4842, %v5009
    %v5220 = vadd.f32 %v4843, %v5014
    %v5221 = vadd.f32 %v4844, %v5017
    %v5222 = vadd.f32 %v4845, %v5022
    %v5223 = vadd.f32 %v4846, %v5025
    %v5224 = vadd.f32 %v4847, %v5030
    %v5225 = vadd.f32 %v4848, %v5033
    %v5226 = vadd.f32 %v4849, %v5038
    %v5227 = vadd.f32 %v4850, %v5041
    %v5228 = vadd.f32 %v4851, %v5046
    %v5229 = vadd.f32 %v4852, %v5049
    %v5230 = vadd.f32 %v4853, %v5054
    %v5231 = vadd.f32 %v4854, %v5057
    %v5232 = vadd.f32 %v4855, %v5062
    %v5233 = vadd.f32 %v4856, %v5065
    %v5234 = vadd.f32 %v4857, %v5070
    %v5235 = vadd.f32 %v4858, %v5073
    %v5236 = vadd.f32 %v4859, %v5078
    %v5237 = vadd.f32 %v4860, %v5081
    %v5238 = vadd.f32 %v4861, %v5086
    %v5239 = vadd.f32 %v4862, %v5089
    %v5240 = vadd.f32 %v4863, %v5094
    %v5241 = vadd.f32 %v4864, %v5097
    %v5242 = vadd.f32 %v4865, %v5102
    %v5243 = vadd.f32 %v4866, %v5105
    %v5244 = vadd.f32 %v4867, %v5110
    %v5245 = vadd.f32 %v4868, %v5113
    %v5246 = vadd.f32 %v4869, %v5118
    %v5247 = vadd.f32 %v4870, %v5121
    %v5248 = vadd.f32 %v4871, %v5126
    %v5249 = vadd.f32 %v4872, %v5129
    %v5250 = vadd.f32 %v4873, %v5134
    %v5251 = vadd.f32 %v4874, %v5137
    %v5252 = vadd.f32 %v4875, %v5142
    %v5253 = vadd.f32 %v4876, %v5145
    %v5254 = vadd.f32 %v4877, %v5150
    %v5255 = vadd.f32 %v4878, %v5153
    %v5256 = vadd.f32 %v4879, %v5158
    %v5257 = vadd.f32 %v4880, %v5161
    %v5258 = vadd.f32 %v4881, %v5166
    %v5259 = vadd.f32 %v4882, %v5169
    %v5260 = vadd.f32 %v4883, %v5174
    %v5261 = vadd.f32 %v4884, %v5177
    %v5262 = vadd.f32 %v4885, %v5182
    %v5263 = vadd.f32 %v4886, %v5185
    %v5264 = vadd.f32 %v4887, %v5190
    %v5265 = vadd.f32 %v4888, %v5193
    %v5266 = vadd.f32 %v4889, %v5198
    %v5267 = vadd.f32 %v4890, %v5201
    %v5276 = vunpack.c.l.b16 %v2079
    %v5277 = vunpack.c.l.b16 %v2080
    %v5278 = vunpack.c.l.b16 %v2081
    %v5279 = vunpack.c.l.b16 %v2082
    %v5280 = vunpack.c.l.b16 %v2083
    %v5281 = vunpack.c.l.b16 %v2084
    %v5282 = vunpack.c.l.b16 %v2085
    %v5283 = vunpack.c.l.b16 %v2086
    %v5284 = vpack.c.b16 %v5277, %v5276
    %v5285 = vpack.c.b16 %v5279, %v5278
    %v5286 = vpack.c.b16 %v5281, %v5280
    %v5287 = vpack.c.b16 %v5283, %v5282
    %5292 = vmatprep.subr.bf16.mxu0 0
    %5293 = vmatpush1.bf16.msra.mxu0 0
    %5294 = vmatprep.subr.bf16.mxu0 0
    %5295 = vmatpush1.bf16.msra.mxu0 0
    %5296 = vmatprep.subr.bf16.mxu0 0
    %5297 = vmatpush1.bf16.msra.mxu0 0
    %5298 = vmatprep.subr.bf16.mxu0 0
    %5299 = vmatpush1.bf16.msra.mxu0 0
    %5300 = vmatprep.subr.bf16.mxu0 0
    %5301 = vmatpush1.bf16.msra.mxu0 %v5287
    %5302 = vmatprep.subr.bf16.mxu0 0
    %5303 = vmatpush1.bf16.msra.mxu0 %v5286
    %5304 = vmatprep.subr.bf16.mxu0 0
    %5305 = vmatpush1.bf16.msra.mxu0 %v5285
    %5306 = vmatprep.subr.bf16.mxu0 0
    %5307 = vmatpush1.bf16.msra.mxu0 %v5284
    %5308 = vmatprep.subr.bf16.mxu0 0
    %5309 = vmatpush2.bf16.msra.mxu0 0
    %5310 = vmatprep.subr.bf16.mxu0 0
    %5311 = vmatpush2.bf16.msra.mxu0 0
    %5312 = vmatprep.subr.bf16.mxu0 0
    %5313 = vmatpush2.bf16.msra.mxu0 0
    %5314 = vmatprep.subr.bf16.mxu0 0
    %5315 = vmatpush2.bf16.msra.mxu0 0
    %5316 = vmatprep.subr.bf16.mxu0 0
    %5317 = vmatpush2.bf16.msra.mxu0 0
    %5318 = vmatprep.subr.bf16.mxu0 0
    %5319 = vmatpush2.bf16.msra.mxu0 0
    %5320 = vmatprep.subr.bf16.mxu0 0
    %5321 = vmatpush2.bf16.msra.mxu0 0
    %5322 = vmatprep.subr.bf16.mxu0 0
    %5323 = vmatpush2.bf16.msra.mxu0 0
    %5324 = vmatprep.mubr.bf16.mxu0 0
    %5325 = vmatmul.mubr.bf16.gmra.mxu0 %v2585
    %v5326 = vpop.f32.mrf.mxu0
    %v5327 = vadd.f32 0.0, %v5326
    %v5328 = vpop.f32.mrf.mxu0
    %v5329 = vpop.f32.mrf.mxu0
    %v5330 = vadd.f32 0.0, %v5329
    %v5331 = vpop.f32.mrf.mxu0
    %5332 = vmatprep.mubr.bf16.mxu0 0
    %5333 = vmatmul.mubr.bf16.gmra.mxu0 %v2588
    %v5334 = vpop.f32.mrf.mxu0
    %v5335 = vadd.f32 0.0, %v5334
    %v5336 = vpop.f32.mrf.mxu0
    %v5337 = vpop.f32.mrf.mxu0
    %v5338 = vadd.f32 0.0, %v5337
    %v5339 = vpop.f32.mrf.mxu0
    %5340 = vmatprep.mubr.bf16.mxu0 0
    %5341 = vmatmul.mubr.bf16.gmra.mxu0 %v2591
    %v5342 = vpop.f32.mrf.mxu0
    %v5343 = vadd.f32 0.0, %v5342
    %v5344 = vpop.f32.mrf.mxu0
    %v5345 = vpop.f32.mrf.mxu0
    %v5346 = vadd.f32 0.0, %v5345
    %v5347 = vpop.f32.mrf.mxu0
    %5348 = vmatprep.mubr.bf16.mxu0 0
    %5349 = vmatmul.mubr.bf16.gmra.mxu0 %v2977
    %v5350 = vpop.f32.mrf.mxu0
    %v5351 = vadd.f32 0.0, %v5350
    %v5352 = vpop.f32.mrf.mxu0
    %v5353 = vpop.f32.mrf.mxu0
    %v5354 = vadd.f32 0.0, %v5353
    %v5355 = vpop.f32.mrf.mxu0
    %5356 = vmatprep.mubr.bf16.mxu0 0
    %5357 = vmatmul.mubr.bf16.gmra.mxu0 %v2597
    %v5358 = vpop.f32.mrf.mxu0
    %v5359 = vadd.f32 0.0, %v5358
    %v5360 = vpop.f32.mrf.mxu0
    %v5361 = vpop.f32.mrf.mxu0
    %v5362 = vadd.f32 0.0, %v5361
    %v5363 = vpop.f32.mrf.mxu0
    %5364 = vmatprep.mubr.bf16.mxu0 0
    %5365 = vmatmul.mubr.bf16.gmra.mxu0 %v2600
    %v5366 = vpop.f32.mrf.mxu0
    %v5367 = vadd.f32 0.0, %v5366
    %v5368 = vpop.f32.mrf.mxu0
    %v5369 = vpop.f32.mrf.mxu0
    %v5370 = vadd.f32 0.0, %v5369
    %v5371 = vpop.f32.mrf.mxu0
    %5372 = vmatprep.mubr.bf16.mxu0 0
    %5373 = vmatmul.mubr.bf16.gmra.mxu0 %v2603
    %v5374 = vpop.f32.mrf.mxu0
    %v5375 = vadd.f32 0.0, %v5374
    %v5376 = vpop.f32.mrf.mxu0
    %v5377 = vpop.f32.mrf.mxu0
    %v5378 = vadd.f32 0.0, %v5377
    %v5379 = vpop.f32.mrf.mxu0
    %5380 = vmatprep.mubr.bf16.mxu0 0
    %5381 = vmatmul.mubr.bf16.gmra.mxu0 %v2980
    %v5382 = vpop.f32.mrf.mxu0
    %v5383 = vadd.f32 0.0, %v5382
    %v5384 = vpop.f32.mrf.mxu0
    %v5385 = vpop.f32.mrf.mxu0
    %v5386 = vadd.f32 0.0, %v5385
    %v5387 = vpop.f32.mrf.mxu0
    %5388 = vmatprep.mubr.bf16.mxu0 0
    %5389 = vmatmul.mubr.bf16.gmra.mxu0 %v2609
    %v5390 = vpop.f32.mrf.mxu0
    %v5391 = vadd.f32 0.0, %v5390
    %v5392 = vpop.f32.mrf.mxu0
    %v5393 = vpop.f32.mrf.mxu0
    %v5394 = vadd.f32 0.0, %v5393
    %v5395 = vpop.f32.mrf.mxu0
    %5396 = vmatprep.mubr.bf16.mxu0 0
    %5397 = vmatmul.mubr.bf16.gmra.mxu0 %v2612
    %v5398 = vpop.f32.mrf.mxu0
    %v5399 = vadd.f32 0.0, %v5398
    %v5400 = vpop.f32.mrf.mxu0
    %v5401 = vpop.f32.mrf.mxu0
    %v5402 = vadd.f32 0.0, %v5401
    %v5403 = vpop.f32.mrf.mxu0
    %5404 = vmatprep.mubr.bf16.mxu0 0
    %5405 = vmatmul.mubr.bf16.gmra.mxu0 %v2615
    %v5406 = vpop.f32.mrf.mxu0
    %v5407 = vadd.f32 0.0, %v5406
    %v5408 = vpop.f32.mrf.mxu0
    %v5409 = vpop.f32.mrf.mxu0
    %v5410 = vadd.f32 0.0, %v5409
    %v5411 = vpop.f32.mrf.mxu0
    %5412 = vmatprep.mubr.bf16.mxu0 0
    %5413 = vmatmul.mubr.bf16.gmra.mxu0 %v2983
    %v5414 = vpop.f32.mrf.mxu0
    %v5415 = vadd.f32 0.0, %v5414
    %v5416 = vpop.f32.mrf.mxu0
    %v5417 = vpop.f32.mrf.mxu0
    %v5418 = vadd.f32 0.0, %v5417
    %v5419 = vpop.f32.mrf.mxu0
    %5420 = vmatprep.mubr.bf16.mxu0 0
    %5421 = vmatmul.mubr.bf16.gmra.mxu0 %v2621
    %v5422 = vpop.f32.mrf.mxu0
    %v5423 = vadd.f32 0.0, %v5422
    %v5424 = vpop.f32.mrf.mxu0
    %v5425 = vpop.f32.mrf.mxu0
    %v5426 = vadd.f32 0.0, %v5425
    %v5427 = vpop.f32.mrf.mxu0
    %5428 = vmatprep.mubr.bf16.mxu0 0
    %5429 = vmatmul.mubr.bf16.gmra.mxu0 %v2624
    %v5430 = vpop.f32.mrf.mxu0
    %v5431 = vadd.f32 0.0, %v5430
    %v5432 = vpop.f32.mrf.mxu0
    %v5433 = vpop.f32.mrf.mxu0
    %v5434 = vadd.f32 0.0, %v5433
    %v5435 = vpop.f32.mrf.mxu0
    %5436 = vmatprep.mubr.bf16.mxu0 0
    %5437 = vmatmul.mubr.bf16.gmra.mxu0 %v2627
    %v5438 = vpop.f32.mrf.mxu0
    %v5439 = vadd.f32 0.0, %v5438
    %v5440 = vpop.f32.mrf.mxu0
    %v5441 = vpop.f32.mrf.mxu0
    %v5442 = vadd.f32 0.0, %v5441
    %v5443 = vpop.f32.mrf.mxu0
    %5444 = vmatprep.mubr.bf16.mxu0 0
    %5445 = vmatmul.mubr.bf16.gmra.mxu0 %v2986
    %v5446 = vpop.f32.mrf.mxu0
    %v5447 = vadd.f32 0.0, %v5446
    %v5448 = vpop.f32.mrf.mxu0
    %v5449 = vpop.f32.mrf.mxu0
    %v5450 = vadd.f32 0.0, %v5449
    %v5451 = vpop.f32.mrf.mxu0
    %5452 = vmatprep.mubr.bf16.mxu0 0
    %5453 = vmatmul.mubr.bf16.gmra.mxu0 %v2633
    %v5454 = vpop.f32.mrf.mxu0
    %v5455 = vadd.f32 0.0, %v5454
    %v5456 = vpop.f32.mrf.mxu0
    %v5457 = vpop.f32.mrf.mxu0
    %v5458 = vadd.f32 0.0, %v5457
    %v5459 = vpop.f32.mrf.mxu0
    %5460 = vmatprep.mubr.bf16.mxu0 0
    %5461 = vmatmul.mubr.bf16.gmra.mxu0 %v2636
    %v5462 = vpop.f32.mrf.mxu0
    %v5463 = vadd.f32 0.0, %v5462
    %v5464 = vpop.f32.mrf.mxu0
    %v5465 = vpop.f32.mrf.mxu0
    %v5466 = vadd.f32 0.0, %v5465
    %v5467 = vpop.f32.mrf.mxu0
    %5468 = vmatprep.mubr.bf16.mxu0 0
    %5469 = vmatmul.mubr.bf16.gmra.mxu0 %v2639
    %v5470 = vpop.f32.mrf.mxu0
    %v5471 = vadd.f32 0.0, %v5470
    %v5472 = vpop.f32.mrf.mxu0
    %v5473 = vpop.f32.mrf.mxu0
    %v5474 = vadd.f32 0.0, %v5473
    %v5475 = vpop.f32.mrf.mxu0
    %5476 = vmatprep.mubr.bf16.mxu0 0
    %5477 = vmatmul.mubr.bf16.gmra.mxu0 %v2989
    %v5478 = vpop.f32.mrf.mxu0
    %v5479 = vadd.f32 0.0, %v5478
    %v5480 = vpop.f32.mrf.mxu0
    %v5481 = vpop.f32.mrf.mxu0
    %v5482 = vadd.f32 0.0, %v5481
    %v5483 = vpop.f32.mrf.mxu0
    %5484 = vmatprep.mubr.bf16.mxu0 0
    %5485 = vmatmul.mubr.bf16.gmra.mxu0 %v2645
    %v5486 = vpop.f32.mrf.mxu0
    %v5487 = vadd.f32 0.0, %v5486
    %v5488 = vpop.f32.mrf.mxu0
    %v5489 = vpop.f32.mrf.mxu0
    %v5490 = vadd.f32 0.0, %v5489
    %v5491 = vpop.f32.mrf.mxu0
    %5492 = vmatprep.mubr.bf16.mxu0 0
    %5493 = vmatmul.mubr.bf16.gmra.mxu0 %v2648
    %v5494 = vpop.f32.mrf.mxu0
    %v5495 = vadd.f32 0.0, %v5494
    %v5496 = vpop.f32.mrf.mxu0
    %v5497 = vpop.f32.mrf.mxu0
    %v5498 = vadd.f32 0.0, %v5497
    %v5499 = vpop.f32.mrf.mxu0
    %5500 = vmatprep.mubr.bf16.mxu0 0
    %5501 = vmatmul.mubr.bf16.gmra.mxu0 %v2651
    %v5502 = vpop.f32.mrf.mxu0
    %v5503 = vadd.f32 0.0, %v5502
    %v5504 = vpop.f32.mrf.mxu0
    %v5505 = vpop.f32.mrf.mxu0
    %v5506 = vadd.f32 0.0, %v5505
    %v5507 = vpop.f32.mrf.mxu0
    %5508 = vmatprep.mubr.bf16.mxu0 0
    %5509 = vmatmul.mubr.bf16.gmra.mxu0 %v2992
    %v5510 = vpop.f32.mrf.mxu0
    %v5511 = vadd.f32 0.0, %v5510
    %v5512 = vpop.f32.mrf.mxu0
    %v5513 = vpop.f32.mrf.mxu0
    %v5514 = vadd.f32 0.0, %v5513
    %v5515 = vpop.f32.mrf.mxu0
    %5516 = vmatprep.mubr.bf16.mxu0 0
    %5517 = vmatmul.mubr.bf16.gmra.mxu0 %v3379
    %v5518 = vpop.f32.mrf.mxu0
    %v5519 = vadd.f32 0.0, %v5518
    %v5520 = vpop.f32.mrf.mxu0
    %v5521 = vpop.f32.mrf.mxu0
    %v5522 = vadd.f32 0.0, %v5521
    %v5523 = vpop.f32.mrf.mxu0
    %5524 = vmatprep.mubr.bf16.mxu0 0
    %5525 = vmatmul.mubr.bf16.gmra.mxu0 %v3382
    %v5526 = vpop.f32.mrf.mxu0
    %v5527 = vadd.f32 0.0, %v5526
    %v5528 = vpop.f32.mrf.mxu0
    %v5529 = vpop.f32.mrf.mxu0
    %v5530 = vadd.f32 0.0, %v5529
    %v5531 = vpop.f32.mrf.mxu0
    %5532 = vmatprep.mubr.bf16.mxu0 0
    %5533 = vmatmul.mubr.bf16.gmra.mxu0 %v3385
    %v5534 = vpop.f32.mrf.mxu0
    %v5535 = vadd.f32 0.0, %v5534
    %v5536 = vpop.f32.mrf.mxu0
    %v5537 = vpop.f32.mrf.mxu0
    %v5538 = vadd.f32 0.0, %v5537
    %v5539 = vpop.f32.mrf.mxu0
    %5540 = vmatprep.mubr.bf16.mxu0 0
    %5541 = vmatmul.mubr.bf16.gmra.mxu0 %v4159
    %v5542 = vpop.f32.mrf.mxu0
    %v5543 = vadd.f32 0.0, %v5542
    %v5544 = vpop.f32.mrf.mxu0
    %v5545 = vpop.f32.mrf.mxu0
    %v5546 = vadd.f32 0.0, %v5545
    %v5547 = vpop.f32.mrf.mxu0
    %5548 = vmatprep.mubr.bf16.mxu0 0
    %5549 = vmatmul.mubr.bf16.gmra.mxu0 %v2170
    %v5550 = vpop.f32.mrf.mxu0
    %v5551 = vadd.f32 0.0, %v5550
    %v5552 = vpop.f32.mrf.mxu0
    %v5553 = vpop.f32.mrf.mxu0
    %v5554 = vadd.f32 0.0, %v5553
    %v5555 = vpop.f32.mrf.mxu0
    %5556 = vmatprep.mubr.bf16.mxu0 0
    %5557 = vmatmul.mubr.bf16.gmra.mxu0 %v2170
    %v5558 = vpop.f32.mrf.mxu0
    %v5559 = vadd.f32 0.0, %v5558
    %v5560 = vpop.f32.mrf.mxu0
    %v5561 = vpop.f32.mrf.mxu0
    %v5562 = vadd.f32 0.0, %v5561
    %v5563 = vpop.f32.mrf.mxu0
    %5564 = vmatprep.mubr.bf16.mxu0 0
    %5565 = vmatmul.mubr.bf16.gmra.mxu0 %v2170
    %v5566 = vpop.f32.mrf.mxu0
    %v5567 = vadd.f32 0.0, %v5566
    %v5568 = vpop.f32.mrf.mxu0
    %v5569 = vpop.f32.mrf.mxu0
    %v5570 = vadd.f32 0.0, %v5569
    %v5571 = vpop.f32.mrf.mxu0
    %5572 = vmatprep.mubr.bf16.mxu0 0
    %5573 = vmatmul.mubr.bf16.gmra.mxu0 %v2170
    %v5574 = vpop.f32.mrf.mxu0
    %v5575 = vadd.f32 0.0, %v5574
    %v5576 = vpop.f32.mrf.mxu0
    %v5577 = vpop.f32.mrf.mxu0
    %v5578 = vadd.f32 0.0, %v5577
    %v5579 = vpop.f32.mrf.mxu0
    %5580 = vdwg.mxu0
    %v5581 = vadd.f32 %v5204, %v5327
    %v5582 = vadd.f32 %v5205, %v5330
    %v5583 = vadd.f32 %v5206, %v5335
    %v5584 = vadd.f32 %v5207, %v5338
    %v5585 = vadd.f32 %v5208, %v5343
    %v5586 = vadd.f32 %v5209, %v5346
    %v5587 = vadd.f32 %v5210, %v5351
    %v5588 = vadd.f32 %v5211, %v5354
    %v5589 = vadd.f32 %v5212, %v5359
    %v5590 = vadd.f32 %v5213, %v5362
    %v5591 = vadd.f32 %v5214, %v5367
    %v5592 = vadd.f32 %v5215, %v5370
    %v5593 = vadd.f32 %v5216, %v5375
    %v5594 = vadd.f32 %v5217, %v5378
    %v5595 = vadd.f32 %v5218, %v5383
    %v5596 = vadd.f32 %v5219, %v5386
    %v5597 = vadd.f32 %v5220, %v5391
    %v5598 = vadd.f32 %v5221, %v5394
    %v5599 = vadd.f32 %v5222, %v5399
    %v5600 = vadd.f32 %v5223, %v5402
    %v5601 = vadd.f32 %v5224, %v5407
    %v5602 = vadd.f32 %v5225, %v5410
    %v5603 = vadd.f32 %v5226, %v5415
    %v5604 = vadd.f32 %v5227, %v5418
    %v5605 = vadd.f32 %v5228, %v5423
    %v5606 = vadd.f32 %v5229, %v5426
    %v5607 = vadd.f32 %v5230, %v5431
    %v5608 = vadd.f32 %v5231, %v5434
    %v5609 = vadd.f32 %v5232, %v5439
    %v5610 = vadd.f32 %v5233, %v5442
    %v5611 = vadd.f32 %v5234, %v5447
    %v5612 = vadd.f32 %v5235, %v5450
    %v5613 = vadd.f32 %v5236, %v5455
    %v5614 = vadd.f32 %v5237, %v5458
    %v5615 = vadd.f32 %v5238, %v5463
    %v5616 = vadd.f32 %v5239, %v5466
    %v5617 = vadd.f32 %v5240, %v5471
    %v5618 = vadd.f32 %v5241, %v5474
    %v5619 = vadd.f32 %v5242, %v5479
    %v5620 = vadd.f32 %v5243, %v5482
    %v5621 = vadd.f32 %v5244, %v5487
    %v5622 = vadd.f32 %v5245, %v5490
    %v5623 = vadd.f32 %v5246, %v5495
    %v5624 = vadd.f32 %v5247, %v5498
    %v5625 = vadd.f32 %v5248, %v5503
    %v5626 = vadd.f32 %v5249, %v5506
    %v5627 = vadd.f32 %v5250, %v5511
    %v5628 = vadd.f32 %v5251, %v5514
    %v5629 = vadd.f32 %v5252, %v5519
    %v5630 = vadd.f32 %v5253, %v5522
    %v5631 = vadd.f32 %v5254, %v5527
    %v5632 = vadd.f32 %v5255, %v5530
    %v5633 = vadd.f32 %v5256, %v5535
    %v5634 = vadd.f32 %v5257, %v5538
    %v5635 = vadd.f32 %v5258, %v5543
    %v5636 = vadd.f32 %v5259, %v5546
    %v5637 = vadd.f32 %v5260, %v5551
    %v5638 = vadd.f32 %v5261, %v5554
    %v5639 = vadd.f32 %v5262, %v5559
    %v5640 = vadd.f32 %v5263, %v5562
    %v5641 = vadd.f32 %v5264, %v5567
    %v5642 = vadd.f32 %v5265, %v5570
    %v5643 = vadd.f32 %v5266, %v5575
    %v5644 = vadd.f32 %v5267, %v5578
    %v5645 = vld [vmem:[#allocation10] sm:$0x1]
    %v5647 = vlaneseq
    %v5648 = vshrl.u32 %v5647, 7
    %v5649 = vsub.s32 0, %v5648
    %v5650 = vrot.slane %v5645, %v5649
    %v5652 = vmul.f32 %v5581, %v5650
    %v5653 = vmul.f32 %v5582, %v5650
    %v5654 = vmul.f32 %v5583, %v5650
    %v5655 = vmul.f32 %v5584, %v5650
    %v5656 = vmul.f32 %v5585, %v5650
    %v5657 = vmul.f32 %v5586, %v5650
    %v5658 = vmul.f32 %v5587, %v5650
    %v5659 = vmul.f32 %v5588, %v5650
    %v5660 = vmul.f32 %v5589, %v5650
    %v5661 = vmul.f32 %v5590, %v5650
    %v5662 = vmul.f32 %v5591, %v5650
    %v5663 = vmul.f32 %v5592, %v5650
    %v5664 = vmul.f32 %v5593, %v5650
    %v5665 = vmul.f32 %v5594, %v5650
    %v5666 = vmul.f32 %v5595, %v5650
    %v5667 = vmul.f32 %v5596, %v5650
    %v5668 = vmul.f32 %v5597, %v5650
    %v5669 = vmul.f32 %v5598, %v5650
    %v5670 = vmul.f32 %v5599, %v5650
    %v5671 = vmul.f32 %v5600, %v5650
    %v5672 = vmul.f32 %v5601, %v5650
    %v5673 = vmul.f32 %v5602, %v5650
    %v5674 = vmul.f32 %v5603, %v5650
    %v5675 = vmul.f32 %v5604, %v5650
    %v5676 = vmul.f32 %v5605, %v5650
    %v5677 = vmul.f32 %v5606, %v5650
    %v5678 = vmul.f32 %v5607, %v5650
    %v5679 = vmul.f32 %v5608, %v5650
    %v5680 = vmul.f32 %v5609, %v5650
    %v5681 = vmul.f32 %v5610, %v5650
    %v5682 = vmul.f32 %v5611, %v5650
    %v5683 = vmul.f32 %v5612, %v5650
    %v5684 = vmul.f32 %v5613, %v5650
    %v5685 = vmul.f32 %v5614, %v5650
    %v5686 = vmul.f32 %v5615, %v5650
    %v5687 = vmul.f32 %v5616, %v5650
    %v5688 = vmul.f32 %v5617, %v5650
    %v5689 = vmul.f32 %v5618, %v5650
    %v5690 = vmul.f32 %v5619, %v5650
    %v5691 = vmul.f32 %v5620, %v5650
    %v5692 = vmul.f32 %v5621, %v5650
    %v5693 = vmul.f32 %v5622, %v5650
    %v5694 = vmul.f32 %v5623, %v5650
    %v5695 = vmul.f32 %v5624, %v5650
    %v5696 = vmul.f32 %v5625, %v5650
    %v5697 = vmul.f32 %v5626, %v5650
    %v5698 = vmul.f32 %v5627, %v5650
    %v5699 = vmul.f32 %v5628, %v5650
    %v5700 = vmul.f32 %v5629, %v5650
    %v5701 = vmul.f32 %v5630, %v5650
    %v5702 = vmul.f32 %v5631, %v5650
    %v5703 = vmul.f32 %v5632, %v5650
    %v5704 = vmul.f32 %v5633, %v5650
    %v5705 = vmul.f32 %v5634, %v5650
    %v5706 = vmul.f32 %v5635, %v5650
    %v5707 = vmul.f32 %v5636, %v5650
    %v5708 = vmul.f32 %v5637, %v5650
    %v5709 = vmul.f32 %v5638, %v5650
    %v5710 = vmul.f32 %v5639, %v5650
    %v5711 = vmul.f32 %v5640, %v5650
    %v5712 = vmul.f32 %v5641, %v5650
    %v5713 = vmul.f32 %v5642, %v5650
    %v5714 = vmul.f32 %v5643, %v5650
    %v5715 = vmul.f32 %v5644, %v5650
    %v5716 = vld [vmem:[#allocation11] sm:$0x1]
    %v5718 = vlaneseq
    %v5719 = vshrl.u32 %v5718, 7
    %v5720 = vsub.s32 0, %v5719
    %v5721 = vrot.slane %v5716, %v5720
    %v5723 = vadd.f32 %v5652, %v5721
    %v5724 = vadd.f32 %v5653, %v5721
    %v5725 = vadd.f32 %v5654, %v5721
    %v5726 = vadd.f32 %v5655, %v5721
    %v5727 = vadd.f32 %v5656, %v5721
    %v5728 = vadd.f32 %v5657, %v5721
    %v5729 = vadd.f32 %v5658, %v5721
    %v5730 = vadd.f32 %v5659, %v5721
    %v5731 = vadd.f32 %v5660, %v5721
    %v5732 = vadd.f32 %v5661, %v5721
    %v5733 = vadd.f32 %v5662, %v5721
    %v5734 = vadd.f32 %v5663, %v5721
    %v5735 = vadd.f32 %v5664, %v5721
    %v5736 = vadd.f32 %v5665, %v5721
    %v5737 = vadd.f32 %v5666, %v5721
    %v5738 = vadd.f32 %v5667, %v5721
    %v5739 = vadd.f32 %v5668, %v5721
    %v5740 = vadd.f32 %v5669, %v5721
    %v5741 = vadd.f32 %v5670, %v5721
    %v5742 = vadd.f32 %v5671, %v5721
    %v5743 = vadd.f32 %v5672, %v5721
    %v5744 = vadd.f32 %v5673, %v5721
    %v5745 = vadd.f32 %v5674, %v5721
    %v5746 = vadd.f32 %v5675, %v5721
    %v5747 = vadd.f32 %v5676, %v5721
    %v5748 = vadd.f32 %v5677, %v5721
    %v5749 = vadd.f32 %v5678, %v5721
    %v5750 = vadd.f32 %v5679, %v5721
    %v5751 = vadd.f32 %v5680, %v5721
    %v5752 = vadd.f32 %v5681, %v5721
    %v5753 = vadd.f32 %v5682, %v5721
    %v5754 = vadd.f32 %v5683, %v5721
    %v5755 = vadd.f32 %v5684, %v5721
    %v5756 = vadd.f32 %v5685, %v5721
    %v5757 = vadd.f32 %v5686, %v5721
    %v5758 = vadd.f32 %v5687, %v5721
    %v5759 = vadd.f32 %v5688, %v5721
    %v5760 = vadd.f32 %v5689, %v5721
    %v5761 = vadd.f32 %v5690, %v5721
    %v5762 = vadd.f32 %v5691, %v5721
    %v5763 = vadd.f32 %v5692, %v5721
    %v5764 = vadd.f32 %v5693, %v5721
    %v5765 = vadd.f32 %v5694, %v5721
    %v5766 = vadd.f32 %v5695, %v5721
    %v5767 = vadd.f32 %v5696, %v5721
    %v5768 = vadd.f32 %v5697, %v5721
    %v5769 = vadd.f32 %v5698, %v5721
    %v5770 = vadd.f32 %v5699, %v5721
    %v5771 = vadd.f32 %v5700, %v5721
    %v5772 = vadd.f32 %v5701, %v5721
    %v5773 = vadd.f32 %v5702, %v5721
    %v5774 = vadd.f32 %v5703, %v5721
    %v5775 = vadd.f32 %v5704, %v5721
    %v5776 = vadd.f32 %v5705, %v5721
    %v5777 = vadd.f32 %v5706, %v5721
    %v5778 = vadd.f32 %v5707, %v5721
    %v5779 = vadd.f32 %v5708, %v5721
    %v5780 = vadd.f32 %v5709, %v5721
    %v5781 = vadd.f32 %v5710, %v5721
    %v5782 = vadd.f32 %v5711, %v5721
    %v5783 = vadd.f32 %v5712, %v5721
    %v5784 = vadd.f32 %v5713, %v5721
    %v5785 = vadd.f32 %v5714, %v5721
    %v5786 = vadd.f32 %v5715, %v5721
    %v5787 = vmax.f32 %v5723, 0.0
    %v5788 = vmax.f32 %v5724, 0.0
    %v5789 = vmax.f32 %v5725, 0.0
    %v5790 = vmax.f32 %v5726, 0.0
    %v5791 = vmax.f32 %v5727, 0.0
    %v5792 = vmax.f32 %v5728, 0.0
    %v5793 = vmax.f32 %v5729, 0.0
    %v5794 = vmax.f32 %v5730, 0.0
    %v5795 = vmax.f32 %v5731, 0.0
    %v5796 = vmax.f32 %v5732, 0.0
    %v5797 = vmax.f32 %v5733, 0.0
    %v5798 = vmax.f32 %v5734, 0.0
    %v5799 = vmax.f32 %v5735, 0.0
    %v5800 = vmax.f32 %v5736, 0.0
    %v5801 = vmax.f32 %v5737, 0.0
    %v5802 = vmax.f32 %v5738, 0.0
    %v5803 = vmax.f32 %v5739, 0.0
    %v5804 = vmax.f32 %v5740, 0.0
    %v5805 = vmax.f32 %v5741, 0.0
    %v5806 = vmax.f32 %v5742, 0.0
    %v5807 = vmax.f32 %v5743, 0.0
    %v5808 = vmax.f32 %v5744, 0.0
    %v5809 = vmax.f32 %v5745, 0.0
    %v5810 = vmax.f32 %v5746, 0.0
    %v5811 = vmax.f32 %v5747, 0.0
    %v5812 = vmax.f32 %v5748, 0.0
    %v5813 = vmax.f32 %v5749, 0.0
    %v5814 = vmax.f32 %v5750, 0.0
    %v5815 = vmax.f32 %v5751, 0.0
    %v5816 = vmax.f32 %v5752, 0.0
    %v5817 = vmax.f32 %v5753, 0.0
    %v5818 = vmax.f32 %v5754, 0.0
    %v5819 = vmax.f32 %v5755, 0.0
    %v5820 = vmax.f32 %v5756, 0.0
    %v5821 = vmax.f32 %v5757, 0.0
    %v5822 = vmax.f32 %v5758, 0.0
    %v5823 = vmax.f32 %v5759, 0.0
    %v5824 = vmax.f32 %v5760, 0.0
    %v5825 = vmax.f32 %v5761, 0.0
    %v5826 = vmax.f32 %v5762, 0.0
    %v5827 = vmax.f32 %v5763, 0.0
    %v5828 = vmax.f32 %v5764, 0.0
    %v5829 = vmax.f32 %v5765, 0.0
    %v5830 = vmax.f32 %v5766, 0.0
    %v5831 = vmax.f32 %v5767, 0.0
    %v5832 = vmax.f32 %v5768, 0.0
    %v5833 = vmax.f32 %v5769, 0.0
    %v5834 = vmax.f32 %v5770, 0.0
    %v5835 = vmax.f32 %v5771, 0.0
    %v5836 = vmax.f32 %v5772, 0.0
    %v5837 = vmax.f32 %v5773, 0.0
    %v5838 = vmax.f32 %v5774, 0.0
    %v5839 = vmax.f32 %v5775, 0.0
    %v5840 = vmax.f32 %v5776, 0.0
    %v5841 = vmax.f32 %v5777, 0.0
    %v5842 = vmax.f32 %v5778, 0.0
    %v5843 = vmax.f32 %v5779, 0.0
    %v5844 = vmax.f32 %v5780, 0.0
    %v5845 = vmax.f32 %v5781, 0.0
    %v5846 = vmax.f32 %v5782, 0.0
    %v5847 = vmax.f32 %v5783, 0.0
    %v5848 = vmax.f32 %v5784, 0.0
    %v5849 = vmax.f32 %v5785, 0.0
    %v5850 = vmax.f32 %v5786, 0.0
    %v5851 = vmax.f32 %v5787, %v5795
    %v5852 = vmax.f32 %v5788, %v5796
    %v5853 = vmax.f32 %v5789, %v5797
    %v5854 = vmax.f32 %v5790, %v5798
    %v5855 = vmax.f32 %v5791, %v5799
    %v5856 = vmax.f32 %v5792, %v5800
    %v5857 = vmax.f32 %v5793, %v5801
    %v5858 = vmax.f32 %v5794, %v5802
    %v5859 = vmax.f32 %v5803, %v5811
    %v5860 = vmax.f32 %v5804, %v5812
    %v5861 = vmax.f32 %v5805, %v5813
    %v5862 = vmax.f32 %v5806, %v5814
    %v5863 = vmax.f32 %v5807, %v5815
    %v5864 = vmax.f32 %v5808, %v5816
    %v5865 = vmax.f32 %v5809, %v5817
    %v5866 = vmax.f32 %v5810, %v5818
    %v5867 = vmax.f32 %v5819, %v5827
    %v5868 = vmax.f32 %v5820, %v5828
    %v5869 = vmax.f32 %v5821, %v5829
    %v5870 = vmax.f32 %v5822, %v5830
    %v5871 = vmax.f32 %v5823, %v5831
    %v5872 = vmax.f32 %v5824, %v5832
    %v5873 = vmax.f32 %v5825, %v5833
    %v5874 = vmax.f32 %v5826, %v5834
    %v5875 = vmax.f32 %v5835, %v5843
    %v5876 = vmax.f32 %v5836, %v5844
    %v5877 = vmax.f32 %v5837, %v5845
    %v5878 = vmax.f32 %v5838, %v5846
    %v5879 = vmax.f32 %v5839, %v5847
    %v5880 = vmax.f32 %v5840, %v5848
    %v5881 = vmax.f32 %v5841, %v5849
    %v5882 = vmax.f32 %v5842, %v5850
    %v5883 = vmax.f32 %v5851, %v5852
    %v5884 = vmax.f32 %v5853, %v5854
    %v5885 = vmax.f32 %v5855, %v5856
    %v5886 = vmax.f32 %v5857, %v5858
    %v5887 = vmax.f32 %v5859, %v5860
    %v5888 = vmax.f32 %v5861, %v5862
    %v5889 = vmax.f32 %v5863, %v5864
    %v5890 = vmax.f32 %v5865, %v5866
    %v5891 = vmax.f32 %v5867, %v5868
    %v5892 = vmax.f32 %v5869, %v5870
    %v5893 = vmax.f32 %v5871, %v5872
    %v5894 = vmax.f32 %v5873, %v5874
    %v5895 = vmax.f32 %v5875, %v5876
    %v5896 = vmax.f32 %v5877, %v5878
    %v5897 = vmax.f32 %v5879, %v5880
    %v5898 = vmax.f32 %v5881, %v5882
    %v5899 = vld [vmem:[#allocation13] sm:$0xff]
    %v5900 = vld [vmem:[#allocation13 + $0x8] sm:$0xff]
    %v5901 = vld [vmem:[#allocation13 + $0x10] sm:$0xff]
    %v5902 = vld [vmem:[#allocation13 + $0x18] sm:$0xff]
    %v5903 = vld [vmem:[#allocation13 + $0x20] sm:$0xff]
    %v5904 = vld [vmem:[#allocation13 + $0x28] sm:$0xff]
    %v5905 = vld [vmem:[#allocation13 + $0x30] sm:$0xff]
    %v5906 = vld [vmem:[#allocation13 + $0x38] sm:$0xff]
    %v5907 = vld [vmem:[#allocation13 + $0x40] sm:$0xff]
    %v5908 = vld [vmem:[#allocation13 + $0x48] sm:$0xff]
    %v5909 = vld [vmem:[#allocation13 + $0x50] sm:$0xff]
    %v5910 = vld [vmem:[#allocation13 + $0x58] sm:$0xff]
    %v5911 = vld [vmem:[#allocation13 + $0x60] sm:$0xff]
    %v5912 = vld [vmem:[#allocation13 + $0x68] sm:$0xff]
    %v5913 = vld [vmem:[#allocation13 + $0x70] sm:$0xff]
    %v5914 = vld [vmem:[#allocation13 + $0x78] sm:$0xff]
    %v5915 = vld [vmem:[#allocation13 + $0x80] sm:$0xff]
    %v5916 = vld [vmem:[#allocation13 + $0x88] sm:$0xff]
    %v5917 = vld [vmem:[#allocation13 + $0x90] sm:$0xff]
    %v5918 = vld [vmem:[#allocation13 + $0x98] sm:$0xff]
    %v5919 = vld [vmem:[#allocation13 + $0xa0] sm:$0xff]
    %v5920 = vld [vmem:[#allocation13 + $0xa8] sm:$0xff]
    %v5921 = vld [vmem:[#allocation13 + $0xb0] sm:$0xff]
    %v5922 = vld [vmem:[#allocation13 + $0xb8] sm:$0xff]
    %v5923 = vld [vmem:[#allocation13 + $0xc0] sm:$0xff]
    %v5924 = vld [vmem:[#allocation13 + $0xc8] sm:$0xff]
    %v5925 = vld [vmem:[#allocation13 + $0xd0] sm:$0xff]
    %v5926 = vld [vmem:[#allocation13 + $0xd8] sm:$0xff]
    %v5927 = vld [vmem:[#allocation13 + $0xe0] sm:$0xff]
    %v5928 = vld [vmem:[#allocation13 + $0xe8] sm:$0xff]
    %v5929 = vld [vmem:[#allocation13 + $0xf0] sm:$0xff]
    %v5930 = vld [vmem:[#allocation13 + $0xf8] sm:$0xff]
    %v5931 = vld [vmem:[#allocation13 + $0x100] sm:$0xff]
    %v5932 = vld [vmem:[#allocation13 + $0x108] sm:$0xff]
    %v5933 = vld [vmem:[#allocation13 + $0x110] sm:$0xff]
    %v5934 = vld [vmem:[#allocation13 + $0x118] sm:$0xff]
    %v5935 = vld [vmem:[#allocation13 + $0x120] sm:$0xff]
    %v5936 = vld [vmem:[#allocation13 + $0x128] sm:$0xff]
    %v5937 = vld [vmem:[#allocation13 + $0x130] sm:$0xff]
    %v5938 = vld [vmem:[#allocation13 + $0x138] sm:$0xff]
    %v5939 = vld [vmem:[#allocation13 + $0x140] sm:$0xff]
    %v5940 = vld [vmem:[#allocation13 + $0x148] sm:$0xff]
    %v5941 = vld [vmem:[#allocation13 + $0x150] sm:$0xff]
    %v5942 = vld [vmem:[#allocation13 + $0x158] sm:$0xff]
    %v5943 = vld [vmem:[#allocation13 + $0x160] sm:$0xff]
    %v5944 = vld [vmem:[#allocation13 + $0x168] sm:$0xff]
    %v5945 = vld [vmem:[#allocation13 + $0x170] sm:$0xff]
    %v5946 = vld [vmem:[#allocation13 + $0x178] sm:$0xff]
    %v5947 = vld [vmem:[#allocation13 + $0x180] sm:$0xff]
    %v5948 = vld [vmem:[#allocation13 + $0x188] sm:$0xff]
    %v5949 = vld [vmem:[#allocation13 + $0x190] sm:$0xff]
    %v5950 = vld [vmem:[#allocation13 + $0x198] sm:$0xff]
    %v5951 = vld [vmem:[#allocation13 + $0x1a0] sm:$0xff]
    %v5952 = vld [vmem:[#allocation13 + $0x1a8] sm:$0xff]
    %v5953 = vld [vmem:[#allocation13 + $0x1b0] sm:$0xff]
    %v5954 = vld [vmem:[#allocation13 + $0x1b8] sm:$0xff]
    %v5955 = vld [vmem:[#allocation13 + $0x1c0] sm:$0xff]
    %v5956 = vld [vmem:[#allocation13 + $0x1c8] sm:$0xff]
    %v5957 = vld [vmem:[#allocation13 + $0x1d0] sm:$0xff]
    %v5958 = vld [vmem:[#allocation13 + $0x1d8] sm:$0xff]
    %v5959 = vld [vmem:[#allocation13 + $0x1e0] sm:$0xff]
    %v5960 = vld [vmem:[#allocation13 + $0x1e8] sm:$0xff]
    %v5961 = vld [vmem:[#allocation13 + $0x1f0] sm:$0xff]
    %v5962 = vld [vmem:[#allocation13 + $0x1f8] sm:$0xff]
    %v5963 = vld [vmem:[#allocation13 + $0x200] sm:$0xff]
    %v5964 = vld [vmem:[#allocation13 + $0x208] sm:$0xff]
    %v5965 = vld [vmem:[#allocation13 + $0x210] sm:$0xff]
    %v5966 = vld [vmem:[#allocation13 + $0x218] sm:$0xff]
    %v5967 = vld [vmem:[#allocation13 + $0x220] sm:$0xff]
    %v5968 = vld [vmem:[#allocation13 + $0x228] sm:$0xff]
    %v5969 = vld [vmem:[#allocation13 + $0x230] sm:$0xff]
    %v5970 = vld [vmem:[#allocation13 + $0x238] sm:$0xff]
    %v5971 = vld [vmem:[#allocation13 + $0x240] sm:$0xff]
    %v5972 = vld [vmem:[#allocation13 + $0x248] sm:$0xff]
    %v5973 = vld [vmem:[#allocation13 + $0x250] sm:$0xff]
    %v5974 = vld [vmem:[#allocation13 + $0x258] sm:$0xff]
    %v5975 = vld [vmem:[#allocation13 + $0x260] sm:$0xff]
    %v5976 = vld [vmem:[#allocation13 + $0x268] sm:$0xff]
    %v5977 = vld [vmem:[#allocation13 + $0x270] sm:$0xff]
    %v5978 = vld [vmem:[#allocation13 + $0x278] sm:$0xff]
    %v5979 = vld [vmem:[#allocation13 + $0x280] sm:$0xff]
    %v5980 = vld [vmem:[#allocation13 + $0x288] sm:$0xff]
    %v5981 = vld [vmem:[#allocation13 + $0x290] sm:$0xff]
    %v5982 = vld [vmem:[#allocation13 + $0x298] sm:$0xff]
    %v5983 = vld [vmem:[#allocation13 + $0x2a0] sm:$0xff]
    %v5984 = vld [vmem:[#allocation13 + $0x2a8] sm:$0xff]
    %v5985 = vld [vmem:[#allocation13 + $0x2b0] sm:$0xff]
    %v5986 = vld [vmem:[#allocation13 + $0x2b8] sm:$0xff]
    %v5987 = vld [vmem:[#allocation13 + $0x2c0] sm:$0xff]
    %v5988 = vld [vmem:[#allocation13 + $0x2c8] sm:$0xff]
    %v5989 = vld [vmem:[#allocation13 + $0x2d0] sm:$0xff]
    %v5990 = vld [vmem:[#allocation13 + $0x2d8] sm:$0xff]
    %v5991 = vld [vmem:[#allocation13 + $0x2e0] sm:$0xff]
    %v5992 = vld [vmem:[#allocation13 + $0x2e8] sm:$0xff]
    %v5993 = vld [vmem:[#allocation13 + $0x2f0] sm:$0xff]
    %v5994 = vld [vmem:[#allocation13 + $0x2f8] sm:$0xff]
    %v5995 = vld [vmem:[#allocation13 + $0x300] sm:$0xff]
    %v5996 = vld [vmem:[#allocation13 + $0x308] sm:$0xff]
    %v5997 = vld [vmem:[#allocation13 + $0x310] sm:$0xff]
    %v5998 = vld [vmem:[#allocation13 + $0x318] sm:$0xff]
    %v5999 = vld [vmem:[#allocation13 + $0x320] sm:$0xff]
    %v6000 = vld [vmem:[#allocation13 + $0x328] sm:$0xff]
    %v6001 = vld [vmem:[#allocation13 + $0x330] sm:$0xff]
    %v6002 = vld [vmem:[#allocation13 + $0x338] sm:$0xff]
    %v6003 = vld [vmem:[#allocation13 + $0x340] sm:$0xff]
    %v6004 = vld [vmem:[#allocation13 + $0x348] sm:$0xff]
    %v6005 = vld [vmem:[#allocation13 + $0x350] sm:$0xff]
    %v6006 = vld [vmem:[#allocation13 + $0x358] sm:$0xff]
    %v6007 = vld [vmem:[#allocation13 + $0x360] sm:$0xff]
    %v6008 = vld [vmem:[#allocation13 + $0x368] sm:$0xff]
    %v6009 = vld [vmem:[#allocation13 + $0x370] sm:$0xff]
    %v6010 = vld [vmem:[#allocation13 + $0x378] sm:$0xff]
    %v6011 = vld [vmem:[#allocation13 + $0x380] sm:$0xff]
    %v6012 = vld [vmem:[#allocation13 + $0x388] sm:$0xff]
    %v6013 = vld [vmem:[#allocation13 + $0x390] sm:$0xff]
    %v6014 = vld [vmem:[#allocation13 + $0x398] sm:$0xff]
    %v6015 = vld [vmem:[#allocation13 + $0x3a0] sm:$0xff]
    %v6016 = vld [vmem:[#allocation13 + $0x3a8] sm:$0xff]
    %v6017 = vld [vmem:[#allocation13 + $0x3b0] sm:$0xff]
    %v6018 = vld [vmem:[#allocation13 + $0x3b8] sm:$0xff]
    %v6019 = vld [vmem:[#allocation13 + $0x3c0] sm:$0xff]
    %v6020 = vld [vmem:[#allocation13 + $0x3c8] sm:$0xff]
    %v6021 = vld [vmem:[#allocation13 + $0x3d0] sm:$0xff]
    %v6022 = vld [vmem:[#allocation13 + $0x3d8] sm:$0xff]
    %v6023 = vld [vmem:[#allocation13 + $0x3e0] sm:$0xff]
    %v6024 = vld [vmem:[#allocation13 + $0x3e8] sm:$0xff]
    %v6025 = vld [vmem:[#allocation13 + $0x3f0] sm:$0xff]
    %v6026 = vld [vmem:[#allocation13 + $0x3f8] sm:$0xff]
    %v6027 = vld [vmem:[#allocation13 + $0x400] sm:$0xff]
    %v6028 = vld [vmem:[#allocation13 + $0x408] sm:$0xff]
    %v6029 = vld [vmem:[#allocation13 + $0x410] sm:$0xff]
    %v6030 = vld [vmem:[#allocation13 + $0x418] sm:$0xff]
    %v6031 = vld [vmem:[#allocation13 + $0x420] sm:$0xff]
    %v6032 = vld [vmem:[#allocation13 + $0x428] sm:$0xff]
    %v6033 = vld [vmem:[#allocation13 + $0x430] sm:$0xff]
    %v6034 = vld [vmem:[#allocation13 + $0x438] sm:$0xff]
    %v6035 = vld [vmem:[#allocation13 + $0x440] sm:$0xff]
    %v6036 = vld [vmem:[#allocation13 + $0x448] sm:$0xff]
    %v6037 = vld [vmem:[#allocation13 + $0x450] sm:$0xff]
    %v6038 = vld [vmem:[#allocation13 + $0x458] sm:$0xff]
    %v6039 = vld [vmem:[#allocation13 + $0x460] sm:$0xff]
    %v6040 = vld [vmem:[#allocation13 + $0x468] sm:$0xff]
    %v6041 = vld [vmem:[#allocation13 + $0x470] sm:$0xff]
    %v6042 = vld [vmem:[#allocation13 + $0x478] sm:$0xff]
    %v6043 = vld [vmem:[#allocation13 + $0x480] sm:$0xff]
    %v6044 = vld [vmem:[#allocation13 + $0x488] sm:$0xff]
    %v6045 = vld [vmem:[#allocation13 + $0x490] sm:$0xff]
    %v6046 = vld [vmem:[#allocation13 + $0x498] sm:$0xff]
    %v6047 = vld [vmem:[#allocation13 + $0x4a0] sm:$0xff]
    %v6048 = vld [vmem:[#allocation13 + $0x4a8] sm:$0xff]
    %v6049 = vld [vmem:[#allocation13 + $0x4b0] sm:$0xff]
    %v6050 = vld [vmem:[#allocation13 + $0x4b8] sm:$0xff]
    %v6051 = vld [vmem:[#allocation13 + $0x4c0] sm:$0xff]
    %v6052 = vld [vmem:[#allocation13 + $0x4c8] sm:$0xff]
    %v6053 = vld [vmem:[#allocation13 + $0x4d0] sm:$0xff]
    %v6054 = vld [vmem:[#allocation13 + $0x4d8] sm:$0xff]
    %v6055 = vld [vmem:[#allocation13 + $0x4e0] sm:$0xff]
    %v6056 = vld [vmem:[#allocation13 + $0x4e8] sm:$0xff]
    %v6057 = vld [vmem:[#allocation13 + $0x4f0] sm:$0xff]
    %v6058 = vld [vmem:[#allocation13 + $0x4f8] sm:$0xff]
    %v6059 = vld [vmem:[#allocation13 + $0x500] sm:$0xff]
    %v6060 = vld [vmem:[#allocation13 + $0x508] sm:$0xff]
    %v6061 = vld [vmem:[#allocation13 + $0x510] sm:$0xff]
    %v6062 = vld [vmem:[#allocation13 + $0x518] sm:$0xff]
    %v6063 = vld [vmem:[#allocation13 + $0x520] sm:$0xff]
    %v6064 = vld [vmem:[#allocation13 + $0x528] sm:$0xff]
    %v6065 = vld [vmem:[#allocation13 + $0x530] sm:$0xff]
    %v6066 = vld [vmem:[#allocation13 + $0x538] sm:$0xff]
    %v6067 = vld [vmem:[#allocation13 + $0x540] sm:$0xff]
    %v6068 = vld [vmem:[#allocation13 + $0x548] sm:$0xff]
    %v6069 = vld [vmem:[#allocation13 + $0x550] sm:$0xff]
    %v6070 = vld [vmem:[#allocation13 + $0x558] sm:$0xff]
    %v6071 = vld [vmem:[#allocation13 + $0x560] sm:$0xff]
    %v6072 = vld [vmem:[#allocation13 + $0x568] sm:$0xff]
    %v6073 = vld [vmem:[#allocation13 + $0x570] sm:$0xff]
    %v6074 = vld [vmem:[#allocation13 + $0x578] sm:$0xff]
    %v6075 = vld [vmem:[#allocation13 + $0x580] sm:$0xff]
    %v6076 = vld [vmem:[#allocation13 + $0x588] sm:$0xff]
    %v6077 = vld [vmem:[#allocation13 + $0x590] sm:$0xff]
    %v6078 = vld [vmem:[#allocation13 + $0x598] sm:$0xff]
    %v6079 = vld [vmem:[#allocation13 + $0x5a0] sm:$0xff]
    %v6080 = vld [vmem:[#allocation13 + $0x5a8] sm:$0xff]
    %v6081 = vld [vmem:[#allocation13 + $0x5b0] sm:$0xff]
    %v6082 = vld [vmem:[#allocation13 + $0x5b8] sm:$0xff]
    %v6083 = vld [vmem:[#allocation13 + $0x5c0] sm:$0xff]
    %v6084 = vld [vmem:[#allocation13 + $0x5c8] sm:$0xff]
    %v6085 = vld [vmem:[#allocation13 + $0x5d0] sm:$0xff]
    %v6086 = vld [vmem:[#allocation13 + $0x5d8] sm:$0xff]
    %v6087 = vld [vmem:[#allocation13 + $0x5e0] sm:$0xff]
    %v6088 = vld [vmem:[#allocation13 + $0x5e8] sm:$0xff]
    %v6089 = vld [vmem:[#allocation13 + $0x5f0] sm:$0xff]
    %v6090 = vld [vmem:[#allocation13 + $0x5f8] sm:$0xff]
    %v6091 = vld [vmem:[#allocation13 + $0x600] sm:$0xff]
    %v6092 = vld [vmem:[#allocation13 + $0x608] sm:$0xff]
    %v6093 = vld [vmem:[#allocation13 + $0x610] sm:$0xff]
    %v6094 = vld [vmem:[#allocation13 + $0x618] sm:$0xff]
    %v6095 = vld [vmem:[#allocation13 + $0x620] sm:$0xff]
    %v6096 = vld [vmem:[#allocation13 + $0x628] sm:$0xff]
    %v6097 = vld [vmem:[#allocation13 + $0x630] sm:$0xff]
    %v6098 = vld [vmem:[#allocation13 + $0x638] sm:$0xff]
    %v6099 = vld [vmem:[#allocation13 + $0x640] sm:$0xff]
    %v6100 = vld [vmem:[#allocation13 + $0x648] sm:$0xff]
    %v6101 = vld [vmem:[#allocation13 + $0x650] sm:$0xff]
    %v6102 = vld [vmem:[#allocation13 + $0x658] sm:$0xff]
    %v6103 = vld [vmem:[#allocation13 + $0x660] sm:$0xff]
    %v6104 = vld [vmem:[#allocation13 + $0x668] sm:$0xff]
    %v6105 = vld [vmem:[#allocation13 + $0x670] sm:$0xff]
    %v6106 = vld [vmem:[#allocation13 + $0x678] sm:$0xff]
    %v6107 = vld [vmem:[#allocation13 + $0x680] sm:$0xff]
    %v6108 = vld [vmem:[#allocation13 + $0x688] sm:$0xff]
    %v6109 = vld [vmem:[#allocation13 + $0x690] sm:$0xff]
    %v6110 = vld [vmem:[#allocation13 + $0x698] sm:$0xff]
    %v6111 = vld [vmem:[#allocation13 + $0x6a0] sm:$0xff]
    %v6112 = vld [vmem:[#allocation13 + $0x6a8] sm:$0xff]
    %v6113 = vld [vmem:[#allocation13 + $0x6b0] sm:$0xff]
    %v6114 = vld [vmem:[#allocation13 + $0x6b8] sm:$0xff]
    %v6115 = vld [vmem:[#allocation13 + $0x6c0] sm:$0xff]
    %v6116 = vld [vmem:[#allocation13 + $0x6c8] sm:$0xff]
    %v6117 = vld [vmem:[#allocation13 + $0x6d0] sm:$0xff]
    %v6118 = vld [vmem:[#allocation13 + $0x6d8] sm:$0xff]
    %v6119 = vld [vmem:[#allocation13 + $0x6e0] sm:$0xff]
    %v6120 = vld [vmem:[#allocation13 + $0x6e8] sm:$0xff]
    %v6121 = vld [vmem:[#allocation13 + $0x6f0] sm:$0xff]
    %v6122 = vld [vmem:[#allocation13 + $0x6f8] sm:$0xff]
    %v6123 = vld [vmem:[#allocation13 + $0x700] sm:$0xff]
    %v6124 = vld [vmem:[#allocation13 + $0x708] sm:$0xff]
    %v6125 = vld [vmem:[#allocation13 + $0x710] sm:$0xff]
    %v6126 = vld [vmem:[#allocation13 + $0x718] sm:$0xff]
    %v6127 = vld [vmem:[#allocation13 + $0x720] sm:$0xff]
    %v6128 = vld [vmem:[#allocation13 + $0x728] sm:$0xff]
    %v6129 = vld [vmem:[#allocation13 + $0x730] sm:$0xff]
    %v6130 = vld [vmem:[#allocation13 + $0x738] sm:$0xff]
    %v6131 = vld [vmem:[#allocation13 + $0x740] sm:$0xff]
    %v6132 = vld [vmem:[#allocation13 + $0x748] sm:$0xff]
    %v6133 = vld [vmem:[#allocation13 + $0x750] sm:$0xff]
    %v6134 = vld [vmem:[#allocation13 + $0x758] sm:$0xff]
    %v6135 = vld [vmem:[#allocation13 + $0x760] sm:$0xff]
    %v6136 = vld [vmem:[#allocation13 + $0x768] sm:$0xff]
    %v6137 = vld [vmem:[#allocation13 + $0x770] sm:$0xff]
    %v6138 = vld [vmem:[#allocation13 + $0x778] sm:$0xff]
    %v6139 = vld [vmem:[#allocation13 + $0x780] sm:$0xff]
    %v6140 = vld [vmem:[#allocation13 + $0x788] sm:$0xff]
    %v6141 = vld [vmem:[#allocation13 + $0x790] sm:$0xff]
    %v6142 = vld [vmem:[#allocation13 + $0x798] sm:$0xff]
    %v6143 = vld [vmem:[#allocation13 + $0x7a0] sm:$0xff]
    %v6144 = vld [vmem:[#allocation13 + $0x7a8] sm:$0xff]
    %v6145 = vld [vmem:[#allocation13 + $0x7b0] sm:$0xff]
    %v6146 = vld [vmem:[#allocation13 + $0x7b8] sm:$0xff]
    %v6147 = vld [vmem:[#allocation13 + $0x7c0] sm:$0xff]
    %v6148 = vld [vmem:[#allocation13 + $0x7c8] sm:$0xff]
    %v6149 = vld [vmem:[#allocation13 + $0x7d0] sm:$0xff]
    %v6150 = vld [vmem:[#allocation13 + $0x7d8] sm:$0xff]
    %v6151 = vld [vmem:[#allocation13 + $0x7e0] sm:$0xff]
    %v6152 = vld [vmem:[#allocation13 + $0x7e8] sm:$0xff]
    %v6153 = vld [vmem:[#allocation13 + $0x7f0] sm:$0xff]
    %v6154 = vld [vmem:[#allocation13 + $0x7f8] sm:$0xff]
    %v6155 = vld [vmem:[#allocation13 + $0x800] sm:$0xff]
    %v6156 = vld [vmem:[#allocation13 + $0x808] sm:$0xff]
    %v6157 = vld [vmem:[#allocation13 + $0x810] sm:$0xff]
    %v6158 = vld [vmem:[#allocation13 + $0x818] sm:$0xff]
    %v6159 = vld [vmem:[#allocation13 + $0x820] sm:$0xff]
    %v6160 = vld [vmem:[#allocation13 + $0x828] sm:$0xff]
    %v6161 = vld [vmem:[#allocation13 + $0x830] sm:$0xff]
    %v6162 = vld [vmem:[#allocation13 + $0x838] sm:$0xff]
    %v6163 = vld [vmem:[#allocation13 + $0x840] sm:$0xff]
    %v6164 = vld [vmem:[#allocation13 + $0x848] sm:$0xff]
    %v6165 = vld [vmem:[#allocation13 + $0x850] sm:$0xff]
    %v6166 = vld [vmem:[#allocation13 + $0x858] sm:$0xff]
    %v6167 = vld [vmem:[#allocation13 + $0x860] sm:$0xff]
    %v6168 = vld [vmem:[#allocation13 + $0x868] sm:$0xff]
    %v6169 = vld [vmem:[#allocation13 + $0x870] sm:$0xff]
    %v6170 = vld [vmem:[#allocation13 + $0x878] sm:$0xff]
    %v6171 = vld [vmem:[#allocation13 + $0x880] sm:$0xff]
    %v6172 = vld [vmem:[#allocation13 + $0x888] sm:$0xff]
    %v6173 = vld [vmem:[#allocation13 + $0x890] sm:$0xff]
    %v6174 = vld [vmem:[#allocation13 + $0x898] sm:$0xff]
    %v6175 = vld [vmem:[#allocation13 + $0x8a0] sm:$0xff]
    %v6176 = vld [vmem:[#allocation13 + $0x8a8] sm:$0xff]
    %v6177 = vld [vmem:[#allocation13 + $0x8b0] sm:$0xff]
    %v6178 = vld [vmem:[#allocation13 + $0x8b8] sm:$0xff]
    %v6179 = vld [vmem:[#allocation13 + $0x8c0] sm:$0xff]
    %v6180 = vld [vmem:[#allocation13 + $0x8c8] sm:$0xff]
    %v6181 = vld [vmem:[#allocation13 + $0x8d0] sm:$0xff]
    %v6182 = vld [vmem:[#allocation13 + $0x8d8] sm:$0xff]
    %v6183 = vld [vmem:[#allocation13 + $0x8e0] sm:$0xff]
    %v6184 = vld [vmem:[#allocation13 + $0x8e8] sm:$0xff]
    %v6185 = vld [vmem:[#allocation13 + $0x8f0] sm:$0xff]
    %v6186 = vld [vmem:[#allocation13 + $0x8f8] sm:$0xff]
    %v6187 = vld [vmem:[#allocation13 + $0x900] sm:$0xff]
    %v6188 = vld [vmem:[#allocation13 + $0x908] sm:$0xff]
    %v6189 = vld [vmem:[#allocation13 + $0x910] sm:$0xff]
    %v6190 = vld [vmem:[#allocation13 + $0x918] sm:$0xff]
    %v6191 = vld [vmem:[#allocation13 + $0x920] sm:$0xff]
    %v6192 = vld [vmem:[#allocation13 + $0x928] sm:$0xff]
    %v6193 = vld [vmem:[#allocation13 + $0x930] sm:$0xff]
    %v6194 = vld [vmem:[#allocation13 + $0x938] sm:$0xff]
    %v6195 = vld [vmem:[#allocation13 + $0x940] sm:$0xff]
    %v6196 = vld [vmem:[#allocation13 + $0x948] sm:$0xff]
    %v6197 = vld [vmem:[#allocation13 + $0x950] sm:$0xff]
    %v6198 = vld [vmem:[#allocation13 + $0x958] sm:$0xff]
    %v6199 = vld [vmem:[#allocation13 + $0x960] sm:$0xff]
    %v6200 = vld [vmem:[#allocation13 + $0x968] sm:$0xff]
    %v6201 = vld [vmem:[#allocation13 + $0x970] sm:$0xff]
    %v6202 = vld [vmem:[#allocation13 + $0x978] sm:$0xff]
    %v6203 = vld [vmem:[#allocation13 + $0x980] sm:$0xff]
    %v6204 = vld [vmem:[#allocation13 + $0x988] sm:$0xff]
    %v6205 = vld [vmem:[#allocation13 + $0x990] sm:$0xff]
    %v6206 = vld [vmem:[#allocation13 + $0x998] sm:$0xff]
    %v6207 = vld [vmem:[#allocation13 + $0x9a0] sm:$0xff]
    %v6208 = vld [vmem:[#allocation13 + $0x9a8] sm:$0xff]
    %v6209 = vld [vmem:[#allocation13 + $0x9b0] sm:$0xff]
    %v6210 = vld [vmem:[#allocation13 + $0x9b8] sm:$0xff]
    %v6211 = vld [vmem:[#allocation13 + $0x9c0] sm:$0xff]
    %v6212 = vld [vmem:[#allocation13 + $0x9c8] sm:$0xff]
    %v6213 = vld [vmem:[#allocation13 + $0x9d0] sm:$0xff]
    %v6214 = vld [vmem:[#allocation13 + $0x9d8] sm:$0xff]
    %v6215 = vld [vmem:[#allocation13 + $0x9e0] sm:$0xff]
    %v6216 = vld [vmem:[#allocation13 + $0x9e8] sm:$0xff]
    %v6217 = vld [vmem:[#allocation13 + $0x9f0] sm:$0xff]
    %v6218 = vld [vmem:[#allocation13 + $0x9f8] sm:$0xff]
    %v6219 = vld [vmem:[#allocation13 + $0xa00] sm:$0xff]
    %v6220 = vld [vmem:[#allocation13 + $0xa08] sm:$0xff]
    %v6221 = vld [vmem:[#allocation13 + $0xa10] sm:$0xff]
    %v6222 = vld [vmem:[#allocation13 + $0xa18] sm:$0xff]
    %v6223 = vld [vmem:[#allocation13 + $0xa20] sm:$0xff]
    %v6224 = vld [vmem:[#allocation13 + $0xa28] sm:$0xff]
    %v6225 = vld [vmem:[#allocation13 + $0xa30] sm:$0xff]
    %v6226 = vld [vmem:[#allocation13 + $0xa38] sm:$0xff]
    %v6227 = vld [vmem:[#allocation13 + $0xa40] sm:$0xff]
    %v6228 = vld [vmem:[#allocation13 + $0xa48] sm:$0xff]
    %v6229 = vld [vmem:[#allocation13 + $0xa50] sm:$0xff]
    %v6230 = vld [vmem:[#allocation13 + $0xa58] sm:$0xff]
    %v6231 = vld [vmem:[#allocation13 + $0xa60] sm:$0xff]
    %v6232 = vld [vmem:[#allocation13 + $0xa68] sm:$0xff]
    %v6233 = vld [vmem:[#allocation13 + $0xa70] sm:$0xff]
    %v6234 = vld [vmem:[#allocation13 + $0xa78] sm:$0xff]
    %v6235 = vld [vmem:[#allocation13 + $0xa80] sm:$0xff]
    %v6236 = vld [vmem:[#allocation13 + $0xa88] sm:$0xff]
    %v6237 = vld [vmem:[#allocation13 + $0xa90] sm:$0xff]
    %v6238 = vld [vmem:[#allocation13 + $0xa98] sm:$0xff]
    %v6239 = vld [vmem:[#allocation13 + $0xaa0] sm:$0xff]
    %v6240 = vld [vmem:[#allocation13 + $0xaa8] sm:$0xff]
    %v6241 = vld [vmem:[#allocation13 + $0xab0] sm:$0xff]
    %v6242 = vld [vmem:[#allocation13 + $0xab8] sm:$0xff]
    %v6243 = vld [vmem:[#allocation13 + $0xac0] sm:$0xff]
    %v6244 = vld [vmem:[#allocation13 + $0xac8] sm:$0xff]
    %v6245 = vld [vmem:[#allocation13 + $0xad0] sm:$0xff]
    %v6246 = vld [vmem:[#allocation13 + $0xad8] sm:$0xff]
    %v6247 = vld [vmem:[#allocation13 + $0xae0] sm:$0xff]
    %v6248 = vld [vmem:[#allocation13 + $0xae8] sm:$0xff]
    %v6249 = vld [vmem:[#allocation13 + $0xaf0] sm:$0xff]
    %v6250 = vld [vmem:[#allocation13 + $0xaf8] sm:$0xff]
    %v6251 = vld [vmem:[#allocation13 + $0xb00] sm:$0xff]
    %v6252 = vld [vmem:[#allocation13 + $0xb08] sm:$0xff]
    %v6253 = vld [vmem:[#allocation13 + $0xb10] sm:$0xff]
    %v6254 = vld [vmem:[#allocation13 + $0xb18] sm:$0xff]
    %v6255 = vld [vmem:[#allocation13 + $0xb20] sm:$0xff]
    %v6256 = vld [vmem:[#allocation13 + $0xb28] sm:$0xff]
    %v6257 = vld [vmem:[#allocation13 + $0xb30] sm:$0xff]
    %v6258 = vld [vmem:[#allocation13 + $0xb38] sm:$0xff]
    %v6259 = vld [vmem:[#allocation13 + $0xb40] sm:$0xff]
    %v6260 = vld [vmem:[#allocation13 + $0xb48] sm:$0xff]
    %v6261 = vld [vmem:[#allocation13 + $0xb50] sm:$0xff]
    %v6262 = vld [vmem:[#allocation13 + $0xb58] sm:$0xff]
    %v6263 = vld [vmem:[#allocation13 + $0xb60] sm:$0xff]
    %v6264 = vld [vmem:[#allocation13 + $0xb68] sm:$0xff]
    %v6265 = vld [vmem:[#allocation13 + $0xb70] sm:$0xff]
    %v6266 = vld [vmem:[#allocation13 + $0xb78] sm:$0xff]
    %v6267 = vld [vmem:[#allocation13 + $0xb80] sm:$0xff]
    %v6268 = vld [vmem:[#allocation13 + $0xb88] sm:$0xff]
    %v6269 = vld [vmem:[#allocation13 + $0xb90] sm:$0xff]
    %v6270 = vld [vmem:[#allocation13 + $0xb98] sm:$0xff]
    %v6271 = vld [vmem:[#allocation13 + $0xba0] sm:$0xff]
    %v6272 = vld [vmem:[#allocation13 + $0xba8] sm:$0xff]
    %v6273 = vld [vmem:[#allocation13 + $0xbb0] sm:$0xff]
    %v6274 = vld [vmem:[#allocation13 + $0xbb8] sm:$0xff]
    %v6275 = vld [vmem:[#allocation13 + $0xbc0] sm:$0xff]
    %v6276 = vld [vmem:[#allocation13 + $0xbc8] sm:$0xff]
    %v6277 = vld [vmem:[#allocation13 + $0xbd0] sm:$0xff]
    %v6278 = vld [vmem:[#allocation13 + $0xbd8] sm:$0xff]
    %v6279 = vld [vmem:[#allocation13 + $0xbe0] sm:$0xff]
    %v6280 = vld [vmem:[#allocation13 + $0xbe8] sm:$0xff]
    %v6281 = vld [vmem:[#allocation13 + $0xbf0] sm:$0xff]
    %v6282 = vld [vmem:[#allocation13 + $0xbf8] sm:$0xff]
    %v6283 = vld [vmem:[#allocation13 + $0xc00] sm:$0xff]
    %v6284 = vld [vmem:[#allocation13 + $0xc08] sm:$0xff]
    %v6285 = vld [vmem:[#allocation13 + $0xc10] sm:$0xff]
    %v6286 = vld [vmem:[#allocation13 + $0xc18] sm:$0xff]
    %v6287 = vld [vmem:[#allocation13 + $0xc20] sm:$0xff]
    %v6288 = vld [vmem:[#allocation13 + $0xc28] sm:$0xff]
    %v6289 = vld [vmem:[#allocation13 + $0xc30] sm:$0xff]
    %v6290 = vld [vmem:[#allocation13 + $0xc38] sm:$0xff]
    %v6291 = vld [vmem:[#allocation13 + $0xc40] sm:$0xff]
    %v6292 = vld [vmem:[#allocation13 + $0xc48] sm:$0xff]
    %v6293 = vld [vmem:[#allocation13 + $0xc50] sm:$0xff]
    %v6294 = vld [vmem:[#allocation13 + $0xc58] sm:$0xff]
    %v6295 = vld [vmem:[#allocation13 + $0xc60] sm:$0xff]
    %v6296 = vld [vmem:[#allocation13 + $0xc68] sm:$0xff]
    %v6297 = vld [vmem:[#allocation13 + $0xc70] sm:$0xff]
    %v6298 = vld [vmem:[#allocation13 + $0xc78] sm:$0xff]
    %v6299 = vld [vmem:[#allocation13 + $0xc80] sm:$0xff]
    %v6300 = vld [vmem:[#allocation13 + $0xc88] sm:$0xff]
    %v6301 = vld [vmem:[#allocation13 + $0xc90] sm:$0xff]
    %v6302 = vld [vmem:[#allocation13 + $0xc98] sm:$0xff]
    %v6303 = vld [vmem:[#allocation13 + $0xca0] sm:$0xff]
    %v6304 = vld [vmem:[#allocation13 + $0xca8] sm:$0xff]
    %v6305 = vld [vmem:[#allocation13 + $0xcb0] sm:$0xff]
    %v6306 = vld [vmem:[#allocation13 + $0xcb8] sm:$0xff]
    %v6307 = vld [vmem:[#allocation13 + $0xcc0] sm:$0xff]
    %v6308 = vld [vmem:[#allocation13 + $0xcc8] sm:$0xff]
    %v6309 = vld [vmem:[#allocation13 + $0xcd0] sm:$0xff]
    %v6310 = vld [vmem:[#allocation13 + $0xcd8] sm:$0xff]
    %v6311 = vld [vmem:[#allocation13 + $0xce0] sm:$0xff]
    %v6312 = vld [vmem:[#allocation13 + $0xce8] sm:$0xff]
    %v6313 = vld [vmem:[#allocation13 + $0xcf0] sm:$0xff]
    %v6314 = vld [vmem:[#allocation13 + $0xcf8] sm:$0xff]
    %v6315 = vld [vmem:[#allocation13 + $0xd00] sm:$0xff]
    %v6316 = vld [vmem:[#allocation13 + $0xd08] sm:$0xff]
    %v6317 = vld [vmem:[#allocation13 + $0xd10] sm:$0xff]
    %v6318 = vld [vmem:[#allocation13 + $0xd18] sm:$0xff]
    %v6319 = vld [vmem:[#allocation13 + $0xd20] sm:$0xff]
    %v6320 = vld [vmem:[#allocation13 + $0xd28] sm:$0xff]
    %v6321 = vld [vmem:[#allocation13 + $0xd30] sm:$0xff]
    %v6322 = vld [vmem:[#allocation13 + $0xd38] sm:$0xff]
    %v6323 = vld [vmem:[#allocation13 + $0xd40] sm:$0xff]
    %v6324 = vld [vmem:[#allocation13 + $0xd48] sm:$0xff]
    %v6325 = vld [vmem:[#allocation13 + $0xd50] sm:$0xff]
    %v6326 = vld [vmem:[#allocation13 + $0xd58] sm:$0xff]
    %v6327 = vld [vmem:[#allocation13 + $0xd60] sm:$0xff]
    %v6328 = vld [vmem:[#allocation13 + $0xd68] sm:$0xff]
    %v6329 = vld [vmem:[#allocation13 + $0xd70] sm:$0xff]
    %v6330 = vld [vmem:[#allocation13 + $0xd78] sm:$0xff]
    %v6331 = vld [vmem:[#allocation13 + $0xd80] sm:$0xff]
    %v6332 = vld [vmem:[#allocation13 + $0xd88] sm:$0xff]
    %v6333 = vld [vmem:[#allocation13 + $0xd90] sm:$0xff]
    %v6334 = vld [vmem:[#allocation13 + $0xd98] sm:$0xff]
    %v6335 = vld [vmem:[#allocation13 + $0xda0] sm:$0xff]
    %v6336 = vld [vmem:[#allocation13 + $0xda8] sm:$0xff]
    %v6337 = vld [vmem:[#allocation13 + $0xdb0] sm:$0xff]
    %v6338 = vld [vmem:[#allocation13 + $0xdb8] sm:$0xff]
    %v6339 = vld [vmem:[#allocation13 + $0xdc0] sm:$0xff]
    %v6340 = vld [vmem:[#allocation13 + $0xdc8] sm:$0xff]
    %v6341 = vld [vmem:[#allocation13 + $0xdd0] sm:$0xff]
    %v6342 = vld [vmem:[#allocation13 + $0xdd8] sm:$0xff]
    %v6343 = vld [vmem:[#allocation13 + $0xde0] sm:$0xff]
    %v6344 = vld [vmem:[#allocation13 + $0xde8] sm:$0xff]
    %v6345 = vld [vmem:[#allocation13 + $0xdf0] sm:$0xff]
    %v6346 = vld [vmem:[#allocation13 + $0xdf8] sm:$0xff]
    %v6347 = vld [vmem:[#allocation13 + $0xe00] sm:$0xff]
    %v6348 = vld [vmem:[#allocation13 + $0xe08] sm:$0xff]
    %v6349 = vld [vmem:[#allocation13 + $0xe10] sm:$0xff]
    %v6350 = vld [vmem:[#allocation13 + $0xe18] sm:$0xff]
    %v6351 = vld [vmem:[#allocation13 + $0xe20] sm:$0xff]
    %v6352 = vld [vmem:[#allocation13 + $0xe28] sm:$0xff]
    %v6353 = vld [vmem:[#allocation13 + $0xe30] sm:$0xff]
    %v6354 = vld [vmem:[#allocation13 + $0xe38] sm:$0xff]
    %v6355 = vld [vmem:[#allocation13 + $0xe40] sm:$0xff]
    %v6356 = vld [vmem:[#allocation13 + $0xe48] sm:$0xff]
    %v6357 = vld [vmem:[#allocation13 + $0xe50] sm:$0xff]
    %v6358 = vld [vmem:[#allocation13 + $0xe58] sm:$0xff]
    %v6359 = vld [vmem:[#allocation13 + $0xe60] sm:$0xff]
    %v6360 = vld [vmem:[#allocation13 + $0xe68] sm:$0xff]
    %v6361 = vld [vmem:[#allocation13 + $0xe70] sm:$0xff]
    %v6362 = vld [vmem:[#allocation13 + $0xe78] sm:$0xff]
    %v6363 = vld [vmem:[#allocation13 + $0xe80] sm:$0xff]
    %v6364 = vld [vmem:[#allocation13 + $0xe88] sm:$0xff]
    %v6365 = vld [vmem:[#allocation13 + $0xe90] sm:$0xff]
    %v6366 = vld [vmem:[#allocation13 + $0xe98] sm:$0xff]
    %v6367 = vld [vmem:[#allocation13 + $0xea0] sm:$0xff]
    %v6368 = vld [vmem:[#allocation13 + $0xea8] sm:$0xff]
    %v6369 = vld [vmem:[#allocation13 + $0xeb0] sm:$0xff]
    %v6370 = vld [vmem:[#allocation13 + $0xeb8] sm:$0xff]
    %v6371 = vld [vmem:[#allocation13 + $0xec0] sm:$0xff]
    %v6372 = vld [vmem:[#allocation13 + $0xec8] sm:$0xff]
    %v6373 = vld [vmem:[#allocation13 + $0xed0] sm:$0xff]
    %v6374 = vld [vmem:[#allocation13 + $0xed8] sm:$0xff]
    %v6375 = vld [vmem:[#allocation13 + $0xee0] sm:$0xff]
    %v6376 = vld [vmem:[#allocation13 + $0xee8] sm:$0xff]
    %v6377 = vld [vmem:[#allocation13 + $0xef0] sm:$0xff]
    %v6378 = vld [vmem:[#allocation13 + $0xef8] sm:$0xff]
    %v6379 = vld [vmem:[#allocation13 + $0xf00] sm:$0xff]
    %v6380 = vld [vmem:[#allocation13 + $0xf08] sm:$0xff]
    %v6381 = vld [vmem:[#allocation13 + $0xf10] sm:$0xff]
    %v6382 = vld [vmem:[#allocation13 + $0xf18] sm:$0xff]
    %v6383 = vld [vmem:[#allocation13 + $0xf20] sm:$0xff]
    %v6384 = vld [vmem:[#allocation13 + $0xf28] sm:$0xff]
    %v6385 = vld [vmem:[#allocation13 + $0xf30] sm:$0xff]
    %v6386 = vld [vmem:[#allocation13 + $0xf38] sm:$0xff]
    %v6387 = vld [vmem:[#allocation13 + $0xf40] sm:$0xff]
    %v6388 = vld [vmem:[#allocation13 + $0xf48] sm:$0xff]
    %v6389 = vld [vmem:[#allocation13 + $0xf50] sm:$0xff]
    %v6390 = vld [vmem:[#allocation13 + $0xf58] sm:$0xff]
    %v6391 = vld [vmem:[#allocation13 + $0xf60] sm:$0xff]
    %v6392 = vld [vmem:[#allocation13 + $0xf68] sm:$0xff]
    %v6393 = vld [vmem:[#allocation13 + $0xf70] sm:$0xff]
    %v6394 = vld [vmem:[#allocation13 + $0xf78] sm:$0xff]
    %v6395 = vld [vmem:[#allocation13 + $0xf80] sm:$0xff]
    %v6396 = vld [vmem:[#allocation13 + $0xf88] sm:$0xff]
    %v6397 = vld [vmem:[#allocation13 + $0xf90] sm:$0xff]
    %v6398 = vld [vmem:[#allocation13 + $0xf98] sm:$0xff]
    %v6399 = vld [vmem:[#allocation13 + $0xfa0] sm:$0xff]
    %v6400 = vld [vmem:[#allocation13 + $0xfa8] sm:$0xff]
    %v6401 = vld [vmem:[#allocation13 + $0xfb0] sm:$0xff]
    %v6402 = vld [vmem:[#allocation13 + $0xfb8] sm:$0xff]
    %v6403 = vld [vmem:[#allocation13 + $0xfc0] sm:$0xff]
    %v6404 = vld [vmem:[#allocation13 + $0xfc8] sm:$0xff]
    %v6405 = vld [vmem:[#allocation13 + $0xfd0] sm:$0xff]
    %v6406 = vld [vmem:[#allocation13 + $0xfd8] sm:$0xff]
    %v6407 = vld [vmem:[#allocation13 + $0xfe0] sm:$0xff]
    %v6408 = vld [vmem:[#allocation13 + $0xfe8] sm:$0xff]
    %v6409 = vld [vmem:[#allocation13 + $0xff0] sm:$0xff]
    %v6410 = vld [vmem:[#allocation13 + $0xff8] sm:$0xff]
    %v6411 = vpack.c.bf16 %v5883, %v5883
    %v6412 = vpack.c.bf16 %v5884, %v5884
    %v6445 = vunpack.c.l.b16 %v5931
    %v6446 = vunpack.c.h.b16 %v5931
    %v6447 = vunpack.c.l.b16 %v5932
    %v6448 = vunpack.c.h.b16 %v5932
    %v6449 = vunpack.c.l.b16 %v5933
    %v6450 = vunpack.c.h.b16 %v5933
    %v6451 = vunpack.c.l.b16 %v5934
    %v6452 = vunpack.c.h.b16 %v5934
    %v6453 = vunpack.c.l.b16 %v5935
    %v6454 = vunpack.c.h.b16 %v5935
    %v6455 = vunpack.c.l.b16 %v5936
    %v6456 = vunpack.c.h.b16 %v5936
    %v6457 = vunpack.c.l.b16 %v5937
    %v6458 = vunpack.c.h.b16 %v5937
    %v6459 = vunpack.c.l.b16 %v5938
    %v6460 = vunpack.c.h.b16 %v5938
    %v6461 = vunpack.c.l.b16 %v5939
    %v6462 = vunpack.c.h.b16 %v5939
    %v6463 = vunpack.c.l.b16 %v5940
    %v6464 = vunpack.c.h.b16 %v5940
    %v6465 = vunpack.c.l.b16 %v5941
    %v6466 = vunpack.c.h.b16 %v5941
    %v6467 = vunpack.c.l.b16 %v5942
    %v6468 = vunpack.c.h.b16 %v5942
    %v6469 = vunpack.c.l.b16 %v5943
    %v6470 = vunpack.c.h.b16 %v5943
    %v6471 = vunpack.c.l.b16 %v5944
    %v6472 = vunpack.c.h.b16 %v5944
    %v6473 = vunpack.c.l.b16 %v5945
    %v6474 = vunpack.c.h.b16 %v5945
    %v6475 = vunpack.c.l.b16 %v5946
    %v6476 = vunpack.c.h.b16 %v5946
    %v6477 = vunpack.c.l.b16 %v5947
    %v6478 = vunpack.c.h.b16 %v5947
    %v6479 = vunpack.c.l.b16 %v5948
    %v6480 = vunpack.c.h.b16 %v5948
    %v6481 = vunpack.c.l.b16 %v5949
    %v6482 = vunpack.c.h.b16 %v5949
    %v6483 = vunpack.c.l.b16 %v5950
    %v6484 = vunpack.c.h.b16 %v5950
    %v6485 = vunpack.c.l.b16 %v5951
    %v6486 = vunpack.c.h.b16 %v5951
    %v6487 = vunpack.c.l.b16 %v5952
    %v6488 = vunpack.c.h.b16 %v5952
    %v6489 = vunpack.c.l.b16 %v5953
    %v6490 = vunpack.c.h.b16 %v5953
    %v6491 = vunpack.c.l.b16 %v5954
    %v6492 = vunpack.c.h.b16 %v5954
    %v6493 = vunpack.c.l.b16 %v5955
    %v6494 = vunpack.c.h.b16 %v5955
    %v6495 = vunpack.c.l.b16 %v5956
    %v6496 = vunpack.c.h.b16 %v5956
    %v6497 = vunpack.c.l.b16 %v5957
    %v6498 = vunpack.c.h.b16 %v5957
    %v6499 = vunpack.c.l.b16 %v5958
    %v6500 = vunpack.c.h.b16 %v5958
    %v6501 = vunpack.c.l.b16 %v5959
    %v6502 = vunpack.c.h.b16 %v5959
    %v6503 = vunpack.c.l.b16 %v5960
    %v6504 = vunpack.c.h.b16 %v5960
    %v6505 = vunpack.c.l.b16 %v5961
    %v6506 = vunpack.c.h.b16 %v5961
    %v6507 = vunpack.c.l.b16 %v5962
    %v6508 = vunpack.c.h.b16 %v5962
    %v6509 = vpack.c.b16 %v6453, %v6445
    %v6510 = vpack.c.b16 %v6454, %v6446
    %v6511 = vpack.c.b16 %v6455, %v6447
    %v6512 = vpack.c.b16 %v6456, %v6448
    %v6513 = vpack.c.b16 %v6457, %v6449
    %v6514 = vpack.c.b16 %v6458, %v6450
    %v6515 = vpack.c.b16 %v6459, %v6451
    %v6516 = vpack.c.b16 %v6460, %v6452
    %v6517 = vpack.c.b16 %v6469, %v6461
    %v6518 = vpack.c.b16 %v6470, %v6462
    %v6519 = vpack.c.b16 %v6471, %v6463
    %v6520 = vpack.c.b16 %v6472, %v6464
    %v6521 = vpack.c.b16 %v6473, %v6465
    %v6522 = vpack.c.b16 %v6474, %v6466
    %v6523 = vpack.c.b16 %v6475, %v6467
    %v6524 = vpack.c.b16 %v6476, %v6468
    %v6525 = vpack.c.b16 %v6485, %v6477
    %v6526 = vpack.c.b16 %v6486, %v6478
    %v6527 = vpack.c.b16 %v6487, %v6479
    %v6528 = vpack.c.b16 %v6488, %v6480
    %v6529 = vpack.c.b16 %v6489, %v6481
    %v6530 = vpack.c.b16 %v6490, %v6482
    %v6531 = vpack.c.b16 %v6491, %v6483
    %v6532 = vpack.c.b16 %v6492, %v6484
    %v6533 = vpack.c.b16 %v6501, %v6493
    %v6534 = vpack.c.b16 %v6502, %v6494
    %v6535 = vpack.c.b16 %v6503, %v6495
    %v6536 = vpack.c.b16 %v6504, %v6496
    %v6537 = vpack.c.b16 %v6505, %v6497
    %v6538 = vpack.c.b16 %v6506, %v6498
    %v6539 = vpack.c.b16 %v6507, %v6499
    %v6540 = vpack.c.b16 %v6508, %v6500
    %v6574 = vsel %vm2168, %v6412, 0
    %6576 = vmatprep.subr.bf16.mxu0 0
    %6577 = vmatpush1.bf16.msra.mxu0 0
    %6578 = vmatprep.subr.bf16.mxu0 0
    %6579 = vmatpush1.bf16.msra.mxu0 0
    %6580 = vmatprep.subr.bf16.mxu0 0
    %6581 = vmatpush1.bf16.msra.mxu0 0
    %6582 = vmatprep.subr.bf16.mxu0 0
    %6583 = vmatpush1.bf16.msra.mxu0 0
    %6584 = vmatprep.subr.bf16.mxu0 %v6534
    %6585 = vmatpush1.bf16.msra.mxu0 %v6533
    %6586 = vmatprep.subr.bf16.mxu0 %v6526
    %6587 = vmatpush1.bf16.msra.mxu0 %v6525
    %6588 = vmatprep.subr.bf16.mxu0 %v6518
    %6589 = vmatpush1.bf16.msra.mxu0 %v6517
    %6590 = vmatprep.subr.bf16.mxu0 %v6510
    %6591 = vmatpush1.bf16.msra.mxu0 %v6509
    %6592 = vmatprep.subr.bf16.mxu0 0
    %6593 = vmatpush2.bf16.msra.mxu0 0
    %6594 = vmatprep.subr.bf16.mxu0 0
    %6595 = vmatpush2.bf16.msra.mxu0 0
    %6596 = vmatprep.subr.bf16.mxu0 0
    %6597 = vmatpush2.bf16.msra.mxu0 0
    %6598 = vmatprep.subr.bf16.mxu0 0
    %6599 = vmatpush2.bf16.msra.mxu0 0
    %6600 = vmatprep.subr.bf16.mxu0 0
    %6601 = vmatpush2.bf16.msra.mxu0 0
    %6602 = vmatprep.subr.bf16.mxu0 0
    %6603 = vmatpush2.bf16.msra.mxu0 0
    %6604 = vmatprep.subr.bf16.mxu0 0
    %6605 = vmatpush2.bf16.msra.mxu0 0
    %6606 = vmatprep.subr.bf16.mxu0 0
    %6607 = vmatpush2.bf16.msra.mxu0 0
    %6608 = vmatprep.mubr.bf16.mxu0 0
    %6609 = vmatmul.mubr.bf16.gmra.mxu0 %v6574
    %v6610 = vpop.f32.mrf.mxu0
    %v6611 = vadd.f32 0.0, %v6610
    %v6612 = vpop.f32.mrf.mxu0
    %v6613 = vadd.f32 0.0, %v6612
    %v6614 = vpop.f32.mrf.mxu0
    %v6615 = vpop.f32.mrf.mxu0
    %6616 = vdwg.mxu0
    %6617 = vmatprep.subr.bf16.mxu0 0
    %6618 = vmatpush1.bf16.msra.mxu0 0
    %6619 = vmatprep.subr.bf16.mxu0 0
    %6620 = vmatpush1.bf16.msra.mxu0 0
    %6621 = vmatprep.subr.bf16.mxu0 0
    %6622 = vmatpush1.bf16.msra.mxu0 0
    %6623 = vmatprep.subr.bf16.mxu0 0
    %6624 = vmatpush1.bf16.msra.mxu0 0
    %6625 = vmatprep.subr.bf16.mxu0 %v6536
    %6626 = vmatpush1.bf16.msra.mxu0 %v6535
    %6627 = vmatprep.subr.bf16.mxu0 %v6528
    %6628 = vmatpush1.bf16.msra.mxu0 %v6527
    %6629 = vmatprep.subr.bf16.mxu0 %v6520
    %6630 = vmatpush1.bf16.msra.mxu0 %v6519
    %6631 = vmatprep.subr.bf16.mxu0 %v6512
    %6632 = vmatpush1.bf16.msra.mxu0 %v6511
    %6633 = vmatprep.subr.bf16.mxu0 0
    %6634 = vmatpush2.bf16.msra.mxu0 0
    %6635 = vmatprep.subr.bf16.mxu0 0
    %6636 = vmatpush2.bf16.msra.mxu0 0
    %6637 = vmatprep.subr.bf16.mxu0 0
    %6638 = vmatpush2.bf16.msra.mxu0 0
    %6639 = vmatprep.subr.bf16.mxu0 0
    %6640 = vmatpush2.bf16.msra.mxu0 0
    %6641 = vmatprep.subr.bf16.mxu0 0
    %6642 = vmatpush2.bf16.msra.mxu0 0
    %6643 = vmatprep.subr.bf16.mxu0 0
    %6644 = vmatpush2.bf16.msra.mxu0 0
    %6645 = vmatprep.subr.bf16.mxu0 0
    %6646 = vmatpush2.bf16.msra.mxu0 0
    %6647 = vmatprep.subr.bf16.mxu0 0
    %6648 = vmatpush2.bf16.msra.mxu0 0
    %6649 = vmatprep.mubr.bf16.mxu0 0
    %6650 = vmatmul.mubr.bf16.gmra.mxu0 %v6574
    %v6651 = vpop.f32.mrf.mxu0
    %v6652 = vadd.f32 0.0, %v6651
    %v6653 = vpop.f32.mrf.mxu0
    %v6654 = vadd.f32 0.0, %v6653
    %v6655 = vpop.f32.mrf.mxu0
    %v6656 = vpop.f32.mrf.mxu0
    %6657 = vdwg.mxu0
    %6658 = vmatprep.subr.bf16.mxu0 0
    %6659 = vmatpush1.bf16.msra.mxu0 0
    %6660 = vmatprep.subr.bf16.mxu0 0
    %6661 = vmatpush1.bf16.msra.mxu0 0
    %6662 = vmatprep.subr.bf16.mxu0 0
    %6663 = vmatpush1.bf16.msra.mxu0 0
    %6664 = vmatprep.subr.bf16.mxu0 0
    %6665 = vmatpush1.bf16.msra.mxu0 0
    %6666 = vmatprep.subr.bf16.mxu0 %v6538
    %6667 = vmatpush1.bf16.msra.mxu0 %v6537
    %6668 = vmatprep.subr.bf16.mxu0 %v6530
    %6669 = vmatpush1.bf16.msra.mxu0 %v6529
    %6670 = vmatprep.subr.bf16.mxu0 %v6522
    %6671 = vmatpush1.bf16.msra.mxu0 %v6521
    %6672 = vmatprep.subr.bf16.mxu0 %v6514
    %6673 = vmatpush1.bf16.msra.mxu0 %v6513
    %6674 = vmatprep.subr.bf16.mxu0 0
    %6675 = vmatpush2.bf16.msra.mxu0 0
    %6676 = vmatprep.subr.bf16.mxu0 0
    %6677 = vmatpush2.bf16.msra.mxu0 0
    %6678 = vmatprep.subr.bf16.mxu0 0
    %6679 = vmatpush2.bf16.msra.mxu0 0
    %6680 = vmatprep.subr.bf16.mxu0 0
    %6681 = vmatpush2.bf16.msra.mxu0 0
    %6682 = vmatprep.subr.bf16.mxu0 0
    %6683 = vmatpush2.bf16.msra.mxu0 0
    %6684 = vmatprep.subr.bf16.mxu0 0
    %6685 = vmatpush2.bf16.msra.mxu0 0
    %6686 = vmatprep.subr.bf16.mxu0 0
    %6687 = vmatpush2.bf16.msra.mxu0 0
    %6688 = vmatprep.subr.bf16.mxu0 0
    %6689 = vmatpush2.bf16.msra.mxu0 0
    %6690 = vmatprep.mubr.bf16.mxu0 0
    %6691 = vmatmul.mubr.bf16.gmra.mxu0 %v6574
    %v6692 = vpop.f32.mrf.mxu0
    %v6693 = vadd.f32 0.0, %v6692
    %v6694 = vpop.f32.mrf.mxu0
    %v6695 = vadd.f32 0.0, %v6694
    %v6696 = vpop.f32.mrf.mxu0
    %v6697 = vpop.f32.mrf.mxu0
    %6698 = vdwg.mxu0
    %6699 = vmatprep.subr.bf16.mxu0 0
    %6700 = vmatpush1.bf16.msra.mxu0 0
    %6701 = vmatprep.subr.bf16.mxu0 0
    %6702 = vmatpush1.bf16.msra.mxu0 0
    %6703 = vmatprep.subr.bf16.mxu0 0
    %6704 = vmatpush1.bf16.msra.mxu0 0
    %6705 = vmatprep.subr.bf16.mxu0 0
    %6706 = vmatpush1.bf16.msra.mxu0 0
    %6707 = vmatprep.subr.bf16.mxu0 %v6540
    %6708 = vmatpush1.bf16.msra.mxu0 %v6539
    %6709 = vmatprep.subr.bf16.mxu0 %v6532
    %6710 = vmatpush1.bf16.msra.mxu0 %v6531
    %6711 = vmatprep.subr.bf16.mxu0 %v6524
    %6712 = vmatpush1.bf16.msra.mxu0 %v6523
    %6713 = vmatprep.subr.bf16.mxu0 %v6516
    %6714 = vmatpush1.bf16.msra.mxu0 %v6515
    %6715 = vmatprep.subr.bf16.mxu0 0
    %6716 = vmatpush2.bf16.msra.mxu0 0
    %6717 = vmatprep.subr.bf16.mxu0 0
    %6718 = vmatpush2.bf16.msra.mxu0 0
    %6719 = vmatprep.subr.bf16.mxu0 0
    %6720 = vmatpush2.bf16.msra.mxu0 0
    %6721 = vmatprep.subr.bf16.mxu0 0
    %6722 = vmatpush2.bf16.msra.mxu0 0
    %6723 = vmatprep.subr.bf16.mxu0 0
    %6724 = vmatpush2.bf16.msra.mxu0 0
    %6725 = vmatprep.subr.bf16.mxu0 0
    %6726 = vmatpush2.bf16.msra.mxu0 0
    %6727 = vmatprep.subr.bf16.mxu0 0
    %6728 = vmatpush2.bf16.msra.mxu0 0
    %6729 = vmatprep.subr.bf16.mxu0 0
    %6730 = vmatpush2.bf16.msra.mxu0 0
    %6731 = vmatprep.mubr.bf16.mxu0 0
    %6732 = vmatmul.mubr.bf16.gmra.mxu0 %v6574
    %v6733 = vpop.f32.mrf.mxu0
    %v6734 = vadd.f32 0.0, %v6733
    %v6735 = vpop.f32.mrf.mxu0
    %v6736 = vadd.f32 0.0, %v6735
    %v6737 = vpop.f32.mrf.mxu0
    %v6738 = vpop.f32.mrf.mxu0
    %6739 = vdwg.mxu0
    %v6772 = vunpack.c.l.b16 %v5899
    %v6773 = vunpack.c.h.b16 %v5899
    %v6774 = vunpack.c.l.b16 %v5900
    %v6775 = vunpack.c.h.b16 %v5900
    %v6776 = vunpack.c.l.b16 %v5901
    %v6777 = vunpack.c.h.b16 %v5901
    %v6778 = vunpack.c.l.b16 %v5902
    %v6779 = vunpack.c.h.b16 %v5902
    %v6780 = vunpack.c.l.b16 %v5903
    %v6781 = vunpack.c.h.b16 %v5903
    %v6782 = vunpack.c.l.b16 %v5904
    %v6783 = vunpack.c.h.b16 %v5904
    %v6784 = vunpack.c.l.b16 %v5905
    %v6785 = vunpack.c.h.b16 %v5905
    %v6786 = vunpack.c.l.b16 %v5906
    %v6787 = vunpack.c.h.b16 %v5906
    %v6788 = vunpack.c.l.b16 %v5907
    %v6789 = vunpack.c.h.b16 %v5907
    %v6790 = vunpack.c.l.b16 %v5908
    %v6791 = vunpack.c.h.b16 %v5908
    %v6792 = vunpack.c.l.b16 %v5909
    %v6793 = vunpack.c.h.b16 %v5909
    %v6794 = vunpack.c.l.b16 %v5910
    %v6795 = vunpack.c.h.b16 %v5910
    %v6796 = vunpack.c.l.b16 %v5911
    %v6797 = vunpack.c.h.b16 %v5911
    %v6798 = vunpack.c.l.b16 %v5912
    %v6799 = vunpack.c.h.b16 %v5912
    %v6800 = vunpack.c.l.b16 %v5913
    %v6801 = vunpack.c.h.b16 %v5913
    %v6802 = vunpack.c.l.b16 %v5914
    %v6803 = vunpack.c.h.b16 %v5914
    %v6804 = vunpack.c.l.b16 %v5915
    %v6805 = vunpack.c.h.b16 %v5915
    %v6806 = vunpack.c.l.b16 %v5916
    %v6807 = vunpack.c.h.b16 %v5916
    %v6808 = vunpack.c.l.b16 %v5917
    %v6809 = vunpack.c.h.b16 %v5917
    %v6810 = vunpack.c.l.b16 %v5918
    %v6811 = vunpack.c.h.b16 %v5918
    %v6812 = vunpack.c.l.b16 %v5919
    %v6813 = vunpack.c.h.b16 %v5919
    %v6814 = vunpack.c.l.b16 %v5920
    %v6815 = vunpack.c.h.b16 %v5920
    %v6816 = vunpack.c.l.b16 %v5921
    %v6817 = vunpack.c.h.b16 %v5921
    %v6818 = vunpack.c.l.b16 %v5922
    %v6819 = vunpack.c.h.b16 %v5922
    %v6820 = vunpack.c.l.b16 %v5923
    %v6821 = vunpack.c.h.b16 %v5923
    %v6822 = vunpack.c.l.b16 %v5924
    %v6823 = vunpack.c.h.b16 %v5924
    %v6824 = vunpack.c.l.b16 %v5925
    %v6825 = vunpack.c.h.b16 %v5925
    %v6826 = vunpack.c.l.b16 %v5926
    %v6827 = vunpack.c.h.b16 %v5926
    %v6828 = vunpack.c.l.b16 %v5927
    %v6829 = vunpack.c.h.b16 %v5927
    %v6830 = vunpack.c.l.b16 %v5928
    %v6831 = vunpack.c.h.b16 %v5928
    %v6832 = vunpack.c.l.b16 %v5929
    %v6833 = vunpack.c.h.b16 %v5929
    %v6834 = vunpack.c.l.b16 %v5930
    %v6835 = vunpack.c.h.b16 %v5930
    %v6836 = vpack.c.b16 %v6780, %v6772
    %v6837 = vpack.c.b16 %v6781, %v6773
    %v6838 = vpack.c.b16 %v6782, %v6774
    %v6839 = vpack.c.b16 %v6783, %v6775
    %v6840 = vpack.c.b16 %v6784, %v6776
    %v6841 = vpack.c.b16 %v6785, %v6777
    %v6842 = vpack.c.b16 %v6786, %v6778
    %v6843 = vpack.c.b16 %v6787, %v6779
    %v6844 = vpack.c.b16 %v6796, %v6788
    %v6845 = vpack.c.b16 %v6797, %v6789
    %v6846 = vpack.c.b16 %v6798, %v6790
    %v6847 = vpack.c.b16 %v6799, %v6791
    %v6848 = vpack.c.b16 %v6800, %v6792
    %v6849 = vpack.c.b16 %v6801, %v6793
    %v6850 = vpack.c.b16 %v6802, %v6794
    %v6851 = vpack.c.b16 %v6803, %v6795
    %v6852 = vpack.c.b16 %v6812, %v6804
    %v6853 = vpack.c.b16 %v6813, %v6805
    %v6854 = vpack.c.b16 %v6814, %v6806
    %v6855 = vpack.c.b16 %v6815, %v6807
    %v6856 = vpack.c.b16 %v6816, %v6808
    %v6857 = vpack.c.b16 %v6817, %v6809
    %v6858 = vpack.c.b16 %v6818, %v6810
    %v6859 = vpack.c.b16 %v6819, %v6811
    %v6860 = vpack.c.b16 %v6828, %v6820
    %v6861 = vpack.c.b16 %v6829, %v6821
    %v6862 = vpack.c.b16 %v6830, %v6822
    %v6863 = vpack.c.b16 %v6831, %v6823
    %v6864 = vpack.c.b16 %v6832, %v6824
    %v6865 = vpack.c.b16 %v6833, %v6825
    %v6866 = vpack.c.b16 %v6834, %v6826
    %v6867 = vpack.c.b16 %v6835, %v6827
    %v6901 = vsel %vm2168, %v6411, 0
    %6903 = vmatprep.subr.bf16.mxu0 0
    %6904 = vmatpush1.bf16.msra.mxu0 0
    %6905 = vmatprep.subr.bf16.mxu0 0
    %6906 = vmatpush1.bf16.msra.mxu0 0
    %6907 = vmatprep.subr.bf16.mxu0 0
    %6908 = vmatpush1.bf16.msra.mxu0 0
    %6909 = vmatprep.subr.bf16.mxu0 0
    %6910 = vmatpush1.bf16.msra.mxu0 0
    %6911 = vmatprep.subr.bf16.mxu0 %v6861
    %6912 = vmatpush1.bf16.msra.mxu0 %v6860
    %6913 = vmatprep.subr.bf16.mxu0 %v6853
    %6914 = vmatpush1.bf16.msra.mxu0 %v6852
    %6915 = vmatprep.subr.bf16.mxu0 %v6845
    %6916 = vmatpush1.bf16.msra.mxu0 %v6844
    %6917 = vmatprep.subr.bf16.mxu0 %v6837
    %6918 = vmatpush1.bf16.msra.mxu0 %v6836
    %6919 = vmatprep.subr.bf16.mxu0 0
    %6920 = vmatpush2.bf16.msra.mxu0 0
    %6921 = vmatprep.subr.bf16.mxu0 0
    %6922 = vmatpush2.bf16.msra.mxu0 0
    %6923 = vmatprep.subr.bf16.mxu0 0
    %6924 = vmatpush2.bf16.msra.mxu0 0
    %6925 = vmatprep.subr.bf16.mxu0 0
    %6926 = vmatpush2.bf16.msra.mxu0 0
    %6927 = vmatprep.subr.bf16.mxu0 0
    %6928 = vmatpush2.bf16.msra.mxu0 0
    %6929 = vmatprep.subr.bf16.mxu0 0
    %6930 = vmatpush2.bf16.msra.mxu0 0
    %6931 = vmatprep.subr.bf16.mxu0 0
    %6932 = vmatpush2.bf16.msra.mxu0 0
    %6933 = vmatprep.subr.bf16.mxu0 0
    %6934 = vmatpush2.bf16.msra.mxu0 0
    %6935 = vmatprep.mubr.bf16.mxu0 0
    %6936 = vmatmul.mubr.bf16.gmra.mxu0 %v6901
    %v6937 = vpop.f32.mrf.mxu0
    %v6938 = vadd.f32 %v6611, %v6937
    %v6939 = vpop.f32.mrf.mxu0
    %v6940 = vadd.f32 %v6613, %v6939
    %v6941 = vpop.f32.mrf.mxu0
    %v6942 = vpop.f32.mrf.mxu0
    %6943 = vdwg.mxu0
    %6944 = vmatprep.subr.bf16.mxu0 0
    %6945 = vmatpush1.bf16.msra.mxu0 0
    %6946 = vmatprep.subr.bf16.mxu0 0
    %6947 = vmatpush1.bf16.msra.mxu0 0
    %6948 = vmatprep.subr.bf16.mxu0 0
    %6949 = vmatpush1.bf16.msra.mxu0 0
    %6950 = vmatprep.subr.bf16.mxu0 0
    %6951 = vmatpush1.bf16.msra.mxu0 0
    %6952 = vmatprep.subr.bf16.mxu0 %v6863
    %6953 = vmatpush1.bf16.msra.mxu0 %v6862
    %6954 = vmatprep.subr.bf16.mxu0 %v6855
    %6955 = vmatpush1.bf16.msra.mxu0 %v6854
    %6956 = vmatprep.subr.bf16.mxu0 %v6847
    %6957 = vmatpush1.bf16.msra.mxu0 %v6846
    %6958 = vmatprep.subr.bf16.mxu0 %v6839
    %6959 = vmatpush1.bf16.msra.mxu0 %v6838
    %6960 = vmatprep.subr.bf16.mxu0 0
    %6961 = vmatpush2.bf16.msra.mxu0 0
    %6962 = vmatprep.subr.bf16.mxu0 0
    %6963 = vmatpush2.bf16.msra.mxu0 0
    %6964 = vmatprep.subr.bf16.mxu0 0
    %6965 = vmatpush2.bf16.msra.mxu0 0
    %6966 = vmatprep.subr.bf16.mxu0 0
    %6967 = vmatpush2.bf16.msra.mxu0 0
    %6968 = vmatprep.subr.bf16.mxu0 0
    %6969 = vmatpush2.bf16.msra.mxu0 0
    %6970 = vmatprep.subr.bf16.mxu0 0
    %6971 = vmatpush2.bf16.msra.mxu0 0
    %6972 = vmatprep.subr.bf16.mxu0 0
    %6973 = vmatpush2.bf16.msra.mxu0 0
    %6974 = vmatprep.subr.bf16.mxu0 0
    %6975 = vmatpush2.bf16.msra.mxu0 0
    %6976 = vmatprep.mubr.bf16.mxu0 0
    %6977 = vmatmul.mubr.bf16.gmra.mxu0 %v6901
    %v6978 = vpop.f32.mrf.mxu0
    %v6979 = vadd.f32 %v6652, %v6978
    %v6980 = vpop.f32.mrf.mxu0
    %v6981 = vadd.f32 %v6654, %v6980
    %v6982 = vpop.f32.mrf.mxu0
    %v6983 = vpop.f32.mrf.mxu0
    %6984 = vdwg.mxu0
    %6985 = vmatprep.subr.bf16.mxu0 0
    %6986 = vmatpush1.bf16.msra.mxu0 0
    %6987 = vmatprep.subr.bf16.mxu0 0
    %6988 = vmatpush1.bf16.msra.mxu0 0
    %6989 = vmatprep.subr.bf16.mxu0 0
    %6990 = vmatpush1.bf16.msra.mxu0 0
    %6991 = vmatprep.subr.bf16.mxu0 0
    %6992 = vmatpush1.bf16.msra.mxu0 0
    %6993 = vmatprep.subr.bf16.mxu0 %v6865
    %6994 = vmatpush1.bf16.msra.mxu0 %v6864
    %6995 = vmatprep.subr.bf16.mxu0 %v6857
    %6996 = vmatpush1.bf16.msra.mxu0 %v6856
    %6997 = vmatprep.subr.bf16.mxu0 %v6849
    %6998 = vmatpush1.bf16.msra.mxu0 %v6848
    %6999 = vmatprep.subr.bf16.mxu0 %v6841
    %7000 = vmatpush1.bf16.msra.mxu0 %v6840
    %7001 = vmatprep.subr.bf16.mxu0 0
    %7002 = vmatpush2.bf16.msra.mxu0 0
    %7003 = vmatprep.subr.bf16.mxu0 0
    %7004 = vmatpush2.bf16.msra.mxu0 0
    %7005 = vmatprep.subr.bf16.mxu0 0
    %7006 = vmatpush2.bf16.msra.mxu0 0
    %7007 = vmatprep.subr.bf16.mxu0 0
    %7008 = vmatpush2.bf16.msra.mxu0 0
    %7009 = vmatprep.subr.bf16.mxu0 0
    %7010 = vmatpush2.bf16.msra.mxu0 0
    %7011 = vmatprep.subr.bf16.mxu0 0
    %7012 = vmatpush2.bf16.msra.mxu0 0
    %7013 = vmatprep.subr.bf16.mxu0 0
    %7014 = vmatpush2.bf16.msra.mxu0 0
    %7015 = vmatprep.subr.bf16.mxu0 0
    %7016 = vmatpush2.bf16.msra.mxu0 0
    %7017 = vmatprep.mubr.bf16.mxu0 0
    %7018 = vmatmul.mubr.bf16.gmra.mxu0 %v6901
    %v7019 = vpop.f32.mrf.mxu0
    %v7020 = vadd.f32 %v6693, %v7019
    %v7021 = vpop.f32.mrf.mxu0
    %v7022 = vadd.f32 %v6695, %v7021
    %v7023 = vpop.f32.mrf.mxu0
    %v7024 = vpop.f32.mrf.mxu0
    %7025 = vdwg.mxu0
    %7026 = vmatprep.subr.bf16.mxu0 0
    %7027 = vmatpush1.bf16.msra.mxu0 0
    %7028 = vmatprep.subr.bf16.mxu0 0
    %7029 = vmatpush1.bf16.msra.mxu0 0
    %7030 = vmatprep.subr.bf16.mxu0 0
    %7031 = vmatpush1.bf16.msra.mxu0 0
    %7032 = vmatprep.subr.bf16.mxu0 0
    %7033 = vmatpush1.bf16.msra.mxu0 0
    %7034 = vmatprep.subr.bf16.mxu0 %v6867
    %7035 = vmatpush1.bf16.msra.mxu0 %v6866
    %7036 = vmatprep.subr.bf16.mxu0 %v6859
    %7037 = vmatpush1.bf16.msra.mxu0 %v6858
    %7038 = vmatprep.subr.bf16.mxu0 %v6851
    %7039 = vmatpush1.bf16.msra.mxu0 %v6850
    %7040 = vmatprep.subr.bf16.mxu0 %v6843
    %7041 = vmatpush1.bf16.msra.mxu0 %v6842
    %7042 = vmatprep.subr.bf16.mxu0 0
    %7043 = vmatpush2.bf16.msra.mxu0 0
    %7044 = vmatprep.subr.bf16.mxu0 0
    %7045 = vmatpush2.bf16.msra.mxu0 0
    %7046 = vmatprep.subr.bf16.mxu0 0
    %7047 = vmatpush2.bf16.msra.mxu0 0
    %7048 = vmatprep.subr.bf16.mxu0 0
    %7049 = vmatpush2.bf16.msra.mxu0 0
    %7050 = vmatprep.subr.bf16.mxu0 0
    %7051 = vmatpush2.bf16.msra.mxu0 0
    %7052 = vmatprep.subr.bf16.mxu0 0
    %7053 = vmatpush2.bf16.msra.mxu0 0
    %7054 = vmatprep.subr.bf16.mxu0 0
    %7055 = vmatpush2.bf16.msra.mxu0 0
    %7056 = vmatprep.subr.bf16.mxu0 0
    %7057 = vmatpush2.bf16.msra.mxu0 0
    %7058 = vmatprep.mubr.bf16.mxu0 0
    %7059 = vmatmul.mubr.bf16.gmra.mxu0 %v6901
    %v7060 = vpop.f32.mrf.mxu0
    %v7061 = vadd.f32 %v6734, %v7060
    %v7062 = vpop.f32.mrf.mxu0
    %v7063 = vadd.f32 %v6736, %v7062
    %v7064 = vpop.f32.mrf.mxu0
    %v7065 = vpop.f32.mrf.mxu0
    %7066 = vdwg.mxu0
    %v7067 = vpack.c.bf16 %v5885, %v5885
    %v7100 = vunpack.c.l.b16 %v5963
    %v7101 = vunpack.c.h.b16 %v5963
    %v7102 = vunpack.c.l.b16 %v5964
    %v7103 = vunpack.c.h.b16 %v5964
    %v7104 = vunpack.c.l.b16 %v5965
    %v7105 = vunpack.c.h.b16 %v5965
    %v7106 = vunpack.c.l.b16 %v5966
    %v7107 = vunpack.c.h.b16 %v5966
    %v7108 = vunpack.c.l.b16 %v5967
    %v7109 = vunpack.c.h.b16 %v5967
    %v7110 = vunpack.c.l.b16 %v5968
    %v7111 = vunpack.c.h.b16 %v5968
    %v7112 = vunpack.c.l.b16 %v5969
    %v7113 = vunpack.c.h.b16 %v5969
    %v7114 = vunpack.c.l.b16 %v5970
    %v7115 = vunpack.c.h.b16 %v5970
    %v7116 = vunpack.c.l.b16 %v5971
    %v7117 = vunpack.c.h.b16 %v5971
    %v7118 = vunpack.c.l.b16 %v5972
    %v7119 = vunpack.c.h.b16 %v5972
    %v7120 = vunpack.c.l.b16 %v5973
    %v7121 = vunpack.c.h.b16 %v5973
    %v7122 = vunpack.c.l.b16 %v5974
    %v7123 = vunpack.c.h.b16 %v5974
    %v7124 = vunpack.c.l.b16 %v5975
    %v7125 = vunpack.c.h.b16 %v5975
    %v7126 = vunpack.c.l.b16 %v5976
    %v7127 = vunpack.c.h.b16 %v5976
    %v7128 = vunpack.c.l.b16 %v5977
    %v7129 = vunpack.c.h.b16 %v5977
    %v7130 = vunpack.c.l.b16 %v5978
    %v7131 = vunpack.c.h.b16 %v5978
    %v7132 = vunpack.c.l.b16 %v5979
    %v7133 = vunpack.c.h.b16 %v5979
    %v7134 = vunpack.c.l.b16 %v5980
    %v7135 = vunpack.c.h.b16 %v5980
    %v7136 = vunpack.c.l.b16 %v5981
    %v7137 = vunpack.c.h.b16 %v5981
    %v7138 = vunpack.c.l.b16 %v5982
    %v7139 = vunpack.c.h.b16 %v5982
    %v7140 = vunpack.c.l.b16 %v5983
    %v7141 = vunpack.c.h.b16 %v5983
    %v7142 = vunpack.c.l.b16 %v5984
    %v7143 = vunpack.c.h.b16 %v5984
    %v7144 = vunpack.c.l.b16 %v5985
    %v7145 = vunpack.c.h.b16 %v5985
    %v7146 = vunpack.c.l.b16 %v5986
    %v7147 = vunpack.c.h.b16 %v5986
    %v7148 = vunpack.c.l.b16 %v5987
    %v7149 = vunpack.c.h.b16 %v5987
    %v7150 = vunpack.c.l.b16 %v5988
    %v7151 = vunpack.c.h.b16 %v5988
    %v7152 = vunpack.c.l.b16 %v5989
    %v7153 = vunpack.c.h.b16 %v5989
    %v7154 = vunpack.c.l.b16 %v5990
    %v7155 = vunpack.c.h.b16 %v5990
    %v7156 = vunpack.c.l.b16 %v5991
    %v7157 = vunpack.c.h.b16 %v5991
    %v7158 = vunpack.c.l.b16 %v5992
    %v7159 = vunpack.c.h.b16 %v5992
    %v7160 = vunpack.c.l.b16 %v5993
    %v7161 = vunpack.c.h.b16 %v5993
    %v7162 = vunpack.c.l.b16 %v5994
    %v7163 = vunpack.c.h.b16 %v5994
    %v7164 = vpack.c.b16 %v7108, %v7100
    %v7165 = vpack.c.b16 %v7109, %v7101
    %v7166 = vpack.c.b16 %v7110, %v7102
    %v7167 = vpack.c.b16 %v7111, %v7103
    %v7168 = vpack.c.b16 %v7112, %v7104
    %v7169 = vpack.c.b16 %v7113, %v7105
    %v7170 = vpack.c.b16 %v7114, %v7106
    %v7171 = vpack.c.b16 %v7115, %v7107
    %v7172 = vpack.c.b16 %v7124, %v7116
    %v7173 = vpack.c.b16 %v7125, %v7117
    %v7174 = vpack.c.b16 %v7126, %v7118
    %v7175 = vpack.c.b16 %v7127, %v7119
    %v7176 = vpack.c.b16 %v7128, %v7120
    %v7177 = vpack.c.b16 %v7129, %v7121
    %v7178 = vpack.c.b16 %v7130, %v7122
    %v7179 = vpack.c.b16 %v7131, %v7123
    %v7180 = vpack.c.b16 %v7140, %v7132
    %v7181 = vpack.c.b16 %v7141, %v7133
    %v7182 = vpack.c.b16 %v7142, %v7134
    %v7183 = vpack.c.b16 %v7143, %v7135
    %v7184 = vpack.c.b16 %v7144, %v7136
    %v7185 = vpack.c.b16 %v7145, %v7137
    %v7186 = vpack.c.b16 %v7146, %v7138
    %v7187 = vpack.c.b16 %v7147, %v7139
    %v7188 = vpack.c.b16 %v7156, %v7148
    %v7189 = vpack.c.b16 %v7157, %v7149
    %v7190 = vpack.c.b16 %v7158, %v7150
    %v7191 = vpack.c.b16 %v7159, %v7151
    %v7192 = vpack.c.b16 %v7160, %v7152
    %v7193 = vpack.c.b16 %v7161, %v7153
    %v7194 = vpack.c.b16 %v7162, %v7154
    %v7195 = vpack.c.b16 %v7163, %v7155
    %v7229 = vsel %vm2168, %v7067, 0
    %7231 = vmatprep.subr.bf16.mxu0 0
    %7232 = vmatpush1.bf16.msra.mxu0 0
    %7233 = vmatprep.subr.bf16.mxu0 0
    %7234 = vmatpush1.bf16.msra.mxu0 0
    %7235 = vmatprep.subr.bf16.mxu0 0
    %7236 = vmatpush1.bf16.msra.mxu0 0
    %7237 = vmatprep.subr.bf16.mxu0 0
    %7238 = vmatpush1.bf16.msra.mxu0 0
    %7239 = vmatprep.subr.bf16.mxu0 %v7189
    %7240 = vmatpush1.bf16.msra.mxu0 %v7188
    %7241 = vmatprep.subr.bf16.mxu0 %v7181
    %7242 = vmatpush1.bf16.msra.mxu0 %v7180
    %7243 = vmatprep.subr.bf16.mxu0 %v7173
    %7244 = vmatpush1.bf16.msra.mxu0 %v7172
    %7245 = vmatprep.subr.bf16.mxu0 %v7165
    %7246 = vmatpush1.bf16.msra.mxu0 %v7164
    %7247 = vmatprep.subr.bf16.mxu0 0
    %7248 = vmatpush2.bf16.msra.mxu0 0
    %7249 = vmatprep.subr.bf16.mxu0 0
    %7250 = vmatpush2.bf16.msra.mxu0 0
    %7251 = vmatprep.subr.bf16.mxu0 0
    %7252 = vmatpush2.bf16.msra.mxu0 0
    %7253 = vmatprep.subr.bf16.mxu0 0
    %7254 = vmatpush2.bf16.msra.mxu0 0
    %7255 = vmatprep.subr.bf16.mxu0 0
    %7256 = vmatpush2.bf16.msra.mxu0 0
    %7257 = vmatprep.subr.bf16.mxu0 0
    %7258 = vmatpush2.bf16.msra.mxu0 0
    %7259 = vmatprep.subr.bf16.mxu0 0
    %7260 = vmatpush2.bf16.msra.mxu0 0
    %7261 = vmatprep.subr.bf16.mxu0 0
    %7262 = vmatpush2.bf16.msra.mxu0 0
    %7263 = vmatprep.mubr.bf16.mxu0 0
    %7264 = vmatmul.mubr.bf16.gmra.mxu0 %v7229
    %v7265 = vpop.f32.mrf.mxu0
    %v7266 = vadd.f32 0.0, %v7265
    %v7267 = vpop.f32.mrf.mxu0
    %v7268 = vadd.f32 0.0, %v7267
    %v7269 = vpop.f32.mrf.mxu0
    %v7270 = vpop.f32.mrf.mxu0
    %7271 = vdwg.mxu0
    %7272 = vmatprep.subr.bf16.mxu0 0
    %7273 = vmatpush1.bf16.msra.mxu0 0
    %7274 = vmatprep.subr.bf16.mxu0 0
    %7275 = vmatpush1.bf16.msra.mxu0 0
    %7276 = vmatprep.subr.bf16.mxu0 0
    %7277 = vmatpush1.bf16.msra.mxu0 0
    %7278 = vmatprep.subr.bf16.mxu0 0
    %7279 = vmatpush1.bf16.msra.mxu0 0
    %7280 = vmatprep.subr.bf16.mxu0 %v7191
    %7281 = vmatpush1.bf16.msra.mxu0 %v7190
    %7282 = vmatprep.subr.bf16.mxu0 %v7183
    %7283 = vmatpush1.bf16.msra.mxu0 %v7182
    %7284 = vmatprep.subr.bf16.mxu0 %v7175
    %7285 = vmatpush1.bf16.msra.mxu0 %v7174
    %7286 = vmatprep.subr.bf16.mxu0 %v7167
    %7287 = vmatpush1.bf16.msra.mxu0 %v7166
    %7288 = vmatprep.subr.bf16.mxu0 0
    %7289 = vmatpush2.bf16.msra.mxu0 0
    %7290 = vmatprep.subr.bf16.mxu0 0
    %7291 = vmatpush2.bf16.msra.mxu0 0
    %7292 = vmatprep.subr.bf16.mxu0 0
    %7293 = vmatpush2.bf16.msra.mxu0 0
    %7294 = vmatprep.subr.bf16.mxu0 0
    %7295 = vmatpush2.bf16.msra.mxu0 0
    %7296 = vmatprep.subr.bf16.mxu0 0
    %7297 = vmatpush2.bf16.msra.mxu0 0
    %7298 = vmatprep.subr.bf16.mxu0 0
    %7299 = vmatpush2.bf16.msra.mxu0 0
    %7300 = vmatprep.subr.bf16.mxu0 0
    %7301 = vmatpush2.bf16.msra.mxu0 0
    %7302 = vmatprep.subr.bf16.mxu0 0
    %7303 = vmatpush2.bf16.msra.mxu0 0
    %7304 = vmatprep.mubr.bf16.mxu0 0
    %7305 = vmatmul.mubr.bf16.gmra.mxu0 %v7229
    %v7306 = vpop.f32.mrf.mxu0
    %v7307 = vadd.f32 0.0, %v7306
    %v7308 = vpop.f32.mrf.mxu0
    %v7309 = vadd.f32 0.0, %v7308
    %v7310 = vpop.f32.mrf.mxu0
    %v7311 = vpop.f32.mrf.mxu0
    %7312 = vdwg.mxu0
    %7313 = vmatprep.subr.bf16.mxu0 0
    %7314 = vmatpush1.bf16.msra.mxu0 0
    %7315 = vmatprep.subr.bf16.mxu0 0
    %7316 = vmatpush1.bf16.msra.mxu0 0
    %7317 = vmatprep.subr.bf16.mxu0 0
    %7318 = vmatpush1.bf16.msra.mxu0 0
    %7319 = vmatprep.subr.bf16.mxu0 0
    %7320 = vmatpush1.bf16.msra.mxu0 0
    %7321 = vmatprep.subr.bf16.mxu0 %v7193
    %7322 = vmatpush1.bf16.msra.mxu0 %v7192
    %7323 = vmatprep.subr.bf16.mxu0 %v7185
    %7324 = vmatpush1.bf16.msra.mxu0 %v7184
    %7325 = vmatprep.subr.bf16.mxu0 %v7177
    %7326 = vmatpush1.bf16.msra.mxu0 %v7176
    %7327 = vmatprep.subr.bf16.mxu0 %v7169
    %7328 = vmatpush1.bf16.msra.mxu0 %v7168
    %7329 = vmatprep.subr.bf16.mxu0 0
    %7330 = vmatpush2.bf16.msra.mxu0 0
    %7331 = vmatprep.subr.bf16.mxu0 0
    %7332 = vmatpush2.bf16.msra.mxu0 0
    %7333 = vmatprep.subr.bf16.mxu0 0
    %7334 = vmatpush2.bf16.msra.mxu0 0
    %7335 = vmatprep.subr.bf16.mxu0 0
    %7336 = vmatpush2.bf16.msra.mxu0 0
    %7337 = vmatprep.subr.bf16.mxu0 0
    %7338 = vmatpush2.bf16.msra.mxu0 0
    %7339 = vmatprep.subr.bf16.mxu0 0
    %7340 = vmatpush2.bf16.msra.mxu0 0
    %7341 = vmatprep.subr.bf16.mxu0 0
    %7342 = vmatpush2.bf16.msra.mxu0 0
    %7343 = vmatprep.subr.bf16.mxu0 0
    %7344 = vmatpush2.bf16.msra.mxu0 0
    %7345 = vmatprep.mubr.bf16.mxu0 0
    %7346 = vmatmul.mubr.bf16.gmra.mxu0 %v7229
    %v7347 = vpop.f32.mrf.mxu0
    %v7348 = vadd.f32 0.0, %v7347
    %v7349 = vpop.f32.mrf.mxu0
    %v7350 = vadd.f32 0.0, %v7349
    %v7351 = vpop.f32.mrf.mxu0
    %v7352 = vpop.f32.mrf.mxu0
    %7353 = vdwg.mxu0
    %7354 = vmatprep.subr.bf16.mxu0 0
    %7355 = vmatpush1.bf16.msra.mxu0 0
    %7356 = vmatprep.subr.bf16.mxu0 0
    %7357 = vmatpush1.bf16.msra.mxu0 0
    %7358 = vmatprep.subr.bf16.mxu0 0
    %7359 = vmatpush1.bf16.msra.mxu0 0
    %7360 = vmatprep.subr.bf16.mxu0 0
    %7361 = vmatpush1.bf16.msra.mxu0 0
    %7362 = vmatprep.subr.bf16.mxu0 %v7195
    %7363 = vmatpush1.bf16.msra.mxu0 %v7194
    %7364 = vmatprep.subr.bf16.mxu0 %v7187
    %7365 = vmatpush1.bf16.msra.mxu0 %v7186
    %7366 = vmatprep.subr.bf16.mxu0 %v7179
    %7367 = vmatpush1.bf16.msra.mxu0 %v7178
    %7368 = vmatprep.subr.bf16.mxu0 %v7171
    %7369 = vmatpush1.bf16.msra.mxu0 %v7170
    %7370 = vmatprep.subr.bf16.mxu0 0
    %7371 = vmatpush2.bf16.msra.mxu0 0
    %7372 = vmatprep.subr.bf16.mxu0 0
    %7373 = vmatpush2.bf16.msra.mxu0 0
    %7374 = vmatprep.subr.bf16.mxu0 0
    %7375 = vmatpush2.bf16.msra.mxu0 0
    %7376 = vmatprep.subr.bf16.mxu0 0
    %7377 = vmatpush2.bf16.msra.mxu0 0
    %7378 = vmatprep.subr.bf16.mxu0 0
    %7379 = vmatpush2.bf16.msra.mxu0 0
    %7380 = vmatprep.subr.bf16.mxu0 0
    %7381 = vmatpush2.bf16.msra.mxu0 0
    %7382 = vmatprep.subr.bf16.mxu0 0
    %7383 = vmatpush2.bf16.msra.mxu0 0
    %7384 = vmatprep.subr.bf16.mxu0 0
    %7385 = vmatpush2.bf16.msra.mxu0 0
    %7386 = vmatprep.mubr.bf16.mxu0 0
    %7387 = vmatmul.mubr.bf16.gmra.mxu0 %v7229
    %v7388 = vpop.f32.mrf.mxu0
    %v7389 = vadd.f32 0.0, %v7388
    %v7390 = vpop.f32.mrf.mxu0
    %v7391 = vadd.f32 0.0, %v7390
    %v7392 = vpop.f32.mrf.mxu0
    %v7393 = vpop.f32.mrf.mxu0
    %7394 = vdwg.mxu0
    %v7395 = vadd.f32 %v6938, %v7266
    %v7396 = vadd.f32 %v6940, %v7268
    %v7397 = vadd.f32 %v6979, %v7307
    %v7398 = vadd.f32 %v6981, %v7309
    %v7399 = vadd.f32 %v7020, %v7348
    %v7400 = vadd.f32 %v7022, %v7350
    %v7401 = vadd.f32 %v7061, %v7389
    %v7402 = vadd.f32 %v7063, %v7391
    %v7403 = vpack.c.bf16 %v5886, %v5886
    %v7436 = vunpack.c.l.b16 %v5995
    %v7437 = vunpack.c.h.b16 %v5995
    %v7438 = vunpack.c.l.b16 %v5996
    %v7439 = vunpack.c.h.b16 %v5996
    %v7440 = vunpack.c.l.b16 %v5997
    %v7441 = vunpack.c.h.b16 %v5997
    %v7442 = vunpack.c.l.b16 %v5998
    %v7443 = vunpack.c.h.b16 %v5998
    %v7444 = vunpack.c.l.b16 %v5999
    %v7445 = vunpack.c.h.b16 %v5999
    %v7446 = vunpack.c.l.b16 %v6000
    %v7447 = vunpack.c.h.b16 %v6000
    %v7448 = vunpack.c.l.b16 %v6001
    %v7449 = vunpack.c.h.b16 %v6001
    %v7450 = vunpack.c.l.b16 %v6002
    %v7451 = vunpack.c.h.b16 %v6002
    %v7452 = vunpack.c.l.b16 %v6003
    %v7453 = vunpack.c.h.b16 %v6003
    %v7454 = vunpack.c.l.b16 %v6004
    %v7455 = vunpack.c.h.b16 %v6004
    %v7456 = vunpack.c.l.b16 %v6005
    %v7457 = vunpack.c.h.b16 %v6005
    %v7458 = vunpack.c.l.b16 %v6006
    %v7459 = vunpack.c.h.b16 %v6006
    %v7460 = vunpack.c.l.b16 %v6007
    %v7461 = vunpack.c.h.b16 %v6007
    %v7462 = vunpack.c.l.b16 %v6008
    %v7463 = vunpack.c.h.b16 %v6008
    %v7464 = vunpack.c.l.b16 %v6009
    %v7465 = vunpack.c.h.b16 %v6009
    %v7466 = vunpack.c.l.b16 %v6010
    %v7467 = vunpack.c.h.b16 %v6010
    %v7468 = vunpack.c.l.b16 %v6011
    %v7469 = vunpack.c.h.b16 %v6011
    %v7470 = vunpack.c.l.b16 %v6012
    %v7471 = vunpack.c.h.b16 %v6012
    %v7472 = vunpack.c.l.b16 %v6013
    %v7473 = vunpack.c.h.b16 %v6013
    %v7474 = vunpack.c.l.b16 %v6014
    %v7475 = vunpack.c.h.b16 %v6014
    %v7476 = vunpack.c.l.b16 %v6015
    %v7477 = vunpack.c.h.b16 %v6015
    %v7478 = vunpack.c.l.b16 %v6016
    %v7479 = vunpack.c.h.b16 %v6016
    %v7480 = vunpack.c.l.b16 %v6017
    %v7481 = vunpack.c.h.b16 %v6017
    %v7482 = vunpack.c.l.b16 %v6018
    %v7483 = vunpack.c.h.b16 %v6018
    %v7484 = vunpack.c.l.b16 %v6019
    %v7485 = vunpack.c.h.b16 %v6019
    %v7486 = vunpack.c.l.b16 %v6020
    %v7487 = vunpack.c.h.b16 %v6020
    %v7488 = vunpack.c.l.b16 %v6021
    %v7489 = vunpack.c.h.b16 %v6021
    %v7490 = vunpack.c.l.b16 %v6022
    %v7491 = vunpack.c.h.b16 %v6022
    %v7492 = vunpack.c.l.b16 %v6023
    %v7493 = vunpack.c.h.b16 %v6023
    %v7494 = vunpack.c.l.b16 %v6024
    %v7495 = vunpack.c.h.b16 %v6024
    %v7496 = vunpack.c.l.b16 %v6025
    %v7497 = vunpack.c.h.b16 %v6025
    %v7498 = vunpack.c.l.b16 %v6026
    %v7499 = vunpack.c.h.b16 %v6026
    %v7500 = vpack.c.b16 %v7444, %v7436
    %v7501 = vpack.c.b16 %v7445, %v7437
    %v7502 = vpack.c.b16 %v7446, %v7438
    %v7503 = vpack.c.b16 %v7447, %v7439
    %v7504 = vpack.c.b16 %v7448, %v7440
    %v7505 = vpack.c.b16 %v7449, %v7441
    %v7506 = vpack.c.b16 %v7450, %v7442
    %v7507 = vpack.c.b16 %v7451, %v7443
    %v7508 = vpack.c.b16 %v7460, %v7452
    %v7509 = vpack.c.b16 %v7461, %v7453
    %v7510 = vpack.c.b16 %v7462, %v7454
    %v7511 = vpack.c.b16 %v7463, %v7455
    %v7512 = vpack.c.b16 %v7464, %v7456
    %v7513 = vpack.c.b16 %v7465, %v7457
    %v7514 = vpack.c.b16 %v7466, %v7458
    %v7515 = vpack.c.b16 %v7467, %v7459
    %v7516 = vpack.c.b16 %v7476, %v7468
    %v7517 = vpack.c.b16 %v7477, %v7469
    %v7518 = vpack.c.b16 %v7478, %v7470
    %v7519 = vpack.c.b16 %v7479, %v7471
    %v7520 = vpack.c.b16 %v7480, %v7472
    %v7521 = vpack.c.b16 %v7481, %v7473
    %v7522 = vpack.c.b16 %v7482, %v7474
    %v7523 = vpack.c.b16 %v7483, %v7475
    %v7524 = vpack.c.b16 %v7492, %v7484
    %v7525 = vpack.c.b16 %v7493, %v7485
    %v7526 = vpack.c.b16 %v7494, %v7486
    %v7527 = vpack.c.b16 %v7495, %v7487
    %v7528 = vpack.c.b16 %v7496, %v7488
    %v7529 = vpack.c.b16 %v7497, %v7489
    %v7530 = vpack.c.b16 %v7498, %v7490
    %v7531 = vpack.c.b16 %v7499, %v7491
    %v7565 = vsel %vm2168, %v7403, 0
    %7567 = vmatprep.subr.bf16.mxu0 0
    %7568 = vmatpush1.bf16.msra.mxu0 0
    %7569 = vmatprep.subr.bf16.mxu0 0
    %7570 = vmatpush1.bf16.msra.mxu0 0
    %7571 = vmatprep.subr.bf16.mxu0 0
    %7572 = vmatpush1.bf16.msra.mxu0 0
    %7573 = vmatprep.subr.bf16.mxu0 0
    %7574 = vmatpush1.bf16.msra.mxu0 0
    %7575 = vmatprep.subr.bf16.mxu0 %v7525
    %7576 = vmatpush1.bf16.msra.mxu0 %v7524
    %7577 = vmatprep.subr.bf16.mxu0 %v7517
    %7578 = vmatpush1.bf16.msra.mxu0 %v7516
    %7579 = vmatprep.subr.bf16.mxu0 %v7509
    %7580 = vmatpush1.bf16.msra.mxu0 %v7508
    %7581 = vmatprep.subr.bf16.mxu0 %v7501
    %7582 = vmatpush1.bf16.msra.mxu0 %v7500
    %7583 = vmatprep.subr.bf16.mxu0 0
    %7584 = vmatpush2.bf16.msra.mxu0 0
    %7585 = vmatprep.subr.bf16.mxu0 0
    %7586 = vmatpush2.bf16.msra.mxu0 0
    %7587 = vmatprep.subr.bf16.mxu0 0
    %7588 = vmatpush2.bf16.msra.mxu0 0
    %7589 = vmatprep.subr.bf16.mxu0 0
    %7590 = vmatpush2.bf16.msra.mxu0 0
    %7591 = vmatprep.subr.bf16.mxu0 0
    %7592 = vmatpush2.bf16.msra.mxu0 0
    %7593 = vmatprep.subr.bf16.mxu0 0
    %7594 = vmatpush2.bf16.msra.mxu0 0
    %7595 = vmatprep.subr.bf16.mxu0 0
    %7596 = vmatpush2.bf16.msra.mxu0 0
    %7597 = vmatprep.subr.bf16.mxu0 0
    %7598 = vmatpush2.bf16.msra.mxu0 0
    %7599 = vmatprep.mubr.bf16.mxu0 0
    %7600 = vmatmul.mubr.bf16.gmra.mxu0 %v7565
    %v7601 = vpop.f32.mrf.mxu0
    %v7602 = vadd.f32 0.0, %v7601
    %v7603 = vpop.f32.mrf.mxu0
    %v7604 = vadd.f32 0.0, %v7603
    %v7605 = vpop.f32.mrf.mxu0
    %v7606 = vpop.f32.mrf.mxu0
    %7607 = vdwg.mxu0
    %7608 = vmatprep.subr.bf16.mxu0 0
    %7609 = vmatpush1.bf16.msra.mxu0 0
    %7610 = vmatprep.subr.bf16.mxu0 0
    %7611 = vmatpush1.bf16.msra.mxu0 0
    %7612 = vmatprep.subr.bf16.mxu0 0
    %7613 = vmatpush1.bf16.msra.mxu0 0
    %7614 = vmatprep.subr.bf16.mxu0 0
    %7615 = vmatpush1.bf16.msra.mxu0 0
    %7616 = vmatprep.subr.bf16.mxu0 %v7527
    %7617 = vmatpush1.bf16.msra.mxu0 %v7526
    %7618 = vmatprep.subr.bf16.mxu0 %v7519
    %7619 = vmatpush1.bf16.msra.mxu0 %v7518
    %7620 = vmatprep.subr.bf16.mxu0 %v7511
    %7621 = vmatpush1.bf16.msra.mxu0 %v7510
    %7622 = vmatprep.subr.bf16.mxu0 %v7503
    %7623 = vmatpush1.bf16.msra.mxu0 %v7502
    %7624 = vmatprep.subr.bf16.mxu0 0
    %7625 = vmatpush2.bf16.msra.mxu0 0
    %7626 = vmatprep.subr.bf16.mxu0 0
    %7627 = vmatpush2.bf16.msra.mxu0 0
    %7628 = vmatprep.subr.bf16.mxu0 0
    %7629 = vmatpush2.bf16.msra.mxu0 0
    %7630 = vmatprep.subr.bf16.mxu0 0
    %7631 = vmatpush2.bf16.msra.mxu0 0
    %7632 = vmatprep.subr.bf16.mxu0 0
    %7633 = vmatpush2.bf16.msra.mxu0 0
    %7634 = vmatprep.subr.bf16.mxu0 0
    %7635 = vmatpush2.bf16.msra.mxu0 0
    %7636 = vmatprep.subr.bf16.mxu0 0
    %7637 = vmatpush2.bf16.msra.mxu0 0
    %7638 = vmatprep.subr.bf16.mxu0 0
    %7639 = vmatpush2.bf16.msra.mxu0 0
    %7640 = vmatprep.mubr.bf16.mxu0 0
    %7641 = vmatmul.mubr.bf16.gmra.mxu0 %v7565
    %v7642 = vpop.f32.mrf.mxu0
    %v7643 = vadd.f32 0.0, %v7642
    %v7644 = vpop.f32.mrf.mxu0
    %v7645 = vadd.f32 0.0, %v7644
    %v7646 = vpop.f32.mrf.mxu0
    %v7647 = vpop.f32.mrf.mxu0
    %7648 = vdwg.mxu0
    %7649 = vmatprep.subr.bf16.mxu0 0
    %7650 = vmatpush1.bf16.msra.mxu0 0
    %7651 = vmatprep.subr.bf16.mxu0 0
    %7652 = vmatpush1.bf16.msra.mxu0 0
    %7653 = vmatprep.subr.bf16.mxu0 0
    %7654 = vmatpush1.bf16.msra.mxu0 0
    %7655 = vmatprep.subr.bf16.mxu0 0
    %7656 = vmatpush1.bf16.msra.mxu0 0
    %7657 = vmatprep.subr.bf16.mxu0 %v7529
    %7658 = vmatpush1.bf16.msra.mxu0 %v7528
    %7659 = vmatprep.subr.bf16.mxu0 %v7521
    %7660 = vmatpush1.bf16.msra.mxu0 %v7520
    %7661 = vmatprep.subr.bf16.mxu0 %v7513
    %7662 = vmatpush1.bf16.msra.mxu0 %v7512
    %7663 = vmatprep.subr.bf16.mxu0 %v7505
    %7664 = vmatpush1.bf16.msra.mxu0 %v7504
    %7665 = vmatprep.subr.bf16.mxu0 0
    %7666 = vmatpush2.bf16.msra.mxu0 0
    %7667 = vmatprep.subr.bf16.mxu0 0
    %7668 = vmatpush2.bf16.msra.mxu0 0
    %7669 = vmatprep.subr.bf16.mxu0 0
    %7670 = vmatpush2.bf16.msra.mxu0 0
    %7671 = vmatprep.subr.bf16.mxu0 0
    %7672 = vmatpush2.bf16.msra.mxu0 0
    %7673 = vmatprep.subr.bf16.mxu0 0
    %7674 = vmatpush2.bf16.msra.mxu0 0
    %7675 = vmatprep.subr.bf16.mxu0 0
    %7676 = vmatpush2.bf16.msra.mxu0 0
    %7677 = vmatprep.subr.bf16.mxu0 0
    %7678 = vmatpush2.bf16.msra.mxu0 0
    %7679 = vmatprep.subr.bf16.mxu0 0
    %7680 = vmatpush2.bf16.msra.mxu0 0
    %7681 = vmatprep.mubr.bf16.mxu0 0
    %7682 = vmatmul.mubr.bf16.gmra.mxu0 %v7565
    %v7683 = vpop.f32.mrf.mxu0
    %v7684 = vadd.f32 0.0, %v7683
    %v7685 = vpop.f32.mrf.mxu0
    %v7686 = vadd.f32 0.0, %v7685
    %v7687 = vpop.f32.mrf.mxu0
    %v7688 = vpop.f32.mrf.mxu0
    %7689 = vdwg.mxu0
    %7690 = vmatprep.subr.bf16.mxu0 0
    %7691 = vmatpush1.bf16.msra.mxu0 0
    %7692 = vmatprep.subr.bf16.mxu0 0
    %7693 = vmatpush1.bf16.msra.mxu0 0
    %7694 = vmatprep.subr.bf16.mxu0 0
    %7695 = vmatpush1.bf16.msra.mxu0 0
    %7696 = vmatprep.subr.bf16.mxu0 0
    %7697 = vmatpush1.bf16.msra.mxu0 0
    %7698 = vmatprep.subr.bf16.mxu0 %v7531
    %7699 = vmatpush1.bf16.msra.mxu0 %v7530
    %7700 = vmatprep.subr.bf16.mxu0 %v7523
    %7701 = vmatpush1.bf16.msra.mxu0 %v7522
    %7702 = vmatprep.subr.bf16.mxu0 %v7515
    %7703 = vmatpush1.bf16.msra.mxu0 %v7514
    %7704 = vmatprep.subr.bf16.mxu0 %v7507
    %7705 = vmatpush1.bf16.msra.mxu0 %v7506
    %7706 = vmatprep.subr.bf16.mxu0 0
    %7707 = vmatpush2.bf16.msra.mxu0 0
    %7708 = vmatprep.subr.bf16.mxu0 0
    %7709 = vmatpush2.bf16.msra.mxu0 0
    %7710 = vmatprep.subr.bf16.mxu0 0
    %7711 = vmatpush2.bf16.msra.mxu0 0
    %7712 = vmatprep.subr.bf16.mxu0 0
    %7713 = vmatpush2.bf16.msra.mxu0 0
    %7714 = vmatprep.subr.bf16.mxu0 0
    %7715 = vmatpush2.bf16.msra.mxu0 0
    %7716 = vmatprep.subr.bf16.mxu0 0
    %7717 = vmatpush2.bf16.msra.mxu0 0
    %7718 = vmatprep.subr.bf16.mxu0 0
    %7719 = vmatpush2.bf16.msra.mxu0 0
    %7720 = vmatprep.subr.bf16.mxu0 0
    %7721 = vmatpush2.bf16.msra.mxu0 0
    %7722 = vmatprep.mubr.bf16.mxu0 0
    %7723 = vmatmul.mubr.bf16.gmra.mxu0 %v7565
    %v7724 = vpop.f32.mrf.mxu0
    %v7725 = vadd.f32 0.0, %v7724
    %v7726 = vpop.f32.mrf.mxu0
    %v7727 = vadd.f32 0.0, %v7726
    %v7728 = vpop.f32.mrf.mxu0
    %v7729 = vpop.f32.mrf.mxu0
    %7730 = vdwg.mxu0
    %v7731 = vadd.f32 %v7395, %v7602
    %v7732 = vadd.f32 %v7396, %v7604
    %v7733 = vadd.f32 %v7397, %v7643
    %v7734 = vadd.f32 %v7398, %v7645
    %v7735 = vadd.f32 %v7399, %v7684
    %v7736 = vadd.f32 %v7400, %v7686
    %v7737 = vadd.f32 %v7401, %v7725
    %v7738 = vadd.f32 %v7402, %v7727
    %v7739 = vpack.c.bf16 %v5887, %v5887
    %v7772 = vunpack.c.l.b16 %v6027
    %v7773 = vunpack.c.h.b16 %v6027
    %v7774 = vunpack.c.l.b16 %v6028
    %v7775 = vunpack.c.h.b16 %v6028
    %v7776 = vunpack.c.l.b16 %v6029
    %v7777 = vunpack.c.h.b16 %v6029
    %v7778 = vunpack.c.l.b16 %v6030
    %v7779 = vunpack.c.h.b16 %v6030
    %v7780 = vunpack.c.l.b16 %v6031
    %v7781 = vunpack.c.h.b16 %v6031
    %v7782 = vunpack.c.l.b16 %v6032
    %v7783 = vunpack.c.h.b16 %v6032
    %v7784 = vunpack.c.l.b16 %v6033
    %v7785 = vunpack.c.h.b16 %v6033
    %v7786 = vunpack.c.l.b16 %v6034
    %v7787 = vunpack.c.h.b16 %v6034
    %v7788 = vunpack.c.l.b16 %v6035
    %v7789 = vunpack.c.h.b16 %v6035
    %v7790 = vunpack.c.l.b16 %v6036
    %v7791 = vunpack.c.h.b16 %v6036
    %v7792 = vunpack.c.l.b16 %v6037
    %v7793 = vunpack.c.h.b16 %v6037
    %v7794 = vunpack.c.l.b16 %v6038
    %v7795 = vunpack.c.h.b16 %v6038
    %v7796 = vunpack.c.l.b16 %v6039
    %v7797 = vunpack.c.h.b16 %v6039
    %v7798 = vunpack.c.l.b16 %v6040
    %v7799 = vunpack.c.h.b16 %v6040
    %v7800 = vunpack.c.l.b16 %v6041
    %v7801 = vunpack.c.h.b16 %v6041
    %v7802 = vunpack.c.l.b16 %v6042
    %v7803 = vunpack.c.h.b16 %v6042
    %v7804 = vunpack.c.l.b16 %v6043
    %v7805 = vunpack.c.h.b16 %v6043
    %v7806 = vunpack.c.l.b16 %v6044
    %v7807 = vunpack.c.h.b16 %v6044
    %v7808 = vunpack.c.l.b16 %v6045
    %v7809 = vunpack.c.h.b16 %v6045
    %v7810 = vunpack.c.l.b16 %v6046
    %v7811 = vunpack.c.h.b16 %v6046
    %v7812 = vunpack.c.l.b16 %v6047
    %v7813 = vunpack.c.h.b16 %v6047
    %v7814 = vunpack.c.l.b16 %v6048
    %v7815 = vunpack.c.h.b16 %v6048
    %v7816 = vunpack.c.l.b16 %v6049
    %v7817 = vunpack.c.h.b16 %v6049
    %v7818 = vunpack.c.l.b16 %v6050
    %v7819 = vunpack.c.h.b16 %v6050
    %v7820 = vunpack.c.l.b16 %v6051
    %v7821 = vunpack.c.h.b16 %v6051
    %v7822 = vunpack.c.l.b16 %v6052
    %v7823 = vunpack.c.h.b16 %v6052
    %v7824 = vunpack.c.l.b16 %v6053
    %v7825 = vunpack.c.h.b16 %v6053
    %v7826 = vunpack.c.l.b16 %v6054
    %v7827 = vunpack.c.h.b16 %v6054
    %v7828 = vunpack.c.l.b16 %v6055
    %v7829 = vunpack.c.h.b16 %v6055
    %v7830 = vunpack.c.l.b16 %v6056
    %v7831 = vunpack.c.h.b16 %v6056
    %v7832 = vunpack.c.l.b16 %v6057
    %v7833 = vunpack.c.h.b16 %v6057
    %v7834 = vunpack.c.l.b16 %v6058
    %v7835 = vunpack.c.h.b16 %v6058
    %v7836 = vpack.c.b16 %v7780, %v7772
    %v7837 = vpack.c.b16 %v7781, %v7773
    %v7838 = vpack.c.b16 %v7782, %v7774
    %v7839 = vpack.c.b16 %v7783, %v7775
    %v7840 = vpack.c.b16 %v7784, %v7776
    %v7841 = vpack.c.b16 %v7785, %v7777
    %v7842 = vpack.c.b16 %v7786, %v7778
    %v7843 = vpack.c.b16 %v7787, %v7779
    %v7844 = vpack.c.b16 %v7796, %v7788
    %v7845 = vpack.c.b16 %v7797, %v7789
    %v7846 = vpack.c.b16 %v7798, %v7790
    %v7847 = vpack.c.b16 %v7799, %v7791
    %v7848 = vpack.c.b16 %v7800, %v7792
    %v7849 = vpack.c.b16 %v7801, %v7793
    %v7850 = vpack.c.b16 %v7802, %v7794
    %v7851 = vpack.c.b16 %v7803, %v7795
    %v7852 = vpack.c.b16 %v7812, %v7804
    %v7853 = vpack.c.b16 %v7813, %v7805
    %v7854 = vpack.c.b16 %v7814, %v7806
    %v7855 = vpack.c.b16 %v7815, %v7807
    %v7856 = vpack.c.b16 %v7816, %v7808
    %v7857 = vpack.c.b16 %v7817, %v7809
    %v7858 = vpack.c.b16 %v7818, %v7810
    %v7859 = vpack.c.b16 %v7819, %v7811
    %v7860 = vpack.c.b16 %v7828, %v7820
    %v7861 = vpack.c.b16 %v7829, %v7821
    %v7862 = vpack.c.b16 %v7830, %v7822
    %v7863 = vpack.c.b16 %v7831, %v7823
    %v7864 = vpack.c.b16 %v7832, %v7824
    %v7865 = vpack.c.b16 %v7833, %v7825
    %v7866 = vpack.c.b16 %v7834, %v7826
    %v7867 = vpack.c.b16 %v7835, %v7827
    %v7901 = vsel %vm2168, %v7739, 0
    %7903 = vmatprep.subr.bf16.mxu0 0
    %7904 = vmatpush1.bf16.msra.mxu0 0
    %7905 = vmatprep.subr.bf16.mxu0 0
    %7906 = vmatpush1.bf16.msra.mxu0 0
    %7907 = vmatprep.subr.bf16.mxu0 0
    %7908 = vmatpush1.bf16.msra.mxu0 0
    %7909 = vmatprep.subr.bf16.mxu0 0
    %7910 = vmatpush1.bf16.msra.mxu0 0
    %7911 = vmatprep.subr.bf16.mxu0 %v7861
    %7912 = vmatpush1.bf16.msra.mxu0 %v7860
    %7913 = vmatprep.subr.bf16.mxu0 %v7853
    %7914 = vmatpush1.bf16.msra.mxu0 %v7852
    %7915 = vmatprep.subr.bf16.mxu0 %v7845
    %7916 = vmatpush1.bf16.msra.mxu0 %v7844
    %7917 = vmatprep.subr.bf16.mxu0 %v7837
    %7918 = vmatpush1.bf16.msra.mxu0 %v7836
    %7919 = vmatprep.subr.bf16.mxu0 0
    %7920 = vmatpush2.bf16.msra.mxu0 0
    %7921 = vmatprep.subr.bf16.mxu0 0
    %7922 = vmatpush2.bf16.msra.mxu0 0
    %7923 = vmatprep.subr.bf16.mxu0 0
    %7924 = vmatpush2.bf16.msra.mxu0 0
    %7925 = vmatprep.subr.bf16.mxu0 0
    %7926 = vmatpush2.bf16.msra.mxu0 0
    %7927 = vmatprep.subr.bf16.mxu0 0
    %7928 = vmatpush2.bf16.msra.mxu0 0
    %7929 = vmatprep.subr.bf16.mxu0 0
    %7930 = vmatpush2.bf16.msra.mxu0 0
    %7931 = vmatprep.subr.bf16.mxu0 0
    %7932 = vmatpush2.bf16.msra.mxu0 0
    %7933 = vmatprep.subr.bf16.mxu0 0
    %7934 = vmatpush2.bf16.msra.mxu0 0
    %7935 = vmatprep.mubr.bf16.mxu0 0
    %7936 = vmatmul.mubr.bf16.gmra.mxu0 %v7901
    %v7937 = vpop.f32.mrf.mxu0
    %v7938 = vadd.f32 0.0, %v7937
    %v7939 = vpop.f32.mrf.mxu0
    %v7940 = vadd.f32 0.0, %v7939
    %v7941 = vpop.f32.mrf.mxu0
    %v7942 = vpop.f32.mrf.mxu0
    %7943 = vdwg.mxu0
    %7944 = vmatprep.subr.bf16.mxu0 0
    %7945 = vmatpush1.bf16.msra.mxu0 0
    %7946 = vmatprep.subr.bf16.mxu0 0
    %7947 = vmatpush1.bf16.msra.mxu0 0
    %7948 = vmatprep.subr.bf16.mxu0 0
    %7949 = vmatpush1.bf16.msra.mxu0 0
    %7950 = vmatprep.subr.bf16.mxu0 0
    %7951 = vmatpush1.bf16.msra.mxu0 0
    %7952 = vmatprep.subr.bf16.mxu0 %v7863
    %7953 = vmatpush1.bf16.msra.mxu0 %v7862
    %7954 = vmatprep.subr.bf16.mxu0 %v7855
    %7955 = vmatpush1.bf16.msra.mxu0 %v7854
    %7956 = vmatprep.subr.bf16.mxu0 %v7847
    %7957 = vmatpush1.bf16.msra.mxu0 %v7846
    %7958 = vmatprep.subr.bf16.mxu0 %v7839
    %7959 = vmatpush1.bf16.msra.mxu0 %v7838
    %7960 = vmatprep.subr.bf16.mxu0 0
    %7961 = vmatpush2.bf16.msra.mxu0 0
    %7962 = vmatprep.subr.bf16.mxu0 0
    %7963 = vmatpush2.bf16.msra.mxu0 0
    %7964 = vmatprep.subr.bf16.mxu0 0
    %7965 = vmatpush2.bf16.msra.mxu0 0
    %7966 = vmatprep.subr.bf16.mxu0 0
    %7967 = vmatpush2.bf16.msra.mxu0 0
    %7968 = vmatprep.subr.bf16.mxu0 0
    %7969 = vmatpush2.bf16.msra.mxu0 0
    %7970 = vmatprep.subr.bf16.mxu0 0
    %7971 = vmatpush2.bf16.msra.mxu0 0
    %7972 = vmatprep.subr.bf16.mxu0 0
    %7973 = vmatpush2.bf16.msra.mxu0 0
    %7974 = vmatprep.subr.bf16.mxu0 0
    %7975 = vmatpush2.bf16.msra.mxu0 0
    %7976 = vmatprep.mubr.bf16.mxu0 0
    %7977 = vmatmul.mubr.bf16.gmra.mxu0 %v7901
    %v7978 = vpop.f32.mrf.mxu0
    %v7979 = vadd.f32 0.0, %v7978
    %v7980 = vpop.f32.mrf.mxu0
    %v7981 = vadd.f32 0.0, %v7980
    %v7982 = vpop.f32.mrf.mxu0
    %v7983 = vpop.f32.mrf.mxu0
    %7984 = vdwg.mxu0
    %7985 = vmatprep.subr.bf16.mxu0 0
    %7986 = vmatpush1.bf16.msra.mxu0 0
    %7987 = vmatprep.subr.bf16.mxu0 0
    %7988 = vmatpush1.bf16.msra.mxu0 0
    %7989 = vmatprep.subr.bf16.mxu0 0
    %7990 = vmatpush1.bf16.msra.mxu0 0
    %7991 = vmatprep.subr.bf16.mxu0 0
    %7992 = vmatpush1.bf16.msra.mxu0 0
    %7993 = vmatprep.subr.bf16.mxu0 %v7865
    %7994 = vmatpush1.bf16.msra.mxu0 %v7864
    %7995 = vmatprep.subr.bf16.mxu0 %v7857
    %7996 = vmatpush1.bf16.msra.mxu0 %v7856
    %7997 = vmatprep.subr.bf16.mxu0 %v7849
    %7998 = vmatpush1.bf16.msra.mxu0 %v7848
    %7999 = vmatprep.subr.bf16.mxu0 %v7841
    %8000 = vmatpush1.bf16.msra.mxu0 %v7840
    %8001 = vmatprep.subr.bf16.mxu0 0
    %8002 = vmatpush2.bf16.msra.mxu0 0
    %8003 = vmatprep.subr.bf16.mxu0 0
    %8004 = vmatpush2.bf16.msra.mxu0 0
    %8005 = vmatprep.subr.bf16.mxu0 0
    %8006 = vmatpush2.bf16.msra.mxu0 0
    %8007 = vmatprep.subr.bf16.mxu0 0
    %8008 = vmatpush2.bf16.msra.mxu0 0
    %8009 = vmatprep.subr.bf16.mxu0 0
    %8010 = vmatpush2.bf16.msra.mxu0 0
    %8011 = vmatprep.subr.bf16.mxu0 0
    %8012 = vmatpush2.bf16.msra.mxu0 0
    %8013 = vmatprep.subr.bf16.mxu0 0
    %8014 = vmatpush2.bf16.msra.mxu0 0
    %8015 = vmatprep.subr.bf16.mxu0 0
    %8016 = vmatpush2.bf16.msra.mxu0 0
    %8017 = vmatprep.mubr.bf16.mxu0 0
    %8018 = vmatmul.mubr.bf16.gmra.mxu0 %v7901
    %v8019 = vpop.f32.mrf.mxu0
    %v8020 = vadd.f32 0.0, %v8019
    %v8021 = vpop.f32.mrf.mxu0
    %v8022 = vadd.f32 0.0, %v8021
    %v8023 = vpop.f32.mrf.mxu0
    %v8024 = vpop.f32.mrf.mxu0
    %8025 = vdwg.mxu0
    %8026 = vmatprep.subr.bf16.mxu0 0
    %8027 = vmatpush1.bf16.msra.mxu0 0
    %8028 = vmatprep.subr.bf16.mxu0 0
    %8029 = vmatpush1.bf16.msra.mxu0 0
    %8030 = vmatprep.subr.bf16.mxu0 0
    %8031 = vmatpush1.bf16.msra.mxu0 0
    %8032 = vmatprep.subr.bf16.mxu0 0
    %8033 = vmatpush1.bf16.msra.mxu0 0
    %8034 = vmatprep.subr.bf16.mxu0 %v7867
    %8035 = vmatpush1.bf16.msra.mxu0 %v7866
    %8036 = vmatprep.subr.bf16.mxu0 %v7859
    %8037 = vmatpush1.bf16.msra.mxu0 %v7858
    %8038 = vmatprep.subr.bf16.mxu0 %v7851
    %8039 = vmatpush1.bf16.msra.mxu0 %v7850
    %8040 = vmatprep.subr.bf16.mxu0 %v7843
    %8041 = vmatpush1.bf16.msra.mxu0 %v7842
    %8042 = vmatprep.subr.bf16.mxu0 0
    %8043 = vmatpush2.bf16.msra.mxu0 0
    %8044 = vmatprep.subr.bf16.mxu0 0
    %8045 = vmatpush2.bf16.msra.mxu0 0
    %8046 = vmatprep.subr.bf16.mxu0 0
    %8047 = vmatpush2.bf16.msra.mxu0 0
    %8048 = vmatprep.subr.bf16.mxu0 0
    %8049 = vmatpush2.bf16.msra.mxu0 0
    %8050 = vmatprep.subr.bf16.mxu0 0
    %8051 = vmatpush2.bf16.msra.mxu0 0
    %8052 = vmatprep.subr.bf16.mxu0 0
    %8053 = vmatpush2.bf16.msra.mxu0 0
    %8054 = vmatprep.subr.bf16.mxu0 0
    %8055 = vmatpush2.bf16.msra.mxu0 0
    %8056 = vmatprep.subr.bf16.mxu0 0
    %8057 = vmatpush2.bf16.msra.mxu0 0
    %8058 = vmatprep.mubr.bf16.mxu0 0
    %8059 = vmatmul.mubr.bf16.gmra.mxu0 %v7901
    %v8060 = vpop.f32.mrf.mxu0
    %v8061 = vadd.f32 0.0, %v8060
    %v8062 = vpop.f32.mrf.mxu0
    %v8063 = vadd.f32 0.0, %v8062
    %v8064 = vpop.f32.mrf.mxu0
    %v8065 = vpop.f32.mrf.mxu0
    %8066 = vdwg.mxu0
    %v8067 = vadd.f32 %v7731, %v7938
    %v8068 = vadd.f32 %v7732, %v7940
    %v8069 = vadd.f32 %v7733, %v7979
    %v8070 = vadd.f32 %v7734, %v7981
    %v8071 = vadd.f32 %v7735, %v8020
    %v8072 = vadd.f32 %v7736, %v8022
    %v8073 = vadd.f32 %v7737, %v8061
    %v8074 = vadd.f32 %v7738, %v8063
    %v8075 = vpack.c.bf16 %v5888, %v5888
    %v8108 = vunpack.c.l.b16 %v6059
    %v8109 = vunpack.c.h.b16 %v6059
    %v8110 = vunpack.c.l.b16 %v6060
    %v8111 = vunpack.c.h.b16 %v6060
    %v8112 = vunpack.c.l.b16 %v6061
    %v8113 = vunpack.c.h.b16 %v6061
    %v8114 = vunpack.c.l.b16 %v6062
    %v8115 = vunpack.c.h.b16 %v6062
    %v8116 = vunpack.c.l.b16 %v6063
    %v8117 = vunpack.c.h.b16 %v6063
    %v8118 = vunpack.c.l.b16 %v6064
    %v8119 = vunpack.c.h.b16 %v6064
    %v8120 = vunpack.c.l.b16 %v6065
    %v8121 = vunpack.c.h.b16 %v6065
    %v8122 = vunpack.c.l.b16 %v6066
    %v8123 = vunpack.c.h.b16 %v6066
    %v8124 = vunpack.c.l.b16 %v6067
    %v8125 = vunpack.c.h.b16 %v6067
    %v8126 = vunpack.c.l.b16 %v6068
    %v8127 = vunpack.c.h.b16 %v6068
    %v8128 = vunpack.c.l.b16 %v6069
    %v8129 = vunpack.c.h.b16 %v6069
    %v8130 = vunpack.c.l.b16 %v6070
    %v8131 = vunpack.c.h.b16 %v6070
    %v8132 = vunpack.c.l.b16 %v6071
    %v8133 = vunpack.c.h.b16 %v6071
    %v8134 = vunpack.c.l.b16 %v6072
    %v8135 = vunpack.c.h.b16 %v6072
    %v8136 = vunpack.c.l.b16 %v6073
    %v8137 = vunpack.c.h.b16 %v6073
    %v8138 = vunpack.c.l.b16 %v6074
    %v8139 = vunpack.c.h.b16 %v6074
    %v8140 = vunpack.c.l.b16 %v6075
    %v8141 = vunpack.c.h.b16 %v6075
    %v8142 = vunpack.c.l.b16 %v6076
    %v8143 = vunpack.c.h.b16 %v6076
    %v8144 = vunpack.c.l.b16 %v6077
    %v8145 = vunpack.c.h.b16 %v6077
    %v8146 = vunpack.c.l.b16 %v6078
    %v8147 = vunpack.c.h.b16 %v6078
    %v8148 = vunpack.c.l.b16 %v6079
    %v8149 = vunpack.c.h.b16 %v6079
    %v8150 = vunpack.c.l.b16 %v6080
    %v8151 = vunpack.c.h.b16 %v6080
    %v8152 = vunpack.c.l.b16 %v6081
    %v8153 = vunpack.c.h.b16 %v6081
    %v8154 = vunpack.c.l.b16 %v6082
    %v8155 = vunpack.c.h.b16 %v6082
    %v8156 = vunpack.c.l.b16 %v6083
    %v8157 = vunpack.c.h.b16 %v6083
    %v8158 = vunpack.c.l.b16 %v6084
    %v8159 = vunpack.c.h.b16 %v6084
    %v8160 = vunpack.c.l.b16 %v6085
    %v8161 = vunpack.c.h.b16 %v6085
    %v8162 = vunpack.c.l.b16 %v6086
    %v8163 = vunpack.c.h.b16 %v6086
    %v8164 = vunpack.c.l.b16 %v6087
    %v8165 = vunpack.c.h.b16 %v6087
    %v8166 = vunpack.c.l.b16 %v6088
    %v8167 = vunpack.c.h.b16 %v6088
    %v8168 = vunpack.c.l.b16 %v6089
    %v8169 = vunpack.c.h.b16 %v6089
    %v8170 = vunpack.c.l.b16 %v6090
    %v8171 = vunpack.c.h.b16 %v6090
    %v8172 = vpack.c.b16 %v8116, %v8108
    %v8173 = vpack.c.b16 %v8117, %v8109
    %v8174 = vpack.c.b16 %v8118, %v8110
    %v8175 = vpack.c.b16 %v8119, %v8111
    %v8176 = vpack.c.b16 %v8120, %v8112
    %v8177 = vpack.c.b16 %v8121, %v8113
    %v8178 = vpack.c.b16 %v8122, %v8114
    %v8179 = vpack.c.b16 %v8123, %v8115
    %v8180 = vpack.c.b16 %v8132, %v8124
    %v8181 = vpack.c.b16 %v8133, %v8125
    %v8182 = vpack.c.b16 %v8134, %v8126
    %v8183 = vpack.c.b16 %v8135, %v8127
    %v8184 = vpack.c.b16 %v8136, %v8128
    %v8185 = vpack.c.b16 %v8137, %v8129
    %v8186 = vpack.c.b16 %v8138, %v8130
    %v8187 = vpack.c.b16 %v8139, %v8131
    %v8188 = vpack.c.b16 %v8148, %v8140
    %v8189 = vpack.c.b16 %v8149, %v8141
    %v8190 = vpack.c.b16 %v8150, %v8142
    %v8191 = vpack.c.b16 %v8151, %v8143
    %v8192 = vpack.c.b16 %v8152, %v8144
    %v8193 = vpack.c.b16 %v8153, %v8145
    %v8194 = vpack.c.b16 %v8154, %v8146
    %v8195 = vpack.c.b16 %v8155, %v8147
    %v8196 = vpack.c.b16 %v8164, %v8156
    %v8197 = vpack.c.b16 %v8165, %v8157
    %v8198 = vpack.c.b16 %v8166, %v8158
    %v8199 = vpack.c.b16 %v8167, %v8159
    %v8200 = vpack.c.b16 %v8168, %v8160
    %v8201 = vpack.c.b16 %v8169, %v8161
    %v8202 = vpack.c.b16 %v8170, %v8162
    %v8203 = vpack.c.b16 %v8171, %v8163
    %v8237 = vsel %vm2168, %v8075, 0
    %8239 = vmatprep.subr.bf16.mxu0 0
    %8240 = vmatpush1.bf16.msra.mxu0 0
    %8241 = vmatprep.subr.bf16.mxu0 0
    %8242 = vmatpush1.bf16.msra.mxu0 0
    %8243 = vmatprep.subr.bf16.mxu0 0
    %8244 = vmatpush1.bf16.msra.mxu0 0
    %8245 = vmatprep.subr.bf16.mxu0 0
    %8246 = vmatpush1.bf16.msra.mxu0 0
    %8247 = vmatprep.subr.bf16.mxu0 %v8197
    %8248 = vmatpush1.bf16.msra.mxu0 %v8196
    %8249 = vmatprep.subr.bf16.mxu0 %v8189
    %8250 = vmatpush1.bf16.msra.mxu0 %v8188
    %8251 = vmatprep.subr.bf16.mxu0 %v8181
    %8252 = vmatpush1.bf16.msra.mxu0 %v8180
    %8253 = vmatprep.subr.bf16.mxu0 %v8173
    %8254 = vmatpush1.bf16.msra.mxu0 %v8172
    %8255 = vmatprep.subr.bf16.mxu0 0
    %8256 = vmatpush2.bf16.msra.mxu0 0
    %8257 = vmatprep.subr.bf16.mxu0 0
    %8258 = vmatpush2.bf16.msra.mxu0 0
    %8259 = vmatprep.subr.bf16.mxu0 0
    %8260 = vmatpush2.bf16.msra.mxu0 0
    %8261 = vmatprep.subr.bf16.mxu0 0
    %8262 = vmatpush2.bf16.msra.mxu0 0
    %8263 = vmatprep.subr.bf16.mxu0 0
    %8264 = vmatpush2.bf16.msra.mxu0 0
    %8265 = vmatprep.subr.bf16.mxu0 0
    %8266 = vmatpush2.bf16.msra.mxu0 0
    %8267 = vmatprep.subr.bf16.mxu0 0
    %8268 = vmatpush2.bf16.msra.mxu0 0
    %8269 = vmatprep.subr.bf16.mxu0 0
    %8270 = vmatpush2.bf16.msra.mxu0 0
    %8271 = vmatprep.mubr.bf16.mxu0 0
    %8272 = vmatmul.mubr.bf16.gmra.mxu0 %v8237
    %v8273 = vpop.f32.mrf.mxu0
    %v8274 = vadd.f32 0.0, %v8273
    %v8275 = vpop.f32.mrf.mxu0
    %v8276 = vadd.f32 0.0, %v8275
    %v8277 = vpop.f32.mrf.mxu0
    %v8278 = vpop.f32.mrf.mxu0
    %8279 = vdwg.mxu0
    %8280 = vmatprep.subr.bf16.mxu0 0
    %8281 = vmatpush1.bf16.msra.mxu0 0
    %8282 = vmatprep.subr.bf16.mxu0 0
    %8283 = vmatpush1.bf16.msra.mxu0 0
    %8284 = vmatprep.subr.bf16.mxu0 0
    %8285 = vmatpush1.bf16.msra.mxu0 0
    %8286 = vmatprep.subr.bf16.mxu0 0
    %8287 = vmatpush1.bf16.msra.mxu0 0
    %8288 = vmatprep.subr.bf16.mxu0 %v8199
    %8289 = vmatpush1.bf16.msra.mxu0 %v8198
    %8290 = vmatprep.subr.bf16.mxu0 %v8191
    %8291 = vmatpush1.bf16.msra.mxu0 %v8190
    %8292 = vmatprep.subr.bf16.mxu0 %v8183
    %8293 = vmatpush1.bf16.msra.mxu0 %v8182
    %8294 = vmatprep.subr.bf16.mxu0 %v8175
    %8295 = vmatpush1.bf16.msra.mxu0 %v8174
    %8296 = vmatprep.subr.bf16.mxu0 0
    %8297 = vmatpush2.bf16.msra.mxu0 0
    %8298 = vmatprep.subr.bf16.mxu0 0
    %8299 = vmatpush2.bf16.msra.mxu0 0
    %8300 = vmatprep.subr.bf16.mxu0 0
    %8301 = vmatpush2.bf16.msra.mxu0 0
    %8302 = vmatprep.subr.bf16.mxu0 0
    %8303 = vmatpush2.bf16.msra.mxu0 0
    %8304 = vmatprep.subr.bf16.mxu0 0
    %8305 = vmatpush2.bf16.msra.mxu0 0
    %8306 = vmatprep.subr.bf16.mxu0 0
    %8307 = vmatpush2.bf16.msra.mxu0 0
    %8308 = vmatprep.subr.bf16.mxu0 0
    %8309 = vmatpush2.bf16.msra.mxu0 0
    %8310 = vmatprep.subr.bf16.mxu0 0
    %8311 = vmatpush2.bf16.msra.mxu0 0
    %8312 = vmatprep.mubr.bf16.mxu0 0
    %8313 = vmatmul.mubr.bf16.gmra.mxu0 %v8237
    %v8314 = vpop.f32.mrf.mxu0
    %v8315 = vadd.f32 0.0, %v8314
    %v8316 = vpop.f32.mrf.mxu0
    %v8317 = vadd.f32 0.0, %v8316
    %v8318 = vpop.f32.mrf.mxu0
    %v8319 = vpop.f32.mrf.mxu0
    %8320 = vdwg.mxu0
    %8321 = vmatprep.subr.bf16.mxu0 0
    %8322 = vmatpush1.bf16.msra.mxu0 0
    %8323 = vmatprep.subr.bf16.mxu0 0
    %8324 = vmatpush1.bf16.msra.mxu0 0
    %8325 = vmatprep.subr.bf16.mxu0 0
    %8326 = vmatpush1.bf16.msra.mxu0 0
    %8327 = vmatprep.subr.bf16.mxu0 0
    %8328 = vmatpush1.bf16.msra.mxu0 0
    %8329 = vmatprep.subr.bf16.mxu0 %v8201
    %8330 = vmatpush1.bf16.msra.mxu0 %v8200
    %8331 = vmatprep.subr.bf16.mxu0 %v8193
    %8332 = vmatpush1.bf16.msra.mxu0 %v8192
    %8333 = vmatprep.subr.bf16.mxu0 %v8185
    %8334 = vmatpush1.bf16.msra.mxu0 %v8184
    %8335 = vmatprep.subr.bf16.mxu0 %v8177
    %8336 = vmatpush1.bf16.msra.mxu0 %v8176
    %8337 = vmatprep.subr.bf16.mxu0 0
    %8338 = vmatpush2.bf16.msra.mxu0 0
    %8339 = vmatprep.subr.bf16.mxu0 0
    %8340 = vmatpush2.bf16.msra.mxu0 0
    %8341 = vmatprep.subr.bf16.mxu0 0
    %8342 = vmatpush2.bf16.msra.mxu0 0
    %8343 = vmatprep.subr.bf16.mxu0 0
    %8344 = vmatpush2.bf16.msra.mxu0 0
    %8345 = vmatprep.subr.bf16.mxu0 0
    %8346 = vmatpush2.bf16.msra.mxu0 0
    %8347 = vmatprep.subr.bf16.mxu0 0
    %8348 = vmatpush2.bf16.msra.mxu0 0
    %8349 = vmatprep.subr.bf16.mxu0 0
    %8350 = vmatpush2.bf16.msra.mxu0 0
    %8351 = vmatprep.subr.bf16.mxu0 0
    %8352 = vmatpush2.bf16.msra.mxu0 0
    %8353 = vmatprep.mubr.bf16.mxu0 0
    %8354 = vmatmul.mubr.bf16.gmra.mxu0 %v8237
    %v8355 = vpop.f32.mrf.mxu0
    %v8356 = vadd.f32 0.0, %v8355
    %v8357 = vpop.f32.mrf.mxu0
    %v8358 = vadd.f32 0.0, %v8357
    %v8359 = vpop.f32.mrf.mxu0
    %v8360 = vpop.f32.mrf.mxu0
    %8361 = vdwg.mxu0
    %8362 = vmatprep.subr.bf16.mxu0 0
    %8363 = vmatpush1.bf16.msra.mxu0 0
    %8364 = vmatprep.subr.bf16.mxu0 0
    %8365 = vmatpush1.bf16.msra.mxu0 0
    %8366 = vmatprep.subr.bf16.mxu0 0
    %8367 = vmatpush1.bf16.msra.mxu0 0
    %8368 = vmatprep.subr.bf16.mxu0 0
    %8369 = vmatpush1.bf16.msra.mxu0 0
    %8370 = vmatprep.subr.bf16.mxu0 %v8203
    %8371 = vmatpush1.bf16.msra.mxu0 %v8202
    %8372 = vmatprep.subr.bf16.mxu0 %v8195
    %8373 = vmatpush1.bf16.msra.mxu0 %v8194
    %8374 = vmatprep.subr.bf16.mxu0 %v8187
    %8375 = vmatpush1.bf16.msra.mxu0 %v8186
    %8376 = vmatprep.subr.bf16.mxu0 %v8179
    %8377 = vmatpush1.bf16.msra.mxu0 %v8178
    %8378 = vmatprep.subr.bf16.mxu0 0
    %8379 = vmatpush2.bf16.msra.mxu0 0
    %8380 = vmatprep.subr.bf16.mxu0 0
    %8381 = vmatpush2.bf16.msra.mxu0 0
    %8382 = vmatprep.subr.bf16.mxu0 0
    %8383 = vmatpush2.bf16.msra.mxu0 0
    %8384 = vmatprep.subr.bf16.mxu0 0
    %8385 = vmatpush2.bf16.msra.mxu0 0
    %8386 = vmatprep.subr.bf16.mxu0 0
    %8387 = vmatpush2.bf16.msra.mxu0 0
    %8388 = vmatprep.subr.bf16.mxu0 0
    %8389 = vmatpush2.bf16.msra.mxu0 0
    %8390 = vmatprep.subr.bf16.mxu0 0
    %8391 = vmatpush2.bf16.msra.mxu0 0
    %8392 = vmatprep.subr.bf16.mxu0 0
    %8393 = vmatpush2.bf16.msra.mxu0 0
    %8394 = vmatprep.mubr.bf16.mxu0 0
    %8395 = vmatmul.mubr.bf16.gmra.mxu0 %v8237
    %v8396 = vpop.f32.mrf.mxu0
    %v8397 = vadd.f32 0.0, %v8396
    %v8398 = vpop.f32.mrf.mxu0
    %v8399 = vadd.f32 0.0, %v8398
    %v8400 = vpop.f32.mrf.mxu0
    %v8401 = vpop.f32.mrf.mxu0
    %8402 = vdwg.mxu0
    %v8403 = vadd.f32 %v8067, %v8274
    %v8404 = vadd.f32 %v8068, %v8276
    %v8405 = vadd.f32 %v8069, %v8315
    %v8406 = vadd.f32 %v8070, %v8317
    %v8407 = vadd.f32 %v8071, %v8356
    %v8408 = vadd.f32 %v8072, %v8358
    %v8409 = vadd.f32 %v8073, %v8397
    %v8410 = vadd.f32 %v8074, %v8399
    %v8411 = vpack.c.bf16 %v5889, %v5889
    %v8444 = vunpack.c.l.b16 %v6091
    %v8445 = vunpack.c.h.b16 %v6091
    %v8446 = vunpack.c.l.b16 %v6092
    %v8447 = vunpack.c.h.b16 %v6092
    %v8448 = vunpack.c.l.b16 %v6093
    %v8449 = vunpack.c.h.b16 %v6093
    %v8450 = vunpack.c.l.b16 %v6094
    %v8451 = vunpack.c.h.b16 %v6094
    %v8452 = vunpack.c.l.b16 %v6095
    %v8453 = vunpack.c.h.b16 %v6095
    %v8454 = vunpack.c.l.b16 %v6096
    %v8455 = vunpack.c.h.b16 %v6096
    %v8456 = vunpack.c.l.b16 %v6097
    %v8457 = vunpack.c.h.b16 %v6097
    %v8458 = vunpack.c.l.b16 %v6098
    %v8459 = vunpack.c.h.b16 %v6098
    %v8460 = vunpack.c.l.b16 %v6099
    %v8461 = vunpack.c.h.b16 %v6099
    %v8462 = vunpack.c.l.b16 %v6100
    %v8463 = vunpack.c.h.b16 %v6100
    %v8464 = vunpack.c.l.b16 %v6101
    %v8465 = vunpack.c.h.b16 %v6101
    %v8466 = vunpack.c.l.b16 %v6102
    %v8467 = vunpack.c.h.b16 %v6102
    %v8468 = vunpack.c.l.b16 %v6103
    %v8469 = vunpack.c.h.b16 %v6103
    %v8470 = vunpack.c.l.b16 %v6104
    %v8471 = vunpack.c.h.b16 %v6104
    %v8472 = vunpack.c.l.b16 %v6105
    %v8473 = vunpack.c.h.b16 %v6105
    %v8474 = vunpack.c.l.b16 %v6106
    %v8475 = vunpack.c.h.b16 %v6106
    %v8476 = vunpack.c.l.b16 %v6107
    %v8477 = vunpack.c.h.b16 %v6107
    %v8478 = vunpack.c.l.b16 %v6108
    %v8479 = vunpack.c.h.b16 %v6108
    %v8480 = vunpack.c.l.b16 %v6109
    %v8481 = vunpack.c.h.b16 %v6109
    %v8482 = vunpack.c.l.b16 %v6110
    %v8483 = vunpack.c.h.b16 %v6110
    %v8484 = vunpack.c.l.b16 %v6111
    %v8485 = vunpack.c.h.b16 %v6111
    %v8486 = vunpack.c.l.b16 %v6112
    %v8487 = vunpack.c.h.b16 %v6112
    %v8488 = vunpack.c.l.b16 %v6113
    %v8489 = vunpack.c.h.b16 %v6113
    %v8490 = vunpack.c.l.b16 %v6114
    %v8491 = vunpack.c.h.b16 %v6114
    %v8492 = vunpack.c.l.b16 %v6115
    %v8493 = vunpack.c.h.b16 %v6115
    %v8494 = vunpack.c.l.b16 %v6116
    %v8495 = vunpack.c.h.b16 %v6116
    %v8496 = vunpack.c.l.b16 %v6117
    %v8497 = vunpack.c.h.b16 %v6117
    %v8498 = vunpack.c.l.b16 %v6118
    %v8499 = vunpack.c.h.b16 %v6118
    %v8500 = vunpack.c.l.b16 %v6119
    %v8501 = vunpack.c.h.b16 %v6119
    %v8502 = vunpack.c.l.b16 %v6120
    %v8503 = vunpack.c.h.b16 %v6120
    %v8504 = vunpack.c.l.b16 %v6121
    %v8505 = vunpack.c.h.b16 %v6121
    %v8506 = vunpack.c.l.b16 %v6122
    %v8507 = vunpack.c.h.b16 %v6122
    %v8508 = vpack.c.b16 %v8452, %v8444
    %v8509 = vpack.c.b16 %v8453, %v8445
    %v8510 = vpack.c.b16 %v8454, %v8446
    %v8511 = vpack.c.b16 %v8455, %v8447
    %v8512 = vpack.c.b16 %v8456, %v8448
    %v8513 = vpack.c.b16 %v8457, %v8449
    %v8514 = vpack.c.b16 %v8458, %v8450
    %v8515 = vpack.c.b16 %v8459, %v8451
    %v8516 = vpack.c.b16 %v8468, %v8460
    %v8517 = vpack.c.b16 %v8469, %v8461
    %v8518 = vpack.c.b16 %v8470, %v8462
    %v8519 = vpack.c.b16 %v8471, %v8463
    %v8520 = vpack.c.b16 %v8472, %v8464
    %v8521 = vpack.c.b16 %v8473, %v8465
    %v8522 = vpack.c.b16 %v8474, %v8466
    %v8523 = vpack.c.b16 %v8475, %v8467
    %v8524 = vpack.c.b16 %v8484, %v8476
    %v8525 = vpack.c.b16 %v8485, %v8477
    %v8526 = vpack.c.b16 %v8486, %v8478
    %v8527 = vpack.c.b16 %v8487, %v8479
    %v8528 = vpack.c.b16 %v8488, %v8480
    %v8529 = vpack.c.b16 %v8489, %v8481
    %v8530 = vpack.c.b16 %v8490, %v8482
    %v8531 = vpack.c.b16 %v8491, %v8483
    %v8532 = vpack.c.b16 %v8500, %v8492
    %v8533 = vpack.c.b16 %v8501, %v8493
    %v8534 = vpack.c.b16 %v8502, %v8494
    %v8535 = vpack.c.b16 %v8503, %v8495
    %v8536 = vpack.c.b16 %v8504, %v8496
    %v8537 = vpack.c.b16 %v8505, %v8497
    %v8538 = vpack.c.b16 %v8506, %v8498
    %v8539 = vpack.c.b16 %v8507, %v8499
    %v8573 = vsel %vm2168, %v8411, 0
    %8575 = vmatprep.subr.bf16.mxu0 0
    %8576 = vmatpush1.bf16.msra.mxu0 0
    %8577 = vmatprep.subr.bf16.mxu0 0
    %8578 = vmatpush1.bf16.msra.mxu0 0
    %8579 = vmatprep.subr.bf16.mxu0 0
    %8580 = vmatpush1.bf16.msra.mxu0 0
    %8581 = vmatprep.subr.bf16.mxu0 0
    %8582 = vmatpush1.bf16.msra.mxu0 0
    %8583 = vmatprep.subr.bf16.mxu0 %v8533
    %8584 = vmatpush1.bf16.msra.mxu0 %v8532
    %8585 = vmatprep.subr.bf16.mxu0 %v8525
    %8586 = vmatpush1.bf16.msra.mxu0 %v8524
    %8587 = vmatprep.subr.bf16.mxu0 %v8517
    %8588 = vmatpush1.bf16.msra.mxu0 %v8516
    %8589 = vmatprep.subr.bf16.mxu0 %v8509
    %8590 = vmatpush1.bf16.msra.mxu0 %v8508
    %8591 = vmatprep.subr.bf16.mxu0 0
    %8592 = vmatpush2.bf16.msra.mxu0 0
    %8593 = vmatprep.subr.bf16.mxu0 0
    %8594 = vmatpush2.bf16.msra.mxu0 0
    %8595 = vmatprep.subr.bf16.mxu0 0
    %8596 = vmatpush2.bf16.msra.mxu0 0
    %8597 = vmatprep.subr.bf16.mxu0 0
    %8598 = vmatpush2.bf16.msra.mxu0 0
    %8599 = vmatprep.subr.bf16.mxu0 0
    %8600 = vmatpush2.bf16.msra.mxu0 0
    %8601 = vmatprep.subr.bf16.mxu0 0
    %8602 = vmatpush2.bf16.msra.mxu0 0
    %8603 = vmatprep.subr.bf16.mxu0 0
    %8604 = vmatpush2.bf16.msra.mxu0 0
    %8605 = vmatprep.subr.bf16.mxu0 0
    %8606 = vmatpush2.bf16.msra.mxu0 0
    %8607 = vmatprep.mubr.bf16.mxu0 0
    %8608 = vmatmul.mubr.bf16.gmra.mxu0 %v8573
    %v8609 = vpop.f32.mrf.mxu0
    %v8610 = vadd.f32 0.0, %v8609
    %v8611 = vpop.f32.mrf.mxu0
    %v8612 = vadd.f32 0.0, %v8611
    %v8613 = vpop.f32.mrf.mxu0
    %v8614 = vpop.f32.mrf.mxu0
    %8615 = vdwg.mxu0
    %8616 = vmatprep.subr.bf16.mxu0 0
    %8617 = vmatpush1.bf16.msra.mxu0 0
    %8618 = vmatprep.subr.bf16.mxu0 0
    %8619 = vmatpush1.bf16.msra.mxu0 0
    %8620 = vmatprep.subr.bf16.mxu0 0
    %8621 = vmatpush1.bf16.msra.mxu0 0
    %8622 = vmatprep.subr.bf16.mxu0 0
    %8623 = vmatpush1.bf16.msra.mxu0 0
    %8624 = vmatprep.subr.bf16.mxu0 %v8535
    %8625 = vmatpush1.bf16.msra.mxu0 %v8534
    %8626 = vmatprep.subr.bf16.mxu0 %v8527
    %8627 = vmatpush1.bf16.msra.mxu0 %v8526
    %8628 = vmatprep.subr.bf16.mxu0 %v8519
    %8629 = vmatpush1.bf16.msra.mxu0 %v8518
    %8630 = vmatprep.subr.bf16.mxu0 %v8511
    %8631 = vmatpush1.bf16.msra.mxu0 %v8510
    %8632 = vmatprep.subr.bf16.mxu0 0
    %8633 = vmatpush2.bf16.msra.mxu0 0
    %8634 = vmatprep.subr.bf16.mxu0 0
    %8635 = vmatpush2.bf16.msra.mxu0 0
    %8636 = vmatprep.subr.bf16.mxu0 0
    %8637 = vmatpush2.bf16.msra.mxu0 0
    %8638 = vmatprep.subr.bf16.mxu0 0
    %8639 = vmatpush2.bf16.msra.mxu0 0
    %8640 = vmatprep.subr.bf16.mxu0 0
    %8641 = vmatpush2.bf16.msra.mxu0 0
    %8642 = vmatprep.subr.bf16.mxu0 0
    %8643 = vmatpush2.bf16.msra.mxu0 0
    %8644 = vmatprep.subr.bf16.mxu0 0
    %8645 = vmatpush2.bf16.msra.mxu0 0
    %8646 = vmatprep.subr.bf16.mxu0 0
    %8647 = vmatpush2.bf16.msra.mxu0 0
    %8648 = vmatprep.mubr.bf16.mxu0 0
    %8649 = vmatmul.mubr.bf16.gmra.mxu0 %v8573
    %v8650 = vpop.f32.mrf.mxu0
    %v8651 = vadd.f32 0.0, %v8650
    %v8652 = vpop.f32.mrf.mxu0
    %v8653 = vadd.f32 0.0, %v8652
    %v8654 = vpop.f32.mrf.mxu0
    %v8655 = vpop.f32.mrf.mxu0
    %8656 = vdwg.mxu0
    %8657 = vmatprep.subr.bf16.mxu0 0
    %8658 = vmatpush1.bf16.msra.mxu0 0
    %8659 = vmatprep.subr.bf16.mxu0 0
    %8660 = vmatpush1.bf16.msra.mxu0 0
    %8661 = vmatprep.subr.bf16.mxu0 0
    %8662 = vmatpush1.bf16.msra.mxu0 0
    %8663 = vmatprep.subr.bf16.mxu0 0
    %8664 = vmatpush1.bf16.msra.mxu0 0
    %8665 = vmatprep.subr.bf16.mxu0 %v8537
    %8666 = vmatpush1.bf16.msra.mxu0 %v8536
    %8667 = vmatprep.subr.bf16.mxu0 %v8529
    %8668 = vmatpush1.bf16.msra.mxu0 %v8528
    %8669 = vmatprep.subr.bf16.mxu0 %v8521
    %8670 = vmatpush1.bf16.msra.mxu0 %v8520
    %8671 = vmatprep.subr.bf16.mxu0 %v8513
    %8672 = vmatpush1.bf16.msra.mxu0 %v8512
    %8673 = vmatprep.subr.bf16.mxu0 0
    %8674 = vmatpush2.bf16.msra.mxu0 0
    %8675 = vmatprep.subr.bf16.mxu0 0
    %8676 = vmatpush2.bf16.msra.mxu0 0
    %8677 = vmatprep.subr.bf16.mxu0 0
    %8678 = vmatpush2.bf16.msra.mxu0 0
    %8679 = vmatprep.subr.bf16.mxu0 0
    %8680 = vmatpush2.bf16.msra.mxu0 0
    %8681 = vmatprep.subr.bf16.mxu0 0
    %8682 = vmatpush2.bf16.msra.mxu0 0
    %8683 = vmatprep.subr.bf16.mxu0 0
    %8684 = vmatpush2.bf16.msra.mxu0 0
    %8685 = vmatprep.subr.bf16.mxu0 0
    %8686 = vmatpush2.bf16.msra.mxu0 0
    %8687 = vmatprep.subr.bf16.mxu0 0
    %8688 = vmatpush2.bf16.msra.mxu0 0
    %8689 = vmatprep.mubr.bf16.mxu0 0
    %8690 = vmatmul.mubr.bf16.gmra.mxu0 %v8573
    %v8691 = vpop.f32.mrf.mxu0
    %v8692 = vadd.f32 0.0, %v8691
    %v8693 = vpop.f32.mrf.mxu0
    %v8694 = vadd.f32 0.0, %v8693
    %v8695 = vpop.f32.mrf.mxu0
    %v8696 = vpop.f32.mrf.mxu0
    %8697 = vdwg.mxu0
    %8698 = vmatprep.subr.bf16.mxu0 0
    %8699 = vmatpush1.bf16.msra.mxu0 0
    %8700 = vmatprep.subr.bf16.mxu0 0
    %8701 = vmatpush1.bf16.msra.mxu0 0
    %8702 = vmatprep.subr.bf16.mxu0 0
    %8703 = vmatpush1.bf16.msra.mxu0 0
    %8704 = vmatprep.subr.bf16.mxu0 0
    %8705 = vmatpush1.bf16.msra.mxu0 0
    %8706 = vmatprep.subr.bf16.mxu0 %v8539
    %8707 = vmatpush1.bf16.msra.mxu0 %v8538
    %8708 = vmatprep.subr.bf16.mxu0 %v8531
    %8709 = vmatpush1.bf16.msra.mxu0 %v8530
    %8710 = vmatprep.subr.bf16.mxu0 %v8523
    %8711 = vmatpush1.bf16.msra.mxu0 %v8522
    %8712 = vmatprep.subr.bf16.mxu0 %v8515
    %8713 = vmatpush1.bf16.msra.mxu0 %v8514
    %8714 = vmatprep.subr.bf16.mxu0 0
    %8715 = vmatpush2.bf16.msra.mxu0 0
    %8716 = vmatprep.subr.bf16.mxu0 0
    %8717 = vmatpush2.bf16.msra.mxu0 0
    %8718 = vmatprep.subr.bf16.mxu0 0
    %8719 = vmatpush2.bf16.msra.mxu0 0
    %8720 = vmatprep.subr.bf16.mxu0 0
    %8721 = vmatpush2.bf16.msra.mxu0 0
    %8722 = vmatprep.subr.bf16.mxu0 0
    %8723 = vmatpush2.bf16.msra.mxu0 0
    %8724 = vmatprep.subr.bf16.mxu0 0
    %8725 = vmatpush2.bf16.msra.mxu0 0
    %8726 = vmatprep.subr.bf16.mxu0 0
    %8727 = vmatpush2.bf16.msra.mxu0 0
    %8728 = vmatprep.subr.bf16.mxu0 0
    %8729 = vmatpush2.bf16.msra.mxu0 0
    %8730 = vmatprep.mubr.bf16.mxu0 0
    %8731 = vmatmul.mubr.bf16.gmra.mxu0 %v8573
    %v8732 = vpop.f32.mrf.mxu0
    %v8733 = vadd.f32 0.0, %v8732
    %v8734 = vpop.f32.mrf.mxu0
    %v8735 = vadd.f32 0.0, %v8734
    %v8736 = vpop.f32.mrf.mxu0
    %v8737 = vpop.f32.mrf.mxu0
    %8738 = vdwg.mxu0
    %v8739 = vadd.f32 %v8403, %v8610
    %v8740 = vadd.f32 %v8404, %v8612
    %v8741 = vadd.f32 %v8405, %v8651
    %v8742 = vadd.f32 %v8406, %v8653
    %v8743 = vadd.f32 %v8407, %v8692
    %v8744 = vadd.f32 %v8408, %v8694
    %v8745 = vadd.f32 %v8409, %v8733
    %v8746 = vadd.f32 %v8410, %v8735
    %v8747 = vpack.c.bf16 %v5890, %v5890
    %v8780 = vunpack.c.l.b16 %v6123
    %v8781 = vunpack.c.h.b16 %v6123
    %v8782 = vunpack.c.l.b16 %v6124
    %v8783 = vunpack.c.h.b16 %v6124
    %v8784 = vunpack.c.l.b16 %v6125
    %v8785 = vunpack.c.h.b16 %v6125
    %v8786 = vunpack.c.l.b16 %v6126
    %v8787 = vunpack.c.h.b16 %v6126
    %v8788 = vunpack.c.l.b16 %v6127
    %v8789 = vunpack.c.h.b16 %v6127
    %v8790 = vunpack.c.l.b16 %v6128
    %v8791 = vunpack.c.h.b16 %v6128
    %v8792 = vunpack.c.l.b16 %v6129
    %v8793 = vunpack.c.h.b16 %v6129
    %v8794 = vunpack.c.l.b16 %v6130
    %v8795 = vunpack.c.h.b16 %v6130
    %v8796 = vunpack.c.l.b16 %v6131
    %v8797 = vunpack.c.h.b16 %v6131
    %v8798 = vunpack.c.l.b16 %v6132
    %v8799 = vunpack.c.h.b16 %v6132
    %v8800 = vunpack.c.l.b16 %v6133
    %v8801 = vunpack.c.h.b16 %v6133
    %v8802 = vunpack.c.l.b16 %v6134
    %v8803 = vunpack.c.h.b16 %v6134
    %v8804 = vunpack.c.l.b16 %v6135
    %v8805 = vunpack.c.h.b16 %v6135
    %v8806 = vunpack.c.l.b16 %v6136
    %v8807 = vunpack.c.h.b16 %v6136
    %v8808 = vunpack.c.l.b16 %v6137
    %v8809 = vunpack.c.h.b16 %v6137
    %v8810 = vunpack.c.l.b16 %v6138
    %v8811 = vunpack.c.h.b16 %v6138
    %v8812 = vunpack.c.l.b16 %v6139
    %v8813 = vunpack.c.h.b16 %v6139
    %v8814 = vunpack.c.l.b16 %v6140
    %v8815 = vunpack.c.h.b16 %v6140
    %v8816 = vunpack.c.l.b16 %v6141
    %v8817 = vunpack.c.h.b16 %v6141
    %v8818 = vunpack.c.l.b16 %v6142
    %v8819 = vunpack.c.h.b16 %v6142
    %v8820 = vunpack.c.l.b16 %v6143
    %v8821 = vunpack.c.h.b16 %v6143
    %v8822 = vunpack.c.l.b16 %v6144
    %v8823 = vunpack.c.h.b16 %v6144
    %v8824 = vunpack.c.l.b16 %v6145
    %v8825 = vunpack.c.h.b16 %v6145
    %v8826 = vunpack.c.l.b16 %v6146
    %v8827 = vunpack.c.h.b16 %v6146
    %v8828 = vunpack.c.l.b16 %v6147
    %v8829 = vunpack.c.h.b16 %v6147
    %v8830 = vunpack.c.l.b16 %v6148
    %v8831 = vunpack.c.h.b16 %v6148
    %v8832 = vunpack.c.l.b16 %v6149
    %v8833 = vunpack.c.h.b16 %v6149
    %v8834 = vunpack.c.l.b16 %v6150
    %v8835 = vunpack.c.h.b16 %v6150
    %v8836 = vunpack.c.l.b16 %v6151
    %v8837 = vunpack.c.h.b16 %v6151
    %v8838 = vunpack.c.l.b16 %v6152
    %v8839 = vunpack.c.h.b16 %v6152
    %v8840 = vunpack.c.l.b16 %v6153
    %v8841 = vunpack.c.h.b16 %v6153
    %v8842 = vunpack.c.l.b16 %v6154
    %v8843 = vunpack.c.h.b16 %v6154
    %v8844 = vpack.c.b16 %v8788, %v8780
    %v8845 = vpack.c.b16 %v8789, %v8781
    %v8846 = vpack.c.b16 %v8790, %v8782
    %v8847 = vpack.c.b16 %v8791, %v8783
    %v8848 = vpack.c.b16 %v8792, %v8784
    %v8849 = vpack.c.b16 %v8793, %v8785
    %v8850 = vpack.c.b16 %v8794, %v8786
    %v8851 = vpack.c.b16 %v8795, %v8787
    %v8852 = vpack.c.b16 %v8804, %v8796
    %v8853 = vpack.c.b16 %v8805, %v8797
    %v8854 = vpack.c.b16 %v8806, %v8798
    %v8855 = vpack.c.b16 %v8807, %v8799
    %v8856 = vpack.c.b16 %v8808, %v8800
    %v8857 = vpack.c.b16 %v8809, %v8801
    %v8858 = vpack.c.b16 %v8810, %v8802
    %v8859 = vpack.c.b16 %v8811, %v8803
    %v8860 = vpack.c.b16 %v8820, %v8812
    %v8861 = vpack.c.b16 %v8821, %v8813
    %v8862 = vpack.c.b16 %v8822, %v8814
    %v8863 = vpack.c.b16 %v8823, %v8815
    %v8864 = vpack.c.b16 %v8824, %v8816
    %v8865 = vpack.c.b16 %v8825, %v8817
    %v8866 = vpack.c.b16 %v8826, %v8818
    %v8867 = vpack.c.b16 %v8827, %v8819
    %v8868 = vpack.c.b16 %v8836, %v8828
    %v8869 = vpack.c.b16 %v8837, %v8829
    %v8870 = vpack.c.b16 %v8838, %v8830
    %v8871 = vpack.c.b16 %v8839, %v8831
    %v8872 = vpack.c.b16 %v8840, %v8832
    %v8873 = vpack.c.b16 %v8841, %v8833
    %v8874 = vpack.c.b16 %v8842, %v8834
    %v8875 = vpack.c.b16 %v8843, %v8835
    %v8909 = vsel %vm2168, %v8747, 0
    %8911 = vmatprep.subr.bf16.mxu0 0
    %8912 = vmatpush1.bf16.msra.mxu0 0
    %8913 = vmatprep.subr.bf16.mxu0 0
    %8914 = vmatpush1.bf16.msra.mxu0 0
    %8915 = vmatprep.subr.bf16.mxu0 0
    %8916 = vmatpush1.bf16.msra.mxu0 0
    %8917 = vmatprep.subr.bf16.mxu0 0
    %8918 = vmatpush1.bf16.msra.mxu0 0
    %8919 = vmatprep.subr.bf16.mxu0 %v8869
    %8920 = vmatpush1.bf16.msra.mxu0 %v8868
    %8921 = vmatprep.subr.bf16.mxu0 %v8861
    %8922 = vmatpush1.bf16.msra.mxu0 %v8860
    %8923 = vmatprep.subr.bf16.mxu0 %v8853
    %8924 = vmatpush1.bf16.msra.mxu0 %v8852
    %8925 = vmatprep.subr.bf16.mxu0 %v8845
    %8926 = vmatpush1.bf16.msra.mxu0 %v8844
    %8927 = vmatprep.subr.bf16.mxu0 0
    %8928 = vmatpush2.bf16.msra.mxu0 0
    %8929 = vmatprep.subr.bf16.mxu0 0
    %8930 = vmatpush2.bf16.msra.mxu0 0
    %8931 = vmatprep.subr.bf16.mxu0 0
    %8932 = vmatpush2.bf16.msra.mxu0 0
    %8933 = vmatprep.subr.bf16.mxu0 0
    %8934 = vmatpush2.bf16.msra.mxu0 0
    %8935 = vmatprep.subr.bf16.mxu0 0
    %8936 = vmatpush2.bf16.msra.mxu0 0
    %8937 = vmatprep.subr.bf16.mxu0 0
    %8938 = vmatpush2.bf16.msra.mxu0 0
    %8939 = vmatprep.subr.bf16.mxu0 0
    %8940 = vmatpush2.bf16.msra.mxu0 0
    %8941 = vmatprep.subr.bf16.mxu0 0
    %8942 = vmatpush2.bf16.msra.mxu0 0
    %8943 = vmatprep.mubr.bf16.mxu0 0
    %8944 = vmatmul.mubr.bf16.gmra.mxu0 %v8909
    %v8945 = vpop.f32.mrf.mxu0
    %v8946 = vadd.f32 0.0, %v8945
    %v8947 = vpop.f32.mrf.mxu0
    %v8948 = vadd.f32 0.0, %v8947
    %v8949 = vpop.f32.mrf.mxu0
    %v8950 = vpop.f32.mrf.mxu0
    %8951 = vdwg.mxu0
    %8952 = vmatprep.subr.bf16.mxu0 0
    %8953 = vmatpush1.bf16.msra.mxu0 0
    %8954 = vmatprep.subr.bf16.mxu0 0
    %8955 = vmatpush1.bf16.msra.mxu0 0
    %8956 = vmatprep.subr.bf16.mxu0 0
    %8957 = vmatpush1.bf16.msra.mxu0 0
    %8958 = vmatprep.subr.bf16.mxu0 0
    %8959 = vmatpush1.bf16.msra.mxu0 0
    %8960 = vmatprep.subr.bf16.mxu0 %v8871
    %8961 = vmatpush1.bf16.msra.mxu0 %v8870
    %8962 = vmatprep.subr.bf16.mxu0 %v8863
    %8963 = vmatpush1.bf16.msra.mxu0 %v8862
    %8964 = vmatprep.subr.bf16.mxu0 %v8855
    %8965 = vmatpush1.bf16.msra.mxu0 %v8854
    %8966 = vmatprep.subr.bf16.mxu0 %v8847
    %8967 = vmatpush1.bf16.msra.mxu0 %v8846
    %8968 = vmatprep.subr.bf16.mxu0 0
    %8969 = vmatpush2.bf16.msra.mxu0 0
    %8970 = vmatprep.subr.bf16.mxu0 0
    %8971 = vmatpush2.bf16.msra.mxu0 0
    %8972 = vmatprep.subr.bf16.mxu0 0
    %8973 = vmatpush2.bf16.msra.mxu0 0
    %8974 = vmatprep.subr.bf16.mxu0 0
    %8975 = vmatpush2.bf16.msra.mxu0 0
    %8976 = vmatprep.subr.bf16.mxu0 0
    %8977 = vmatpush2.bf16.msra.mxu0 0
    %8978 = vmatprep.subr.bf16.mxu0 0
    %8979 = vmatpush2.bf16.msra.mxu0 0
    %8980 = vmatprep.subr.bf16.mxu0 0
    %8981 = vmatpush2.bf16.msra.mxu0 0
    %8982 = vmatprep.subr.bf16.mxu0 0
    %8983 = vmatpush2.bf16.msra.mxu0 0
    %8984 = vmatprep.mubr.bf16.mxu0 0
    %8985 = vmatmul.mubr.bf16.gmra.mxu0 %v8909
    %v8986 = vpop.f32.mrf.mxu0
    %v8987 = vadd.f32 0.0, %v8986
    %v8988 = vpop.f32.mrf.mxu0
    %v8989 = vadd.f32 0.0, %v8988
    %v8990 = vpop.f32.mrf.mxu0
    %v8991 = vpop.f32.mrf.mxu0
    %8992 = vdwg.mxu0
    %8993 = vmatprep.subr.bf16.mxu0 0
    %8994 = vmatpush1.bf16.msra.mxu0 0
    %8995 = vmatprep.subr.bf16.mxu0 0
    %8996 = vmatpush1.bf16.msra.mxu0 0
    %8997 = vmatprep.subr.bf16.mxu0 0
    %8998 = vmatpush1.bf16.msra.mxu0 0
    %8999 = vmatprep.subr.bf16.mxu0 0
    %9000 = vmatpush1.bf16.msra.mxu0 0
    %9001 = vmatprep.subr.bf16.mxu0 %v8873
    %9002 = vmatpush1.bf16.msra.mxu0 %v8872
    %9003 = vmatprep.subr.bf16.mxu0 %v8865
    %9004 = vmatpush1.bf16.msra.mxu0 %v8864
    %9005 = vmatprep.subr.bf16.mxu0 %v8857
    %9006 = vmatpush1.bf16.msra.mxu0 %v8856
    %9007 = vmatprep.subr.bf16.mxu0 %v8849
    %9008 = vmatpush1.bf16.msra.mxu0 %v8848
    %9009 = vmatprep.subr.bf16.mxu0 0
    %9010 = vmatpush2.bf16.msra.mxu0 0
    %9011 = vmatprep.subr.bf16.mxu0 0
    %9012 = vmatpush2.bf16.msra.mxu0 0
    %9013 = vmatprep.subr.bf16.mxu0 0
    %9014 = vmatpush2.bf16.msra.mxu0 0
    %9015 = vmatprep.subr.bf16.mxu0 0
    %9016 = vmatpush2.bf16.msra.mxu0 0
    %9017 = vmatprep.subr.bf16.mxu0 0
    %9018 = vmatpush2.bf16.msra.mxu0 0
    %9019 = vmatprep.subr.bf16.mxu0 0
    %9020 = vmatpush2.bf16.msra.mxu0 0
    %9021 = vmatprep.subr.bf16.mxu0 0
    %9022 = vmatpush2.bf16.msra.mxu0 0
    %9023 = vmatprep.subr.bf16.mxu0 0
    %9024 = vmatpush2.bf16.msra.mxu0 0
    %9025 = vmatprep.mubr.bf16.mxu0 0
    %9026 = vmatmul.mubr.bf16.gmra.mxu0 %v8909
    %v9027 = vpop.f32.mrf.mxu0
    %v9028 = vadd.f32 0.0, %v9027
    %v9029 = vpop.f32.mrf.mxu0
    %v9030 = vadd.f32 0.0, %v9029
    %v9031 = vpop.f32.mrf.mxu0
    %v9032 = vpop.f32.mrf.mxu0
    %9033 = vdwg.mxu0
    %9034 = vmatprep.subr.bf16.mxu0 0
    %9035 = vmatpush1.bf16.msra.mxu0 0
    %9036 = vmatprep.subr.bf16.mxu0 0
    %9037 = vmatpush1.bf16.msra.mxu0 0
    %9038 = vmatprep.subr.bf16.mxu0 0
    %9039 = vmatpush1.bf16.msra.mxu0 0
    %9040 = vmatprep.subr.bf16.mxu0 0
    %9041 = vmatpush1.bf16.msra.mxu0 0
    %9042 = vmatprep.subr.bf16.mxu0 %v8875
    %9043 = vmatpush1.bf16.msra.mxu0 %v8874
    %9044 = vmatprep.subr.bf16.mxu0 %v8867
    %9045 = vmatpush1.bf16.msra.mxu0 %v8866
    %9046 = vmatprep.subr.bf16.mxu0 %v8859
    %9047 = vmatpush1.bf16.msra.mxu0 %v8858
    %9048 = vmatprep.subr.bf16.mxu0 %v8851
    %9049 = vmatpush1.bf16.msra.mxu0 %v8850
    %9050 = vmatprep.subr.bf16.mxu0 0
    %9051 = vmatpush2.bf16.msra.mxu0 0
    %9052 = vmatprep.subr.bf16.mxu0 0
    %9053 = vmatpush2.bf16.msra.mxu0 0
    %9054 = vmatprep.subr.bf16.mxu0 0
    %9055 = vmatpush2.bf16.msra.mxu0 0
    %9056 = vmatprep.subr.bf16.mxu0 0
    %9057 = vmatpush2.bf16.msra.mxu0 0
    %9058 = vmatprep.subr.bf16.mxu0 0
    %9059 = vmatpush2.bf16.msra.mxu0 0
    %9060 = vmatprep.subr.bf16.mxu0 0
    %9061 = vmatpush2.bf16.msra.mxu0 0
    %9062 = vmatprep.subr.bf16.mxu0 0
    %9063 = vmatpush2.bf16.msra.mxu0 0
    %9064 = vmatprep.subr.bf16.mxu0 0
    %9065 = vmatpush2.bf16.msra.mxu0 0
    %9066 = vmatprep.mubr.bf16.mxu0 0
    %9067 = vmatmul.mubr.bf16.gmra.mxu0 %v8909
    %v9068 = vpop.f32.mrf.mxu0
    %v9069 = vadd.f32 0.0, %v9068
    %v9070 = vpop.f32.mrf.mxu0
    %v9071 = vadd.f32 0.0, %v9070
    %v9072 = vpop.f32.mrf.mxu0
    %v9073 = vpop.f32.mrf.mxu0
    %9074 = vdwg.mxu0
    %v9075 = vadd.f32 %v8739, %v8946
    %v9076 = vadd.f32 %v8740, %v8948
    %v9077 = vadd.f32 %v8741, %v8987
    %v9078 = vadd.f32 %v8742, %v8989
    %v9079 = vadd.f32 %v8743, %v9028
    %v9080 = vadd.f32 %v8744, %v9030
    %v9081 = vadd.f32 %v8745, %v9069
    %v9082 = vadd.f32 %v8746, %v9071
    %v9083 = vpack.c.bf16 %v5891, %v5891
    %v9116 = vunpack.c.l.b16 %v6155
    %v9117 = vunpack.c.h.b16 %v6155
    %v9118 = vunpack.c.l.b16 %v6156
    %v9119 = vunpack.c.h.b16 %v6156
    %v9120 = vunpack.c.l.b16 %v6157
    %v9121 = vunpack.c.h.b16 %v6157
    %v9122 = vunpack.c.l.b16 %v6158
    %v9123 = vunpack.c.h.b16 %v6158
    %v9124 = vunpack.c.l.b16 %v6159
    %v9125 = vunpack.c.h.b16 %v6159
    %v9126 = vunpack.c.l.b16 %v6160
    %v9127 = vunpack.c.h.b16 %v6160
    %v9128 = vunpack.c.l.b16 %v6161
    %v9129 = vunpack.c.h.b16 %v6161
    %v9130 = vunpack.c.l.b16 %v6162
    %v9131 = vunpack.c.h.b16 %v6162
    %v9132 = vunpack.c.l.b16 %v6163
    %v9133 = vunpack.c.h.b16 %v6163
    %v9134 = vunpack.c.l.b16 %v6164
    %v9135 = vunpack.c.h.b16 %v6164
    %v9136 = vunpack.c.l.b16 %v6165
    %v9137 = vunpack.c.h.b16 %v6165
    %v9138 = vunpack.c.l.b16 %v6166
    %v9139 = vunpack.c.h.b16 %v6166
    %v9140 = vunpack.c.l.b16 %v6167
    %v9141 = vunpack.c.h.b16 %v6167
    %v9142 = vunpack.c.l.b16 %v6168
    %v9143 = vunpack.c.h.b16 %v6168
    %v9144 = vunpack.c.l.b16 %v6169
    %v9145 = vunpack.c.h.b16 %v6169
    %v9146 = vunpack.c.l.b16 %v6170
    %v9147 = vunpack.c.h.b16 %v6170
    %v9148 = vunpack.c.l.b16 %v6171
    %v9149 = vunpack.c.h.b16 %v6171
    %v9150 = vunpack.c.l.b16 %v6172
    %v9151 = vunpack.c.h.b16 %v6172
    %v9152 = vunpack.c.l.b16 %v6173
    %v9153 = vunpack.c.h.b16 %v6173
    %v9154 = vunpack.c.l.b16 %v6174
    %v9155 = vunpack.c.h.b16 %v6174
    %v9156 = vunpack.c.l.b16 %v6175
    %v9157 = vunpack.c.h.b16 %v6175
    %v9158 = vunpack.c.l.b16 %v6176
    %v9159 = vunpack.c.h.b16 %v6176
    %v9160 = vunpack.c.l.b16 %v6177
    %v9161 = vunpack.c.h.b16 %v6177
    %v9162 = vunpack.c.l.b16 %v6178
    %v9163 = vunpack.c.h.b16 %v6178
    %v9164 = vunpack.c.l.b16 %v6179
    %v9165 = vunpack.c.h.b16 %v6179
    %v9166 = vunpack.c.l.b16 %v6180
    %v9167 = vunpack.c.h.b16 %v6180
    %v9168 = vunpack.c.l.b16 %v6181
    %v9169 = vunpack.c.h.b16 %v6181
    %v9170 = vunpack.c.l.b16 %v6182
    %v9171 = vunpack.c.h.b16 %v6182
    %v9172 = vunpack.c.l.b16 %v6183
    %v9173 = vunpack.c.h.b16 %v6183
    %v9174 = vunpack.c.l.b16 %v6184
    %v9175 = vunpack.c.h.b16 %v6184
    %v9176 = vunpack.c.l.b16 %v6185
    %v9177 = vunpack.c.h.b16 %v6185
    %v9178 = vunpack.c.l.b16 %v6186
    %v9179 = vunpack.c.h.b16 %v6186
    %v9180 = vpack.c.b16 %v9124, %v9116
    %v9181 = vpack.c.b16 %v9125, %v9117
    %v9182 = vpack.c.b16 %v9126, %v9118
    %v9183 = vpack.c.b16 %v9127, %v9119
    %v9184 = vpack.c.b16 %v9128, %v9120
    %v9185 = vpack.c.b16 %v9129, %v9121
    %v9186 = vpack.c.b16 %v9130, %v9122
    %v9187 = vpack.c.b16 %v9131, %v9123
    %v9188 = vpack.c.b16 %v9140, %v9132
    %v9189 = vpack.c.b16 %v9141, %v9133
    %v9190 = vpack.c.b16 %v9142, %v9134
    %v9191 = vpack.c.b16 %v9143, %v9135
    %v9192 = vpack.c.b16 %v9144, %v9136
    %v9193 = vpack.c.b16 %v9145, %v9137
    %v9194 = vpack.c.b16 %v9146, %v9138
    %v9195 = vpack.c.b16 %v9147, %v9139
    %v9196 = vpack.c.b16 %v9156, %v9148
    %v9197 = vpack.c.b16 %v9157, %v9149
    %v9198 = vpack.c.b16 %v9158, %v9150
    %v9199 = vpack.c.b16 %v9159, %v9151
    %v9200 = vpack.c.b16 %v9160, %v9152
    %v9201 = vpack.c.b16 %v9161, %v9153
    %v9202 = vpack.c.b16 %v9162, %v9154
    %v9203 = vpack.c.b16 %v9163, %v9155
    %v9204 = vpack.c.b16 %v9172, %v9164
    %v9205 = vpack.c.b16 %v9173, %v9165
    %v9206 = vpack.c.b16 %v9174, %v9166
    %v9207 = vpack.c.b16 %v9175, %v9167
    %v9208 = vpack.c.b16 %v9176, %v9168
    %v9209 = vpack.c.b16 %v9177, %v9169
    %v9210 = vpack.c.b16 %v9178, %v9170
    %v9211 = vpack.c.b16 %v9179, %v9171
    %v9245 = vsel %vm2168, %v9083, 0
    %9247 = vmatprep.subr.bf16.mxu0 0
    %9248 = vmatpush1.bf16.msra.mxu0 0
    %9249 = vmatprep.subr.bf16.mxu0 0
    %9250 = vmatpush1.bf16.msra.mxu0 0
    %9251 = vmatprep.subr.bf16.mxu0 0
    %9252 = vmatpush1.bf16.msra.mxu0 0
    %9253 = vmatprep.subr.bf16.mxu0 0
    %9254 = vmatpush1.bf16.msra.mxu0 0
    %9255 = vmatprep.subr.bf16.mxu0 %v9205
    %9256 = vmatpush1.bf16.msra.mxu0 %v9204
    %9257 = vmatprep.subr.bf16.mxu0 %v9197
    %9258 = vmatpush1.bf16.msra.mxu0 %v9196
    %9259 = vmatprep.subr.bf16.mxu0 %v9189
    %9260 = vmatpush1.bf16.msra.mxu0 %v9188
    %9261 = vmatprep.subr.bf16.mxu0 %v9181
    %9262 = vmatpush1.bf16.msra.mxu0 %v9180
    %9263 = vmatprep.subr.bf16.mxu0 0
    %9264 = vmatpush2.bf16.msra.mxu0 0
    %9265 = vmatprep.subr.bf16.mxu0 0
    %9266 = vmatpush2.bf16.msra.mxu0 0
    %9267 = vmatprep.subr.bf16.mxu0 0
    %9268 = vmatpush2.bf16.msra.mxu0 0
    %9269 = vmatprep.subr.bf16.mxu0 0
    %9270 = vmatpush2.bf16.msra.mxu0 0
    %9271 = vmatprep.subr.bf16.mxu0 0
    %9272 = vmatpush2.bf16.msra.mxu0 0
    %9273 = vmatprep.subr.bf16.mxu0 0
    %9274 = vmatpush2.bf16.msra.mxu0 0
    %9275 = vmatprep.subr.bf16.mxu0 0
    %9276 = vmatpush2.bf16.msra.mxu0 0
    %9277 = vmatprep.subr.bf16.mxu0 0
    %9278 = vmatpush2.bf16.msra.mxu0 0
    %9279 = vmatprep.mubr.bf16.mxu0 0
    %9280 = vmatmul.mubr.bf16.gmra.mxu0 %v9245
    %v9281 = vpop.f32.mrf.mxu0
    %v9282 = vadd.f32 0.0, %v9281
    %v9283 = vpop.f32.mrf.mxu0
    %v9284 = vadd.f32 0.0, %v9283
    %v9285 = vpop.f32.mrf.mxu0
    %v9286 = vpop.f32.mrf.mxu0
    %9287 = vdwg.mxu0
    %9288 = vmatprep.subr.bf16.mxu0 0
    %9289 = vmatpush1.bf16.msra.mxu0 0
    %9290 = vmatprep.subr.bf16.mxu0 0
    %9291 = vmatpush1.bf16.msra.mxu0 0
    %9292 = vmatprep.subr.bf16.mxu0 0
    %9293 = vmatpush1.bf16.msra.mxu0 0
    %9294 = vmatprep.subr.bf16.mxu0 0
    %9295 = vmatpush1.bf16.msra.mxu0 0
    %9296 = vmatprep.subr.bf16.mxu0 %v9207
    %9297 = vmatpush1.bf16.msra.mxu0 %v9206
    %9298 = vmatprep.subr.bf16.mxu0 %v9199
    %9299 = vmatpush1.bf16.msra.mxu0 %v9198
    %9300 = vmatprep.subr.bf16.mxu0 %v9191
    %9301 = vmatpush1.bf16.msra.mxu0 %v9190
    %9302 = vmatprep.subr.bf16.mxu0 %v9183
    %9303 = vmatpush1.bf16.msra.mxu0 %v9182
    %9304 = vmatprep.subr.bf16.mxu0 0
    %9305 = vmatpush2.bf16.msra.mxu0 0
    %9306 = vmatprep.subr.bf16.mxu0 0
    %9307 = vmatpush2.bf16.msra.mxu0 0
    %9308 = vmatprep.subr.bf16.mxu0 0
    %9309 = vmatpush2.bf16.msra.mxu0 0
    %9310 = vmatprep.subr.bf16.mxu0 0
    %9311 = vmatpush2.bf16.msra.mxu0 0
    %9312 = vmatprep.subr.bf16.mxu0 0
    %9313 = vmatpush2.bf16.msra.mxu0 0
    %9314 = vmatprep.subr.bf16.mxu0 0
    %9315 = vmatpush2.bf16.msra.mxu0 0
    %9316 = vmatprep.subr.bf16.mxu0 0
    %9317 = vmatpush2.bf16.msra.mxu0 0
    %9318 = vmatprep.subr.bf16.mxu0 0
    %9319 = vmatpush2.bf16.msra.mxu0 0
    %9320 = vmatprep.mubr.bf16.mxu0 0
    %9321 = vmatmul.mubr.bf16.gmra.mxu0 %v9245
    %v9322 = vpop.f32.mrf.mxu0
    %v9323 = vadd.f32 0.0, %v9322
    %v9324 = vpop.f32.mrf.mxu0
    %v9325 = vadd.f32 0.0, %v9324
    %v9326 = vpop.f32.mrf.mxu0
    %v9327 = vpop.f32.mrf.mxu0
    %9328 = vdwg.mxu0
    %9329 = vmatprep.subr.bf16.mxu0 0
    %9330 = vmatpush1.bf16.msra.mxu0 0
    %9331 = vmatprep.subr.bf16.mxu0 0
    %9332 = vmatpush1.bf16.msra.mxu0 0
    %9333 = vmatprep.subr.bf16.mxu0 0
    %9334 = vmatpush1.bf16.msra.mxu0 0
    %9335 = vmatprep.subr.bf16.mxu0 0
    %9336 = vmatpush1.bf16.msra.mxu0 0
    %9337 = vmatprep.subr.bf16.mxu0 %v9209
    %9338 = vmatpush1.bf16.msra.mxu0 %v9208
    %9339 = vmatprep.subr.bf16.mxu0 %v9201
    %9340 = vmatpush1.bf16.msra.mxu0 %v9200
    %9341 = vmatprep.subr.bf16.mxu0 %v9193
    %9342 = vmatpush1.bf16.msra.mxu0 %v9192
    %9343 = vmatprep.subr.bf16.mxu0 %v9185
    %9344 = vmatpush1.bf16.msra.mxu0 %v9184
    %9345 = vmatprep.subr.bf16.mxu0 0
    %9346 = vmatpush2.bf16.msra.mxu0 0
    %9347 = vmatprep.subr.bf16.mxu0 0
    %9348 = vmatpush2.bf16.msra.mxu0 0
    %9349 = vmatprep.subr.bf16.mxu0 0
    %9350 = vmatpush2.bf16.msra.mxu0 0
    %9351 = vmatprep.subr.bf16.mxu0 0
    %9352 = vmatpush2.bf16.msra.mxu0 0
    %9353 = vmatprep.subr.bf16.mxu0 0
    %9354 = vmatpush2.bf16.msra.mxu0 0
    %9355 = vmatprep.subr.bf16.mxu0 0
    %9356 = vmatpush2.bf16.msra.mxu0 0
    %9357 = vmatprep.subr.bf16.mxu0 0
    %9358 = vmatpush2.bf16.msra.mxu0 0
    %9359 = vmatprep.subr.bf16.mxu0 0
    %9360 = vmatpush2.bf16.msra.mxu0 0
    %9361 = vmatprep.mubr.bf16.mxu0 0
    %9362 = vmatmul.mubr.bf16.gmra.mxu0 %v9245
    %v9363 = vpop.f32.mrf.mxu0
    %v9364 = vadd.f32 0.0, %v9363
    %v9365 = vpop.f32.mrf.mxu0
    %v9366 = vadd.f32 0.0, %v9365
    %v9367 = vpop.f32.mrf.mxu0
    %v9368 = vpop.f32.mrf.mxu0
    %9369 = vdwg.mxu0
    %9370 = vmatprep.subr.bf16.mxu0 0
    %9371 = vmatpush1.bf16.msra.mxu0 0
    %9372 = vmatprep.subr.bf16.mxu0 0
    %9373 = vmatpush1.bf16.msra.mxu0 0
    %9374 = vmatprep.subr.bf16.mxu0 0
    %9375 = vmatpush1.bf16.msra.mxu0 0
    %9376 = vmatprep.subr.bf16.mxu0 0
    %9377 = vmatpush1.bf16.msra.mxu0 0
    %9378 = vmatprep.subr.bf16.mxu0 %v9211
    %9379 = vmatpush1.bf16.msra.mxu0 %v9210
    %9380 = vmatprep.subr.bf16.mxu0 %v9203
    %9381 = vmatpush1.bf16.msra.mxu0 %v9202
    %9382 = vmatprep.subr.bf16.mxu0 %v9195
    %9383 = vmatpush1.bf16.msra.mxu0 %v9194
    %9384 = vmatprep.subr.bf16.mxu0 %v9187
    %9385 = vmatpush1.bf16.msra.mxu0 %v9186
    %9386 = vmatprep.subr.bf16.mxu0 0
    %9387 = vmatpush2.bf16.msra.mxu0 0
    %9388 = vmatprep.subr.bf16.mxu0 0
    %9389 = vmatpush2.bf16.msra.mxu0 0
    %9390 = vmatprep.subr.bf16.mxu0 0
    %9391 = vmatpush2.bf16.msra.mxu0 0
    %9392 = vmatprep.subr.bf16.mxu0 0
    %9393 = vmatpush2.bf16.msra.mxu0 0
    %9394 = vmatprep.subr.bf16.mxu0 0
    %9395 = vmatpush2.bf16.msra.mxu0 0
    %9396 = vmatprep.subr.bf16.mxu0 0
    %9397 = vmatpush2.bf16.msra.mxu0 0
    %9398 = vmatprep.subr.bf16.mxu0 0
    %9399 = vmatpush2.bf16.msra.mxu0 0
    %9400 = vmatprep.subr.bf16.mxu0 0
    %9401 = vmatpush2.bf16.msra.mxu0 0
    %9402 = vmatprep.mubr.bf16.mxu0 0
    %9403 = vmatmul.mubr.bf16.gmra.mxu0 %v9245
    %v9404 = vpop.f32.mrf.mxu0
    %v9405 = vadd.f32 0.0, %v9404
    %v9406 = vpop.f32.mrf.mxu0
    %v9407 = vadd.f32 0.0, %v9406
    %v9408 = vpop.f32.mrf.mxu0
    %v9409 = vpop.f32.mrf.mxu0
    %9410 = vdwg.mxu0
    %v9411 = vadd.f32 %v9075, %v9282
    %v9412 = vadd.f32 %v9076, %v9284
    %v9413 = vadd.f32 %v9077, %v9323
    %v9414 = vadd.f32 %v9078, %v9325
    %v9415 = vadd.f32 %v9079, %v9364
    %v9416 = vadd.f32 %v9080, %v9366
    %v9417 = vadd.f32 %v9081, %v9405
    %v9418 = vadd.f32 %v9082, %v9407
    %v9419 = vpack.c.bf16 %v5892, %v5892
    %v9452 = vunpack.c.l.b16 %v6187
    %v9453 = vunpack.c.h.b16 %v6187
    %v9454 = vunpack.c.l.b16 %v6188
    %v9455 = vunpack.c.h.b16 %v6188
    %v9456 = vunpack.c.l.b16 %v6189
    %v9457 = vunpack.c.h.b16 %v6189
    %v9458 = vunpack.c.l.b16 %v6190
    %v9459 = vunpack.c.h.b16 %v6190
    %v9460 = vunpack.c.l.b16 %v6191
    %v9461 = vunpack.c.h.b16 %v6191
    %v9462 = vunpack.c.l.b16 %v6192
    %v9463 = vunpack.c.h.b16 %v6192
    %v9464 = vunpack.c.l.b16 %v6193
    %v9465 = vunpack.c.h.b16 %v6193
    %v9466 = vunpack.c.l.b16 %v6194
    %v9467 = vunpack.c.h.b16 %v6194
    %v9468 = vunpack.c.l.b16 %v6195
    %v9469 = vunpack.c.h.b16 %v6195
    %v9470 = vunpack.c.l.b16 %v6196
    %v9471 = vunpack.c.h.b16 %v6196
    %v9472 = vunpack.c.l.b16 %v6197
    %v9473 = vunpack.c.h.b16 %v6197
    %v9474 = vunpack.c.l.b16 %v6198
    %v9475 = vunpack.c.h.b16 %v6198
    %v9476 = vunpack.c.l.b16 %v6199
    %v9477 = vunpack.c.h.b16 %v6199
    %v9478 = vunpack.c.l.b16 %v6200
    %v9479 = vunpack.c.h.b16 %v6200
    %v9480 = vunpack.c.l.b16 %v6201
    %v9481 = vunpack.c.h.b16 %v6201
    %v9482 = vunpack.c.l.b16 %v6202
    %v9483 = vunpack.c.h.b16 %v6202
    %v9484 = vunpack.c.l.b16 %v6203
    %v9485 = vunpack.c.h.b16 %v6203
    %v9486 = vunpack.c.l.b16 %v6204
    %v9487 = vunpack.c.h.b16 %v6204
    %v9488 = vunpack.c.l.b16 %v6205
    %v9489 = vunpack.c.h.b16 %v6205
    %v9490 = vunpack.c.l.b16 %v6206
    %v9491 = vunpack.c.h.b16 %v6206
    %v9492 = vunpack.c.l.b16 %v6207
    %v9493 = vunpack.c.h.b16 %v6207
    %v9494 = vunpack.c.l.b16 %v6208
    %v9495 = vunpack.c.h.b16 %v6208
    %v9496 = vunpack.c.l.b16 %v6209
    %v9497 = vunpack.c.h.b16 %v6209
    %v9498 = vunpack.c.l.b16 %v6210
    %v9499 = vunpack.c.h.b16 %v6210
    %v9500 = vunpack.c.l.b16 %v6211
    %v9501 = vunpack.c.h.b16 %v6211
    %v9502 = vunpack.c.l.b16 %v6212
    %v9503 = vunpack.c.h.b16 %v6212
    %v9504 = vunpack.c.l.b16 %v6213
    %v9505 = vunpack.c.h.b16 %v6213
    %v9506 = vunpack.c.l.b16 %v6214
    %v9507 = vunpack.c.h.b16 %v6214
    %v9508 = vunpack.c.l.b16 %v6215
    %v9509 = vunpack.c.h.b16 %v6215
    %v9510 = vunpack.c.l.b16 %v6216
    %v9511 = vunpack.c.h.b16 %v6216
    %v9512 = vunpack.c.l.b16 %v6217
    %v9513 = vunpack.c.h.b16 %v6217
    %v9514 = vunpack.c.l.b16 %v6218
    %v9515 = vunpack.c.h.b16 %v6218
    %v9516 = vpack.c.b16 %v9460, %v9452
    %v9517 = vpack.c.b16 %v9461, %v9453
    %v9518 = vpack.c.b16 %v9462, %v9454
    %v9519 = vpack.c.b16 %v9463, %v9455
    %v9520 = vpack.c.b16 %v9464, %v9456
    %v9521 = vpack.c.b16 %v9465, %v9457
    %v9522 = vpack.c.b16 %v9466, %v9458
    %v9523 = vpack.c.b16 %v9467, %v9459
    %v9524 = vpack.c.b16 %v9476, %v9468
    %v9525 = vpack.c.b16 %v9477, %v9469
    %v9526 = vpack.c.b16 %v9478, %v9470
    %v9527 = vpack.c.b16 %v9479, %v9471
    %v9528 = vpack.c.b16 %v9480, %v9472
    %v9529 = vpack.c.b16 %v9481, %v9473
    %v9530 = vpack.c.b16 %v9482, %v9474
    %v9531 = vpack.c.b16 %v9483, %v9475
    %v9532 = vpack.c.b16 %v9492, %v9484
    %v9533 = vpack.c.b16 %v9493, %v9485
    %v9534 = vpack.c.b16 %v9494, %v9486
    %v9535 = vpack.c.b16 %v9495, %v9487
    %v9536 = vpack.c.b16 %v9496, %v9488
    %v9537 = vpack.c.b16 %v9497, %v9489
    %v9538 = vpack.c.b16 %v9498, %v9490
    %v9539 = vpack.c.b16 %v9499, %v9491
    %v9540 = vpack.c.b16 %v9508, %v9500
    %v9541 = vpack.c.b16 %v9509, %v9501
    %v9542 = vpack.c.b16 %v9510, %v9502
    %v9543 = vpack.c.b16 %v9511, %v9503
    %v9544 = vpack.c.b16 %v9512, %v9504
    %v9545 = vpack.c.b16 %v9513, %v9505
    %v9546 = vpack.c.b16 %v9514, %v9506
    %v9547 = vpack.c.b16 %v9515, %v9507
    %v9581 = vsel %vm2168, %v9419, 0
    %9583 = vmatprep.subr.bf16.mxu0 0
    %9584 = vmatpush1.bf16.msra.mxu0 0
    %9585 = vmatprep.subr.bf16.mxu0 0
    %9586 = vmatpush1.bf16.msra.mxu0 0
    %9587 = vmatprep.subr.bf16.mxu0 0
    %9588 = vmatpush1.bf16.msra.mxu0 0
    %9589 = vmatprep.subr.bf16.mxu0 0
    %9590 = vmatpush1.bf16.msra.mxu0 0
    %9591 = vmatprep.subr.bf16.mxu0 %v9541
    %9592 = vmatpush1.bf16.msra.mxu0 %v9540
    %9593 = vmatprep.subr.bf16.mxu0 %v9533
    %9594 = vmatpush1.bf16.msra.mxu0 %v9532
    %9595 = vmatprep.subr.bf16.mxu0 %v9525
    %9596 = vmatpush1.bf16.msra.mxu0 %v9524
    %9597 = vmatprep.subr.bf16.mxu0 %v9517
    %9598 = vmatpush1.bf16.msra.mxu0 %v9516
    %9599 = vmatprep.subr.bf16.mxu0 0
    %9600 = vmatpush2.bf16.msra.mxu0 0
    %9601 = vmatprep.subr.bf16.mxu0 0
    %9602 = vmatpush2.bf16.msra.mxu0 0
    %9603 = vmatprep.subr.bf16.mxu0 0
    %9604 = vmatpush2.bf16.msra.mxu0 0
    %9605 = vmatprep.subr.bf16.mxu0 0
    %9606 = vmatpush2.bf16.msra.mxu0 0
    %9607 = vmatprep.subr.bf16.mxu0 0
    %9608 = vmatpush2.bf16.msra.mxu0 0
    %9609 = vmatprep.subr.bf16.mxu0 0
    %9610 = vmatpush2.bf16.msra.mxu0 0
    %9611 = vmatprep.subr.bf16.mxu0 0
    %9612 = vmatpush2.bf16.msra.mxu0 0
    %9613 = vmatprep.subr.bf16.mxu0 0
    %9614 = vmatpush2.bf16.msra.mxu0 0
    %9615 = vmatprep.mubr.bf16.mxu0 0
    %9616 = vmatmul.mubr.bf16.gmra.mxu0 %v9581
    %v9617 = vpop.f32.mrf.mxu0
    %v9618 = vadd.f32 0.0, %v9617
    %v9619 = vpop.f32.mrf.mxu0
    %v9620 = vadd.f32 0.0, %v9619
    %v9621 = vpop.f32.mrf.mxu0
    %v9622 = vpop.f32.mrf.mxu0
    %9623 = vdwg.mxu0
    %9624 = vmatprep.subr.bf16.mxu0 0
    %9625 = vmatpush1.bf16.msra.mxu0 0
    %9626 = vmatprep.subr.bf16.mxu0 0
    %9627 = vmatpush1.bf16.msra.mxu0 0
    %9628 = vmatprep.subr.bf16.mxu0 0
    %9629 = vmatpush1.bf16.msra.mxu0 0
    %9630 = vmatprep.subr.bf16.mxu0 0
    %9631 = vmatpush1.bf16.msra.mxu0 0
    %9632 = vmatprep.subr.bf16.mxu0 %v9543
    %9633 = vmatpush1.bf16.msra.mxu0 %v9542
    %9634 = vmatprep.subr.bf16.mxu0 %v9535
    %9635 = vmatpush1.bf16.msra.mxu0 %v9534
    %9636 = vmatprep.subr.bf16.mxu0 %v9527
    %9637 = vmatpush1.bf16.msra.mxu0 %v9526
    %9638 = vmatprep.subr.bf16.mxu0 %v9519
    %9639 = vmatpush1.bf16.msra.mxu0 %v9518
    %9640 = vmatprep.subr.bf16.mxu0 0
    %9641 = vmatpush2.bf16.msra.mxu0 0
    %9642 = vmatprep.subr.bf16.mxu0 0
    %9643 = vmatpush2.bf16.msra.mxu0 0
    %9644 = vmatprep.subr.bf16.mxu0 0
    %9645 = vmatpush2.bf16.msra.mxu0 0
    %9646 = vmatprep.subr.bf16.mxu0 0
    %9647 = vmatpush2.bf16.msra.mxu0 0
    %9648 = vmatprep.subr.bf16.mxu0 0
    %9649 = vmatpush2.bf16.msra.mxu0 0
    %9650 = vmatprep.subr.bf16.mxu0 0
    %9651 = vmatpush2.bf16.msra.mxu0 0
    %9652 = vmatprep.subr.bf16.mxu0 0
    %9653 = vmatpush2.bf16.msra.mxu0 0
    %9654 = vmatprep.subr.bf16.mxu0 0
    %9655 = vmatpush2.bf16.msra.mxu0 0
    %9656 = vmatprep.mubr.bf16.mxu0 0
    %9657 = vmatmul.mubr.bf16.gmra.mxu0 %v9581
    %v9658 = vpop.f32.mrf.mxu0
    %v9659 = vadd.f32 0.0, %v9658
    %v9660 = vpop.f32.mrf.mxu0
    %v9661 = vadd.f32 0.0, %v9660
    %v9662 = vpop.f32.mrf.mxu0
    %v9663 = vpop.f32.mrf.mxu0
    %9664 = vdwg.mxu0
    %9665 = vmatprep.subr.bf16.mxu0 0
    %9666 = vmatpush1.bf16.msra.mxu0 0
    %9667 = vmatprep.subr.bf16.mxu0 0
    %9668 = vmatpush1.bf16.msra.mxu0 0
    %9669 = vmatprep.subr.bf16.mxu0 0
    %9670 = vmatpush1.bf16.msra.mxu0 0
    %9671 = vmatprep.subr.bf16.mxu0 0
    %9672 = vmatpush1.bf16.msra.mxu0 0
    %9673 = vmatprep.subr.bf16.mxu0 %v9545
    %9674 = vmatpush1.bf16.msra.mxu0 %v9544
    %9675 = vmatprep.subr.bf16.mxu0 %v9537
    %9676 = vmatpush1.bf16.msra.mxu0 %v9536
    %9677 = vmatprep.subr.bf16.mxu0 %v9529
    %9678 = vmatpush1.bf16.msra.mxu0 %v9528
    %9679 = vmatprep.subr.bf16.mxu0 %v9521
    %9680 = vmatpush1.bf16.msra.mxu0 %v9520
    %9681 = vmatprep.subr.bf16.mxu0 0
    %9682 = vmatpush2.bf16.msra.mxu0 0
    %9683 = vmatprep.subr.bf16.mxu0 0
    %9684 = vmatpush2.bf16.msra.mxu0 0
    %9685 = vmatprep.subr.bf16.mxu0 0
    %9686 = vmatpush2.bf16.msra.mxu0 0
    %9687 = vmatprep.subr.bf16.mxu0 0
    %9688 = vmatpush2.bf16.msra.mxu0 0
    %9689 = vmatprep.subr.bf16.mxu0 0
    %9690 = vmatpush2.bf16.msra.mxu0 0
    %9691 = vmatprep.subr.bf16.mxu0 0
    %9692 = vmatpush2.bf16.msra.mxu0 0
    %9693 = vmatprep.subr.bf16.mxu0 0
    %9694 = vmatpush2.bf16.msra.mxu0 0
    %9695 = vmatprep.subr.bf16.mxu0 0
    %9696 = vmatpush2.bf16.msra.mxu0 0
    %9697 = vmatprep.mubr.bf16.mxu0 0
    %9698 = vmatmul.mubr.bf16.gmra.mxu0 %v9581
    %v9699 = vpop.f32.mrf.mxu0
    %v9700 = vadd.f32 0.0, %v9699
    %v9701 = vpop.f32.mrf.mxu0
    %v9702 = vadd.f32 0.0, %v9701
    %v9703 = vpop.f32.mrf.mxu0
    %v9704 = vpop.f32.mrf.mxu0
    %9705 = vdwg.mxu0
    %9706 = vmatprep.subr.bf16.mxu0 0
    %9707 = vmatpush1.bf16.msra.mxu0 0
    %9708 = vmatprep.subr.bf16.mxu0 0
    %9709 = vmatpush1.bf16.msra.mxu0 0
    %9710 = vmatprep.subr.bf16.mxu0 0
    %9711 = vmatpush1.bf16.msra.mxu0 0
    %9712 = vmatprep.subr.bf16.mxu0 0
    %9713 = vmatpush1.bf16.msra.mxu0 0
    %9714 = vmatprep.subr.bf16.mxu0 %v9547
    %9715 = vmatpush1.bf16.msra.mxu0 %v9546
    %9716 = vmatprep.subr.bf16.mxu0 %v9539
    %9717 = vmatpush1.bf16.msra.mxu0 %v9538
    %9718 = vmatprep.subr.bf16.mxu0 %v9531
    %9719 = vmatpush1.bf16.msra.mxu0 %v9530
    %9720 = vmatprep.subr.bf16.mxu0 %v9523
    %9721 = vmatpush1.bf16.msra.mxu0 %v9522
    %9722 = vmatprep.subr.bf16.mxu0 0
    %9723 = vmatpush2.bf16.msra.mxu0 0
    %9724 = vmatprep.subr.bf16.mxu0 0
    %9725 = vmatpush2.bf16.msra.mxu0 0
    %9726 = vmatprep.subr.bf16.mxu0 0
    %9727 = vmatpush2.bf16.msra.mxu0 0
    %9728 = vmatprep.subr.bf16.mxu0 0
    %9729 = vmatpush2.bf16.msra.mxu0 0
    %9730 = vmatprep.subr.bf16.mxu0 0
    %9731 = vmatpush2.bf16.msra.mxu0 0
    %9732 = vmatprep.subr.bf16.mxu0 0
    %9733 = vmatpush2.bf16.msra.mxu0 0
    %9734 = vmatprep.subr.bf16.mxu0 0
    %9735 = vmatpush2.bf16.msra.mxu0 0
    %9736 = vmatprep.subr.bf16.mxu0 0
    %9737 = vmatpush2.bf16.msra.mxu0 0
    %9738 = vmatprep.mubr.bf16.mxu0 0
    %9739 = vmatmul.mubr.bf16.gmra.mxu0 %v9581
    %v9740 = vpop.f32.mrf.mxu0
    %v9741 = vadd.f32 0.0, %v9740
    %v9742 = vpop.f32.mrf.mxu0
    %v9743 = vadd.f32 0.0, %v9742
    %v9744 = vpop.f32.mrf.mxu0
    %v9745 = vpop.f32.mrf.mxu0
    %9746 = vdwg.mxu0
    %v9747 = vadd.f32 %v9411, %v9618
    %v9748 = vadd.f32 %v9412, %v9620
    %v9749 = vadd.f32 %v9413, %v9659
    %v9750 = vadd.f32 %v9414, %v9661
    %v9751 = vadd.f32 %v9415, %v9700
    %v9752 = vadd.f32 %v9416, %v9702
    %v9753 = vadd.f32 %v9417, %v9741
    %v9754 = vadd.f32 %v9418, %v9743
    %v9755 = vpack.c.bf16 %v5893, %v5893
    %v9788 = vunpack.c.l.b16 %v6219
    %v9789 = vunpack.c.h.b16 %v6219
    %v9790 = vunpack.c.l.b16 %v6220
    %v9791 = vunpack.c.h.b16 %v6220
    %v9792 = vunpack.c.l.b16 %v6221
    %v9793 = vunpack.c.h.b16 %v6221
    %v9794 = vunpack.c.l.b16 %v6222
    %v9795 = vunpack.c.h.b16 %v6222
    %v9796 = vunpack.c.l.b16 %v6223
    %v9797 = vunpack.c.h.b16 %v6223
    %v9798 = vunpack.c.l.b16 %v6224
    %v9799 = vunpack.c.h.b16 %v6224
    %v9800 = vunpack.c.l.b16 %v6225
    %v9801 = vunpack.c.h.b16 %v6225
    %v9802 = vunpack.c.l.b16 %v6226
    %v9803 = vunpack.c.h.b16 %v6226
    %v9804 = vunpack.c.l.b16 %v6227
    %v9805 = vunpack.c.h.b16 %v6227
    %v9806 = vunpack.c.l.b16 %v6228
    %v9807 = vunpack.c.h.b16 %v6228
    %v9808 = vunpack.c.l.b16 %v6229
    %v9809 = vunpack.c.h.b16 %v6229
    %v9810 = vunpack.c.l.b16 %v6230
    %v9811 = vunpack.c.h.b16 %v6230
    %v9812 = vunpack.c.l.b16 %v6231
    %v9813 = vunpack.c.h.b16 %v6231
    %v9814 = vunpack.c.l.b16 %v6232
    %v9815 = vunpack.c.h.b16 %v6232
    %v9816 = vunpack.c.l.b16 %v6233
    %v9817 = vunpack.c.h.b16 %v6233
    %v9818 = vunpack.c.l.b16 %v6234
    %v9819 = vunpack.c.h.b16 %v6234
    %v9820 = vunpack.c.l.b16 %v6235
    %v9821 = vunpack.c.h.b16 %v6235
    %v9822 = vunpack.c.l.b16 %v6236
    %v9823 = vunpack.c.h.b16 %v6236
    %v9824 = vunpack.c.l.b16 %v6237
    %v9825 = vunpack.c.h.b16 %v6237
    %v9826 = vunpack.c.l.b16 %v6238
    %v9827 = vunpack.c.h.b16 %v6238
    %v9828 = vunpack.c.l.b16 %v6239
    %v9829 = vunpack.c.h.b16 %v6239
    %v9830 = vunpack.c.l.b16 %v6240
    %v9831 = vunpack.c.h.b16 %v6240
    %v9832 = vunpack.c.l.b16 %v6241
    %v9833 = vunpack.c.h.b16 %v6241
    %v9834 = vunpack.c.l.b16 %v6242
    %v9835 = vunpack.c.h.b16 %v6242
    %v9836 = vunpack.c.l.b16 %v6243
    %v9837 = vunpack.c.h.b16 %v6243
    %v9838 = vunpack.c.l.b16 %v6244
    %v9839 = vunpack.c.h.b16 %v6244
    %v9840 = vunpack.c.l.b16 %v6245
    %v9841 = vunpack.c.h.b16 %v6245
    %v9842 = vunpack.c.l.b16 %v6246
    %v9843 = vunpack.c.h.b16 %v6246
    %v9844 = vunpack.c.l.b16 %v6247
    %v9845 = vunpack.c.h.b16 %v6247
    %v9846 = vunpack.c.l.b16 %v6248
    %v9847 = vunpack.c.h.b16 %v6248
    %v9848 = vunpack.c.l.b16 %v6249
    %v9849 = vunpack.c.h.b16 %v6249
    %v9850 = vunpack.c.l.b16 %v6250
    %v9851 = vunpack.c.h.b16 %v6250
    %v9852 = vpack.c.b16 %v9796, %v9788
    %v9853 = vpack.c.b16 %v9797, %v9789
    %v9854 = vpack.c.b16 %v9798, %v9790
    %v9855 = vpack.c.b16 %v9799, %v9791
    %v9856 = vpack.c.b16 %v9800, %v9792
    %v9857 = vpack.c.b16 %v9801, %v9793
    %v9858 = vpack.c.b16 %v9802, %v9794
    %v9859 = vpack.c.b16 %v9803, %v9795
    %v9860 = vpack.c.b16 %v9812, %v9804
    %v9861 = vpack.c.b16 %v9813, %v9805
    %v9862 = vpack.c.b16 %v9814, %v9806
    %v9863 = vpack.c.b16 %v9815, %v9807
    %v9864 = vpack.c.b16 %v9816, %v9808
    %v9865 = vpack.c.b16 %v9817, %v9809
    %v9866 = vpack.c.b16 %v9818, %v9810
    %v9867 = vpack.c.b16 %v9819, %v9811
    %v9868 = vpack.c.b16 %v9828, %v9820
    %v9869 = vpack.c.b16 %v9829, %v9821
    %v9870 = vpack.c.b16 %v9830, %v9822
    %v9871 = vpack.c.b16 %v9831, %v9823
    %v9872 = vpack.c.b16 %v9832, %v9824
    %v9873 = vpack.c.b16 %v9833, %v9825
    %v9874 = vpack.c.b16 %v9834, %v9826
    %v9875 = vpack.c.b16 %v9835, %v9827
    %v9876 = vpack.c.b16 %v9844, %v9836
    %v9877 = vpack.c.b16 %v9845, %v9837
    %v9878 = vpack.c.b16 %v9846, %v9838
    %v9879 = vpack.c.b16 %v9847, %v9839
    %v9880 = vpack.c.b16 %v9848, %v9840
    %v9881 = vpack.c.b16 %v9849, %v9841
    %v9882 = vpack.c.b16 %v9850, %v9842
    %v9883 = vpack.c.b16 %v9851, %v9843
    %v9917 = vsel %vm2168, %v9755, 0
    %9919 = vmatprep.subr.bf16.mxu0 0
    %9920 = vmatpush1.bf16.msra.mxu0 0
    %9921 = vmatprep.subr.bf16.mxu0 0
    %9922 = vmatpush1.bf16.msra.mxu0 0
    %9923 = vmatprep.subr.bf16.mxu0 0
    %9924 = vmatpush1.bf16.msra.mxu0 0
    %9925 = vmatprep.subr.bf16.mxu0 0
    %9926 = vmatpush1.bf16.msra.mxu0 0
    %9927 = vmatprep.subr.bf16.mxu0 %v9877
    %9928 = vmatpush1.bf16.msra.mxu0 %v9876
    %9929 = vmatprep.subr.bf16.mxu0 %v9869
    %9930 = vmatpush1.bf16.msra.mxu0 %v9868
    %9931 = vmatprep.subr.bf16.mxu0 %v9861
    %9932 = vmatpush1.bf16.msra.mxu0 %v9860
    %9933 = vmatprep.subr.bf16.mxu0 %v9853
    %9934 = vmatpush1.bf16.msra.mxu0 %v9852
    %9935 = vmatprep.subr.bf16.mxu0 0
    %9936 = vmatpush2.bf16.msra.mxu0 0
    %9937 = vmatprep.subr.bf16.mxu0 0
    %9938 = vmatpush2.bf16.msra.mxu0 0
    %9939 = vmatprep.subr.bf16.mxu0 0
    %9940 = vmatpush2.bf16.msra.mxu0 0
    %9941 = vmatprep.subr.bf16.mxu0 0
    %9942 = vmatpush2.bf16.msra.mxu0 0
    %9943 = vmatprep.subr.bf16.mxu0 0
    %9944 = vmatpush2.bf16.msra.mxu0 0
    %9945 = vmatprep.subr.bf16.mxu0 0
    %9946 = vmatpush2.bf16.msra.mxu0 0
    %9947 = vmatprep.subr.bf16.mxu0 0
    %9948 = vmatpush2.bf16.msra.mxu0 0
    %9949 = vmatprep.subr.bf16.mxu0 0
    %9950 = vmatpush2.bf16.msra.mxu0 0
    %9951 = vmatprep.mubr.bf16.mxu0 0
    %9952 = vmatmul.mubr.bf16.gmra.mxu0 %v9917
    %v9953 = vpop.f32.mrf.mxu0
    %v9954 = vadd.f32 0.0, %v9953
    %v9955 = vpop.f32.mrf.mxu0
    %v9956 = vadd.f32 0.0, %v9955
    %v9957 = vpop.f32.mrf.mxu0
    %v9958 = vpop.f32.mrf.mxu0
    %9959 = vdwg.mxu0
    %9960 = vmatprep.subr.bf16.mxu0 0
    %9961 = vmatpush1.bf16.msra.mxu0 0
    %9962 = vmatprep.subr.bf16.mxu0 0
    %9963 = vmatpush1.bf16.msra.mxu0 0
    %9964 = vmatprep.subr.bf16.mxu0 0
    %9965 = vmatpush1.bf16.msra.mxu0 0
    %9966 = vmatprep.subr.bf16.mxu0 0
    %9967 = vmatpush1.bf16.msra.mxu0 0
    %9968 = vmatprep.subr.bf16.mxu0 %v9879
    %9969 = vmatpush1.bf16.msra.mxu0 %v9878
    %9970 = vmatprep.subr.bf16.mxu0 %v9871
    %9971 = vmatpush1.bf16.msra.mxu0 %v9870
    %9972 = vmatprep.subr.bf16.mxu0 %v9863
    %9973 = vmatpush1.bf16.msra.mxu0 %v9862
    %9974 = vmatprep.subr.bf16.mxu0 %v9855
    %9975 = vmatpush1.bf16.msra.mxu0 %v9854
    %9976 = vmatprep.subr.bf16.mxu0 0
    %9977 = vmatpush2.bf16.msra.mxu0 0
    %9978 = vmatprep.subr.bf16.mxu0 0
    %9979 = vmatpush2.bf16.msra.mxu0 0
    %9980 = vmatprep.subr.bf16.mxu0 0
    %9981 = vmatpush2.bf16.msra.mxu0 0
    %9982 = vmatprep.subr.bf16.mxu0 0
    %9983 = vmatpush2.bf16.msra.mxu0 0
    %9984 = vmatprep.subr.bf16.mxu0 0
    %9985 = vmatpush2.bf16.msra.mxu0 0
    %9986 = vmatprep.subr.bf16.mxu0 0
    %9987 = vmatpush2.bf16.msra.mxu0 0
    %9988 = vmatprep.subr.bf16.mxu0 0
    %9989 = vmatpush2.bf16.msra.mxu0 0
    %9990 = vmatprep.subr.bf16.mxu0 0
    %9991 = vmatpush2.bf16.msra.mxu0 0
    %9992 = vmatprep.mubr.bf16.mxu0 0
    %9993 = vmatmul.mubr.bf16.gmra.mxu0 %v9917
    %v9994 = vpop.f32.mrf.mxu0
    %v9995 = vadd.f32 0.0, %v9994
    %v9996 = vpop.f32.mrf.mxu0
    %v9997 = vadd.f32 0.0, %v9996
    %v9998 = vpop.f32.mrf.mxu0
    %v9999 = vpop.f32.mrf.mxu0
    %10000 = vdwg.mxu0
    %10001 = vmatprep.subr.bf16.mxu0 0
    %10002 = vmatpush1.bf16.msra.mxu0 0
    %10003 = vmatprep.subr.bf16.mxu0 0
    %10004 = vmatpush1.bf16.msra.mxu0 0
    %10005 = vmatprep.subr.bf16.mxu0 0
    %10006 = vmatpush1.bf16.msra.mxu0 0
    %10007 = vmatprep.subr.bf16.mxu0 0
    %10008 = vmatpush1.bf16.msra.mxu0 0
    %10009 = vmatprep.subr.bf16.mxu0 %v9881
    %10010 = vmatpush1.bf16.msra.mxu0 %v9880
    %10011 = vmatprep.subr.bf16.mxu0 %v9873
    %10012 = vmatpush1.bf16.msra.mxu0 %v9872
    %10013 = vmatprep.subr.bf16.mxu0 %v9865
    %10014 = vmatpush1.bf16.msra.mxu0 %v9864
    %10015 = vmatprep.subr.bf16.mxu0 %v9857
    %10016 = vmatpush1.bf16.msra.mxu0 %v9856
    %10017 = vmatprep.subr.bf16.mxu0 0
    %10018 = vmatpush2.bf16.msra.mxu0 0
    %10019 = vmatprep.subr.bf16.mxu0 0
    %10020 = vmatpush2.bf16.msra.mxu0 0
    %10021 = vmatprep.subr.bf16.mxu0 0
    %10022 = vmatpush2.bf16.msra.mxu0 0
    %10023 = vmatprep.subr.bf16.mxu0 0
    %10024 = vmatpush2.bf16.msra.mxu0 0
    %10025 = vmatprep.subr.bf16.mxu0 0
    %10026 = vmatpush2.bf16.msra.mxu0 0
    %10027 = vmatprep.subr.bf16.mxu0 0
    %10028 = vmatpush2.bf16.msra.mxu0 0
    %10029 = vmatprep.subr.bf16.mxu0 0
    %10030 = vmatpush2.bf16.msra.mxu0 0
    %10031 = vmatprep.subr.bf16.mxu0 0
    %10032 = vmatpush2.bf16.msra.mxu0 0
    %10033 = vmatprep.mubr.bf16.mxu0 0
    %10034 = vmatmul.mubr.bf16.gmra.mxu0 %v9917
    %v10035 = vpop.f32.mrf.mxu0
    %v10036 = vadd.f32 0.0, %v10035
    %v10037 = vpop.f32.mrf.mxu0
    %v10038 = vadd.f32 0.0, %v10037
    %v10039 = vpop.f32.mrf.mxu0
    %v10040 = vpop.f32.mrf.mxu0
    %10041 = vdwg.mxu0
    %10042 = vmatprep.subr.bf16.mxu0 0
    %10043 = vmatpush1.bf16.msra.mxu0 0
    %10044 = vmatprep.subr.bf16.mxu0 0
    %10045 = vmatpush1.bf16.msra.mxu0 0
    %10046 = vmatprep.subr.bf16.mxu0 0
    %10047 = vmatpush1.bf16.msra.mxu0 0
    %10048 = vmatprep.subr.bf16.mxu0 0
    %10049 = vmatpush1.bf16.msra.mxu0 0
    %10050 = vmatprep.subr.bf16.mxu0 %v9883
    %10051 = vmatpush1.bf16.msra.mxu0 %v9882
    %10052 = vmatprep.subr.bf16.mxu0 %v9875
    %10053 = vmatpush1.bf16.msra.mxu0 %v9874
    %10054 = vmatprep.subr.bf16.mxu0 %v9867
    %10055 = vmatpush1.bf16.msra.mxu0 %v9866
    %10056 = vmatprep.subr.bf16.mxu0 %v9859
    %10057 = vmatpush1.bf16.msra.mxu0 %v9858
    %10058 = vmatprep.subr.bf16.mxu0 0
    %10059 = vmatpush2.bf16.msra.mxu0 0
    %10060 = vmatprep.subr.bf16.mxu0 0
    %10061 = vmatpush2.bf16.msra.mxu0 0
    %10062 = vmatprep.subr.bf16.mxu0 0
    %10063 = vmatpush2.bf16.msra.mxu0 0
    %10064 = vmatprep.subr.bf16.mxu0 0
    %10065 = vmatpush2.bf16.msra.mxu0 0
    %10066 = vmatprep.subr.bf16.mxu0 0
    %10067 = vmatpush2.bf16.msra.mxu0 0
    %10068 = vmatprep.subr.bf16.mxu0 0
    %10069 = vmatpush2.bf16.msra.mxu0 0
    %10070 = vmatprep.subr.bf16.mxu0 0
    %10071 = vmatpush2.bf16.msra.mxu0 0
    %10072 = vmatprep.subr.bf16.mxu0 0
    %10073 = vmatpush2.bf16.msra.mxu0 0
    %10074 = vmatprep.mubr.bf16.mxu0 0
    %10075 = vmatmul.mubr.bf16.gmra.mxu0 %v9917
    %v10076 = vpop.f32.mrf.mxu0
    %v10077 = vadd.f32 0.0, %v10076
    %v10078 = vpop.f32.mrf.mxu0
    %v10079 = vadd.f32 0.0, %v10078
    %v10080 = vpop.f32.mrf.mxu0
    %v10081 = vpop.f32.mrf.mxu0
    %10082 = vdwg.mxu0
    %v10083 = vadd.f32 %v9747, %v9954
    %v10084 = vadd.f32 %v9748, %v9956
    %v10085 = vadd.f32 %v9749, %v9995
    %v10086 = vadd.f32 %v9750, %v9997
    %v10087 = vadd.f32 %v9751, %v10036
    %v10088 = vadd.f32 %v9752, %v10038
    %v10089 = vadd.f32 %v9753, %v10077
    %v10090 = vadd.f32 %v9754, %v10079
    %v10091 = vpack.c.bf16 %v5894, %v5894
    %v10124 = vunpack.c.l.b16 %v6251
    %v10125 = vunpack.c.h.b16 %v6251
    %v10126 = vunpack.c.l.b16 %v6252
    %v10127 = vunpack.c.h.b16 %v6252
    %v10128 = vunpack.c.l.b16 %v6253
    %v10129 = vunpack.c.h.b16 %v6253
    %v10130 = vunpack.c.l.b16 %v6254
    %v10131 = vunpack.c.h.b16 %v6254
    %v10132 = vunpack.c.l.b16 %v6255
    %v10133 = vunpack.c.h.b16 %v6255
    %v10134 = vunpack.c.l.b16 %v6256
    %v10135 = vunpack.c.h.b16 %v6256
    %v10136 = vunpack.c.l.b16 %v6257
    %v10137 = vunpack.c.h.b16 %v6257
    %v10138 = vunpack.c.l.b16 %v6258
    %v10139 = vunpack.c.h.b16 %v6258
    %v10140 = vunpack.c.l.b16 %v6259
    %v10141 = vunpack.c.h.b16 %v6259
    %v10142 = vunpack.c.l.b16 %v6260
    %v10143 = vunpack.c.h.b16 %v6260
    %v10144 = vunpack.c.l.b16 %v6261
    %v10145 = vunpack.c.h.b16 %v6261
    %v10146 = vunpack.c.l.b16 %v6262
    %v10147 = vunpack.c.h.b16 %v6262
    %v10148 = vunpack.c.l.b16 %v6263
    %v10149 = vunpack.c.h.b16 %v6263
    %v10150 = vunpack.c.l.b16 %v6264
    %v10151 = vunpack.c.h.b16 %v6264
    %v10152 = vunpack.c.l.b16 %v6265
    %v10153 = vunpack.c.h.b16 %v6265
    %v10154 = vunpack.c.l.b16 %v6266
    %v10155 = vunpack.c.h.b16 %v6266
    %v10156 = vunpack.c.l.b16 %v6267
    %v10157 = vunpack.c.h.b16 %v6267
    %v10158 = vunpack.c.l.b16 %v6268
    %v10159 = vunpack.c.h.b16 %v6268
    %v10160 = vunpack.c.l.b16 %v6269
    %v10161 = vunpack.c.h.b16 %v6269
    %v10162 = vunpack.c.l.b16 %v6270
    %v10163 = vunpack.c.h.b16 %v6270
    %v10164 = vunpack.c.l.b16 %v6271
    %v10165 = vunpack.c.h.b16 %v6271
    %v10166 = vunpack.c.l.b16 %v6272
    %v10167 = vunpack.c.h.b16 %v6272
    %v10168 = vunpack.c.l.b16 %v6273
    %v10169 = vunpack.c.h.b16 %v6273
    %v10170 = vunpack.c.l.b16 %v6274
    %v10171 = vunpack.c.h.b16 %v6274
    %v10172 = vunpack.c.l.b16 %v6275
    %v10173 = vunpack.c.h.b16 %v6275
    %v10174 = vunpack.c.l.b16 %v6276
    %v10175 = vunpack.c.h.b16 %v6276
    %v10176 = vunpack.c.l.b16 %v6277
    %v10177 = vunpack.c.h.b16 %v6277
    %v10178 = vunpack.c.l.b16 %v6278
    %v10179 = vunpack.c.h.b16 %v6278
    %v10180 = vunpack.c.l.b16 %v6279
    %v10181 = vunpack.c.h.b16 %v6279
    %v10182 = vunpack.c.l.b16 %v6280
    %v10183 = vunpack.c.h.b16 %v6280
    %v10184 = vunpack.c.l.b16 %v6281
    %v10185 = vunpack.c.h.b16 %v6281
    %v10186 = vunpack.c.l.b16 %v6282
    %v10187 = vunpack.c.h.b16 %v6282
    %v10188 = vpack.c.b16 %v10132, %v10124
    %v10189 = vpack.c.b16 %v10133, %v10125
    %v10190 = vpack.c.b16 %v10134, %v10126
    %v10191 = vpack.c.b16 %v10135, %v10127
    %v10192 = vpack.c.b16 %v10136, %v10128
    %v10193 = vpack.c.b16 %v10137, %v10129
    %v10194 = vpack.c.b16 %v10138, %v10130
    %v10195 = vpack.c.b16 %v10139, %v10131
    %v10196 = vpack.c.b16 %v10148, %v10140
    %v10197 = vpack.c.b16 %v10149, %v10141
    %v10198 = vpack.c.b16 %v10150, %v10142
    %v10199 = vpack.c.b16 %v10151, %v10143
    %v10200 = vpack.c.b16 %v10152, %v10144
    %v10201 = vpack.c.b16 %v10153, %v10145
    %v10202 = vpack.c.b16 %v10154, %v10146
    %v10203 = vpack.c.b16 %v10155, %v10147
    %v10204 = vpack.c.b16 %v10164, %v10156
    %v10205 = vpack.c.b16 %v10165, %v10157
    %v10206 = vpack.c.b16 %v10166, %v10158
    %v10207 = vpack.c.b16 %v10167, %v10159
    %v10208 = vpack.c.b16 %v10168, %v10160
    %v10209 = vpack.c.b16 %v10169, %v10161
    %v10210 = vpack.c.b16 %v10170, %v10162
    %v10211 = vpack.c.b16 %v10171, %v10163
    %v10212 = vpack.c.b16 %v10180, %v10172
    %v10213 = vpack.c.b16 %v10181, %v10173
    %v10214 = vpack.c.b16 %v10182, %v10174
    %v10215 = vpack.c.b16 %v10183, %v10175
    %v10216 = vpack.c.b16 %v10184, %v10176
    %v10217 = vpack.c.b16 %v10185, %v10177
    %v10218 = vpack.c.b16 %v10186, %v10178
    %v10219 = vpack.c.b16 %v10187, %v10179
    %v10253 = vsel %vm2168, %v10091, 0
    %10255 = vmatprep.subr.bf16.mxu0 0
    %10256 = vmatpush1.bf16.msra.mxu0 0
    %10257 = vmatprep.subr.bf16.mxu0 0
    %10258 = vmatpush1.bf16.msra.mxu0 0
    %10259 = vmatprep.subr.bf16.mxu0 0
    %10260 = vmatpush1.bf16.msra.mxu0 0
    %10261 = vmatprep.subr.bf16.mxu0 0
    %10262 = vmatpush1.bf16.msra.mxu0 0
    %10263 = vmatprep.subr.bf16.mxu0 %v10213
    %10264 = vmatpush1.bf16.msra.mxu0 %v10212
    %10265 = vmatprep.subr.bf16.mxu0 %v10205
    %10266 = vmatpush1.bf16.msra.mxu0 %v10204
    %10267 = vmatprep.subr.bf16.mxu0 %v10197
    %10268 = vmatpush1.bf16.msra.mxu0 %v10196
    %10269 = vmatprep.subr.bf16.mxu0 %v10189
    %10270 = vmatpush1.bf16.msra.mxu0 %v10188
    %10271 = vmatprep.subr.bf16.mxu0 0
    %10272 = vmatpush2.bf16.msra.mxu0 0
    %10273 = vmatprep.subr.bf16.mxu0 0
    %10274 = vmatpush2.bf16.msra.mxu0 0
    %10275 = vmatprep.subr.bf16.mxu0 0
    %10276 = vmatpush2.bf16.msra.mxu0 0
    %10277 = vmatprep.subr.bf16.mxu0 0
    %10278 = vmatpush2.bf16.msra.mxu0 0
    %10279 = vmatprep.subr.bf16.mxu0 0
    %10280 = vmatpush2.bf16.msra.mxu0 0
    %10281 = vmatprep.subr.bf16.mxu0 0
    %10282 = vmatpush2.bf16.msra.mxu0 0
    %10283 = vmatprep.subr.bf16.mxu0 0
    %10284 = vmatpush2.bf16.msra.mxu0 0
    %10285 = vmatprep.subr.bf16.mxu0 0
    %10286 = vmatpush2.bf16.msra.mxu0 0
    %10287 = vmatprep.mubr.bf16.mxu0 0
    %10288 = vmatmul.mubr.bf16.gmra.mxu0 %v10253
    %v10289 = vpop.f32.mrf.mxu0
    %v10290 = vadd.f32 0.0, %v10289
    %v10291 = vpop.f32.mrf.mxu0
    %v10292 = vadd.f32 0.0, %v10291
    %v10293 = vpop.f32.mrf.mxu0
    %v10294 = vpop.f32.mrf.mxu0
    %10295 = vdwg.mxu0
    %10296 = vmatprep.subr.bf16.mxu0 0
    %10297 = vmatpush1.bf16.msra.mxu0 0
    %10298 = vmatprep.subr.bf16.mxu0 0
    %10299 = vmatpush1.bf16.msra.mxu0 0
    %10300 = vmatprep.subr.bf16.mxu0 0
    %10301 = vmatpush1.bf16.msra.mxu0 0
    %10302 = vmatprep.subr.bf16.mxu0 0
    %10303 = vmatpush1.bf16.msra.mxu0 0
    %10304 = vmatprep.subr.bf16.mxu0 %v10215
    %10305 = vmatpush1.bf16.msra.mxu0 %v10214
    %10306 = vmatprep.subr.bf16.mxu0 %v10207
    %10307 = vmatpush1.bf16.msra.mxu0 %v10206
    %10308 = vmatprep.subr.bf16.mxu0 %v10199
    %10309 = vmatpush1.bf16.msra.mxu0 %v10198
    %10310 = vmatprep.subr.bf16.mxu0 %v10191
    %10311 = vmatpush1.bf16.msra.mxu0 %v10190
    %10312 = vmatprep.subr.bf16.mxu0 0
    %10313 = vmatpush2.bf16.msra.mxu0 0
    %10314 = vmatprep.subr.bf16.mxu0 0
    %10315 = vmatpush2.bf16.msra.mxu0 0
    %10316 = vmatprep.subr.bf16.mxu0 0
    %10317 = vmatpush2.bf16.msra.mxu0 0
    %10318 = vmatprep.subr.bf16.mxu0 0
    %10319 = vmatpush2.bf16.msra.mxu0 0
    %10320 = vmatprep.subr.bf16.mxu0 0
    %10321 = vmatpush2.bf16.msra.mxu0 0
    %10322 = vmatprep.subr.bf16.mxu0 0
    %10323 = vmatpush2.bf16.msra.mxu0 0
    %10324 = vmatprep.subr.bf16.mxu0 0
    %10325 = vmatpush2.bf16.msra.mxu0 0
    %10326 = vmatprep.subr.bf16.mxu0 0
    %10327 = vmatpush2.bf16.msra.mxu0 0
    %10328 = vmatprep.mubr.bf16.mxu0 0
    %10329 = vmatmul.mubr.bf16.gmra.mxu0 %v10253
    %v10330 = vpop.f32.mrf.mxu0
    %v10331 = vadd.f32 0.0, %v10330
    %v10332 = vpop.f32.mrf.mxu0
    %v10333 = vadd.f32 0.0, %v10332
    %v10334 = vpop.f32.mrf.mxu0
    %v10335 = vpop.f32.mrf.mxu0
    %10336 = vdwg.mxu0
    %10337 = vmatprep.subr.bf16.mxu0 0
    %10338 = vmatpush1.bf16.msra.mxu0 0
    %10339 = vmatprep.subr.bf16.mxu0 0
    %10340 = vmatpush1.bf16.msra.mxu0 0
    %10341 = vmatprep.subr.bf16.mxu0 0
    %10342 = vmatpush1.bf16.msra.mxu0 0
    %10343 = vmatprep.subr.bf16.mxu0 0
    %10344 = vmatpush1.bf16.msra.mxu0 0
    %10345 = vmatprep.subr.bf16.mxu0 %v10217
    %10346 = vmatpush1.bf16.msra.mxu0 %v10216
    %10347 = vmatprep.subr.bf16.mxu0 %v10209
    %10348 = vmatpush1.bf16.msra.mxu0 %v10208
    %10349 = vmatprep.subr.bf16.mxu0 %v10201
    %10350 = vmatpush1.bf16.msra.mxu0 %v10200
    %10351 = vmatprep.subr.bf16.mxu0 %v10193
    %10352 = vmatpush1.bf16.msra.mxu0 %v10192
    %10353 = vmatprep.subr.bf16.mxu0 0
    %10354 = vmatpush2.bf16.msra.mxu0 0
    %10355 = vmatprep.subr.bf16.mxu0 0
    %10356 = vmatpush2.bf16.msra.mxu0 0
    %10357 = vmatprep.subr.bf16.mxu0 0
    %10358 = vmatpush2.bf16.msra.mxu0 0
    %10359 = vmatprep.subr.bf16.mxu0 0
    %10360 = vmatpush2.bf16.msra.mxu0 0
    %10361 = vmatprep.subr.bf16.mxu0 0
    %10362 = vmatpush2.bf16.msra.mxu0 0
    %10363 = vmatprep.subr.bf16.mxu0 0
    %10364 = vmatpush2.bf16.msra.mxu0 0
    %10365 = vmatprep.subr.bf16.mxu0 0
    %10366 = vmatpush2.bf16.msra.mxu0 0
    %10367 = vmatprep.subr.bf16.mxu0 0
    %10368 = vmatpush2.bf16.msra.mxu0 0
    %10369 = vmatprep.mubr.bf16.mxu0 0
    %10370 = vmatmul.mubr.bf16.gmra.mxu0 %v10253
    %v10371 = vpop.f32.mrf.mxu0
    %v10372 = vadd.f32 0.0, %v10371
    %v10373 = vpop.f32.mrf.mxu0
    %v10374 = vadd.f32 0.0, %v10373
    %v10375 = vpop.f32.mrf.mxu0
    %v10376 = vpop.f32.mrf.mxu0
    %10377 = vdwg.mxu0
    %10378 = vmatprep.subr.bf16.mxu0 0
    %10379 = vmatpush1.bf16.msra.mxu0 0
    %10380 = vmatprep.subr.bf16.mxu0 0
    %10381 = vmatpush1.bf16.msra.mxu0 0
    %10382 = vmatprep.subr.bf16.mxu0 0
    %10383 = vmatpush1.bf16.msra.mxu0 0
    %10384 = vmatprep.subr.bf16.mxu0 0
    %10385 = vmatpush1.bf16.msra.mxu0 0
    %10386 = vmatprep.subr.bf16.mxu0 %v10219
    %10387 = vmatpush1.bf16.msra.mxu0 %v10218
    %10388 = vmatprep.subr.bf16.mxu0 %v10211
    %10389 = vmatpush1.bf16.msra.mxu0 %v10210
    %10390 = vmatprep.subr.bf16.mxu0 %v10203
    %10391 = vmatpush1.bf16.msra.mxu0 %v10202
    %10392 = vmatprep.subr.bf16.mxu0 %v10195
    %10393 = vmatpush1.bf16.msra.mxu0 %v10194
    %10394 = vmatprep.subr.bf16.mxu0 0
    %10395 = vmatpush2.bf16.msra.mxu0 0
    %10396 = vmatprep.subr.bf16.mxu0 0
    %10397 = vmatpush2.bf16.msra.mxu0 0
    %10398 = vmatprep.subr.bf16.mxu0 0
    %10399 = vmatpush2.bf16.msra.mxu0 0
    %10400 = vmatprep.subr.bf16.mxu0 0
    %10401 = vmatpush2.bf16.msra.mxu0 0
    %10402 = vmatprep.subr.bf16.mxu0 0
    %10403 = vmatpush2.bf16.msra.mxu0 0
    %10404 = vmatprep.subr.bf16.mxu0 0
    %10405 = vmatpush2.bf16.msra.mxu0 0
    %10406 = vmatprep.subr.bf16.mxu0 0
    %10407 = vmatpush2.bf16.msra.mxu0 0
    %10408 = vmatprep.subr.bf16.mxu0 0
    %10409 = vmatpush2.bf16.msra.mxu0 0
    %10410 = vmatprep.mubr.bf16.mxu0 0
    %10411 = vmatmul.mubr.bf16.gmra.mxu0 %v10253
    %v10412 = vpop.f32.mrf.mxu0
    %v10413 = vadd.f32 0.0, %v10412
    %v10414 = vpop.f32.mrf.mxu0
    %v10415 = vadd.f32 0.0, %v10414
    %v10416 = vpop.f32.mrf.mxu0
    %v10417 = vpop.f32.mrf.mxu0
    %10418 = vdwg.mxu0
    %v10419 = vadd.f32 %v10083, %v10290
    %v10420 = vadd.f32 %v10084, %v10292
    %v10421 = vadd.f32 %v10085, %v10331
    %v10422 = vadd.f32 %v10086, %v10333
    %v10423 = vadd.f32 %v10087, %v10372
    %v10424 = vadd.f32 %v10088, %v10374
    %v10425 = vadd.f32 %v10089, %v10413
    %v10426 = vadd.f32 %v10090, %v10415
    %v10427 = vpack.c.bf16 %v5895, %v5895
    %v10460 = vunpack.c.l.b16 %v6283
    %v10461 = vunpack.c.h.b16 %v6283
    %v10462 = vunpack.c.l.b16 %v6284
    %v10463 = vunpack.c.h.b16 %v6284
    %v10464 = vunpack.c.l.b16 %v6285
    %v10465 = vunpack.c.h.b16 %v6285
    %v10466 = vunpack.c.l.b16 %v6286
    %v10467 = vunpack.c.h.b16 %v6286
    %v10468 = vunpack.c.l.b16 %v6287
    %v10469 = vunpack.c.h.b16 %v6287
    %v10470 = vunpack.c.l.b16 %v6288
    %v10471 = vunpack.c.h.b16 %v6288
    %v10472 = vunpack.c.l.b16 %v6289
    %v10473 = vunpack.c.h.b16 %v6289
    %v10474 = vunpack.c.l.b16 %v6290
    %v10475 = vunpack.c.h.b16 %v6290
    %v10476 = vunpack.c.l.b16 %v6291
    %v10477 = vunpack.c.h.b16 %v6291
    %v10478 = vunpack.c.l.b16 %v6292
    %v10479 = vunpack.c.h.b16 %v6292
    %v10480 = vunpack.c.l.b16 %v6293
    %v10481 = vunpack.c.h.b16 %v6293
    %v10482 = vunpack.c.l.b16 %v6294
    %v10483 = vunpack.c.h.b16 %v6294
    %v10484 = vunpack.c.l.b16 %v6295
    %v10485 = vunpack.c.h.b16 %v6295
    %v10486 = vunpack.c.l.b16 %v6296
    %v10487 = vunpack.c.h.b16 %v6296
    %v10488 = vunpack.c.l.b16 %v6297
    %v10489 = vunpack.c.h.b16 %v6297
    %v10490 = vunpack.c.l.b16 %v6298
    %v10491 = vunpack.c.h.b16 %v6298
    %v10492 = vunpack.c.l.b16 %v6299
    %v10493 = vunpack.c.h.b16 %v6299
    %v10494 = vunpack.c.l.b16 %v6300
    %v10495 = vunpack.c.h.b16 %v6300
    %v10496 = vunpack.c.l.b16 %v6301
    %v10497 = vunpack.c.h.b16 %v6301
    %v10498 = vunpack.c.l.b16 %v6302
    %v10499 = vunpack.c.h.b16 %v6302
    %v10500 = vunpack.c.l.b16 %v6303
    %v10501 = vunpack.c.h.b16 %v6303
    %v10502 = vunpack.c.l.b16 %v6304
    %v10503 = vunpack.c.h.b16 %v6304
    %v10504 = vunpack.c.l.b16 %v6305
    %v10505 = vunpack.c.h.b16 %v6305
    %v10506 = vunpack.c.l.b16 %v6306
    %v10507 = vunpack.c.h.b16 %v6306
    %v10508 = vunpack.c.l.b16 %v6307
    %v10509 = vunpack.c.h.b16 %v6307
    %v10510 = vunpack.c.l.b16 %v6308
    %v10511 = vunpack.c.h.b16 %v6308
    %v10512 = vunpack.c.l.b16 %v6309
    %v10513 = vunpack.c.h.b16 %v6309
    %v10514 = vunpack.c.l.b16 %v6310
    %v10515 = vunpack.c.h.b16 %v6310
    %v10516 = vunpack.c.l.b16 %v6311
    %v10517 = vunpack.c.h.b16 %v6311
    %v10518 = vunpack.c.l.b16 %v6312
    %v10519 = vunpack.c.h.b16 %v6312
    %v10520 = vunpack.c.l.b16 %v6313
    %v10521 = vunpack.c.h.b16 %v6313
    %v10522 = vunpack.c.l.b16 %v6314
    %v10523 = vunpack.c.h.b16 %v6314
    %v10524 = vpack.c.b16 %v10468, %v10460
    %v10525 = vpack.c.b16 %v10469, %v10461
    %v10526 = vpack.c.b16 %v10470, %v10462
    %v10527 = vpack.c.b16 %v10471, %v10463
    %v10528 = vpack.c.b16 %v10472, %v10464
    %v10529 = vpack.c.b16 %v10473, %v10465
    %v10530 = vpack.c.b16 %v10474, %v10466
    %v10531 = vpack.c.b16 %v10475, %v10467
    %v10532 = vpack.c.b16 %v10484, %v10476
    %v10533 = vpack.c.b16 %v10485, %v10477
    %v10534 = vpack.c.b16 %v10486, %v10478
    %v10535 = vpack.c.b16 %v10487, %v10479
    %v10536 = vpack.c.b16 %v10488, %v10480
    %v10537 = vpack.c.b16 %v10489, %v10481
    %v10538 = vpack.c.b16 %v10490, %v10482
    %v10539 = vpack.c.b16 %v10491, %v10483
    %v10540 = vpack.c.b16 %v10500, %v10492
    %v10541 = vpack.c.b16 %v10501, %v10493
    %v10542 = vpack.c.b16 %v10502, %v10494
    %v10543 = vpack.c.b16 %v10503, %v10495
    %v10544 = vpack.c.b16 %v10504, %v10496
    %v10545 = vpack.c.b16 %v10505, %v10497
    %v10546 = vpack.c.b16 %v10506, %v10498
    %v10547 = vpack.c.b16 %v10507, %v10499
    %v10548 = vpack.c.b16 %v10516, %v10508
    %v10549 = vpack.c.b16 %v10517, %v10509
    %v10550 = vpack.c.b16 %v10518, %v10510
    %v10551 = vpack.c.b16 %v10519, %v10511
    %v10552 = vpack.c.b16 %v10520, %v10512
    %v10553 = vpack.c.b16 %v10521, %v10513
    %v10554 = vpack.c.b16 %v10522, %v10514
    %v10555 = vpack.c.b16 %v10523, %v10515
    %v10589 = vsel %vm2168, %v10427, 0
    %10591 = vmatprep.subr.bf16.mxu0 0
    %10592 = vmatpush1.bf16.msra.mxu0 0
    %10593 = vmatprep.subr.bf16.mxu0 0
    %10594 = vmatpush1.bf16.msra.mxu0 0
    %10595 = vmatprep.subr.bf16.mxu0 0
    %10596 = vmatpush1.bf16.msra.mxu0 0
    %10597 = vmatprep.subr.bf16.mxu0 0
    %10598 = vmatpush1.bf16.msra.mxu0 0
    %10599 = vmatprep.subr.bf16.mxu0 %v10549
    %10600 = vmatpush1.bf16.msra.mxu0 %v10548
    %10601 = vmatprep.subr.bf16.mxu0 %v10541
    %10602 = vmatpush1.bf16.msra.mxu0 %v10540
    %10603 = vmatprep.subr.bf16.mxu0 %v10533
    %10604 = vmatpush1.bf16.msra.mxu0 %v10532
    %10605 = vmatprep.subr.bf16.mxu0 %v10525
    %10606 = vmatpush1.bf16.msra.mxu0 %v10524
    %10607 = vmatprep.subr.bf16.mxu0 0
    %10608 = vmatpush2.bf16.msra.mxu0 0
    %10609 = vmatprep.subr.bf16.mxu0 0
    %10610 = vmatpush2.bf16.msra.mxu0 0
    %10611 = vmatprep.subr.bf16.mxu0 0
    %10612 = vmatpush2.bf16.msra.mxu0 0
    %10613 = vmatprep.subr.bf16.mxu0 0
    %10614 = vmatpush2.bf16.msra.mxu0 0
    %10615 = vmatprep.subr.bf16.mxu0 0
    %10616 = vmatpush2.bf16.msra.mxu0 0
    %10617 = vmatprep.subr.bf16.mxu0 0
    %10618 = vmatpush2.bf16.msra.mxu0 0
    %10619 = vmatprep.subr.bf16.mxu0 0
    %10620 = vmatpush2.bf16.msra.mxu0 0
    %10621 = vmatprep.subr.bf16.mxu0 0
    %10622 = vmatpush2.bf16.msra.mxu0 0
    %10623 = vmatprep.mubr.bf16.mxu0 0
    %10624 = vmatmul.mubr.bf16.gmra.mxu0 %v10589
    %v10625 = vpop.f32.mrf.mxu0
    %v10626 = vadd.f32 0.0, %v10625
    %v10627 = vpop.f32.mrf.mxu0
    %v10628 = vadd.f32 0.0, %v10627
    %v10629 = vpop.f32.mrf.mxu0
    %v10630 = vpop.f32.mrf.mxu0
    %10631 = vdwg.mxu0
    %10632 = vmatprep.subr.bf16.mxu0 0
    %10633 = vmatpush1.bf16.msra.mxu0 0
    %10634 = vmatprep.subr.bf16.mxu0 0
    %10635 = vmatpush1.bf16.msra.mxu0 0
    %10636 = vmatprep.subr.bf16.mxu0 0
    %10637 = vmatpush1.bf16.msra.mxu0 0
    %10638 = vmatprep.subr.bf16.mxu0 0
    %10639 = vmatpush1.bf16.msra.mxu0 0
    %10640 = vmatprep.subr.bf16.mxu0 %v10551
    %10641 = vmatpush1.bf16.msra.mxu0 %v10550
    %10642 = vmatprep.subr.bf16.mxu0 %v10543
    %10643 = vmatpush1.bf16.msra.mxu0 %v10542
    %10644 = vmatprep.subr.bf16.mxu0 %v10535
    %10645 = vmatpush1.bf16.msra.mxu0 %v10534
    %10646 = vmatprep.subr.bf16.mxu0 %v10527
    %10647 = vmatpush1.bf16.msra.mxu0 %v10526
    %10648 = vmatprep.subr.bf16.mxu0 0
    %10649 = vmatpush2.bf16.msra.mxu0 0
    %10650 = vmatprep.subr.bf16.mxu0 0
    %10651 = vmatpush2.bf16.msra.mxu0 0
    %10652 = vmatprep.subr.bf16.mxu0 0
    %10653 = vmatpush2.bf16.msra.mxu0 0
    %10654 = vmatprep.subr.bf16.mxu0 0
    %10655 = vmatpush2.bf16.msra.mxu0 0
    %10656 = vmatprep.subr.bf16.mxu0 0
    %10657 = vmatpush2.bf16.msra.mxu0 0
    %10658 = vmatprep.subr.bf16.mxu0 0
    %10659 = vmatpush2.bf16.msra.mxu0 0
    %10660 = vmatprep.subr.bf16.mxu0 0
    %10661 = vmatpush2.bf16.msra.mxu0 0
    %10662 = vmatprep.subr.bf16.mxu0 0
    %10663 = vmatpush2.bf16.msra.mxu0 0
    %10664 = vmatprep.mubr.bf16.mxu0 0
    %10665 = vmatmul.mubr.bf16.gmra.mxu0 %v10589
    %v10666 = vpop.f32.mrf.mxu0
    %v10667 = vadd.f32 0.0, %v10666
    %v10668 = vpop.f32.mrf.mxu0
    %v10669 = vadd.f32 0.0, %v10668
    %v10670 = vpop.f32.mrf.mxu0
    %v10671 = vpop.f32.mrf.mxu0
    %10672 = vdwg.mxu0
    %10673 = vmatprep.subr.bf16.mxu0 0
    %10674 = vmatpush1.bf16.msra.mxu0 0
    %10675 = vmatprep.subr.bf16.mxu0 0
    %10676 = vmatpush1.bf16.msra.mxu0 0
    %10677 = vmatprep.subr.bf16.mxu0 0
    %10678 = vmatpush1.bf16.msra.mxu0 0
    %10679 = vmatprep.subr.bf16.mxu0 0
    %10680 = vmatpush1.bf16.msra.mxu0 0
    %10681 = vmatprep.subr.bf16.mxu0 %v10553
    %10682 = vmatpush1.bf16.msra.mxu0 %v10552
    %10683 = vmatprep.subr.bf16.mxu0 %v10545
    %10684 = vmatpush1.bf16.msra.mxu0 %v10544
    %10685 = vmatprep.subr.bf16.mxu0 %v10537
    %10686 = vmatpush1.bf16.msra.mxu0 %v10536
    %10687 = vmatprep.subr.bf16.mxu0 %v10529
    %10688 = vmatpush1.bf16.msra.mxu0 %v10528
    %10689 = vmatprep.subr.bf16.mxu0 0
    %10690 = vmatpush2.bf16.msra.mxu0 0
    %10691 = vmatprep.subr.bf16.mxu0 0
    %10692 = vmatpush2.bf16.msra.mxu0 0
    %10693 = vmatprep.subr.bf16.mxu0 0
    %10694 = vmatpush2.bf16.msra.mxu0 0
    %10695 = vmatprep.subr.bf16.mxu0 0
    %10696 = vmatpush2.bf16.msra.mxu0 0
    %10697 = vmatprep.subr.bf16.mxu0 0
    %10698 = vmatpush2.bf16.msra.mxu0 0
    %10699 = vmatprep.subr.bf16.mxu0 0
    %10700 = vmatpush2.bf16.msra.mxu0 0
    %10701 = vmatprep.subr.bf16.mxu0 0
    %10702 = vmatpush2.bf16.msra.mxu0 0
    %10703 = vmatprep.subr.bf16.mxu0 0
    %10704 = vmatpush2.bf16.msra.mxu0 0
    %10705 = vmatprep.mubr.bf16.mxu0 0
    %10706 = vmatmul.mubr.bf16.gmra.mxu0 %v10589
    %v10707 = vpop.f32.mrf.mxu0
    %v10708 = vadd.f32 0.0, %v10707
    %v10709 = vpop.f32.mrf.mxu0
    %v10710 = vadd.f32 0.0, %v10709
    %v10711 = vpop.f32.mrf.mxu0
    %v10712 = vpop.f32.mrf.mxu0
    %10713 = vdwg.mxu0
    %10714 = vmatprep.subr.bf16.mxu0 0
    %10715 = vmatpush1.bf16.msra.mxu0 0
    %10716 = vmatprep.subr.bf16.mxu0 0
    %10717 = vmatpush1.bf16.msra.mxu0 0
    %10718 = vmatprep.subr.bf16.mxu0 0
    %10719 = vmatpush1.bf16.msra.mxu0 0
    %10720 = vmatprep.subr.bf16.mxu0 0
    %10721 = vmatpush1.bf16.msra.mxu0 0
    %10722 = vmatprep.subr.bf16.mxu0 %v10555
    %10723 = vmatpush1.bf16.msra.mxu0 %v10554
    %10724 = vmatprep.subr.bf16.mxu0 %v10547
    %10725 = vmatpush1.bf16.msra.mxu0 %v10546
    %10726 = vmatprep.subr.bf16.mxu0 %v10539
    %10727 = vmatpush1.bf16.msra.mxu0 %v10538
    %10728 = vmatprep.subr.bf16.mxu0 %v10531
    %10729 = vmatpush1.bf16.msra.mxu0 %v10530
    %10730 = vmatprep.subr.bf16.mxu0 0
    %10731 = vmatpush2.bf16.msra.mxu0 0
    %10732 = vmatprep.subr.bf16.mxu0 0
    %10733 = vmatpush2.bf16.msra.mxu0 0
    %10734 = vmatprep.subr.bf16.mxu0 0
    %10735 = vmatpush2.bf16.msra.mxu0 0
    %10736 = vmatprep.subr.bf16.mxu0 0
    %10737 = vmatpush2.bf16.msra.mxu0 0
    %10738 = vmatprep.subr.bf16.mxu0 0
    %10739 = vmatpush2.bf16.msra.mxu0 0
    %10740 = vmatprep.subr.bf16.mxu0 0
    %10741 = vmatpush2.bf16.msra.mxu0 0
    %10742 = vmatprep.subr.bf16.mxu0 0
    %10743 = vmatpush2.bf16.msra.mxu0 0
    %10744 = vmatprep.subr.bf16.mxu0 0
    %10745 = vmatpush2.bf16.msra.mxu0 0
    %10746 = vmatprep.mubr.bf16.mxu0 0
    %10747 = vmatmul.mubr.bf16.gmra.mxu0 %v10589
    %v10748 = vpop.f32.mrf.mxu0
    %v10749 = vadd.f32 0.0, %v10748
    %v10750 = vpop.f32.mrf.mxu0
    %v10751 = vadd.f32 0.0, %v10750
    %v10752 = vpop.f32.mrf.mxu0
    %v10753 = vpop.f32.mrf.mxu0
    %10754 = vdwg.mxu0
    %v10755 = vadd.f32 %v10419, %v10626
    %v10756 = vadd.f32 %v10420, %v10628
    %v10757 = vadd.f32 %v10421, %v10667
    %v10758 = vadd.f32 %v10422, %v10669
    %v10759 = vadd.f32 %v10423, %v10708
    %v10760 = vadd.f32 %v10424, %v10710
    %v10761 = vadd.f32 %v10425, %v10749
    %v10762 = vadd.f32 %v10426, %v10751
    %v10763 = vpack.c.bf16 %v5896, %v5896
    %v10796 = vunpack.c.l.b16 %v6315
    %v10797 = vunpack.c.h.b16 %v6315
    %v10798 = vunpack.c.l.b16 %v6316
    %v10799 = vunpack.c.h.b16 %v6316
    %v10800 = vunpack.c.l.b16 %v6317
    %v10801 = vunpack.c.h.b16 %v6317
    %v10802 = vunpack.c.l.b16 %v6318
    %v10803 = vunpack.c.h.b16 %v6318
    %v10804 = vunpack.c.l.b16 %v6319
    %v10805 = vunpack.c.h.b16 %v6319
    %v10806 = vunpack.c.l.b16 %v6320
    %v10807 = vunpack.c.h.b16 %v6320
    %v10808 = vunpack.c.l.b16 %v6321
    %v10809 = vunpack.c.h.b16 %v6321
    %v10810 = vunpack.c.l.b16 %v6322
    %v10811 = vunpack.c.h.b16 %v6322
    %v10812 = vunpack.c.l.b16 %v6323
    %v10813 = vunpack.c.h.b16 %v6323
    %v10814 = vunpack.c.l.b16 %v6324
    %v10815 = vunpack.c.h.b16 %v6324
    %v10816 = vunpack.c.l.b16 %v6325
    %v10817 = vunpack.c.h.b16 %v6325
    %v10818 = vunpack.c.l.b16 %v6326
    %v10819 = vunpack.c.h.b16 %v6326
    %v10820 = vunpack.c.l.b16 %v6327
    %v10821 = vunpack.c.h.b16 %v6327
    %v10822 = vunpack.c.l.b16 %v6328
    %v10823 = vunpack.c.h.b16 %v6328
    %v10824 = vunpack.c.l.b16 %v6329
    %v10825 = vunpack.c.h.b16 %v6329
    %v10826 = vunpack.c.l.b16 %v6330
    %v10827 = vunpack.c.h.b16 %v6330
    %v10828 = vunpack.c.l.b16 %v6331
    %v10829 = vunpack.c.h.b16 %v6331
    %v10830 = vunpack.c.l.b16 %v6332
    %v10831 = vunpack.c.h.b16 %v6332
    %v10832 = vunpack.c.l.b16 %v6333
    %v10833 = vunpack.c.h.b16 %v6333
    %v10834 = vunpack.c.l.b16 %v6334
    %v10835 = vunpack.c.h.b16 %v6334
    %v10836 = vunpack.c.l.b16 %v6335
    %v10837 = vunpack.c.h.b16 %v6335
    %v10838 = vunpack.c.l.b16 %v6336
    %v10839 = vunpack.c.h.b16 %v6336
    %v10840 = vunpack.c.l.b16 %v6337
    %v10841 = vunpack.c.h.b16 %v6337
    %v10842 = vunpack.c.l.b16 %v6338
    %v10843 = vunpack.c.h.b16 %v6338
    %v10844 = vunpack.c.l.b16 %v6339
    %v10845 = vunpack.c.h.b16 %v6339
    %v10846 = vunpack.c.l.b16 %v6340
    %v10847 = vunpack.c.h.b16 %v6340
    %v10848 = vunpack.c.l.b16 %v6341
    %v10849 = vunpack.c.h.b16 %v6341
    %v10850 = vunpack.c.l.b16 %v6342
    %v10851 = vunpack.c.h.b16 %v6342
    %v10852 = vunpack.c.l.b16 %v6343
    %v10853 = vunpack.c.h.b16 %v6343
    %v10854 = vunpack.c.l.b16 %v6344
    %v10855 = vunpack.c.h.b16 %v6344
    %v10856 = vunpack.c.l.b16 %v6345
    %v10857 = vunpack.c.h.b16 %v6345
    %v10858 = vunpack.c.l.b16 %v6346
    %v10859 = vunpack.c.h.b16 %v6346
    %v10860 = vpack.c.b16 %v10804, %v10796
    %v10861 = vpack.c.b16 %v10805, %v10797
    %v10862 = vpack.c.b16 %v10806, %v10798
    %v10863 = vpack.c.b16 %v10807, %v10799
    %v10864 = vpack.c.b16 %v10808, %v10800
    %v10865 = vpack.c.b16 %v10809, %v10801
    %v10866 = vpack.c.b16 %v10810, %v10802
    %v10867 = vpack.c.b16 %v10811, %v10803
    %v10868 = vpack.c.b16 %v10820, %v10812
    %v10869 = vpack.c.b16 %v10821, %v10813
    %v10870 = vpack.c.b16 %v10822, %v10814
    %v10871 = vpack.c.b16 %v10823, %v10815
    %v10872 = vpack.c.b16 %v10824, %v10816
    %v10873 = vpack.c.b16 %v10825, %v10817
    %v10874 = vpack.c.b16 %v10826, %v10818
    %v10875 = vpack.c.b16 %v10827, %v10819
    %v10876 = vpack.c.b16 %v10836, %v10828
    %v10877 = vpack.c.b16 %v10837, %v10829
    %v10878 = vpack.c.b16 %v10838, %v10830
    %v10879 = vpack.c.b16 %v10839, %v10831
    %v10880 = vpack.c.b16 %v10840, %v10832
    %v10881 = vpack.c.b16 %v10841, %v10833
    %v10882 = vpack.c.b16 %v10842, %v10834
    %v10883 = vpack.c.b16 %v10843, %v10835
    %v10884 = vpack.c.b16 %v10852, %v10844
    %v10885 = vpack.c.b16 %v10853, %v10845
    %v10886 = vpack.c.b16 %v10854, %v10846
    %v10887 = vpack.c.b16 %v10855, %v10847
    %v10888 = vpack.c.b16 %v10856, %v10848
    %v10889 = vpack.c.b16 %v10857, %v10849
    %v10890 = vpack.c.b16 %v10858, %v10850
    %v10891 = vpack.c.b16 %v10859, %v10851
    %v10925 = vsel %vm2168, %v10763, 0
    %10927 = vmatprep.subr.bf16.mxu0 0
    %10928 = vmatpush1.bf16.msra.mxu0 0
    %10929 = vmatprep.subr.bf16.mxu0 0
    %10930 = vmatpush1.bf16.msra.mxu0 0
    %10931 = vmatprep.subr.bf16.mxu0 0
    %10932 = vmatpush1.bf16.msra.mxu0 0
    %10933 = vmatprep.subr.bf16.mxu0 0
    %10934 = vmatpush1.bf16.msra.mxu0 0
    %10935 = vmatprep.subr.bf16.mxu0 %v10885
    %10936 = vmatpush1.bf16.msra.mxu0 %v10884
    %10937 = vmatprep.subr.bf16.mxu0 %v10877
    %10938 = vmatpush1.bf16.msra.mxu0 %v10876
    %10939 = vmatprep.subr.bf16.mxu0 %v10869
    %10940 = vmatpush1.bf16.msra.mxu0 %v10868
    %10941 = vmatprep.subr.bf16.mxu0 %v10861
    %10942 = vmatpush1.bf16.msra.mxu0 %v10860
    %10943 = vmatprep.subr.bf16.mxu0 0
    %10944 = vmatpush2.bf16.msra.mxu0 0
    %10945 = vmatprep.subr.bf16.mxu0 0
    %10946 = vmatpush2.bf16.msra.mxu0 0
    %10947 = vmatprep.subr.bf16.mxu0 0
    %10948 = vmatpush2.bf16.msra.mxu0 0
    %10949 = vmatprep.subr.bf16.mxu0 0
    %10950 = vmatpush2.bf16.msra.mxu0 0
    %10951 = vmatprep.subr.bf16.mxu0 0
    %10952 = vmatpush2.bf16.msra.mxu0 0
    %10953 = vmatprep.subr.bf16.mxu0 0
    %10954 = vmatpush2.bf16.msra.mxu0 0
    %10955 = vmatprep.subr.bf16.mxu0 0
    %10956 = vmatpush2.bf16.msra.mxu0 0
    %10957 = vmatprep.subr.bf16.mxu0 0
    %10958 = vmatpush2.bf16.msra.mxu0 0
    %10959 = vmatprep.mubr.bf16.mxu0 0
    %10960 = vmatmul.mubr.bf16.gmra.mxu0 %v10925
    %v10961 = vpop.f32.mrf.mxu0
    %v10962 = vadd.f32 0.0, %v10961
    %v10963 = vpop.f32.mrf.mxu0
    %v10964 = vadd.f32 0.0, %v10963
    %v10965 = vpop.f32.mrf.mxu0
    %v10966 = vpop.f32.mrf.mxu0
    %10967 = vdwg.mxu0
    %10968 = vmatprep.subr.bf16.mxu0 0
    %10969 = vmatpush1.bf16.msra.mxu0 0
    %10970 = vmatprep.subr.bf16.mxu0 0
    %10971 = vmatpush1.bf16.msra.mxu0 0
    %10972 = vmatprep.subr.bf16.mxu0 0
    %10973 = vmatpush1.bf16.msra.mxu0 0
    %10974 = vmatprep.subr.bf16.mxu0 0
    %10975 = vmatpush1.bf16.msra.mxu0 0
    %10976 = vmatprep.subr.bf16.mxu0 %v10887
    %10977 = vmatpush1.bf16.msra.mxu0 %v10886
    %10978 = vmatprep.subr.bf16.mxu0 %v10879
    %10979 = vmatpush1.bf16.msra.mxu0 %v10878
    %10980 = vmatprep.subr.bf16.mxu0 %v10871
    %10981 = vmatpush1.bf16.msra.mxu0 %v10870
    %10982 = vmatprep.subr.bf16.mxu0 %v10863
    %10983 = vmatpush1.bf16.msra.mxu0 %v10862
    %10984 = vmatprep.subr.bf16.mxu0 0
    %10985 = vmatpush2.bf16.msra.mxu0 0
    %10986 = vmatprep.subr.bf16.mxu0 0
    %10987 = vmatpush2.bf16.msra.mxu0 0
    %10988 = vmatprep.subr.bf16.mxu0 0
    %10989 = vmatpush2.bf16.msra.mxu0 0
    %10990 = vmatprep.subr.bf16.mxu0 0
    %10991 = vmatpush2.bf16.msra.mxu0 0
    %10992 = vmatprep.subr.bf16.mxu0 0
    %10993 = vmatpush2.bf16.msra.mxu0 0
    %10994 = vmatprep.subr.bf16.mxu0 0
    %10995 = vmatpush2.bf16.msra.mxu0 0
    %10996 = vmatprep.subr.bf16.mxu0 0
    %10997 = vmatpush2.bf16.msra.mxu0 0
    %10998 = vmatprep.subr.bf16.mxu0 0
    %10999 = vmatpush2.bf16.msra.mxu0 0
    %11000 = vmatprep.mubr.bf16.mxu0 0
    %11001 = vmatmul.mubr.bf16.gmra.mxu0 %v10925
    %v11002 = vpop.f32.mrf.mxu0
    %v11003 = vadd.f32 0.0, %v11002
    %v11004 = vpop.f32.mrf.mxu0
    %v11005 = vadd.f32 0.0, %v11004
    %v11006 = vpop.f32.mrf.mxu0
    %v11007 = vpop.f32.mrf.mxu0
    %11008 = vdwg.mxu0
    %11009 = vmatprep.subr.bf16.mxu0 0
    %11010 = vmatpush1.bf16.msra.mxu0 0
    %11011 = vmatprep.subr.bf16.mxu0 0
    %11012 = vmatpush1.bf16.msra.mxu0 0
    %11013 = vmatprep.subr.bf16.mxu0 0
    %11014 = vmatpush1.bf16.msra.mxu0 0
    %11015 = vmatprep.subr.bf16.mxu0 0
    %11016 = vmatpush1.bf16.msra.mxu0 0
    %11017 = vmatprep.subr.bf16.mxu0 %v10889
    %11018 = vmatpush1.bf16.msra.mxu0 %v10888
    %11019 = vmatprep.subr.bf16.mxu0 %v10881
    %11020 = vmatpush1.bf16.msra.mxu0 %v10880
    %11021 = vmatprep.subr.bf16.mxu0 %v10873
    %11022 = vmatpush1.bf16.msra.mxu0 %v10872
    %11023 = vmatprep.subr.bf16.mxu0 %v10865
    %11024 = vmatpush1.bf16.msra.mxu0 %v10864
    %11025 = vmatprep.subr.bf16.mxu0 0
    %11026 = vmatpush2.bf16.msra.mxu0 0
    %11027 = vmatprep.subr.bf16.mxu0 0
    %11028 = vmatpush2.bf16.msra.mxu0 0
    %11029 = vmatprep.subr.bf16.mxu0 0
    %11030 = vmatpush2.bf16.msra.mxu0 0
    %11031 = vmatprep.subr.bf16.mxu0 0
    %11032 = vmatpush2.bf16.msra.mxu0 0
    %11033 = vmatprep.subr.bf16.mxu0 0
    %11034 = vmatpush2.bf16.msra.mxu0 0
    %11035 = vmatprep.subr.bf16.mxu0 0
    %11036 = vmatpush2.bf16.msra.mxu0 0
    %11037 = vmatprep.subr.bf16.mxu0 0
    %11038 = vmatpush2.bf16.msra.mxu0 0
    %11039 = vmatprep.subr.bf16.mxu0 0
    %11040 = vmatpush2.bf16.msra.mxu0 0
    %11041 = vmatprep.mubr.bf16.mxu0 0
    %11042 = vmatmul.mubr.bf16.gmra.mxu0 %v10925
    %v11043 = vpop.f32.mrf.mxu0
    %v11044 = vadd.f32 0.0, %v11043
    %v11045 = vpop.f32.mrf.mxu0
    %v11046 = vadd.f32 0.0, %v11045
    %v11047 = vpop.f32.mrf.mxu0
    %v11048 = vpop.f32.mrf.mxu0
    %11049 = vdwg.mxu0
    %11050 = vmatprep.subr.bf16.mxu0 0
    %11051 = vmatpush1.bf16.msra.mxu0 0
    %11052 = vmatprep.subr.bf16.mxu0 0
    %11053 = vmatpush1.bf16.msra.mxu0 0
    %11054 = vmatprep.subr.bf16.mxu0 0
    %11055 = vmatpush1.bf16.msra.mxu0 0
    %11056 = vmatprep.subr.bf16.mxu0 0
    %11057 = vmatpush1.bf16.msra.mxu0 0
    %11058 = vmatprep.subr.bf16.mxu0 %v10891
    %11059 = vmatpush1.bf16.msra.mxu0 %v10890
    %11060 = vmatprep.subr.bf16.mxu0 %v10883
    %11061 = vmatpush1.bf16.msra.mxu0 %v10882
    %11062 = vmatprep.subr.bf16.mxu0 %v10875
    %11063 = vmatpush1.bf16.msra.mxu0 %v10874
    %11064 = vmatprep.subr.bf16.mxu0 %v10867
    %11065 = vmatpush1.bf16.msra.mxu0 %v10866
    %11066 = vmatprep.subr.bf16.mxu0 0
    %11067 = vmatpush2.bf16.msra.mxu0 0
    %11068 = vmatprep.subr.bf16.mxu0 0
    %11069 = vmatpush2.bf16.msra.mxu0 0
    %11070 = vmatprep.subr.bf16.mxu0 0
    %11071 = vmatpush2.bf16.msra.mxu0 0
    %11072 = vmatprep.subr.bf16.mxu0 0
    %11073 = vmatpush2.bf16.msra.mxu0 0
    %11074 = vmatprep.subr.bf16.mxu0 0
    %11075 = vmatpush2.bf16.msra.mxu0 0
    %11076 = vmatprep.subr.bf16.mxu0 0
    %11077 = vmatpush2.bf16.msra.mxu0 0
    %11078 = vmatprep.subr.bf16.mxu0 0
    %11079 = vmatpush2.bf16.msra.mxu0 0
    %11080 = vmatprep.subr.bf16.mxu0 0
    %11081 = vmatpush2.bf16.msra.mxu0 0
    %11082 = vmatprep.mubr.bf16.mxu0 0
    %11083 = vmatmul.mubr.bf16.gmra.mxu0 %v10925
    %v11084 = vpop.f32.mrf.mxu0
    %v11085 = vadd.f32 0.0, %v11084
    %v11086 = vpop.f32.mrf.mxu0
    %v11087 = vadd.f32 0.0, %v11086
    %v11088 = vpop.f32.mrf.mxu0
    %v11089 = vpop.f32.mrf.mxu0
    %11090 = vdwg.mxu0
    %v11091 = vadd.f32 %v10755, %v10962
    %v11092 = vadd.f32 %v10756, %v10964
    %v11093 = vadd.f32 %v10757, %v11003
    %v11094 = vadd.f32 %v10758, %v11005
    %v11095 = vadd.f32 %v10759, %v11044
    %v11096 = vadd.f32 %v10760, %v11046
    %v11097 = vadd.f32 %v10761, %v11085
    %v11098 = vadd.f32 %v10762, %v11087
    %v11099 = vpack.c.bf16 %v5897, %v5897
    %v11132 = vunpack.c.l.b16 %v6347
    %v11133 = vunpack.c.h.b16 %v6347
    %v11134 = vunpack.c.l.b16 %v6348
    %v11135 = vunpack.c.h.b16 %v6348
    %v11136 = vunpack.c.l.b16 %v6349
    %v11137 = vunpack.c.h.b16 %v6349
    %v11138 = vunpack.c.l.b16 %v6350
    %v11139 = vunpack.c.h.b16 %v6350
    %v11140 = vunpack.c.l.b16 %v6351
    %v11141 = vunpack.c.h.b16 %v6351
    %v11142 = vunpack.c.l.b16 %v6352
    %v11143 = vunpack.c.h.b16 %v6352
    %v11144 = vunpack.c.l.b16 %v6353
    %v11145 = vunpack.c.h.b16 %v6353
    %v11146 = vunpack.c.l.b16 %v6354
    %v11147 = vunpack.c.h.b16 %v6354
    %v11148 = vunpack.c.l.b16 %v6355
    %v11149 = vunpack.c.h.b16 %v6355
    %v11150 = vunpack.c.l.b16 %v6356
    %v11151 = vunpack.c.h.b16 %v6356
    %v11152 = vunpack.c.l.b16 %v6357
    %v11153 = vunpack.c.h.b16 %v6357
    %v11154 = vunpack.c.l.b16 %v6358
    %v11155 = vunpack.c.h.b16 %v6358
    %v11156 = vunpack.c.l.b16 %v6359
    %v11157 = vunpack.c.h.b16 %v6359
    %v11158 = vunpack.c.l.b16 %v6360
    %v11159 = vunpack.c.h.b16 %v6360
    %v11160 = vunpack.c.l.b16 %v6361
    %v11161 = vunpack.c.h.b16 %v6361
    %v11162 = vunpack.c.l.b16 %v6362
    %v11163 = vunpack.c.h.b16 %v6362
    %v11164 = vunpack.c.l.b16 %v6363
    %v11165 = vunpack.c.h.b16 %v6363
    %v11166 = vunpack.c.l.b16 %v6364
    %v11167 = vunpack.c.h.b16 %v6364
    %v11168 = vunpack.c.l.b16 %v6365
    %v11169 = vunpack.c.h.b16 %v6365
    %v11170 = vunpack.c.l.b16 %v6366
    %v11171 = vunpack.c.h.b16 %v6366
    %v11172 = vunpack.c.l.b16 %v6367
    %v11173 = vunpack.c.h.b16 %v6367
    %v11174 = vunpack.c.l.b16 %v6368
    %v11175 = vunpack.c.h.b16 %v6368
    %v11176 = vunpack.c.l.b16 %v6369
    %v11177 = vunpack.c.h.b16 %v6369
    %v11178 = vunpack.c.l.b16 %v6370
    %v11179 = vunpack.c.h.b16 %v6370
    %v11180 = vunpack.c.l.b16 %v6371
    %v11181 = vunpack.c.h.b16 %v6371
    %v11182 = vunpack.c.l.b16 %v6372
    %v11183 = vunpack.c.h.b16 %v6372
    %v11184 = vunpack.c.l.b16 %v6373
    %v11185 = vunpack.c.h.b16 %v6373
    %v11186 = vunpack.c.l.b16 %v6374
    %v11187 = vunpack.c.h.b16 %v6374
    %v11188 = vunpack.c.l.b16 %v6375
    %v11189 = vunpack.c.h.b16 %v6375
    %v11190 = vunpack.c.l.b16 %v6376
    %v11191 = vunpack.c.h.b16 %v6376
    %v11192 = vunpack.c.l.b16 %v6377
    %v11193 = vunpack.c.h.b16 %v6377
    %v11194 = vunpack.c.l.b16 %v6378
    %v11195 = vunpack.c.h.b16 %v6378
    %v11196 = vpack.c.b16 %v11140, %v11132
    %v11197 = vpack.c.b16 %v11141, %v11133
    %v11198 = vpack.c.b16 %v11142, %v11134
    %v11199 = vpack.c.b16 %v11143, %v11135
    %v11200 = vpack.c.b16 %v11144, %v11136
    %v11201 = vpack.c.b16 %v11145, %v11137
    %v11202 = vpack.c.b16 %v11146, %v11138
    %v11203 = vpack.c.b16 %v11147, %v11139
    %v11204 = vpack.c.b16 %v11156, %v11148
    %v11205 = vpack.c.b16 %v11157, %v11149
    %v11206 = vpack.c.b16 %v11158, %v11150
    %v11207 = vpack.c.b16 %v11159, %v11151
    %v11208 = vpack.c.b16 %v11160, %v11152
    %v11209 = vpack.c.b16 %v11161, %v11153
    %v11210 = vpack.c.b16 %v11162, %v11154
    %v11211 = vpack.c.b16 %v11163, %v11155
    %v11212 = vpack.c.b16 %v11172, %v11164
    %v11213 = vpack.c.b16 %v11173, %v11165
    %v11214 = vpack.c.b16 %v11174, %v11166
    %v11215 = vpack.c.b16 %v11175, %v11167
    %v11216 = vpack.c.b16 %v11176, %v11168
    %v11217 = vpack.c.b16 %v11177, %v11169
    %v11218 = vpack.c.b16 %v11178, %v11170
    %v11219 = vpack.c.b16 %v11179, %v11171
    %v11220 = vpack.c.b16 %v11188, %v11180
    %v11221 = vpack.c.b16 %v11189, %v11181
    %v11222 = vpack.c.b16 %v11190, %v11182
    %v11223 = vpack.c.b16 %v11191, %v11183
    %v11224 = vpack.c.b16 %v11192, %v11184
    %v11225 = vpack.c.b16 %v11193, %v11185
    %v11226 = vpack.c.b16 %v11194, %v11186
    %v11227 = vpack.c.b16 %v11195, %v11187
    %v11261 = vsel %vm2168, %v11099, 0
    %11263 = vmatprep.subr.bf16.mxu0 0
    %11264 = vmatpush1.bf16.msra.mxu0 0
    %11265 = vmatprep.subr.bf16.mxu0 0
    %11266 = vmatpush1.bf16.msra.mxu0 0
    %11267 = vmatprep.subr.bf16.mxu0 0
    %11268 = vmatpush1.bf16.msra.mxu0 0
    %11269 = vmatprep.subr.bf16.mxu0 0
    %11270 = vmatpush1.bf16.msra.mxu0 0
    %11271 = vmatprep.subr.bf16.mxu0 %v11221
    %11272 = vmatpush1.bf16.msra.mxu0 %v11220
    %11273 = vmatprep.subr.bf16.mxu0 %v11213
    %11274 = vmatpush1.bf16.msra.mxu0 %v11212
    %11275 = vmatprep.subr.bf16.mxu0 %v11205
    %11276 = vmatpush1.bf16.msra.mxu0 %v11204
    %11277 = vmatprep.subr.bf16.mxu0 %v11197
    %11278 = vmatpush1.bf16.msra.mxu0 %v11196
    %11279 = vmatprep.subr.bf16.mxu0 0
    %11280 = vmatpush2.bf16.msra.mxu0 0
    %11281 = vmatprep.subr.bf16.mxu0 0
    %11282 = vmatpush2.bf16.msra.mxu0 0
    %11283 = vmatprep.subr.bf16.mxu0 0
    %11284 = vmatpush2.bf16.msra.mxu0 0
    %11285 = vmatprep.subr.bf16.mxu0 0
    %11286 = vmatpush2.bf16.msra.mxu0 0
    %11287 = vmatprep.subr.bf16.mxu0 0
    %11288 = vmatpush2.bf16.msra.mxu0 0
    %11289 = vmatprep.subr.bf16.mxu0 0
    %11290 = vmatpush2.bf16.msra.mxu0 0
    %11291 = vmatprep.subr.bf16.mxu0 0
    %11292 = vmatpush2.bf16.msra.mxu0 0
    %11293 = vmatprep.subr.bf16.mxu0 0
    %11294 = vmatpush2.bf16.msra.mxu0 0
    %11295 = vmatprep.mubr.bf16.mxu0 0
    %11296 = vmatmul.mubr.bf16.gmra.mxu0 %v11261
    %v11297 = vpop.f32.mrf.mxu0
    %v11298 = vadd.f32 0.0, %v11297
    %v11299 = vpop.f32.mrf.mxu0
    %v11300 = vadd.f32 0.0, %v11299
    %v11301 = vpop.f32.mrf.mxu0
    %v11302 = vpop.f32.mrf.mxu0
    %11303 = vdwg.mxu0
    %11304 = vmatprep.subr.bf16.mxu0 0
    %11305 = vmatpush1.bf16.msra.mxu0 0
    %11306 = vmatprep.subr.bf16.mxu0 0
    %11307 = vmatpush1.bf16.msra.mxu0 0
    %11308 = vmatprep.subr.bf16.mxu0 0
    %11309 = vmatpush1.bf16.msra.mxu0 0
    %11310 = vmatprep.subr.bf16.mxu0 0
    %11311 = vmatpush1.bf16.msra.mxu0 0
    %11312 = vmatprep.subr.bf16.mxu0 %v11223
    %11313 = vmatpush1.bf16.msra.mxu0 %v11222
    %11314 = vmatprep.subr.bf16.mxu0 %v11215
    %11315 = vmatpush1.bf16.msra.mxu0 %v11214
    %11316 = vmatprep.subr.bf16.mxu0 %v11207
    %11317 = vmatpush1.bf16.msra.mxu0 %v11206
    %11318 = vmatprep.subr.bf16.mxu0 %v11199
    %11319 = vmatpush1.bf16.msra.mxu0 %v11198
    %11320 = vmatprep.subr.bf16.mxu0 0
    %11321 = vmatpush2.bf16.msra.mxu0 0
    %11322 = vmatprep.subr.bf16.mxu0 0
    %11323 = vmatpush2.bf16.msra.mxu0 0
    %11324 = vmatprep.subr.bf16.mxu0 0
    %11325 = vmatpush2.bf16.msra.mxu0 0
    %11326 = vmatprep.subr.bf16.mxu0 0
    %11327 = vmatpush2.bf16.msra.mxu0 0
    %11328 = vmatprep.subr.bf16.mxu0 0
    %11329 = vmatpush2.bf16.msra.mxu0 0
    %11330 = vmatprep.subr.bf16.mxu0 0
    %11331 = vmatpush2.bf16.msra.mxu0 0
    %11332 = vmatprep.subr.bf16.mxu0 0
    %11333 = vmatpush2.bf16.msra.mxu0 0
    %11334 = vmatprep.subr.bf16.mxu0 0
    %11335 = vmatpush2.bf16.msra.mxu0 0
    %11336 = vmatprep.mubr.bf16.mxu0 0
    %11337 = vmatmul.mubr.bf16.gmra.mxu0 %v11261
    %v11338 = vpop.f32.mrf.mxu0
    %v11339 = vadd.f32 0.0, %v11338
    %v11340 = vpop.f32.mrf.mxu0
    %v11341 = vadd.f32 0.0, %v11340
    %v11342 = vpop.f32.mrf.mxu0
    %v11343 = vpop.f32.mrf.mxu0
    %11344 = vdwg.mxu0
    %11345 = vmatprep.subr.bf16.mxu0 0
    %11346 = vmatpush1.bf16.msra.mxu0 0
    %11347 = vmatprep.subr.bf16.mxu0 0
    %11348 = vmatpush1.bf16.msra.mxu0 0
    %11349 = vmatprep.subr.bf16.mxu0 0
    %11350 = vmatpush1.bf16.msra.mxu0 0
    %11351 = vmatprep.subr.bf16.mxu0 0
    %11352 = vmatpush1.bf16.msra.mxu0 0
    %11353 = vmatprep.subr.bf16.mxu0 %v11225
    %11354 = vmatpush1.bf16.msra.mxu0 %v11224
    %11355 = vmatprep.subr.bf16.mxu0 %v11217
    %11356 = vmatpush1.bf16.msra.mxu0 %v11216
    %11357 = vmatprep.subr.bf16.mxu0 %v11209
    %11358 = vmatpush1.bf16.msra.mxu0 %v11208
    %11359 = vmatprep.subr.bf16.mxu0 %v11201
    %11360 = vmatpush1.bf16.msra.mxu0 %v11200
    %11361 = vmatprep.subr.bf16.mxu0 0
    %11362 = vmatpush2.bf16.msra.mxu0 0
    %11363 = vmatprep.subr.bf16.mxu0 0
    %11364 = vmatpush2.bf16.msra.mxu0 0
    %11365 = vmatprep.subr.bf16.mxu0 0
    %11366 = vmatpush2.bf16.msra.mxu0 0
    %11367 = vmatprep.subr.bf16.mxu0 0
    %11368 = vmatpush2.bf16.msra.mxu0 0
    %11369 = vmatprep.subr.bf16.mxu0 0
    %11370 = vmatpush2.bf16.msra.mxu0 0
    %11371 = vmatprep.subr.bf16.mxu0 0
    %11372 = vmatpush2.bf16.msra.mxu0 0
    %11373 = vmatprep.subr.bf16.mxu0 0
    %11374 = vmatpush2.bf16.msra.mxu0 0
    %11375 = vmatprep.subr.bf16.mxu0 0
    %11376 = vmatpush2.bf16.msra.mxu0 0
    %11377 = vmatprep.mubr.bf16.mxu0 0
    %11378 = vmatmul.mubr.bf16.gmra.mxu0 %v11261
    %v11379 = vpop.f32.mrf.mxu0
    %v11380 = vadd.f32 0.0, %v11379
    %v11381 = vpop.f32.mrf.mxu0
    %v11382 = vadd.f32 0.0, %v11381
    %v11383 = vpop.f32.mrf.mxu0
    %v11384 = vpop.f32.mrf.mxu0
    %11385 = vdwg.mxu0
    %11386 = vmatprep.subr.bf16.mxu0 0
    %11387 = vmatpush1.bf16.msra.mxu0 0
    %11388 = vmatprep.subr.bf16.mxu0 0
    %11389 = vmatpush1.bf16.msra.mxu0 0
    %11390 = vmatprep.subr.bf16.mxu0 0
    %11391 = vmatpush1.bf16.msra.mxu0 0
    %11392 = vmatprep.subr.bf16.mxu0 0
    %11393 = vmatpush1.bf16.msra.mxu0 0
    %11394 = vmatprep.subr.bf16.mxu0 %v11227
    %11395 = vmatpush1.bf16.msra.mxu0 %v11226
    %11396 = vmatprep.subr.bf16.mxu0 %v11219
    %11397 = vmatpush1.bf16.msra.mxu0 %v11218
    %11398 = vmatprep.subr.bf16.mxu0 %v11211
    %11399 = vmatpush1.bf16.msra.mxu0 %v11210
    %11400 = vmatprep.subr.bf16.mxu0 %v11203
    %11401 = vmatpush1.bf16.msra.mxu0 %v11202
    %11402 = vmatprep.subr.bf16.mxu0 0
    %11403 = vmatpush2.bf16.msra.mxu0 0
    %11404 = vmatprep.subr.bf16.mxu0 0
    %11405 = vmatpush2.bf16.msra.mxu0 0
    %11406 = vmatprep.subr.bf16.mxu0 0
    %11407 = vmatpush2.bf16.msra.mxu0 0
    %11408 = vmatprep.subr.bf16.mxu0 0
    %11409 = vmatpush2.bf16.msra.mxu0 0
    %11410 = vmatprep.subr.bf16.mxu0 0
    %11411 = vmatpush2.bf16.msra.mxu0 0
    %11412 = vmatprep.subr.bf16.mxu0 0
    %11413 = vmatpush2.bf16.msra.mxu0 0
    %11414 = vmatprep.subr.bf16.mxu0 0
    %11415 = vmatpush2.bf16.msra.mxu0 0
    %11416 = vmatprep.subr.bf16.mxu0 0
    %11417 = vmatpush2.bf16.msra.mxu0 0
    %11418 = vmatprep.mubr.bf16.mxu0 0
    %11419 = vmatmul.mubr.bf16.gmra.mxu0 %v11261
    %v11420 = vpop.f32.mrf.mxu0
    %v11421 = vadd.f32 0.0, %v11420
    %v11422 = vpop.f32.mrf.mxu0
    %v11423 = vadd.f32 0.0, %v11422
    %v11424 = vpop.f32.mrf.mxu0
    %v11425 = vpop.f32.mrf.mxu0
    %11426 = vdwg.mxu0
    %v11427 = vadd.f32 %v11091, %v11298
    %v11428 = vadd.f32 %v11092, %v11300
    %v11429 = vadd.f32 %v11093, %v11339
    %v11430 = vadd.f32 %v11094, %v11341
    %v11431 = vadd.f32 %v11095, %v11380
    %v11432 = vadd.f32 %v11096, %v11382
    %v11433 = vadd.f32 %v11097, %v11421
    %v11434 = vadd.f32 %v11098, %v11423
    %v11435 = vpack.c.bf16 %v5898, %v5898
    %v11468 = vunpack.c.l.b16 %v6379
    %v11469 = vunpack.c.h.b16 %v6379
    %v11470 = vunpack.c.l.b16 %v6380
    %v11471 = vunpack.c.h.b16 %v6380
    %v11472 = vunpack.c.l.b16 %v6381
    %v11473 = vunpack.c.h.b16 %v6381
    %v11474 = vunpack.c.l.b16 %v6382
    %v11475 = vunpack.c.h.b16 %v6382
    %v11476 = vunpack.c.l.b16 %v6383
    %v11477 = vunpack.c.h.b16 %v6383
    %v11478 = vunpack.c.l.b16 %v6384
    %v11479 = vunpack.c.h.b16 %v6384
    %v11480 = vunpack.c.l.b16 %v6385
    %v11481 = vunpack.c.h.b16 %v6385
    %v11482 = vunpack.c.l.b16 %v6386
    %v11483 = vunpack.c.h.b16 %v6386
    %v11484 = vunpack.c.l.b16 %v6387
    %v11485 = vunpack.c.h.b16 %v6387
    %v11486 = vunpack.c.l.b16 %v6388
    %v11487 = vunpack.c.h.b16 %v6388
    %v11488 = vunpack.c.l.b16 %v6389
    %v11489 = vunpack.c.h.b16 %v6389
    %v11490 = vunpack.c.l.b16 %v6390
    %v11491 = vunpack.c.h.b16 %v6390
    %v11492 = vunpack.c.l.b16 %v6391
    %v11493 = vunpack.c.h.b16 %v6391
    %v11494 = vunpack.c.l.b16 %v6392
    %v11495 = vunpack.c.h.b16 %v6392
    %v11496 = vunpack.c.l.b16 %v6393
    %v11497 = vunpack.c.h.b16 %v6393
    %v11498 = vunpack.c.l.b16 %v6394
    %v11499 = vunpack.c.h.b16 %v6394
    %v11500 = vunpack.c.l.b16 %v6395
    %v11501 = vunpack.c.h.b16 %v6395
    %v11502 = vunpack.c.l.b16 %v6396
    %v11503 = vunpack.c.h.b16 %v6396
    %v11504 = vunpack.c.l.b16 %v6397
    %v11505 = vunpack.c.h.b16 %v6397
    %v11506 = vunpack.c.l.b16 %v6398
    %v11507 = vunpack.c.h.b16 %v6398
    %v11508 = vunpack.c.l.b16 %v6399
    %v11509 = vunpack.c.h.b16 %v6399
    %v11510 = vunpack.c.l.b16 %v6400
    %v11511 = vunpack.c.h.b16 %v6400
    %v11512 = vunpack.c.l.b16 %v6401
    %v11513 = vunpack.c.h.b16 %v6401
    %v11514 = vunpack.c.l.b16 %v6402
    %v11515 = vunpack.c.h.b16 %v6402
    %v11516 = vunpack.c.l.b16 %v6403
    %v11517 = vunpack.c.h.b16 %v6403
    %v11518 = vunpack.c.l.b16 %v6404
    %v11519 = vunpack.c.h.b16 %v6404
    %v11520 = vunpack.c.l.b16 %v6405
    %v11521 = vunpack.c.h.b16 %v6405
    %v11522 = vunpack.c.l.b16 %v6406
    %v11523 = vunpack.c.h.b16 %v6406
    %v11524 = vunpack.c.l.b16 %v6407
    %v11525 = vunpack.c.h.b16 %v6407
    %v11526 = vunpack.c.l.b16 %v6408
    %v11527 = vunpack.c.h.b16 %v6408
    %v11528 = vunpack.c.l.b16 %v6409
    %v11529 = vunpack.c.h.b16 %v6409
    %v11530 = vunpack.c.l.b16 %v6410
    %v11531 = vunpack.c.h.b16 %v6410
    %v11532 = vpack.c.b16 %v11476, %v11468
    %v11533 = vpack.c.b16 %v11477, %v11469
    %v11534 = vpack.c.b16 %v11478, %v11470
    %v11535 = vpack.c.b16 %v11479, %v11471
    %v11536 = vpack.c.b16 %v11480, %v11472
    %v11537 = vpack.c.b16 %v11481, %v11473
    %v11538 = vpack.c.b16 %v11482, %v11474
    %v11539 = vpack.c.b16 %v11483, %v11475
    %v11540 = vpack.c.b16 %v11492, %v11484
    %v11541 = vpack.c.b16 %v11493, %v11485
    %v11542 = vpack.c.b16 %v11494, %v11486
    %v11543 = vpack.c.b16 %v11495, %v11487
    %v11544 = vpack.c.b16 %v11496, %v11488
    %v11545 = vpack.c.b16 %v11497, %v11489
    %v11546 = vpack.c.b16 %v11498, %v11490
    %v11547 = vpack.c.b16 %v11499, %v11491
    %v11548 = vpack.c.b16 %v11508, %v11500
    %v11549 = vpack.c.b16 %v11509, %v11501
    %v11550 = vpack.c.b16 %v11510, %v11502
    %v11551 = vpack.c.b16 %v11511, %v11503
    %v11552 = vpack.c.b16 %v11512, %v11504
    %v11553 = vpack.c.b16 %v11513, %v11505
    %v11554 = vpack.c.b16 %v11514, %v11506
    %v11555 = vpack.c.b16 %v11515, %v11507
    %v11556 = vpack.c.b16 %v11524, %v11516
    %v11557 = vpack.c.b16 %v11525, %v11517
    %v11558 = vpack.c.b16 %v11526, %v11518
    %v11559 = vpack.c.b16 %v11527, %v11519
    %v11560 = vpack.c.b16 %v11528, %v11520
    %v11561 = vpack.c.b16 %v11529, %v11521
    %v11562 = vpack.c.b16 %v11530, %v11522
    %v11563 = vpack.c.b16 %v11531, %v11523
    %v11597 = vsel %vm2168, %v11435, 0
    %11599 = vmatprep.subr.bf16.mxu0 0
    %11600 = vmatpush1.bf16.msra.mxu0 0
    %11601 = vmatprep.subr.bf16.mxu0 0
    %11602 = vmatpush1.bf16.msra.mxu0 0
    %11603 = vmatprep.subr.bf16.mxu0 0
    %11604 = vmatpush1.bf16.msra.mxu0 0
    %11605 = vmatprep.subr.bf16.mxu0 0
    %11606 = vmatpush1.bf16.msra.mxu0 0
    %11607 = vmatprep.subr.bf16.mxu0 %v11557
    %11608 = vmatpush1.bf16.msra.mxu0 %v11556
    %11609 = vmatprep.subr.bf16.mxu0 %v11549
    %11610 = vmatpush1.bf16.msra.mxu0 %v11548
    %11611 = vmatprep.subr.bf16.mxu0 %v11541
    %11612 = vmatpush1.bf16.msra.mxu0 %v11540
    %11613 = vmatprep.subr.bf16.mxu0 %v11533
    %11614 = vmatpush1.bf16.msra.mxu0 %v11532
    %11615 = vmatprep.subr.bf16.mxu0 0
    %11616 = vmatpush2.bf16.msra.mxu0 0
    %11617 = vmatprep.subr.bf16.mxu0 0
    %11618 = vmatpush2.bf16.msra.mxu0 0
    %11619 = vmatprep.subr.bf16.mxu0 0
    %11620 = vmatpush2.bf16.msra.mxu0 0
    %11621 = vmatprep.subr.bf16.mxu0 0
    %11622 = vmatpush2.bf16.msra.mxu0 0
    %11623 = vmatprep.subr.bf16.mxu0 0
    %11624 = vmatpush2.bf16.msra.mxu0 0
    %11625 = vmatprep.subr.bf16.mxu0 0
    %11626 = vmatpush2.bf16.msra.mxu0 0
    %11627 = vmatprep.subr.bf16.mxu0 0
    %11628 = vmatpush2.bf16.msra.mxu0 0
    %11629 = vmatprep.subr.bf16.mxu0 0
    %11630 = vmatpush2.bf16.msra.mxu0 0
    %11631 = vmatprep.mubr.bf16.mxu0 0
    %11632 = vmatmul.mubr.bf16.gmra.mxu0 %v11597
    %v11633 = vpop.f32.mrf.mxu0
    %v11634 = vadd.f32 0.0, %v11633
    %v11635 = vpop.f32.mrf.mxu0
    %v11636 = vadd.f32 0.0, %v11635
    %v11637 = vpop.f32.mrf.mxu0
    %v11638 = vpop.f32.mrf.mxu0
    %11639 = vdwg.mxu0
    %11640 = vmatprep.subr.bf16.mxu0 0
    %11641 = vmatpush1.bf16.msra.mxu0 0
    %11642 = vmatprep.subr.bf16.mxu0 0
    %11643 = vmatpush1.bf16.msra.mxu0 0
    %11644 = vmatprep.subr.bf16.mxu0 0
    %11645 = vmatpush1.bf16.msra.mxu0 0
    %11646 = vmatprep.subr.bf16.mxu0 0
    %11647 = vmatpush1.bf16.msra.mxu0 0
    %11648 = vmatprep.subr.bf16.mxu0 %v11559
    %11649 = vmatpush1.bf16.msra.mxu0 %v11558
    %11650 = vmatprep.subr.bf16.mxu0 %v11551
    %11651 = vmatpush1.bf16.msra.mxu0 %v11550
    %11652 = vmatprep.subr.bf16.mxu0 %v11543
    %11653 = vmatpush1.bf16.msra.mxu0 %v11542
    %11654 = vmatprep.subr.bf16.mxu0 %v11535
    %11655 = vmatpush1.bf16.msra.mxu0 %v11534
    %11656 = vmatprep.subr.bf16.mxu0 0
    %11657 = vmatpush2.bf16.msra.mxu0 0
    %11658 = vmatprep.subr.bf16.mxu0 0
    %11659 = vmatpush2.bf16.msra.mxu0 0
    %11660 = vmatprep.subr.bf16.mxu0 0
    %11661 = vmatpush2.bf16.msra.mxu0 0
    %11662 = vmatprep.subr.bf16.mxu0 0
    %11663 = vmatpush2.bf16.msra.mxu0 0
    %11664 = vmatprep.subr.bf16.mxu0 0
    %11665 = vmatpush2.bf16.msra.mxu0 0
    %11666 = vmatprep.subr.bf16.mxu0 0
    %11667 = vmatpush2.bf16.msra.mxu0 0
    %11668 = vmatprep.subr.bf16.mxu0 0
    %11669 = vmatpush2.bf16.msra.mxu0 0
    %11670 = vmatprep.subr.bf16.mxu0 0
    %11671 = vmatpush2.bf16.msra.mxu0 0
    %11672 = vmatprep.mubr.bf16.mxu0 0
    %11673 = vmatmul.mubr.bf16.gmra.mxu0 %v11597
    %v11674 = vpop.f32.mrf.mxu0
    %v11675 = vadd.f32 0.0, %v11674
    %v11676 = vpop.f32.mrf.mxu0
    %v11677 = vadd.f32 0.0, %v11676
    %v11678 = vpop.f32.mrf.mxu0
    %v11679 = vpop.f32.mrf.mxu0
    %11680 = vdwg.mxu0
    %11681 = vmatprep.subr.bf16.mxu0 0
    %11682 = vmatpush1.bf16.msra.mxu0 0
    %11683 = vmatprep.subr.bf16.mxu0 0
    %11684 = vmatpush1.bf16.msra.mxu0 0
    %11685 = vmatprep.subr.bf16.mxu0 0
    %11686 = vmatpush1.bf16.msra.mxu0 0
    %11687 = vmatprep.subr.bf16.mxu0 0
    %11688 = vmatpush1.bf16.msra.mxu0 0
    %11689 = vmatprep.subr.bf16.mxu0 %v11561
    %11690 = vmatpush1.bf16.msra.mxu0 %v11560
    %11691 = vmatprep.subr.bf16.mxu0 %v11553
    %11692 = vmatpush1.bf16.msra.mxu0 %v11552
    %11693 = vmatprep.subr.bf16.mxu0 %v11545
    %11694 = vmatpush1.bf16.msra.mxu0 %v11544
    %11695 = vmatprep.subr.bf16.mxu0 %v11537
    %11696 = vmatpush1.bf16.msra.mxu0 %v11536
    %11697 = vmatprep.subr.bf16.mxu0 0
    %11698 = vmatpush2.bf16.msra.mxu0 0
    %11699 = vmatprep.subr.bf16.mxu0 0
    %11700 = vmatpush2.bf16.msra.mxu0 0
    %11701 = vmatprep.subr.bf16.mxu0 0
    %11702 = vmatpush2.bf16.msra.mxu0 0
    %11703 = vmatprep.subr.bf16.mxu0 0
    %11704 = vmatpush2.bf16.msra.mxu0 0
    %11705 = vmatprep.subr.bf16.mxu0 0
    %11706 = vmatpush2.bf16.msra.mxu0 0
    %11707 = vmatprep.subr.bf16.mxu0 0
    %11708 = vmatpush2.bf16.msra.mxu0 0
    %11709 = vmatprep.subr.bf16.mxu0 0
    %11710 = vmatpush2.bf16.msra.mxu0 0
    %11711 = vmatprep.subr.bf16.mxu0 0
    %11712 = vmatpush2.bf16.msra.mxu0 0
    %11713 = vmatprep.mubr.bf16.mxu0 0
    %11714 = vmatmul.mubr.bf16.gmra.mxu0 %v11597
    %v11715 = vpop.f32.mrf.mxu0
    %v11716 = vadd.f32 0.0, %v11715
    %v11717 = vpop.f32.mrf.mxu0
    %v11718 = vadd.f32 0.0, %v11717
    %v11719 = vpop.f32.mrf.mxu0
    %v11720 = vpop.f32.mrf.mxu0
    %11721 = vdwg.mxu0
    %11722 = vmatprep.subr.bf16.mxu0 0
    %11723 = vmatpush1.bf16.msra.mxu0 0
    %11724 = vmatprep.subr.bf16.mxu0 0
    %11725 = vmatpush1.bf16.msra.mxu0 0
    %11726 = vmatprep.subr.bf16.mxu0 0
    %11727 = vmatpush1.bf16.msra.mxu0 0
    %11728 = vmatprep.subr.bf16.mxu0 0
    %11729 = vmatpush1.bf16.msra.mxu0 0
    %11730 = vmatprep.subr.bf16.mxu0 %v11563
    %11731 = vmatpush1.bf16.msra.mxu0 %v11562
    %11732 = vmatprep.subr.bf16.mxu0 %v11555
    %11733 = vmatpush1.bf16.msra.mxu0 %v11554
    %11734 = vmatprep.subr.bf16.mxu0 %v11547
    %11735 = vmatpush1.bf16.msra.mxu0 %v11546
    %11736 = vmatprep.subr.bf16.mxu0 %v11539
    %11737 = vmatpush1.bf16.msra.mxu0 %v11538
    %11738 = vmatprep.subr.bf16.mxu0 0
    %11739 = vmatpush2.bf16.msra.mxu0 0
    %11740 = vmatprep.subr.bf16.mxu0 0
    %11741 = vmatpush2.bf16.msra.mxu0 0
    %11742 = vmatprep.subr.bf16.mxu0 0
    %11743 = vmatpush2.bf16.msra.mxu0 0
    %11744 = vmatprep.subr.bf16.mxu0 0
    %11745 = vmatpush2.bf16.msra.mxu0 0
    %11746 = vmatprep.subr.bf16.mxu0 0
    %11747 = vmatpush2.bf16.msra.mxu0 0
    %11748 = vmatprep.subr.bf16.mxu0 0
    %11749 = vmatpush2.bf16.msra.mxu0 0
    %11750 = vmatprep.subr.bf16.mxu0 0
    %11751 = vmatpush2.bf16.msra.mxu0 0
    %11752 = vmatprep.subr.bf16.mxu0 0
    %11753 = vmatpush2.bf16.msra.mxu0 0
    %11754 = vmatprep.mubr.bf16.mxu0 0
    %11755 = vmatmul.mubr.bf16.gmra.mxu0 %v11597
    %v11756 = vpop.f32.mrf.mxu0
    %v11757 = vadd.f32 0.0, %v11756
    %v11758 = vpop.f32.mrf.mxu0
    %v11759 = vadd.f32 0.0, %v11758
    %v11760 = vpop.f32.mrf.mxu0
    %v11761 = vpop.f32.mrf.mxu0
    %11762 = vdwg.mxu0
    %v11763 = vadd.f32 %v11427, %v11634
    %v11764 = vadd.f32 %v11428, %v11636
    %v11765 = vadd.f32 %v11429, %v11675
    %v11766 = vadd.f32 %v11430, %v11677
    %v11767 = vadd.f32 %v11431, %v11716
    %v11768 = vadd.f32 %v11432, %v11718
    %v11769 = vadd.f32 %v11433, %v11757
    %v11770 = vadd.f32 %v11434, %v11759
    %v11771 = vld [vmem:[#allocation14] sm:$0xff]
    %v11773 = vlaneseq
    %v11774 = vshrl.u32 %v11773, 7
    %v11775 = vsub.s32 0, %v11774
    %v11776 = vrot.slane %v11771, %v11775
    %v11777 = vlaneseq
    %v11778 = vshrl.u32 %v11777, 7
    %v11779 = vsub.s32 1, %v11778
    %v11780 = vrot.slane %v11771, %v11779
    %v11781 = vlaneseq
    %v11782 = vshrl.u32 %v11781, 7
    %v11783 = vsub.s32 2, %v11782
    %v11784 = vrot.slane %v11771, %v11783
    %v11785 = vlaneseq
    %v11786 = vshrl.u32 %v11785, 7
    %v11787 = vsub.s32 3, %v11786
    %v11788 = vrot.slane %v11771, %v11787
    %v11789 = vlaneseq
    %v11790 = vshrl.u32 %v11789, 7
    %v11791 = vsub.s32 4, %v11790
    %v11792 = vrot.slane %v11771, %v11791
    %v11793 = vlaneseq
    %v11794 = vshrl.u32 %v11793, 7
    %v11795 = vsub.s32 5, %v11794
    %v11796 = vrot.slane %v11771, %v11795
    %v11797 = vlaneseq
    %v11798 = vshrl.u32 %v11797, 7
    %v11799 = vsub.s32 6, %v11798
    %v11800 = vrot.slane %v11771, %v11799
    %v11801 = vlaneseq
    %v11802 = vshrl.u32 %v11801, 7
    %v11803 = vsub.s32 7, %v11802
    %v11804 = vrot.slane %v11771, %v11803
    %v11813 = vmul.f32 %v11763, %v11776
    %v11814 = vmul.f32 %v11764, %v11780
    %v11815 = vmul.f32 %v11765, %v11784
    %v11816 = vmul.f32 %v11766, %v11788
    %v11817 = vmul.f32 %v11767, %v11792
    %v11818 = vmul.f32 %v11768, %v11796
    %v11819 = vmul.f32 %v11769, %v11800
    %v11820 = vmul.f32 %v11770, %v11804
    %v11821 = vld [vmem:[#allocation16] sm:$0xff]
    %v11823 = vlaneseq
    %v11824 = vshrl.u32 %v11823, 7
    %v11825 = vsub.s32 0, %v11824
    %v11826 = vrot.slane %v11821, %v11825
    %v11827 = vlaneseq
    %v11828 = vshrl.u32 %v11827, 7
    %v11829 = vsub.s32 1, %v11828
    %v11830 = vrot.slane %v11821, %v11829
    %v11831 = vlaneseq
    %v11832 = vshrl.u32 %v11831, 7
    %v11833 = vsub.s32 2, %v11832
    %v11834 = vrot.slane %v11821, %v11833
    %v11835 = vlaneseq
    %v11836 = vshrl.u32 %v11835, 7
    %v11837 = vsub.s32 3, %v11836
    %v11838 = vrot.slane %v11821, %v11837
    %v11839 = vlaneseq
    %v11840 = vshrl.u32 %v11839, 7
    %v11841 = vsub.s32 4, %v11840
    %v11842 = vrot.slane %v11821, %v11841
    %v11843 = vlaneseq
    %v11844 = vshrl.u32 %v11843, 7
    %v11845 = vsub.s32 5, %v11844
    %v11846 = vrot.slane %v11821, %v11845
    %v11847 = vlaneseq
    %v11848 = vshrl.u32 %v11847, 7
    %v11849 = vsub.s32 6, %v11848
    %v11850 = vrot.slane %v11821, %v11849
    %v11851 = vlaneseq
    %v11852 = vshrl.u32 %v11851, 7
    %v11853 = vsub.s32 7, %v11852
    %v11854 = vrot.slane %v11821, %v11853
    %v11863 = vadd.f32 %v11813, %v11826
    %v11864 = vadd.f32 %v11814, %v11830
    %v11865 = vadd.f32 %v11815, %v11834
    %v11866 = vadd.f32 %v11816, %v11838
    %v11867 = vadd.f32 %v11817, %v11842
    %v11868 = vadd.f32 %v11818, %v11846
    %v11869 = vadd.f32 %v11819, %v11850
    %v11870 = vadd.f32 %v11820, %v11854
    %v11871 = vmax.f32 %v11863, 0.0
    %v11872 = vmax.f32 %v11864, 0.0
    %v11873 = vmax.f32 %v11865, 0.0
    %v11874 = vmax.f32 %v11866, 0.0
    %v11875 = vmax.f32 %v11867, 0.0
    %v11876 = vmax.f32 %v11868, 0.0
    %v11877 = vmax.f32 %v11869, 0.0
    %v11878 = vmax.f32 %v11870, 0.0
    %v11879 = vmax.f32 %v11871, %v11873
    %v11880 = vmax.f32 %v11872, %v11874
    %v11881 = vmax.f32 %v11875, %v11877
    %v11882 = vmax.f32 %v11876, %v11878
    %v11883 = vmax.f32 %v11879, %v11881
    %v11884 = vmax.f32 %v11880, %v11882
    %v11885 = vpack.c.bf16 %v11883, %v11883
    %v11886 = vpack.c.bf16 %v11884, %v11884
    %v11887 = vld [vmem:[#allocation17] sm:$0xff]
    %v11888 = vld [vmem:[#allocation17 + $0x8] sm:$0xff]
    %v11889 = vld [vmem:[#allocation17 + $0x10] sm:$0xff]
    %v11890 = vld [vmem:[#allocation17 + $0x18] sm:$0xff]
    %v11891 = vld [vmem:[#allocation17 + $0x20] sm:$0xff]
    %v11892 = vld [vmem:[#allocation17 + $0x28] sm:$0xff]
    %v11893 = vld [vmem:[#allocation17 + $0x30] sm:$0xff]
    %v11894 = vld [vmem:[#allocation17 + $0x38] sm:$0xff]
    %v11895 = vld [vmem:[#allocation17 + $0x40] sm:$0xff]
    %v11896 = vld [vmem:[#allocation17 + $0x48] sm:$0xff]
    %v11897 = vld [vmem:[#allocation17 + $0x50] sm:$0xff]
    %v11898 = vld [vmem:[#allocation17 + $0x58] sm:$0xff]
    %v11899 = vld [vmem:[#allocation17 + $0x60] sm:$0xff]
    %v11900 = vld [vmem:[#allocation17 + $0x68] sm:$0xff]
    %v11901 = vld [vmem:[#allocation17 + $0x70] sm:$0xff]
    %v11902 = vld [vmem:[#allocation17 + $0x78] sm:$0xff]
    %v11903 = vld [vmem:[#allocation17 + $0x80] sm:$0xff]
    %v11904 = vld [vmem:[#allocation17 + $0x88] sm:$0xff]
    %v11905 = vld [vmem:[#allocation17 + $0x90] sm:$0xff]
    %v11906 = vld [vmem:[#allocation17 + $0x98] sm:$0xff]
    %v11907 = vld [vmem:[#allocation17 + $0xa0] sm:$0xff]
    %v11908 = vld [vmem:[#allocation17 + $0xa8] sm:$0xff]
    %v11909 = vld [vmem:[#allocation17 + $0xb0] sm:$0xff]
    %v11910 = vld [vmem:[#allocation17 + $0xb8] sm:$0xff]
    %v11911 = vld [vmem:[#allocation17 + $0xc0] sm:$0xff]
    %v11912 = vld [vmem:[#allocation17 + $0xc8] sm:$0xff]
    %v11913 = vld [vmem:[#allocation17 + $0xd0] sm:$0xff]
    %v11914 = vld [vmem:[#allocation17 + $0xd8] sm:$0xff]
    %v11915 = vld [vmem:[#allocation17 + $0xe0] sm:$0xff]
    %v11916 = vld [vmem:[#allocation17 + $0xe8] sm:$0xff]
    %v11917 = vld [vmem:[#allocation17 + $0xf0] sm:$0xff]
    %v11918 = vld [vmem:[#allocation17 + $0xf8] sm:$0xff]
    %v11951 = vunpack.c.l.b16 %v11887
    %v11952 = vunpack.c.h.b16 %v11887
    %v11953 = vunpack.c.l.b16 %v11888
    %v11954 = vunpack.c.h.b16 %v11888
    %v11955 = vunpack.c.l.b16 %v11889
    %v11956 = vunpack.c.h.b16 %v11889
    %v11957 = vunpack.c.l.b16 %v11890
    %v11958 = vunpack.c.h.b16 %v11890
    %v11959 = vunpack.c.l.b16 %v11891
    %v11960 = vunpack.c.h.b16 %v11891
    %v11961 = vunpack.c.l.b16 %v11892
    %v11962 = vunpack.c.h.b16 %v11892
    %v11963 = vunpack.c.l.b16 %v11893
    %v11964 = vunpack.c.h.b16 %v11893
    %v11965 = vunpack.c.l.b16 %v11894
    %v11966 = vunpack.c.h.b16 %v11894
    %v11967 = vunpack.c.l.b16 %v11895
    %v11968 = vunpack.c.h.b16 %v11895
    %v11969 = vunpack.c.l.b16 %v11896
    %v11970 = vunpack.c.h.b16 %v11896
    %v11971 = vunpack.c.l.b16 %v11897
    %v11972 = vunpack.c.h.b16 %v11897
    %v11973 = vunpack.c.l.b16 %v11898
    %v11974 = vunpack.c.h.b16 %v11898
    %v11975 = vunpack.c.l.b16 %v11899
    %v11976 = vunpack.c.h.b16 %v11899
    %v11977 = vunpack.c.l.b16 %v11900
    %v11978 = vunpack.c.h.b16 %v11900
    %v11979 = vunpack.c.l.b16 %v11901
    %v11980 = vunpack.c.h.b16 %v11901
    %v11981 = vunpack.c.l.b16 %v11902
    %v11982 = vunpack.c.h.b16 %v11902
    %v11983 = vunpack.c.l.b16 %v11903
    %v11984 = vunpack.c.h.b16 %v11903
    %v11985 = vunpack.c.l.b16 %v11904
    %v11986 = vunpack.c.h.b16 %v11904
    %v11987 = vunpack.c.l.b16 %v11905
    %v11988 = vunpack.c.h.b16 %v11905
    %v11989 = vunpack.c.l.b16 %v11906
    %v11990 = vunpack.c.h.b16 %v11906
    %v11991 = vunpack.c.l.b16 %v11907
    %v11992 = vunpack.c.h.b16 %v11907
    %v11993 = vunpack.c.l.b16 %v11908
    %v11994 = vunpack.c.h.b16 %v11908
    %v11995 = vunpack.c.l.b16 %v11909
    %v11996 = vunpack.c.h.b16 %v11909
    %v11997 = vunpack.c.l.b16 %v11910
    %v11998 = vunpack.c.h.b16 %v11910
    %v11999 = vunpack.c.l.b16 %v11911
    %v12000 = vunpack.c.h.b16 %v11911
    %v12001 = vunpack.c.l.b16 %v11912
    %v12002 = vunpack.c.h.b16 %v11912
    %v12003 = vunpack.c.l.b16 %v11913
    %v12004 = vunpack.c.h.b16 %v11913
    %v12005 = vunpack.c.l.b16 %v11914
    %v12006 = vunpack.c.h.b16 %v11914
    %v12007 = vunpack.c.l.b16 %v11915
    %v12008 = vunpack.c.h.b16 %v11915
    %v12009 = vunpack.c.l.b16 %v11916
    %v12010 = vunpack.c.h.b16 %v11916
    %v12011 = vunpack.c.l.b16 %v11917
    %v12012 = vunpack.c.h.b16 %v11917
    %v12013 = vunpack.c.l.b16 %v11918
    %v12014 = vunpack.c.h.b16 %v11918
    %v12015 = vpack.c.b16 %v11953, %v11951
    %v12016 = vpack.c.b16 %v11954, %v11952
    %v12017 = vpack.c.b16 %v11957, %v11955
    %v12018 = vpack.c.b16 %v11958, %v11956
    %v12019 = vpack.c.b16 %v11961, %v11959
    %v12020 = vpack.c.b16 %v11962, %v11960
    %v12021 = vpack.c.b16 %v11965, %v11963
    %v12022 = vpack.c.b16 %v11966, %v11964
    %v12023 = vpack.c.b16 %v11969, %v11967
    %v12024 = vpack.c.b16 %v11970, %v11968
    %v12025 = vpack.c.b16 %v11973, %v11971
    %v12026 = vpack.c.b16 %v11974, %v11972
    %v12027 = vpack.c.b16 %v11977, %v11975
    %v12028 = vpack.c.b16 %v11978, %v11976
    %v12029 = vpack.c.b16 %v11981, %v11979
    %v12030 = vpack.c.b16 %v11982, %v11980
    %v12031 = vpack.c.b16 %v11985, %v11983
    %v12032 = vpack.c.b16 %v11986, %v11984
    %v12033 = vpack.c.b16 %v11989, %v11987
    %v12034 = vpack.c.b16 %v11990, %v11988
    %v12035 = vpack.c.b16 %v11993, %v11991
    %v12036 = vpack.c.b16 %v11994, %v11992
    %v12037 = vpack.c.b16 %v11997, %v11995
    %v12038 = vpack.c.b16 %v11998, %v11996
    %v12039 = vpack.c.b16 %v12001, %v11999
    %v12040 = vpack.c.b16 %v12002, %v12000
    %v12041 = vpack.c.b16 %v12005, %v12003
    %v12042 = vpack.c.b16 %v12006, %v12004
    %v12043 = vpack.c.b16 %v12009, %v12007
    %v12044 = vpack.c.b16 %v12010, %v12008
    %v12045 = vpack.c.b16 %v12013, %v12011
    %v12046 = vpack.c.b16 %v12014, %v12012
    %12079 = vmatprep.subr.bf16.mxu0 %v12030
    %12080 = vmatpush1.bf16.msra.mxu0 %v12029
    %12081 = vmatprep.subr.bf16.mxu0 %v12028
    %12082 = vmatpush1.bf16.msra.mxu0 %v12027
    %12083 = vmatprep.subr.bf16.mxu0 %v12026
    %12084 = vmatpush1.bf16.msra.mxu0 %v12025
    %12085 = vmatprep.subr.bf16.mxu0 %v12024
    %12086 = vmatpush1.bf16.msra.mxu0 %v12023
    %12087 = vmatprep.subr.bf16.mxu0 %v12022
    %12088 = vmatpush1.bf16.msra.mxu0 %v12021
    %12089 = vmatprep.subr.bf16.mxu0 %v12020
    %12090 = vmatpush1.bf16.msra.mxu0 %v12019
    %12091 = vmatprep.subr.bf16.mxu0 %v12018
    %12092 = vmatpush1.bf16.msra.mxu0 %v12017
    %12093 = vmatprep.subr.bf16.mxu0 %v12016
    %12094 = vmatpush1.bf16.msra.mxu0 %v12015
    %12095 = vmatprep.subr.bf16.mxu0 %v12046
    %12096 = vmatpush2.bf16.msra.mxu0 %v12045
    %12097 = vmatprep.subr.bf16.mxu0 %v12044
    %12098 = vmatpush2.bf16.msra.mxu0 %v12043
    %12099 = vmatprep.subr.bf16.mxu0 %v12042
    %12100 = vmatpush2.bf16.msra.mxu0 %v12041
    %12101 = vmatprep.subr.bf16.mxu0 %v12040
    %12102 = vmatpush2.bf16.msra.mxu0 %v12039
    %12103 = vmatprep.subr.bf16.mxu0 %v12038
    %12104 = vmatpush2.bf16.msra.mxu0 %v12037
    %12105 = vmatprep.subr.bf16.mxu0 %v12036
    %12106 = vmatpush2.bf16.msra.mxu0 %v12035
    %12107 = vmatprep.subr.bf16.mxu0 %v12034
    %12108 = vmatpush2.bf16.msra.mxu0 %v12033
    %12109 = vmatprep.subr.bf16.mxu0 %v12032
    %12110 = vmatpush2.bf16.msra.mxu0 %v12031
    %12111 = vmatprep.mubr.bf16.mxu0 %v11886
    %12112 = vmatmul.mubr.bf16.gmra.mxu0 %v11885
    %v12113 = vpop.f32.mrf.mxu0
    %v12114 = vadd.f32 0.0, %v12113
    %v12115 = vpop.f32.mrf.mxu0
    %v12116 = vadd.f32 0.0, %v12115
    %v12117 = vpop.f32.mrf.mxu0
    %v12118 = vpop.f32.mrf.mxu0
    %12119 = vdwg.mxu0
    %v12120 = vld [vmem:[#allocation19] sm:$0x3]
    %v12122 = vlaneseq
    %v12123 = vshrl.u32 %v12122, 7
    %v12124 = vsub.s32 0, %v12123
    %v12125 = vrot.slane %v12120, %v12124
    %v12126 = vlaneseq
    %v12127 = vshrl.u32 %v12126, 7
    %v12128 = vsub.s32 1, %v12127
    %v12129 = vrot.slane %v12120, %v12128
    %v12132 = vmul.f32 %v12114, %v12125
    %v12133 = vmul.f32 %v12116, %v12129
    %v12134 = vld [vmem:[#allocation20] sm:$0x3]
    %v12136 = vlaneseq
    %v12137 = vshrl.u32 %v12136, 7
    %v12138 = vsub.s32 0, %v12137
    %v12139 = vrot.slane %v12134, %v12138
    %v12140 = vlaneseq
    %v12141 = vshrl.u32 %v12140, 7
    %v12142 = vsub.s32 1, %v12141
    %v12143 = vrot.slane %v12134, %v12142
    %v12146 = vadd.f32 %v12132, %v12139
    %v12147 = vadd.f32 %v12133, %v12143
    %v12148 = vmax.f32 %v12146, 0.0
    %v12149 = vmax.f32 %v12147, 0.0
    %12151 = vrot.lane.b32.xlu0 %v12148, 64
    %v12152 = vpop.permute.xlu0 %12151
    %v12154 = vmax.f32 %v12148, %v12152
    %12156 = vrot.lane.b32.xlu0 %v12149, 64
    %v12157 = vpop.permute.xlu0 %12156
    %v12159 = vmax.f32 %v12149, %v12157
    %v12160 = vmax.f32 %v12154, %v12159
    %12161 = vst.msk [vmem:[#allocation22] sm:$0xff] %vm2168, %v12160
    // Predicated region
    $region102: #{tpu_custom_call.1} parent=1 // pred_check
      _
    $region103: #{tpu_custom_call.1} parent=1 // pred_check_branch
      %12163 = sbr.rel (0) target = $region105
    $region104: #{tpu_custom_call.1} parent=1 // pred_region
      %s12165 = ssub.s32 128, 128
      %12166 = vsyncadd [#allocation4], %s12165
      %s12168 = sshll.u32 [#allocation22], 4
      %s12169 = int_to_ptr.vmem [resolvable:$true] %s12168
      %12171 = dma.vmem_to_hbm [thread:$0]  %s12169, 128, %s13, [#allocation4]
    $region105: #{tpu_custom_call.1} parent=1 // pred_fallthru
      _
    // Predicated region
    $region106: #{tpu_custom_call.1} parent=1 // pred_check
      _
    $region107: #{tpu_custom_call.1} parent=1 // pred_check_branch
      %12173 = sbr.rel (0) target = $region109
    $region108: #{tpu_custom_call.1} parent=1 // pred_region
      %12174 = dma.done [#allocation4], 128
    $region109: #{tpu_custom_call.1} parent=1 // pred_fallthru
      _
    %12175 = vsyncpa [#allocation3], 1
    %12176 = vsyncpa [#allocation6], 1
    %12177 = vsyncpa [#allocation9], 1
    %12178 = vsyncpa [#allocation12], 1
    %12179 = vsyncpa [#allocation15], 1
    %12180 = vsyncpa [#allocation18], 1
    %12181 = vsyncpa [#allocation21], 1
    %12182 = vsyncpa [#allocation4], 1

</llo_original>
